<compile_context>
chip_gen: v5e
topology: v5e:2x2
jax: 0.10.0
libtpu: 0.0.40
codegen_flags: <defaults>
</compile_context>

<pallas_src>
import jax
import jax.numpy as jnp
from jax.experimental import pallas as pl
from jax.experimental.pallas import tpu as pltpu

# Full-precision matmuls everywhere so the kernel and the pure-JAX reference
# agree tightly (applies both to the in-kernel dots and the reference).
jax.config.update("jax_default_matmul_precision", "highest")

COV_SCALING = 0.8            # MDN cov_scaling_factor (module default)

# ---- MDN head geometry (fixed by the PyTorch module) -----------------------
PI_GROUPS = 440              # pi raw width = 3 * 440 = 1320
MU_RAW = 945                 # mu / sigma raw width (315 * 3)
LOC_RAW = 375                # loc / concentration raw width (125 * 3)

PI_W = 512                   # 440 padded to a lane multiple
PI_SEG = 3 * PI_W            # 1536
MU_PAD = 1024                # 945 -> 1024
LC_PAD = 384                 # 375 -> 384

MU_OFF = PI_SEG              # 1536
SG_OFF = MU_OFF + MU_PAD     # 2560
LC_OFF = SG_OFF + MU_PAD     # 3584
CC_OFF = LC_OFF + LC_PAD     # 3968
HEAD_W = CC_OFF + LC_PAD     # 4352 = 34 * 128   (latent segment starts here)


def _dot(a, b):
    return jnp.dot(a, b, preferred_element_type=jnp.float32,
                   precision=jax.lax.Precision.HIGHEST)


def _softplus(x):
    # Numerically stable softplus using only max/exp/log/abs.
    return jnp.maximum(x, 0.0) + jnp.log(1.0 + jnp.exp(-jnp.abs(x)))


# ---------------------------------------------------------------------------
# Kernel: fully fused Encoder + Decoder trunk + MDN head on one batch tile.
# ---------------------------------------------------------------------------
def _autoencoder_kernel(x_ref,
                        ew1, eb1, ew2, eb2, ew3, eb3, ew6, eb6,
                        dw1, db1, dw2, db2, dw3, db3,
                        mw1, mb1, wh, bh,
                        out_ref):
    x = x_ref[...]                                               # (tm, D)

    # ---- Encoder: tanh(fc1) -> tanh(fc2) -> tanh(fc3) -> fc6 ----
    h = jnp.tanh(_dot(x, ew1[...]) + eb1[...])                   # (tm, 256)
    h = jnp.tanh(_dot(h, ew2[...]) + eb2[...])                   # (tm, 64)
    h = jnp.tanh(_dot(h, ew3[...]) + eb3[...])                   # (tm, 8)
    z = _dot(h, ew6[...]) + eb6[...]                             # (tm, LAT_W), pad cols are 0
    out_ref[:, HEAD_W:] = z                                      # lane-dense latent store

    # ---- Decoder trunk: tanh(fc1) -> tanh(fc2) -> tanh(fc3) ----
    d = jnp.tanh(_dot(z, dw1[...]) + db1[...])                   # (tm, 8)
    d = jnp.tanh(_dot(d, dw2[...]) + db2[...])                   # (tm, 64)
    d = jnp.tanh(_dot(d, dw3[...]) + db3[...])                   # (tm, 256)

    # ---- MDN head: one fused matmul over the packed (50, 4352) weight ----
    fc = jnp.tanh(_dot(d, mw1[...]) + mb1[...])                  # (tm, 50)
    head = _dot(fc, wh[...]) + bh[...]                           # (tm, 4352)

    # pi: 3-way grouped softmax over three lane-dense 512-wide component blocks.
    p0 = head[:, 0 * PI_W:1 * PI_W]
    p1 = head[:, 1 * PI_W:2 * PI_W]
    p2 = head[:, 2 * PI_W:3 * PI_W]
    m = jnp.maximum(jnp.maximum(p0, p1), p2)
    e0 = jnp.exp(p0 - m)
    e1 = jnp.exp(p1 - m)
    e2 = jnp.exp(p2 - m)
    inv = 1.0 / (e0 + e1 + e2)
    out_ref[:, 0 * PI_W:1 * PI_W] = e0 * inv
    out_ref[:, 1 * PI_W:2 * PI_W] = e1 * inv
    out_ref[:, 2 * PI_W:3 * PI_W] = e2 * inv

    # mu / loc: identity pass-through.
    out_ref[:, MU_OFF:MU_OFF + MU_PAD] = head[:, MU_OFF:MU_OFF + MU_PAD]
    out_ref[:, LC_OFF:LC_OFF + LC_PAD] = head[:, LC_OFF:LC_OFF + LC_PAD]

    # sigma: sigmoid(x) * 0.8 == 0.4 * (tanh(x/2) + 1)  (single EUP op / elem).
    s = head[:, SG_OFF:SG_OFF + MU_PAD]
    out_ref[:, SG_OFF:SG_OFF + MU_PAD] = (0.5 * COV_SCALING) * (jnp.tanh(0.5 * s) + 1.0)

    # concentration: softplus.
    c = head[:, CC_OFF:CC_OFF + LC_PAD]
    out_ref[:, CC_OFF:CC_OFF + LC_PAD] = _softplus(c)


# ---------------------------------------------------------------------------
# Wrapper-side parameter packing (done once, outside the hot path).
# ---------------------------------------------------------------------------
def _pad_cols(a, width):
    return jnp.pad(a, ((0, 0), (0, width - a.shape[1])))


def pack_params(params, latent_dim):
    """Pack the 26 nn.Linear tensors into the 18 kernel arrays."""
    (ew1, eb1, ew2, eb2, ew3, eb3, ew6, eb6,
     dw1, db1, dw2, db2, dw3, db3,
     mw1, mb1, wpi, bpi, wmu, bmu, wsg, bsg, wlc, blc, wcc, bcc) = [
        p.astype(jnp.float32) for p in params]

    lat_w = max(128, ((latent_dim + 127) // 128) * 128)
    ew6p = _pad_cols(ew6, lat_w)                 # (8, LAT_W)
    eb6p = _pad_cols(eb6, lat_w)                 # (1, LAT_W)
    dw1p = jnp.pad(dw1, ((0, lat_w - dw1.shape[0]), (0, 0)))   # (LAT_W, 8)

    def block_pi(w):
        # (K, 1320) interleaved (mix, comp) -> 3 per-component blocks of 512.
        k = w.shape[0]
        w3 = jnp.transpose(w.reshape(k, PI_GROUPS, 3), (0, 2, 1))   # (K, 3, 440)
        return jnp.pad(w3, ((0, 0), (0, 0), (0, PI_W - PI_GROUPS))).reshape(k, PI_SEG)

    wh = jnp.concatenate(
        [block_pi(wpi), _pad_cols(wmu, MU_PAD), _pad_cols(wsg, MU_PAD),
         _pad_cols(wlc, LC_PAD), _pad_cols(wcc, LC_PAD)], axis=1)     # (50, 4352)
    bh = jnp.concatenate(
        [block_pi(bpi), _pad_cols(bmu, MU_PAD), _pad_cols(bsg, MU_PAD),
         _pad_cols(blc, LC_PAD), _pad_cols(bcc, LC_PAD)], axis=1)     # (1, 4352)

    arrays = (ew1, eb1, ew2, eb2, ew3, eb3, ew6p, eb6p,
              dw1p, db1, dw2, db2, dw3, db3, mw1, mb1, wh, bh)
    return arrays, lat_w


# ---------------------------------------------------------------------------
# Tile selection / compiler params.
# ---------------------------------------------------------------------------
def _tensorcores_per_chip():
    try:
        kind = jax.devices()[0].device_kind.lower()
    except Exception:
        return 1
    return 2 if ("v7" in kind or "7x" in kind) else 1


def _pick_tm(B, two_cores):
    # Single-TC chips: biggest divisor tile up to 512 (grid is a serial loop).
    # Dual-TC chips: cap 256 and keep >=2 "parallel" steps when possible.
    cap = 256 if two_cores else 512
    cands = [t for t in range(8, min(B, cap) + 1, 8) if B % t == 0]
    if two_cores:
        split = [t for t in cands if t <= B // 2]
        if split:
            return max(split)
    return max(cands) if cands else B


def autoencoder_forward(x, packed_params, latent_dim, *, tm=None):
    """x: (B, input_dim). Returns (latent, pi, mu, sigma, loc, conc)."""
    arrays, lat_w = packed_params
    x = x.astype(jnp.float32)                    # matches x.to(fc1.weight.dtype)
    B, D = x.shape
    out_w = HEAD_W + lat_w
    hidden = arrays[14].shape[1]                 # mw1: (256, hidden)

    two_cores = _tensorcores_per_chip() >= 2
    if tm is None:
        tm = _pick_tm(B, two_cores)
    assert B % tm == 0, "batch must be divisible by the batch tile"
    grid = (B // tm,)

    in_specs = [pl.BlockSpec((tm, D), lambda i: (i, 0))]
    # Constant block index -> params stay resident in VMEM (no re-DMA per step).
    in_specs += [pl.BlockSpec(a.shape, lambda i: (0, 0)) for a in arrays]
    out_specs = pl.BlockSpec((tm, out_w), lambda i: (i, 0))

    # Advisory cost estimate for XLA scheduling around the custom call.
    layer_dims = [(D, 256), (256, 64), (64, 8), (8, lat_w),
                  (lat_w, 8), (8, 64), (64, 256), (256, hidden), (hidden, HEAD_W)]
    flops = 2 * B * sum(i * o for i, o in layer_dims)
    transcendentals = B * (256 + 64 + 8 + 8 + 64 + 256 + hidden    # tanh layers
                           + MU_PAD                                # sigmoid-as-tanh
                           + 3 * PI_W                              # softmax exps
                           + 2 * LC_PAD)                           # softplus exp+log
    param_bytes = 4 * sum(int(a.size) for a in arrays)
    bytes_accessed = 4 * B * (D + out_w) + param_bytes

    # Only raise the scoped-VMEM limit when the working set actually needs it.
    est_vmem = 4 * (2 * tm * (D + out_w) + 4 * tm * HEAD_W) + 2 * param_bytes
    cp = dict(dimension_semantics=("parallel",))
    if est_vmem > (24 << 20):
        cap = (44 << 20) if two_cores else (96 << 20)   # v7x 64 MiB/TC, v5e/v6e 128 MiB
        try:
            phys = pltpu.get_tpu_info().vmem_capacity_bytes
            cap = min(cap, int(phys * 3 // 4))
        except Exception:
            pass
        cp["vmem_limit_bytes"] = int(min(max(est_vmem, 32 << 20), cap))

    out = pl.pallas_call(
        _autoencoder_kernel,
        out_shape=jax.ShapeDtypeStruct((B, out_w), jnp.float32),
        grid_spec=pltpu.PrefetchScalarGridSpec(
            num_scalar_prefetch=0,
            grid=grid,
            in_specs=in_specs,
            out_specs=out_specs),
        compiler_params=pltpu.CompilerParams(**cp),
        cost_estimate=pl.CostEstimate(flops=flops,
                                      transcendentals=transcendentals,
                                      bytes_accessed=bytes_accessed),
    )(x, *arrays)

    # Cheap lane-sparse reshapes at the API boundary only.
    latent = out[:, HEAD_W:HEAD_W + latent_dim]
    pi = jnp.transpose(out[:, :PI_SEG].reshape(B, 3, PI_W)[:, :, :PI_GROUPS], (0, 2, 1))
    mu = out[:, MU_OFF:MU_OFF + MU_RAW].reshape(B, 315, 3)
    sigma = out[:, SG_OFF:SG_OFF + MU_RAW].reshape(B, 315, 3)
    loc = out[:, LC_OFF:LC_OFF + LOC_RAW].reshape(B, 125, 3)
    conc = out[:, CC_OFF:CC_OFF + LOC_RAW].reshape(B, 125, 3)
    return latent, pi, mu, sigma, loc, conc


# ---------------------------------------------------------------------------
# Parameter init (nn.Linear style) and pure-JAX reference.
# ---------------------------------------------------------------------------
def init_params(key, input_dim, latent_dim, hidden_dim=50):
    """nn.Linear-style init (uniform +-1/sqrt(fan_in)); weights stored (in, out)."""
    dims = [
        # encoder fc1, fc2, fc3, fc6
        (input_dim, 256), (256, 64), (64, 8), (8, latent_dim),
        # decoder fc1, fc2, fc3 (fc4/fc5/fc6 unused in the mdn_bool=True path)
        (latent_dim, 8), (8, 64), (64, 256),
        # MDN: fc1, fc_pi, fc_mu, fc_sigma, fc_loc, fc_concentration
        (256, hidden_dim), (hidden_dim, 3 * PI_GROUPS), (hidden_dim, MU_RAW),
        (hidden_dim, MU_RAW), (hidden_dim, LOC_RAW), (hidden_dim, LOC_RAW),
    ]
    params = []
    for i, (fan_in, fan_out) in enumerate(dims):
        kw, kb = jax.random.split(jax.random.fold_in(key, i))
        bound = 1.0 / (fan_in ** 0.5)
        w = jax.random.uniform(kw, (fan_in, fan_out), jnp.float32, -bound, bound)
        b = jax.random.uniform(kb, (1, fan_out), jnp.float32, -bound, bound)
        params += [w, b]
    return tuple(params)


def autoencoder_ref(x, params):
    """Pure-JAX reference of the full forward pass for correctness checking."""
    (ew1, eb1, ew2, eb2, ew3, eb3, ew6, eb6,
     dw1, db1, dw2, db2, dw3, db3,
     mw1, mb1, wpi, bpi, wmu, bmu, wsg, bsg, wlc, blc, wcc, bcc) = params
    x = x.astype(jnp.float32)
    B = x.shape[0]
    h = jnp.tanh(x @ ew1 + eb1)
    h = jnp.tanh(h @ ew2 + eb2)
    h = jnp.tanh(h @ ew3 + eb3)
    z = (h @ ew6 + eb6).astype(jnp.float32)
    d = jnp.tanh(z @ dw1 + db1)
    d = jnp.tanh(d @ dw2 + db2)
    d = jnp.tanh(d @ dw3 + db3)
    fc = jnp.tanh(d @ mw1 + mb1)
    pi = jax.nn.softmax((fc @ wpi + bpi).reshape(B, PI_GROUPS, 3), axis=-1)
    mu = (fc @ wmu + bmu).reshape(B, 315, 3)
    sigma = (jax.nn.sigmoid(fc @ wsg + bsg) * COV_SCALING).reshape(B, 315, 3)
    loc = (fc @ wlc + blc).reshape(B, 125, 3)
    conc = _softplus(fc @ wcc + bcc).reshape(B, 125, 3)
    return z, pi, mu, sigma, loc, conc


if __name__ == "__main__":
    key = jax.random.PRNGKey(0)
    B, input_dim, latent_dim, hidden_dim = 8, 32, 2, 50

    kx, kp = jax.random.split(key)
    x = jax.random.normal(kx, (B, input_dim), jnp.float32)
    params = init_params(kp, input_dim, latent_dim, hidden_dim)
    packed = pack_params(params, latent_dim)

    outs = autoencoder_forward(x, packed, latent_dim)
    outs = jax.block_until_ready(outs)

    refs = autoencoder_ref(x, params)
    expected_shapes = {
        "latent": (B, latent_dim), "pi": (B, 440, 3), "mu": (B, 315, 3),
        "sigma": (B, 315, 3), "loc": (B, 125, 3), "conc": (B, 125, 3),
    }
    for name, o, r in zip(expected_shapes, outs, refs):
        assert o.shape == expected_shapes[name], (name, o.shape)
        assert o.dtype == jnp.float32, (name, o.dtype)
        assert jnp.allclose(o, r, atol=2e-5, rtol=2e-4), (
            name, float(jnp.max(jnp.abs(o - r))))

    print("KERNEL_OK")
</pallas_src>

<mosaic_0001>
module attributes {stable_mosaic.version = 11 : i64} {
  func.func @_autoencoder_kernel(%arg0: i32, %arg1: memref<8x32xf32, #tpu.memory_space<vmem>>, %arg2: memref<32x256xf32, #tpu.memory_space<vmem>>, %arg3: memref<1x256xf32, #tpu.memory_space<vmem>>, %arg4: memref<256x64xf32, #tpu.memory_space<vmem>>, %arg5: memref<1x64xf32, #tpu.memory_space<vmem>>, %arg6: memref<64x8xf32, #tpu.memory_space<vmem>>, %arg7: memref<1x8xf32, #tpu.memory_space<vmem>>, %arg8: memref<8x128xf32, #tpu.memory_space<vmem>>, %arg9: memref<1x128xf32, #tpu.memory_space<vmem>>, %arg10: memref<128x8xf32, #tpu.memory_space<vmem>>, %arg11: memref<1x8xf32, #tpu.memory_space<vmem>>, %arg12: memref<8x64xf32, #tpu.memory_space<vmem>>, %arg13: memref<1x64xf32, #tpu.memory_space<vmem>>, %arg14: memref<64x256xf32, #tpu.memory_space<vmem>>, %arg15: memref<1x256xf32, #tpu.memory_space<vmem>>, %arg16: memref<256x50xf32, #tpu.memory_space<vmem>>, %arg17: memref<1x50xf32, #tpu.memory_space<vmem>>, %arg18: memref<50x4352xf32, #tpu.memory_space<vmem>>, %arg19: memref<1x4352xf32, #tpu.memory_space<vmem>>, %arg20: memref<8x4480xf32, #tpu.memory_space<vmem>>) attributes {dimension_semantics = [#tpu.dimension_semantics<parallel>], iteration_bounds = array<i64: 1>, scalar_prefetch = 0 : i64, scratch_operands = 0 : i64, tpu.core_type = #tpu.core_type<tc>, window_params = [{transform_indices = @transform_0, window_bounds = array<i64: 8, 32>}, {pipeline_mode = #tpu.pipeline_mode<synchronous>, transform_indices = @transform_1, window_bounds = array<i64: 32, 256>}, {pipeline_mode = #tpu.pipeline_mode<synchronous>, transform_indices = @transform_2, window_bounds = array<i64: 1, 256>}, {pipeline_mode = #tpu.pipeline_mode<synchronous>, transform_indices = @transform_3, window_bounds = array<i64: 256, 64>}, {pipeline_mode = #tpu.pipeline_mode<synchronous>, transform_indices = @transform_4, window_bounds = array<i64: 1, 64>}, {pipeline_mode = #tpu.pipeline_mode<synchronous>, transform_indices = @transform_5, window_bounds = array<i64: 64, 8>}, {pipeline_mode = #tpu.pipeline_mode<synchronous>, transform_indices = @transform_6, window_bounds = array<i64: 1, 8>}, {pipeline_mode = #tpu.pipeline_mode<synchronous>, transform_indices = @transform_7, window_bounds = array<i64: 8, 128>}, {pipeline_mode = #tpu.pipeline_mode<synchronous>, transform_indices = @transform_8, window_bounds = array<i64: 1, 128>}, {pipeline_mode = #tpu.pipeline_mode<synchronous>, transform_indices = @transform_9, window_bounds = array<i64: 128, 8>}, {pipeline_mode = #tpu.pipeline_mode<synchronous>, transform_indices = @transform_10, window_bounds = array<i64: 1, 8>}, {pipeline_mode = #tpu.pipeline_mode<synchronous>, transform_indices = @transform_11, window_bounds = array<i64: 8, 64>}, {pipeline_mode = #tpu.pipeline_mode<synchronous>, transform_indices = @transform_12, window_bounds = array<i64: 1, 64>}, {pipeline_mode = #tpu.pipeline_mode<synchronous>, transform_indices = @transform_13, window_bounds = array<i64: 64, 256>}, {pipeline_mode = #tpu.pipeline_mode<synchronous>, transform_indices = @transform_14, window_bounds = array<i64: 1, 256>}, {pipeline_mode = #tpu.pipeline_mode<synchronous>, transform_indices = @transform_15, window_bounds = array<i64: 256, 50>}, {pipeline_mode = #tpu.pipeline_mode<synchronous>, transform_indices = @transform_16, window_bounds = array<i64: 1, 50>}, {pipeline_mode = #tpu.pipeline_mode<synchronous>, transform_indices = @transform_17, window_bounds = array<i64: 50, 4352>}, {pipeline_mode = #tpu.pipeline_mode<synchronous>, transform_indices = @transform_18, window_bounds = array<i64: 1, 4352>}, {transform_indices = @transform_19, window_bounds = array<i64: 8, 4480>}]} {
    %c0 = arith.constant 0 : index
    %c0_0 = arith.constant 0 : index
    %0 = vector.load %arg1[%c0, %c0_0] : memref<8x32xf32, #tpu.memory_space<vmem>>, vector<8x32xf32>
    %c0_1 = arith.constant 0 : index
    %c0_2 = arith.constant 0 : index
    %1 = vector.load %arg2[%c0_1, %c0_2] : memref<32x256xf32, #tpu.memory_space<vmem>>, vector<32x256xf32>
    %cst = arith.constant dense<0.000000e+00> : vector<8x256xf32>
    %2 = tpu.matmul %0, %1, %cst {dimension_numbers = #tpu.dot_dimension_numbers<[1], [0], [0], [1], [0, 0, 1, 1], [], []>, precision = #tpu.contract_precision<fp32>} : vector<8x32xf32>, vector<32x256xf32>, vector<8x256xf32> -> vector<8x256xf32>
    %c0_3 = arith.constant 0 : index
    %c0_4 = arith.constant 0 : index
    %3 = vector.load %arg3[%c0_3, %c0_4] : memref<1x256xf32, #tpu.memory_space<vmem>>, vector<1x256xf32>
    %4 = vector.broadcast %3 : vector<1x256xf32> to vector<8x256xf32>
    %5 = arith.addf %2, %4 : vector<8x256xf32>
    %6 = math.tanh %5 : vector<8x256xf32>
    %c0_5 = arith.constant 0 : index
    %c0_6 = arith.constant 0 : index
    %7 = vector.load %arg4[%c0_5, %c0_6] : memref<256x64xf32, #tpu.memory_space<vmem>>, vector<256x64xf32>
    %cst_7 = arith.constant dense<0.000000e+00> : vector<8x64xf32>
    %8 = tpu.matmul %6, %7, %cst_7 {dimension_numbers = #tpu.dot_dimension_numbers<[1], [0], [0], [1], [0, 0, 1, 1], [], []>, precision = #tpu.contract_precision<fp32>} : vector<8x256xf32>, vector<256x64xf32>, vector<8x64xf32> -> vector<8x64xf32>
    %c0_8 = arith.constant 0 : index
    %c0_9 = arith.constant 0 : index
    %9 = vector.load %arg5[%c0_8, %c0_9] : memref<1x64xf32, #tpu.memory_space<vmem>>, vector<1x64xf32>
    %10 = vector.broadcast %9 : vector<1x64xf32> to vector<8x64xf32>
    %11 = arith.addf %8, %10 : vector<8x64xf32>
    %12 = math.tanh %11 : vector<8x64xf32>
    %c0_10 = arith.constant 0 : index
    %c0_11 = arith.constant 0 : index
    %13 = vector.load %arg6[%c0_10, %c0_11] : memref<64x8xf32, #tpu.memory_space<vmem>>, vector<64x8xf32>
    %cst_12 = arith.constant dense<0.000000e+00> : vector<8x8xf32>
    %14 = tpu.matmul %12, %13, %cst_12 {dimension_numbers = #tpu.dot_dimension_numbers<[1], [0], [0], [1], [0, 0, 1, 1], [], []>, precision = #tpu.contract_precision<fp32>} : vector<8x64xf32>, vector<64x8xf32>, vector<8x8xf32> -> vector<8x8xf32>
    %c0_13 = arith.constant 0 : index
    %c0_14 = arith.constant 0 : index
    %15 = vector.load %arg7[%c0_13, %c0_14] : memref<1x8xf32, #tpu.memory_space<vmem>>, vector<1x8xf32>
    %16 = vector.broadcast %15 : vector<1x8xf32> to vector<8x8xf32>
    %17 = arith.addf %14, %16 : vector<8x8xf32>
    %18 = math.tanh %17 : vector<8x8xf32>
    %c0_15 = arith.constant 0 : index
    %c0_16 = arith.constant 0 : index
    %19 = vector.load %arg8[%c0_15, %c0_16] : memref<8x128xf32, #tpu.memory_space<vmem>>, vector<8x128xf32>
    %cst_17 = arith.constant dense<0.000000e+00> : vector<8x128xf32>
    %20 = tpu.matmul %18, %19, %cst_17 {dimension_numbers = #tpu.dot_dimension_numbers<[1], [0], [0], [1], [0, 0, 1, 1], [], []>, precision = #tpu.contract_precision<fp32>} : vector<8x8xf32>, vector<8x128xf32>, vector<8x128xf32> -> vector<8x128xf32>
    %c0_18 = arith.constant 0 : index
    %c0_19 = arith.constant 0 : index
    %21 = vector.load %arg9[%c0_18, %c0_19] : memref<1x128xf32, #tpu.memory_space<vmem>>, vector<1x128xf32>
    %22 = vector.broadcast %21 : vector<1x128xf32> to vector<8x128xf32>
    %23 = arith.addf %20, %22 : vector<8x128xf32>
    %c0_20 = arith.constant 0 : index
    %c4352 = arith.constant 4352 : index
    %24 = vector.load %arg20[%c0_20, %c4352] : memref<8x4480xf32, #tpu.memory_space<vmem>>, vector<8x128xf32>
    tpu.vector_store %arg20[%c0_20, %c4352], %23 {strides = array<i32>} : memref<8x4480xf32, #tpu.memory_space<vmem>>, vector<8x128xf32>,
    %c0_21 = arith.constant 0 : index
    %c0_22 = arith.constant 0 : index
    %25 = vector.load %arg10[%c0_21, %c0_22] : memref<128x8xf32, #tpu.memory_space<vmem>>, vector<128x8xf32>
    %cst_23 = arith.constant dense<0.000000e+00> : vector<8x8xf32>
    %26 = tpu.matmul %23, %25, %cst_23 {dimension_numbers = #tpu.dot_dimension_numbers<[1], [0], [0], [1], [0, 0, 1, 1], [], []>, precision = #tpu.contract_precision<fp32>} : vector<8x128xf32>, vector<128x8xf32>, vector<8x8xf32> -> vector<8x8xf32>
    %c0_24 = arith.constant 0 : index
    %c0_25 = arith.constant 0 : index
    %27 = vector.load %arg11[%c0_24, %c0_25] : memref<1x8xf32, #tpu.memory_space<vmem>>, vector<1x8xf32>
    %28 = vector.broadcast %27 : vector<1x8xf32> to vector<8x8xf32>
    %29 = arith.addf %26, %28 : vector<8x8xf32>
    %30 = math.tanh %29 : vector<8x8xf32>
    %c0_26 = arith.constant 0 : index
    %c0_27 = arith.constant 0 : index
    %31 = vector.load %arg12[%c0_26, %c0_27] : memref<8x64xf32, #tpu.memory_space<vmem>>, vector<8x64xf32>
    %cst_28 = arith.constant dense<0.000000e+00> : vector<8x64xf32>
    %32 = tpu.matmul %30, %31, %cst_28 {dimension_numbers = #tpu.dot_dimension_numbers<[1], [0], [0], [1], [0, 0, 1, 1], [], []>, precision = #tpu.contract_precision<fp32>} : vector<8x8xf32>, vector<8x64xf32>, vector<8x64xf32> -> vector<8x64xf32>
    %c0_29 = arith.constant 0 : index
    %c0_30 = arith.constant 0 : index
    %33 = vector.load %arg13[%c0_29, %c0_30] : memref<1x64xf32, #tpu.memory_space<vmem>>, vector<1x64xf32>
    %34 = vector.broadcast %33 : vector<1x64xf32> to vector<8x64xf32>
    %35 = arith.addf %32, %34 : vector<8x64xf32>
    %36 = math.tanh %35 : vector<8x64xf32>
    %c0_31 = arith.constant 0 : index
    %c0_32 = arith.constant 0 : index
    %37 = vector.load %arg14[%c0_31, %c0_32] : memref<64x256xf32, #tpu.memory_space<vmem>>, vector<64x256xf32>
    %cst_33 = arith.constant dense<0.000000e+00> : vector<8x256xf32>
    %38 = tpu.matmul %36, %37, %cst_33 {dimension_numbers = #tpu.dot_dimension_numbers<[1], [0], [0], [1], [0, 0, 1, 1], [], []>, precision = #tpu.contract_precision<fp32>} : vector<8x64xf32>, vector<64x256xf32>, vector<8x256xf32> -> vector<8x256xf32>
    %c0_34 = arith.constant 0 : index
    %c0_35 = arith.constant 0 : index
    %39 = vector.load %arg15[%c0_34, %c0_35] : memref<1x256xf32, #tpu.memory_space<vmem>>, vector<1x256xf32>
    %40 = vector.broadcast %39 : vector<1x256xf32> to vector<8x256xf32>
    %41 = arith.addf %38, %40 : vector<8x256xf32>
    %42 = math.tanh %41 : vector<8x256xf32>
    %c0_36 = arith.constant 0 : index
    %c0_37 = arith.constant 0 : index
    %43 = vector.load %arg16[%c0_36, %c0_37] : memref<256x50xf32, #tpu.memory_space<vmem>>, vector<256x50xf32>
    %cst_38 = arith.constant dense<0.000000e+00> : vector<8x50xf32>
    %44 = tpu.matmul %42, %43, %cst_38 {dimension_numbers = #tpu.dot_dimension_numbers<[1], [0], [0], [1], [0, 0, 1, 1], [], []>, precision = #tpu.contract_precision<fp32>} : vector<8x256xf32>, vector<256x50xf32>, vector<8x50xf32> -> vector<8x50xf32>
    %c0_39 = arith.constant 0 : index
    %c0_40 = arith.constant 0 : index
    %45 = vector.load %arg17[%c0_39, %c0_40] : memref<1x50xf32, #tpu.memory_space<vmem>>, vector<1x50xf32>
    %46 = vector.broadcast %45 : vector<1x50xf32> to vector<8x50xf32>
    %47 = arith.addf %44, %46 : vector<8x50xf32>
    %48 = math.tanh %47 : vector<8x50xf32>
    %c0_41 = arith.constant 0 : index
    %c0_42 = arith.constant 0 : index
    %49 = vector.load %arg18[%c0_41, %c0_42] : memref<50x4352xf32, #tpu.memory_space<vmem>>, vector<50x4352xf32>
    %cst_43 = arith.constant dense<0.000000e+00> : vector<8x4352xf32>
    %50 = tpu.matmul %48, %49, %cst_43 {dimension_numbers = #tpu.dot_dimension_numbers<[1], [0], [0], [1], [0, 0, 1, 1], [], []>, precision = #tpu.contract_precision<fp32>} : vector<8x50xf32>, vector<50x4352xf32>, vector<8x4352xf32> -> vector<8x4352xf32>
    %c0_44 = arith.constant 0 : index
    %c0_45 = arith.constant 0 : index
    %51 = vector.load %arg19[%c0_44, %c0_45] : memref<1x4352xf32, #tpu.memory_space<vmem>>, vector<1x4352xf32>
    %52 = vector.broadcast %51 : vector<1x4352xf32> to vector<8x4352xf32>
    %53 = arith.addf %50, %52 : vector<8x4352xf32>
    %54 = vector.extract_strided_slice %53 {offsets = [0, 0], sizes = [8, 512], strides = [1, 1]} : vector<8x4352xf32> to vector<8x512xf32>
    %55 = vector.extract_strided_slice %53 {offsets = [0, 512], sizes = [8, 512], strides = [1, 1]} : vector<8x4352xf32> to vector<8x512xf32>
    %56 = vector.extract_strided_slice %53 {offsets = [0, 1024], sizes = [8, 512], strides = [1, 1]} : vector<8x4352xf32> to vector<8x512xf32>
    %57 = arith.maximumf %54, %55 : vector<8x512xf32>
    %58 = arith.maximumf %57, %56 : vector<8x512xf32>
    %59 = arith.subf %54, %58 : vector<8x512xf32>
    %60 = math.exp %59 : vector<8x512xf32>
    %61 = arith.subf %55, %58 : vector<8x512xf32>
    %62 = math.exp %61 : vector<8x512xf32>
    %63 = arith.subf %56, %58 : vector<8x512xf32>
    %64 = math.exp %63 : vector<8x512xf32>
    %65 = arith.addf %60, %62 : vector<8x512xf32>
    %66 = arith.addf %65, %64 : vector<8x512xf32>
    %cst_46 = arith.constant 1.000000e+00 : f32
    %67 = vector.broadcast %cst_46 : f32 to vector<8x512xf32>
    %68 = arith.divf %67, %66 : vector<8x512xf32>
    %69 = arith.mulf %60, %68 : vector<8x512xf32>
    %c0_47 = arith.constant 0 : index
    %c0_48 = arith.constant 0 : index
    %70 = vector.load %arg20[%c0_47, %c0_48] : memref<8x4480xf32, #tpu.memory_space<vmem>>, vector<8x512xf32>
    tpu.vector_store %arg20[%c0_47, %c0_48], %69 {strides = array<i32>} : memref<8x4480xf32, #tpu.memory_space<vmem>>, vector<8x512xf32>,
    %71 = arith.mulf %62, %68 : vector<8x512xf32>
    %c0_49 = arith.constant 0 : index
    %c512 = arith.constant 512 : index
    %72 = vector.load %arg20[%c0_49, %c512] : memref<8x4480xf32, #tpu.memory_space<vmem>>, vector<8x512xf32>
    tpu.vector_store %arg20[%c0_49, %c512], %71 {strides = array<i32>} : memref<8x4480xf32, #tpu.memory_space<vmem>>, vector<8x512xf32>,
    %73 = arith.mulf %64, %68 : vector<8x512xf32>
    %c0_50 = arith.constant 0 : index
    %c1024 = arith.constant 1024 : index
    %74 = vector.load %arg20[%c0_50, %c1024] : memref<8x4480xf32, #tpu.memory_space<vmem>>, vector<8x512xf32>
    tpu.vector_store %arg20[%c0_50, %c1024], %73 {strides = array<i32>} : memref<8x4480xf32, #tpu.memory_space<vmem>>, vector<8x512xf32>,
    %75 = vector.extract_strided_slice %53 {offsets = [0, 1536], sizes = [8, 1024], strides = [1, 1]} : vector<8x4352xf32> to vector<8x1024xf32>
    %c0_51 = arith.constant 0 : index
    %c1536 = arith.constant 1536 : index
    %76 = vector.load %arg20[%c0_51, %c1536] : memref<8x4480xf32, #tpu.memory_space<vmem>>, vector<8x1024xf32>
    tpu.vector_store %arg20[%c0_51, %c1536], %75 {strides = array<i32>} : memref<8x4480xf32, #tpu.memory_space<vmem>>, vector<8x1024xf32>,
    %77 = vector.extract_strided_slice %53 {offsets = [0, 3584], sizes = [8, 384], strides = [1, 1]} : vector<8x4352xf32> to vector<8x384xf32>
    %c0_52 = arith.constant 0 : index
    %c3584 = arith.constant 3584 : index
    %78 = vector.load %arg20[%c0_52, %c3584] : memref<8x4480xf32, #tpu.memory_space<vmem>>, vector<8x384xf32>
    tpu.vector_store %arg20[%c0_52, %c3584], %77 {strides = array<i32>} : memref<8x4480xf32, #tpu.memory_space<vmem>>, vector<8x384xf32>,
    %79 = vector.extract_strided_slice %53 {offsets = [0, 2560], sizes = [8, 1024], strides = [1, 1]} : vector<8x4352xf32> to vector<8x1024xf32>
    %cst_53 = arith.constant 5.000000e-01 : f32
    %80 = vector.broadcast %cst_53 : f32 to vector<8x1024xf32>
    %81 = arith.mulf %80, %79 : vector<8x1024xf32>
    %82 = math.tanh %81 : vector<8x1024xf32>
    %cst_54 = arith.constant 1.000000e+00 : f32
    %83 = vector.broadcast %cst_54 : f32 to vector<8x1024xf32>
    %84 = arith.addf %82, %83 : vector<8x1024xf32>
    %cst_55 = arith.constant 4.000000e-01 : f32
    %85 = vector.broadcast %cst_55 : f32 to vector<8x1024xf32>
    %86 = arith.mulf %85, %84 : vector<8x1024xf32>
    %c0_56 = arith.constant 0 : index
    %c2560 = arith.constant 2560 : index
    %87 = vector.load %arg20[%c0_56, %c2560] : memref<8x4480xf32, #tpu.memory_space<vmem>>, vector<8x1024xf32>
    tpu.vector_store %arg20[%c0_56, %c2560], %86 {strides = array<i32>} : memref<8x4480xf32, #tpu.memory_space<vmem>>, vector<8x1024xf32>,
    %88 = vector.extract_strided_slice %53 {offsets = [0, 3968], sizes = [8, 384], strides = [1, 1]} : vector<8x4352xf32> to vector<8x384xf32>
    %cst_57 = arith.constant 0.000000e+00 : f32
    %89 = vector.broadcast %cst_57 : f32 to vector<8x384xf32>
    %90 = arith.maximumf %88, %89 : vector<8x384xf32>
    %91 = math.absf %88 : vector<8x384xf32>
    %cst_58 = arith.constant 0.000000e+00 : f32
    %92 = vector.broadcast %cst_58 : f32 to vector<8x384xf32>
    %93 = arith.subf %92, %91 : vector<8x384xf32>
    %94 = math.exp %93 : vector<8x384xf32>
    %cst_59 = arith.constant 1.000000e+00 : f32
    %95 = vector.broadcast %cst_59 : f32 to vector<8x384xf32>
    %96 = arith.addf %95, %94 : vector<8x384xf32>
    %97 = math.log %96 : vector<8x384xf32>
    %98 = arith.addf %90, %97 : vector<8x384xf32>
    %c0_60 = arith.constant 0 : index
    %c3968 = arith.constant 3968 : index
    %99 = vector.load %arg20[%c0_60, %c3968] : memref<8x4480xf32, #tpu.memory_space<vmem>>, vector<8x384xf32>
    tpu.vector_store %arg20[%c0_60, %c3968], %98 {strides = array<i32>} : memref<8x4480xf32, #tpu.memory_space<vmem>>, vector<8x384xf32>,
    return
  }
  func.func @transform_0(%arg0: i32) -> (i32, i32) {
    %c0_i32 = arith.constant 0 : i32
    %c0_i32_0 = arith.constant 0 : i32
    return %arg0, %c0_i32 : i32, i32
  }
  func.func @transform_1(%arg0: i32) -> (i32, i32) {
    %c0_i32 = arith.constant 0 : i32
    %c0_i32_0 = arith.constant 0 : i32
    %c0_i32_1 = arith.constant 0 : i32
    return %c0_i32, %c0_i32_0 : i32, i32
  }
  func.func @transform_2(%arg0: i32) -> (i32, i32) {
    %c0_i32 = arith.constant 0 : i32
    %c0_i32_0 = arith.constant 0 : i32
    %c0_i32_1 = arith.constant 0 : i32
    return %c0_i32, %c0_i32_0 : i32, i32
  }
  func.func @transform_3(%arg0: i32) -> (i32, i32) {
    %c0_i32 = arith.constant 0 : i32
    %c0_i32_0 = arith.constant 0 : i32
    %c0_i32_1 = arith.constant 0 : i32
    return %c0_i32, %c0_i32_0 : i32, i32
  }
  func.func @transform_4(%arg0: i32) -> (i32, i32) {
    %c0_i32 = arith.constant 0 : i32
    %c0_i32_0 = arith.constant 0 : i32
    %c0_i32_1 = arith.constant 0 : i32
    return %c0_i32, %c0_i32_0 : i32, i32
  }
  func.func @transform_5(%arg0: i32) -> (i32, i32) {
    %c0_i32 = arith.constant 0 : i32
    %c0_i32_0 = arith.constant 0 : i32
    %c0_i32_1 = arith.constant 0 : i32
    return %c0_i32, %c0_i32_0 : i32, i32
  }
  func.func @transform_6(%arg0: i32) -> (i32, i32) {
    %c0_i32 = arith.constant 0 : i32
    %c0_i32_0 = arith.constant 0 : i32
    %c0_i32_1 = arith.constant 0 : i32
    return %c0_i32, %c0_i32_0 : i32, i32
  }
  func.func @transform_7(%arg0: i32) -> (i32, i32) {
    %c0_i32 = arith.constant 0 : i32
    %c0_i32_0 = arith.constant 0 : i32
    %c0_i32_1 = arith.constant 0 : i32
    return %c0_i32, %c0_i32_0 : i32, i32
  }
  func.func @transform_8(%arg0: i32) -> (i32, i32) {
    %c0_i32 = arith.constant 0 : i32
    %c0_i32_0 = arith.constant 0 : i32
    %c0_i32_1 = arith.constant 0 : i32
    return %c0_i32, %c0_i32_0 : i32, i32
  }
  func.func @transform_9(%arg0: i32) -> (i32, i32) {
    %c0_i32 = arith.constant 0 : i32
    %c0_i32_0 = arith.constant 0 : i32
    %c0_i32_1 = arith.constant 0 : i32
    return %c0_i32, %c0_i32_0 : i32, i32
  }
  func.func @transform_10(%arg0: i32) -> (i32, i32) {
    %c0_i32 = arith.constant 0 : i32
    %c0_i32_0 = arith.constant 0 : i32
    %c0_i32_1 = arith.constant 0 : i32
    return %c0_i32, %c0_i32_0 : i32, i32
  }
  func.func @transform_11(%arg0: i32) -> (i32, i32) {
    %c0_i32 = arith.constant 0 : i32
    %c0_i32_0 = arith.constant 0 : i32
    %c0_i32_1 = arith.constant 0 : i32
    return %c0_i32, %c0_i32_0 : i32, i32
  }
  func.func @transform_12(%arg0: i32) -> (i32, i32) {
    %c0_i32 = arith.constant 0 : i32
    %c0_i32_0 = arith.constant 0 : i32
    %c0_i32_1 = arith.constant 0 : i32
    return %c0_i32, %c0_i32_0 : i32, i32
  }
  func.func @transform_13(%arg0: i32) -> (i32, i32) {
    %c0_i32 = arith.constant 0 : i32
    %c0_i32_0 = arith.constant 0 : i32
    %c0_i32_1 = arith.constant 0 : i32
    return %c0_i32, %c0_i32_0 : i32, i32
  }
  func.func @transform_14(%arg0: i32) -> (i32, i32) {
    %c0_i32 = arith.constant 0 : i32
    %c0_i32_0 = arith.constant 0 : i32
    %c0_i32_1 = arith.constant 0 : i32
    return %c0_i32, %c0_i32_0 : i32, i32
  }
  func.func @transform_15(%arg0: i32) -> (i32, i32) {
    %c0_i32 = arith.constant 0 : i32
    %c0_i32_0 = arith.constant 0 : i32
    %c0_i32_1 = arith.constant 0 : i32
    return %c0_i32, %c0_i32_0 : i32, i32
  }
  func.func @transform_16(%arg0: i32) -> (i32, i32) {
    %c0_i32 = arith.constant 0 : i32
    %c0_i32_0 = arith.constant 0 : i32
    %c0_i32_1 = arith.constant 0 : i32
    return %c0_i32, %c0_i32_0 : i32, i32
  }
  func.func @transform_17(%arg0: i32) -> (i32, i32) {
    %c0_i32 = arith.constant 0 : i32
    %c0_i32_0 = arith.constant 0 : i32
    %c0_i32_1 = arith.constant 0 : i32
    return %c0_i32, %c0_i32_0 : i32, i32
  }
  func.func @transform_18(%arg0: i32) -> (i32, i32) {
    %c0_i32 = arith.constant 0 : i32
    %c0_i32_0 = arith.constant 0 : i32
    %c0_i32_1 = arith.constant 0 : i32
    return %c0_i32, %c0_i32_0 : i32, i32
  }
  func.func @transform_19(%arg0: i32) -> (i32, i32) {
    %c0_i32 = arith.constant 0 : i32
    %c0_i32_0 = arith.constant 0 : i32
    return %arg0, %c0_i32 : i32, i32
  }
}

</mosaic_0001>

<llo_original>
// kernel: tpu_custom_call.1
$region0: #{tpu_custom_call.1}
  #allocation0 [shape = 'u32[]', space=smem, size = 0x4, offset = 0x4, fixed_abs, tag = 'smem constant byte address 0x4 - core index']
  #allocation1 [shape = 'u32[72,128]{1,0:T(1,128)}', space=vmem, size = 0x9000, scoped, tag = 'internal scratch']
  %s0 = inlined_call_operand.vmem [shape: f32[8,32], index: 0, kind: input, shape index: {}]
  %s1 = inlined_call_operand.vmem [shape: f32[32,256], index: 1, kind: input, shape index: {}]
  %s2 = inlined_call_operand.vmem [shape: f32[1,256], index: 2, kind: input, shape index: {}]
  %s3 = inlined_call_operand.vmem [shape: f32[256,64], index: 3, kind: input, shape index: {}]
  %s4 = inlined_call_operand.vmem [shape: f32[1,64], index: 4, kind: input, shape index: {}]
  %s5 = inlined_call_operand.vmem [shape: f32[64,8], index: 5, kind: input, shape index: {}]
  %s6 = inlined_call_operand.vmem [shape: f32[1,8], index: 6, kind: input, shape index: {}]
  %s7 = inlined_call_operand.vmem [shape: f32[8,128], index: 7, kind: input, shape index: {}]
  %s8 = inlined_call_operand.vmem [shape: f32[1,128], index: 8, kind: input, shape index: {}]
  %s9 = inlined_call_operand.vmem [shape: f32[128,8], index: 9, kind: input, shape index: {}]
  %s10 = inlined_call_operand.vmem [shape: f32[1,8], index: 10, kind: input, shape index: {}]
  %s11 = inlined_call_operand.vmem [shape: f32[8,64], index: 11, kind: input, shape index: {}]
  %s12 = inlined_call_operand.vmem [shape: f32[1,64], index: 12, kind: input, shape index: {}]
  %s13 = inlined_call_operand.vmem [shape: f32[64,256], index: 13, kind: input, shape index: {}]
  %s14 = inlined_call_operand.vmem [shape: f32[1,256], index: 14, kind: input, shape index: {}]
  %s15 = inlined_call_operand.vmem [shape: f32[256,50], index: 15, kind: input, shape index: {}]
  %s16 = inlined_call_operand.vmem [shape: f32[1,50], index: 16, kind: input, shape index: {}]
  %s17 = inlined_call_operand.hbm [shape: f32[50,4352], index: 17, kind: input, shape index: {}]
  %s18 = inlined_call_operand.vmem [shape: f32[1,4352], index: 18, kind: input, shape index: {}]
  %s19 = inlined_call_operand.hbm [shape: f32[8,4480], index: 19, kind: output, shape index: {}]
  %s20 = sld [smem:[#allocation0]]
  $region90: #{tpu_custom_call.1} parent=0
    _
  %s22 = ssub.s32 1, %s20
  %s23 = scalar_select 0, %s22, %s20
  $region1: #{tpu_custom_call.1} parent=0
    #allocation2 [shape = 'u8[974848]{0}', space=vmem, size = 0xee000, scoped, tag = 'input window, operand 17, single buffered']
    #allocation3 [shape = 's32[1]{0}', space=sflag, size = 0x4, scoped, tag = 'scoped memory for tpu_custom_call.1']
    #allocation4 [shape = 's32[1]{0}', space=sflag, size = 0x4, scoped, tag = 'scoped memory for tpu_custom_call.1']
    #allocation5 [shape = 'u8[143360]{0}', space=vmem, size = 0x23000, scoped, tag = 'output window, operand 0, single buffered']
    %24 = vsyncpa [#allocation3], 0
    %25 = vsyncpa [#allocation4], 0
    // Predicated region
    $region2: #{tpu_custom_call.1} parent=1 // pred_check
      _
    $region3: #{tpu_custom_call.1} parent=1 // pred_check_branch
      %27 = sbr.rel (0) target = $region5
    $region4: #{tpu_custom_call.1} parent=1 // pred_region
      _
    $region5: #{tpu_custom_call.1} parent=1 // pred_fallthru
      _
    // Predicated region
    $region6: #{tpu_custom_call.1} parent=1 // pred_check
      _
    $region7: #{tpu_custom_call.1} parent=1 // pred_check_branch
      %29 = sbr.rel (0) target = $region9
    $region8: #{tpu_custom_call.1} parent=1 // pred_region
      _
    $region9: #{tpu_custom_call.1} parent=1 // pred_fallthru
      _
    // Predicated region
    $region10: #{tpu_custom_call.1} parent=1 // pred_check
      _
    $region11: #{tpu_custom_call.1} parent=1 // pred_check_branch
      %31 = sbr.rel (0) target = $region13
    $region12: #{tpu_custom_call.1} parent=1 // pred_region
      _
    $region13: #{tpu_custom_call.1} parent=1 // pred_fallthru
      _
    // Predicated region
    $region14: #{tpu_custom_call.1} parent=1 // pred_check
      _
    $region15: #{tpu_custom_call.1} parent=1 // pred_check_branch
      %33 = sbr.rel (0) target = $region17
    $region16: #{tpu_custom_call.1} parent=1 // pred_region
      _
    $region17: #{tpu_custom_call.1} parent=1 // pred_fallthru
      _
    // Predicated region
    $region18: #{tpu_custom_call.1} parent=1 // pred_check
      _
    $region19: #{tpu_custom_call.1} parent=1 // pred_check_branch
      %35 = sbr.rel (0) target = $region21
    $region20: #{tpu_custom_call.1} parent=1 // pred_region
      _
    $region21: #{tpu_custom_call.1} parent=1 // pred_fallthru
      _
    // Predicated region
    $region22: #{tpu_custom_call.1} parent=1 // pred_check
      _
    $region23: #{tpu_custom_call.1} parent=1 // pred_check_branch
      %37 = sbr.rel (0) target = $region25
    $region24: #{tpu_custom_call.1} parent=1 // pred_region
      _
    $region25: #{tpu_custom_call.1} parent=1 // pred_fallthru
      _
    // Predicated region
    $region26: #{tpu_custom_call.1} parent=1 // pred_check
      _
    $region27: #{tpu_custom_call.1} parent=1 // pred_check_branch
      %39 = sbr.rel (0) target = $region29
    $region28: #{tpu_custom_call.1} parent=1 // pred_region
      _
    $region29: #{tpu_custom_call.1} parent=1 // pred_fallthru
      _
    // Predicated region
    $region30: #{tpu_custom_call.1} parent=1 // pred_check
      _
    $region31: #{tpu_custom_call.1} parent=1 // pred_check_branch
      %41 = sbr.rel (0) target = $region33
    $region32: #{tpu_custom_call.1} parent=1 // pred_region
      _
    $region33: #{tpu_custom_call.1} parent=1 // pred_fallthru
      _
    // Predicated region
    $region34: #{tpu_custom_call.1} parent=1 // pred_check
      _
    $region35: #{tpu_custom_call.1} parent=1 // pred_check_branch
      %43 = sbr.rel (0) target = $region37
    $region36: #{tpu_custom_call.1} parent=1 // pred_region
      _
    $region37: #{tpu_custom_call.1} parent=1 // pred_fallthru
      _
    // Predicated region
    $region38: #{tpu_custom_call.1} parent=1 // pred_check
      _
    $region39: #{tpu_custom_call.1} parent=1 // pred_check_branch
      %45 = sbr.rel (0) target = $region41
    $region40: #{tpu_custom_call.1} parent=1 // pred_region
      _
    $region41: #{tpu_custom_call.1} parent=1 // pred_fallthru
      _
    // Predicated region
    $region42: #{tpu_custom_call.1} parent=1 // pred_check
      _
    $region43: #{tpu_custom_call.1} parent=1 // pred_check_branch
      %47 = sbr.rel (0) target = $region45
    $region44: #{tpu_custom_call.1} parent=1 // pred_region
      _
    $region45: #{tpu_custom_call.1} parent=1 // pred_fallthru
      _
    // Predicated region
    $region46: #{tpu_custom_call.1} parent=1 // pred_check
      _
    $region47: #{tpu_custom_call.1} parent=1 // pred_check_branch
      %49 = sbr.rel (0) target = $region49
    $region48: #{tpu_custom_call.1} parent=1 // pred_region
      _
    $region49: #{tpu_custom_call.1} parent=1 // pred_fallthru
      _
    // Predicated region
    $region50: #{tpu_custom_call.1} parent=1 // pred_check
      _
    $region51: #{tpu_custom_call.1} parent=1 // pred_check_branch
      %51 = sbr.rel (0) target = $region53
    $region52: #{tpu_custom_call.1} parent=1 // pred_region
      _
    $region53: #{tpu_custom_call.1} parent=1 // pred_fallthru
      _
    // Predicated region
    $region54: #{tpu_custom_call.1} parent=1 // pred_check
      _
    $region55: #{tpu_custom_call.1} parent=1 // pred_check_branch
      %53 = sbr.rel (0) target = $region57
    $region56: #{tpu_custom_call.1} parent=1 // pred_region
      _
    $region57: #{tpu_custom_call.1} parent=1 // pred_fallthru
      _
    // Predicated region
    $region58: #{tpu_custom_call.1} parent=1 // pred_check
      _
    $region59: #{tpu_custom_call.1} parent=1 // pred_check_branch
      %55 = sbr.rel (0) target = $region61
    $region60: #{tpu_custom_call.1} parent=1 // pred_region
      _
    $region61: #{tpu_custom_call.1} parent=1 // pred_fallthru
      _
    // Predicated region
    $region62: #{tpu_custom_call.1} parent=1 // pred_check
      _
    $region63: #{tpu_custom_call.1} parent=1 // pred_check_branch
      %57 = sbr.rel (0) target = $region65
    $region64: #{tpu_custom_call.1} parent=1 // pred_region
      _
    $region65: #{tpu_custom_call.1} parent=1 // pred_fallthru
      _
    // Predicated region
    $region66: #{tpu_custom_call.1} parent=1 // pred_check
      _
    $region67: #{tpu_custom_call.1} parent=1 // pred_check_branch
      %59 = sbr.rel (0) target = $region69
    $region68: #{tpu_custom_call.1} parent=1 // pred_region
      _
    $region69: #{tpu_custom_call.1} parent=1 // pred_fallthru
      _
    // Predicated region
    $region70: #{tpu_custom_call.1} parent=1 // pred_check
      _
    $region71: #{tpu_custom_call.1} parent=1 // pred_check_branch
      %61 = sbr.rel (0) target = $region73
    $region72: #{tpu_custom_call.1} parent=1 // pred_region
      %63 = vsyncadd [#allocation3], 0
      %s64 = sshll.u32 %s17, 4
      %s65 = int_to_ptr.hbm [resolvable:$true] %s64
      %s66 = sshll.u32 [#allocation2], 4
      %s67 = int_to_ptr.vmem [resolvable:$true] %s66
      %72 = dma.hbm_to_vmem [thread:$0]  %s65, 30464, %s67, [#allocation3], 4352, 4352, 272
    $region73: #{tpu_custom_call.1} parent=1 // pred_fallthru
      _
    // Predicated region
    $region74: #{tpu_custom_call.1} parent=1 // pred_check
      _
    $region75: #{tpu_custom_call.1} parent=1 // pred_check_branch
      %74 = sbr.rel (0) target = $region77
    $region76: #{tpu_custom_call.1} parent=1 // pred_region
      _
    $region77: #{tpu_custom_call.1} parent=1 // pred_fallthru
      _
    // Predicated region
    $region78: #{tpu_custom_call.1} parent=1 // pred_check
      _
    $region79: #{tpu_custom_call.1} parent=1 // pred_check_branch
      %76 = sbr.rel (0) target = $region81
    $region80: #{tpu_custom_call.1} parent=1 // pred_region
      %78 = dma.done [#allocation3], 30464
    $region81: #{tpu_custom_call.1} parent=1 // pred_fallthru
      _
    %v79 = vld [vmem:[%s0] sm:$0xff]
    %v80 = vld [vmem:[%s1] sm:$0xff]
    %v81 = vld [vmem:[%s1 + $0x8] sm:$0xff]
    %v82 = vld [vmem:[%s1 + $0x10] sm:$0xff]
    %v83 = vld [vmem:[%s1 + $0x18] sm:$0xff]
    %v84 = vld [vmem:[%s1 + $0x20] sm:$0xff]
    %v85 = vld [vmem:[%s1 + $0x28] sm:$0xff]
    %v86 = vld [vmem:[%s1 + $0x30] sm:$0xff]
    %v87 = vld [vmem:[%s1 + $0x38] sm:$0xff]
    %v88 = vld [vmem:[%s2] sm:$0x3]
    %v90 = vperm.slane %v88, 0
    %v91 = vperm.slane %v88, 1
    %vm94 = vcmask 261120
    %v96 = vsel %vm94, %v79, 0
    %98 = vmatpush.msra.mxu0 0.0
    %99 = vmatpush.msra.mxu0 0.0
    %100 = vmatpush.msra.mxu0 0.0
    %101 = vmatpush.msra.mxu0 0.0
    %102 = vmatpush.msra.mxu0 0.0
    %103 = vmatpush.msra.mxu0 0.0
    %104 = vmatpush.msra.mxu0 0.0
    %105 = vmatpush.msra.mxu0 0.0
    %106 = vmatpush.msra.mxu0 0.0
    %107 = vmatpush.msra.mxu0 0.0
    %108 = vmatpush.msra.mxu0 0.0
    %109 = vmatpush.msra.mxu0 0.0
    %v110 = vand.u32 %v86, 4294901760
    %111 = vmatpush.msra.mxu0 %v110
    %v112 = vand.u32 %v84, 4294901760
    %113 = vmatpush.msra.mxu0 %v112
    %v114 = vand.u32 %v82, 4294901760
    %115 = vmatpush.msra.mxu0 %v114
    %v116 = vand.u32 %v80, 4294901760
    %117 = vmatpush.msra.mxu0 %v116
    %v118 = vand.u32 %v96, 4294901760
    %v119 = vsub.f32 %v96, %v118
    %v120 = vand.u32 %v119, 4294901760
    %v121 = vsub.f32 %v119, %v120
    %v122 = vand.u32 %v121, 4294901760
    %123 = vmatmul.f32.gmra.mxu0 %v122
    %v124 = vpop.f32.mrf.mxu0
    %v125 = vadd.f32 %v90, %v124
    %126 = vdwg.mxu0
    %127 = vmatpush.msra.mxu0 0.0
    %128 = vmatpush.msra.mxu0 0.0
    %129 = vmatpush.msra.mxu0 0.0
    %130 = vmatpush.msra.mxu0 0.0
    %131 = vmatpush.msra.mxu0 0.0
    %132 = vmatpush.msra.mxu0 0.0
    %133 = vmatpush.msra.mxu0 0.0
    %134 = vmatpush.msra.mxu0 0.0
    %135 = vmatpush.msra.mxu0 0.0
    %136 = vmatpush.msra.mxu0 0.0
    %137 = vmatpush.msra.mxu0 0.0
    %138 = vmatpush.msra.mxu0 0.0
    %v139 = vand.u32 %v86, 4294901760
    %v140 = vsub.f32 %v86, %v139
    %v141 = vand.u32 %v140, 4294901760
    %v142 = vsub.f32 %v140, %v141
    %v143 = vand.u32 %v142, 4294901760
    %144 = vmatpush.msra.mxu0 %v143
    %v145 = vand.u32 %v84, 4294901760
    %v146 = vsub.f32 %v84, %v145
    %v147 = vand.u32 %v146, 4294901760
    %v148 = vsub.f32 %v146, %v147
    %v149 = vand.u32 %v148, 4294901760
    %150 = vmatpush.msra.mxu0 %v149
    %v151 = vand.u32 %v82, 4294901760
    %v152 = vsub.f32 %v82, %v151
    %v153 = vand.u32 %v152, 4294901760
    %v154 = vsub.f32 %v152, %v153
    %v155 = vand.u32 %v154, 4294901760
    %156 = vmatpush.msra.mxu0 %v155
    %v157 = vand.u32 %v80, 4294901760
    %v158 = vsub.f32 %v80, %v157
    %v159 = vand.u32 %v158, 4294901760
    %v160 = vsub.f32 %v158, %v159
    %v161 = vand.u32 %v160, 4294901760
    %162 = vmatpush.msra.mxu0 %v161
    %v163 = vand.u32 %v96, 4294901760
    %164 = vmatmul.f32.gmra.mxu0 %v163
    %v165 = vpop.f32.mrf.mxu0
    %v166 = vadd.f32 %v125, %v165
    %167 = vdwg.mxu0
    %168 = vmatpush.msra.mxu0 0.0
    %169 = vmatpush.msra.mxu0 0.0
    %170 = vmatpush.msra.mxu0 0.0
    %171 = vmatpush.msra.mxu0 0.0
    %172 = vmatpush.msra.mxu0 0.0
    %173 = vmatpush.msra.mxu0 0.0
    %174 = vmatpush.msra.mxu0 0.0
    %175 = vmatpush.msra.mxu0 0.0
    %176 = vmatpush.msra.mxu0 0.0
    %177 = vmatpush.msra.mxu0 0.0
    %178 = vmatpush.msra.mxu0 0.0
    %179 = vmatpush.msra.mxu0 0.0
    %v180 = vand.u32 %v86, 4294901760
    %v181 = vsub.f32 %v86, %v180
    %182 = vmatpush.msra.mxu0 %v181
    %v183 = vand.u32 %v84, 4294901760
    %v184 = vsub.f32 %v84, %v183
    %185 = vmatpush.msra.mxu0 %v184
    %v186 = vand.u32 %v82, 4294901760
    %v187 = vsub.f32 %v82, %v186
    %188 = vmatpush.msra.mxu0 %v187
    %v189 = vand.u32 %v80, 4294901760
    %v190 = vsub.f32 %v80, %v189
    %191 = vmatpush.msra.mxu0 %v190
    %v192 = vand.u32 %v96, 4294901760
    %v193 = vsub.f32 %v96, %v192
    %194 = vmatmul.f32.gmra.mxu0 %v193
    %v195 = vpop.f32.mrf.mxu0
    %v196 = vadd.f32 %v166, %v195
    %197 = vdwg.mxu0
    %198 = vmatpush.msra.mxu0 0.0
    %199 = vmatpush.msra.mxu0 0.0
    %200 = vmatpush.msra.mxu0 0.0
    %201 = vmatpush.msra.mxu0 0.0
    %202 = vmatpush.msra.mxu0 0.0
    %203 = vmatpush.msra.mxu0 0.0
    %204 = vmatpush.msra.mxu0 0.0
    %205 = vmatpush.msra.mxu0 0.0
    %206 = vmatpush.msra.mxu0 0.0
    %207 = vmatpush.msra.mxu0 0.0
    %208 = vmatpush.msra.mxu0 0.0
    %209 = vmatpush.msra.mxu0 0.0
    %v210 = vand.u32 %v86, 4294901760
    %211 = vmatpush.msra.mxu0 %v210
    %v212 = vand.u32 %v84, 4294901760
    %213 = vmatpush.msra.mxu0 %v212
    %v214 = vand.u32 %v82, 4294901760
    %215 = vmatpush.msra.mxu0 %v214
    %v216 = vand.u32 %v80, 4294901760
    %217 = vmatpush.msra.mxu0 %v216
    %v218 = vand.u32 %v96, 4294901760
    %v219 = vsub.f32 %v96, %v218
    %v220 = vand.u32 %v219, 4294901760
    %221 = vmatmul.f32.gmra.mxu0 %v220
    %v222 = vpop.f32.mrf.mxu0
    %v223 = vadd.f32 %v196, %v222
    %224 = vdwg.mxu0
    %225 = vmatpush.msra.mxu0 0.0
    %226 = vmatpush.msra.mxu0 0.0
    %227 = vmatpush.msra.mxu0 0.0
    %228 = vmatpush.msra.mxu0 0.0
    %229 = vmatpush.msra.mxu0 0.0
    %230 = vmatpush.msra.mxu0 0.0
    %231 = vmatpush.msra.mxu0 0.0
    %232 = vmatpush.msra.mxu0 0.0
    %233 = vmatpush.msra.mxu0 0.0
    %234 = vmatpush.msra.mxu0 0.0
    %235 = vmatpush.msra.mxu0 0.0
    %236 = vmatpush.msra.mxu0 0.0
    %v237 = vand.u32 %v86, 4294901760
    %v238 = vsub.f32 %v86, %v237
    %v239 = vand.u32 %v238, 4294901760
    %240 = vmatpush.msra.mxu0 %v239
    %v241 = vand.u32 %v84, 4294901760
    %v242 = vsub.f32 %v84, %v241
    %v243 = vand.u32 %v242, 4294901760
    %244 = vmatpush.msra.mxu0 %v243
    %v245 = vand.u32 %v82, 4294901760
    %v246 = vsub.f32 %v82, %v245
    %v247 = vand.u32 %v246, 4294901760
    %248 = vmatpush.msra.mxu0 %v247
    %v249 = vand.u32 %v80, 4294901760
    %v250 = vsub.f32 %v80, %v249
    %v251 = vand.u32 %v250, 4294901760
    %252 = vmatpush.msra.mxu0 %v251
    %v253 = vand.u32 %v96, 4294901760
    %254 = vmatmul.f32.gmra.mxu0 %v253
    %v255 = vpop.f32.mrf.mxu0
    %v256 = vadd.f32 %v223, %v255
    %257 = vdwg.mxu0
    %258 = vmatpush.msra.mxu0 0.0
    %259 = vmatpush.msra.mxu0 0.0
    %260 = vmatpush.msra.mxu0 0.0
    %261 = vmatpush.msra.mxu0 0.0
    %262 = vmatpush.msra.mxu0 0.0
    %263 = vmatpush.msra.mxu0 0.0
    %264 = vmatpush.msra.mxu0 0.0
    %265 = vmatpush.msra.mxu0 0.0
    %266 = vmatpush.msra.mxu0 0.0
    %267 = vmatpush.msra.mxu0 0.0
    %268 = vmatpush.msra.mxu0 0.0
    %269 = vmatpush.msra.mxu0 0.0
    %v270 = vand.u32 %v86, 4294901760
    %271 = vmatpush.msra.mxu0 %v270
    %v272 = vand.u32 %v84, 4294901760
    %273 = vmatpush.msra.mxu0 %v272
    %v274 = vand.u32 %v82, 4294901760
    %275 = vmatpush.msra.mxu0 %v274
    %v276 = vand.u32 %v80, 4294901760
    %277 = vmatpush.msra.mxu0 %v276
    %v278 = vand.u32 %v96, 4294901760
    %279 = vmatmul.f32.gmra.mxu0 %v278
    %v280 = vpop.f32.mrf.mxu0
    %v281 = vadd.f32 %v256, %v280
    %282 = vdwg.mxu0
    %283 = vmatpush.msra.mxu0 0.0
    %284 = vmatpush.msra.mxu0 0.0
    %285 = vmatpush.msra.mxu0 0.0
    %286 = vmatpush.msra.mxu0 0.0
    %287 = vmatpush.msra.mxu0 0.0
    %288 = vmatpush.msra.mxu0 0.0
    %289 = vmatpush.msra.mxu0 0.0
    %290 = vmatpush.msra.mxu0 0.0
    %291 = vmatpush.msra.mxu0 0.0
    %292 = vmatpush.msra.mxu0 0.0
    %293 = vmatpush.msra.mxu0 0.0
    %294 = vmatpush.msra.mxu0 0.0
    %v295 = vand.u32 %v87, 4294901760
    %296 = vmatpush.msra.mxu0 %v295
    %v297 = vand.u32 %v85, 4294901760
    %298 = vmatpush.msra.mxu0 %v297
    %v299 = vand.u32 %v83, 4294901760
    %300 = vmatpush.msra.mxu0 %v299
    %v301 = vand.u32 %v81, 4294901760
    %302 = vmatpush.msra.mxu0 %v301
    %v303 = vand.u32 %v96, 4294901760
    %v304 = vsub.f32 %v96, %v303
    %v305 = vand.u32 %v304, 4294901760
    %v306 = vsub.f32 %v304, %v305
    %v307 = vand.u32 %v306, 4294901760
    %308 = vmatmul.f32.gmra.mxu0 %v307
    %v309 = vpop.f32.mrf.mxu0
    %v310 = vadd.f32 %v91, %v309
    %311 = vdwg.mxu0
    %312 = vmatpush.msra.mxu0 0.0
    %313 = vmatpush.msra.mxu0 0.0
    %314 = vmatpush.msra.mxu0 0.0
    %315 = vmatpush.msra.mxu0 0.0
    %316 = vmatpush.msra.mxu0 0.0
    %317 = vmatpush.msra.mxu0 0.0
    %318 = vmatpush.msra.mxu0 0.0
    %319 = vmatpush.msra.mxu0 0.0
    %320 = vmatpush.msra.mxu0 0.0
    %321 = vmatpush.msra.mxu0 0.0
    %322 = vmatpush.msra.mxu0 0.0
    %323 = vmatpush.msra.mxu0 0.0
    %v324 = vand.u32 %v87, 4294901760
    %v325 = vsub.f32 %v87, %v324
    %v326 = vand.u32 %v325, 4294901760
    %v327 = vsub.f32 %v325, %v326
    %v328 = vand.u32 %v327, 4294901760
    %329 = vmatpush.msra.mxu0 %v328
    %v330 = vand.u32 %v85, 4294901760
    %v331 = vsub.f32 %v85, %v330
    %v332 = vand.u32 %v331, 4294901760
    %v333 = vsub.f32 %v331, %v332
    %v334 = vand.u32 %v333, 4294901760
    %335 = vmatpush.msra.mxu0 %v334
    %v336 = vand.u32 %v83, 4294901760
    %v337 = vsub.f32 %v83, %v336
    %v338 = vand.u32 %v337, 4294901760
    %v339 = vsub.f32 %v337, %v338
    %v340 = vand.u32 %v339, 4294901760
    %341 = vmatpush.msra.mxu0 %v340
    %v342 = vand.u32 %v81, 4294901760
    %v343 = vsub.f32 %v81, %v342
    %v344 = vand.u32 %v343, 4294901760
    %v345 = vsub.f32 %v343, %v344
    %v346 = vand.u32 %v345, 4294901760
    %347 = vmatpush.msra.mxu0 %v346
    %v348 = vand.u32 %v96, 4294901760
    %349 = vmatmul.f32.gmra.mxu0 %v348
    %v350 = vpop.f32.mrf.mxu0
    %v351 = vadd.f32 %v310, %v350
    %352 = vdwg.mxu0
    %353 = vmatpush.msra.mxu0 0.0
    %354 = vmatpush.msra.mxu0 0.0
    %355 = vmatpush.msra.mxu0 0.0
    %356 = vmatpush.msra.mxu0 0.0
    %357 = vmatpush.msra.mxu0 0.0
    %358 = vmatpush.msra.mxu0 0.0
    %359 = vmatpush.msra.mxu0 0.0
    %360 = vmatpush.msra.mxu0 0.0
    %361 = vmatpush.msra.mxu0 0.0
    %362 = vmatpush.msra.mxu0 0.0
    %363 = vmatpush.msra.mxu0 0.0
    %364 = vmatpush.msra.mxu0 0.0
    %v365 = vand.u32 %v87, 4294901760
    %v366 = vsub.f32 %v87, %v365
    %367 = vmatpush.msra.mxu0 %v366
    %v368 = vand.u32 %v85, 4294901760
    %v369 = vsub.f32 %v85, %v368
    %370 = vmatpush.msra.mxu0 %v369
    %v371 = vand.u32 %v83, 4294901760
    %v372 = vsub.f32 %v83, %v371
    %373 = vmatpush.msra.mxu0 %v372
    %v374 = vand.u32 %v81, 4294901760
    %v375 = vsub.f32 %v81, %v374
    %376 = vmatpush.msra.mxu0 %v375
    %v377 = vand.u32 %v96, 4294901760
    %v378 = vsub.f32 %v96, %v377
    %379 = vmatmul.f32.gmra.mxu0 %v378
    %v380 = vpop.f32.mrf.mxu0
    %v381 = vadd.f32 %v351, %v380
    %382 = vdwg.mxu0
    %383 = vmatpush.msra.mxu0 0.0
    %384 = vmatpush.msra.mxu0 0.0
    %385 = vmatpush.msra.mxu0 0.0
    %386 = vmatpush.msra.mxu0 0.0
    %387 = vmatpush.msra.mxu0 0.0
    %388 = vmatpush.msra.mxu0 0.0
    %389 = vmatpush.msra.mxu0 0.0
    %390 = vmatpush.msra.mxu0 0.0
    %391 = vmatpush.msra.mxu0 0.0
    %392 = vmatpush.msra.mxu0 0.0
    %393 = vmatpush.msra.mxu0 0.0
    %394 = vmatpush.msra.mxu0 0.0
    %v395 = vand.u32 %v87, 4294901760
    %396 = vmatpush.msra.mxu0 %v395
    %v397 = vand.u32 %v85, 4294901760
    %398 = vmatpush.msra.mxu0 %v397
    %v399 = vand.u32 %v83, 4294901760
    %400 = vmatpush.msra.mxu0 %v399
    %v401 = vand.u32 %v81, 4294901760
    %402 = vmatpush.msra.mxu0 %v401
    %v403 = vand.u32 %v96, 4294901760
    %v404 = vsub.f32 %v96, %v403
    %v405 = vand.u32 %v404, 4294901760
    %406 = vmatmul.f32.gmra.mxu0 %v405
    %v407 = vpop.f32.mrf.mxu0
    %v408 = vadd.f32 %v381, %v407
    %409 = vdwg.mxu0
    %410 = vmatpush.msra.mxu0 0.0
    %411 = vmatpush.msra.mxu0 0.0
    %412 = vmatpush.msra.mxu0 0.0
    %413 = vmatpush.msra.mxu0 0.0
    %414 = vmatpush.msra.mxu0 0.0
    %415 = vmatpush.msra.mxu0 0.0
    %416 = vmatpush.msra.mxu0 0.0
    %417 = vmatpush.msra.mxu0 0.0
    %418 = vmatpush.msra.mxu0 0.0
    %419 = vmatpush.msra.mxu0 0.0
    %420 = vmatpush.msra.mxu0 0.0
    %421 = vmatpush.msra.mxu0 0.0
    %v422 = vand.u32 %v87, 4294901760
    %v423 = vsub.f32 %v87, %v422
    %v424 = vand.u32 %v423, 4294901760
    %425 = vmatpush.msra.mxu0 %v424
    %v426 = vand.u32 %v85, 4294901760
    %v427 = vsub.f32 %v85, %v426
    %v428 = vand.u32 %v427, 4294901760
    %429 = vmatpush.msra.mxu0 %v428
    %v430 = vand.u32 %v83, 4294901760
    %v431 = vsub.f32 %v83, %v430
    %v432 = vand.u32 %v431, 4294901760
    %433 = vmatpush.msra.mxu0 %v432
    %v434 = vand.u32 %v81, 4294901760
    %v435 = vsub.f32 %v81, %v434
    %v436 = vand.u32 %v435, 4294901760
    %437 = vmatpush.msra.mxu0 %v436
    %v438 = vand.u32 %v96, 4294901760
    %439 = vmatmul.f32.gmra.mxu0 %v438
    %v440 = vpop.f32.mrf.mxu0
    %v441 = vadd.f32 %v408, %v440
    %442 = vdwg.mxu0
    %443 = vmatpush.msra.mxu0 0.0
    %444 = vmatpush.msra.mxu0 0.0
    %445 = vmatpush.msra.mxu0 0.0
    %446 = vmatpush.msra.mxu0 0.0
    %447 = vmatpush.msra.mxu0 0.0
    %448 = vmatpush.msra.mxu0 0.0
    %449 = vmatpush.msra.mxu0 0.0
    %450 = vmatpush.msra.mxu0 0.0
    %451 = vmatpush.msra.mxu0 0.0
    %452 = vmatpush.msra.mxu0 0.0
    %453 = vmatpush.msra.mxu0 0.0
    %454 = vmatpush.msra.mxu0 0.0
    %v455 = vand.u32 %v87, 4294901760
    %456 = vmatpush.msra.mxu0 %v455
    %v457 = vand.u32 %v85, 4294901760
    %458 = vmatpush.msra.mxu0 %v457
    %v459 = vand.u32 %v83, 4294901760
    %460 = vmatpush.msra.mxu0 %v459
    %v461 = vand.u32 %v81, 4294901760
    %462 = vmatpush.msra.mxu0 %v461
    %v463 = vand.u32 %v96, 4294901760
    %464 = vmatmul.f32.gmra.mxu0 %v463
    %v465 = vpop.f32.mrf.mxu0
    %v466 = vadd.f32 %v441, %v465
    %467 = vdwg.mxu0
    %v468 = vtanh.pop %v281
    %v469 = vtanh.pop %v466
    %v470 = vld [vmem:[%s3] sm:$0xff]
    %v471 = vld [vmem:[%s3 + $0x8] sm:$0xff]
    %v472 = vld [vmem:[%s3 + $0x10] sm:$0xff]
    %v473 = vld [vmem:[%s3 + $0x18] sm:$0xff]
    %v474 = vld [vmem:[%s3 + $0x20] sm:$0xff]
    %v475 = vld [vmem:[%s3 + $0x28] sm:$0xff]
    %v476 = vld [vmem:[%s3 + $0x30] sm:$0xff]
    %v477 = vld [vmem:[%s3 + $0x38] sm:$0xff]
    %v478 = vld [vmem:[%s3 + $0x40] sm:$0xff]
    %v479 = vld [vmem:[%s3 + $0x48] sm:$0xff]
    %v480 = vld [vmem:[%s3 + $0x50] sm:$0xff]
    %v481 = vld [vmem:[%s3 + $0x58] sm:$0xff]
    %v482 = vld [vmem:[%s3 + $0x60] sm:$0xff]
    %v483 = vld [vmem:[%s3 + $0x68] sm:$0xff]
    %v484 = vld [vmem:[%s3 + $0x70] sm:$0xff]
    %v485 = vld [vmem:[%s3 + $0x78] sm:$0xff]
    %v486 = vld [vmem:[%s3 + $0x80] sm:$0xff]
    %v487 = vld [vmem:[%s3 + $0x88] sm:$0xff]
    %v488 = vld [vmem:[%s3 + $0x90] sm:$0xff]
    %v489 = vld [vmem:[%s3 + $0x98] sm:$0xff]
    %v490 = vld [vmem:[%s3 + $0xa0] sm:$0xff]
    %v491 = vld [vmem:[%s3 + $0xa8] sm:$0xff]
    %v492 = vld [vmem:[%s3 + $0xb0] sm:$0xff]
    %v493 = vld [vmem:[%s3 + $0xb8] sm:$0xff]
    %v494 = vld [vmem:[%s3 + $0xc0] sm:$0xff]
    %v495 = vld [vmem:[%s3 + $0xc8] sm:$0xff]
    %v496 = vld [vmem:[%s3 + $0xd0] sm:$0xff]
    %v497 = vld [vmem:[%s3 + $0xd8] sm:$0xff]
    %v498 = vld [vmem:[%s3 + $0xe0] sm:$0xff]
    %v499 = vld [vmem:[%s3 + $0xe8] sm:$0xff]
    %v500 = vld [vmem:[%s3 + $0xf0] sm:$0xff]
    %v501 = vld [vmem:[%s3 + $0xf8] sm:$0xff]
    %v502 = vld [vmem:[%s4] sm:$0x1]
    %v504 = vperm.slane %v502, 0
    %v506 = vand.u32 %v485, 4294901760
    %507 = vmatpush.msra.mxu0 %v506
    %v508 = vand.u32 %v484, 4294901760
    %509 = vmatpush.msra.mxu0 %v508
    %v510 = vand.u32 %v483, 4294901760
    %511 = vmatpush.msra.mxu0 %v510
    %v512 = vand.u32 %v482, 4294901760
    %513 = vmatpush.msra.mxu0 %v512
    %v514 = vand.u32 %v481, 4294901760
    %515 = vmatpush.msra.mxu0 %v514
    %v516 = vand.u32 %v480, 4294901760
    %517 = vmatpush.msra.mxu0 %v516
    %v518 = vand.u32 %v479, 4294901760
    %519 = vmatpush.msra.mxu0 %v518
    %v520 = vand.u32 %v478, 4294901760
    %521 = vmatpush.msra.mxu0 %v520
    %v522 = vand.u32 %v477, 4294901760
    %523 = vmatpush.msra.mxu0 %v522
    %v524 = vand.u32 %v476, 4294901760
    %525 = vmatpush.msra.mxu0 %v524
    %v526 = vand.u32 %v475, 4294901760
    %527 = vmatpush.msra.mxu0 %v526
    %v528 = vand.u32 %v474, 4294901760
    %529 = vmatpush.msra.mxu0 %v528
    %v530 = vand.u32 %v473, 4294901760
    %531 = vmatpush.msra.mxu0 %v530
    %v532 = vand.u32 %v472, 4294901760
    %533 = vmatpush.msra.mxu0 %v532
    %v534 = vand.u32 %v471, 4294901760
    %535 = vmatpush.msra.mxu0 %v534
    %v536 = vand.u32 %v470, 4294901760
    %537 = vmatpush.msra.mxu0 %v536
    %v538 = vand.u32 %v468, 4294901760
    %v539 = vsub.f32 %v468, %v538
    %v540 = vand.u32 %v539, 4294901760
    %v541 = vsub.f32 %v539, %v540
    %v542 = vand.u32 %v541, 4294901760
    %543 = vmatmul.f32.gmra.mxu0 %v542
    %v544 = vpop.f32.mrf.mxu0
    %v545 = vadd.f32 %v504, %v544
    %546 = vdwg.mxu0
    %v547 = vand.u32 %v485, 4294901760
    %v548 = vsub.f32 %v485, %v547
    %v549 = vand.u32 %v548, 4294901760
    %v550 = vsub.f32 %v548, %v549
    %v551 = vand.u32 %v550, 4294901760
    %552 = vmatpush.msra.mxu0 %v551
    %v553 = vand.u32 %v484, 4294901760
    %v554 = vsub.f32 %v484, %v553
    %v555 = vand.u32 %v554, 4294901760
    %v556 = vsub.f32 %v554, %v555
    %v557 = vand.u32 %v556, 4294901760
    %558 = vmatpush.msra.mxu0 %v557
    %v559 = vand.u32 %v483, 4294901760
    %v560 = vsub.f32 %v483, %v559
    %v561 = vand.u32 %v560, 4294901760
    %v562 = vsub.f32 %v560, %v561
    %v563 = vand.u32 %v562, 4294901760
    %564 = vmatpush.msra.mxu0 %v563
    %v565 = vand.u32 %v482, 4294901760
    %v566 = vsub.f32 %v482, %v565
    %v567 = vand.u32 %v566, 4294901760
    %v568 = vsub.f32 %v566, %v567
    %v569 = vand.u32 %v568, 4294901760
    %570 = vmatpush.msra.mxu0 %v569
    %v571 = vand.u32 %v481, 4294901760
    %v572 = vsub.f32 %v481, %v571
    %v573 = vand.u32 %v572, 4294901760
    %v574 = vsub.f32 %v572, %v573
    %v575 = vand.u32 %v574, 4294901760
    %576 = vmatpush.msra.mxu0 %v575
    %v577 = vand.u32 %v480, 4294901760
    %v578 = vsub.f32 %v480, %v577
    %v579 = vand.u32 %v578, 4294901760
    %v580 = vsub.f32 %v578, %v579
    %v581 = vand.u32 %v580, 4294901760
    %582 = vmatpush.msra.mxu0 %v581
    %v583 = vand.u32 %v479, 4294901760
    %v584 = vsub.f32 %v479, %v583
    %v585 = vand.u32 %v584, 4294901760
    %v586 = vsub.f32 %v584, %v585
    %v587 = vand.u32 %v586, 4294901760
    %588 = vmatpush.msra.mxu0 %v587
    %v589 = vand.u32 %v478, 4294901760
    %v590 = vsub.f32 %v478, %v589
    %v591 = vand.u32 %v590, 4294901760
    %v592 = vsub.f32 %v590, %v591
    %v593 = vand.u32 %v592, 4294901760
    %594 = vmatpush.msra.mxu0 %v593
    %v595 = vand.u32 %v477, 4294901760
    %v596 = vsub.f32 %v477, %v595
    %v597 = vand.u32 %v596, 4294901760
    %v598 = vsub.f32 %v596, %v597
    %v599 = vand.u32 %v598, 4294901760
    %600 = vmatpush.msra.mxu0 %v599
    %v601 = vand.u32 %v476, 4294901760
    %v602 = vsub.f32 %v476, %v601
    %v603 = vand.u32 %v602, 4294901760
    %v604 = vsub.f32 %v602, %v603
    %v605 = vand.u32 %v604, 4294901760
    %606 = vmatpush.msra.mxu0 %v605
    %v607 = vand.u32 %v475, 4294901760
    %v608 = vsub.f32 %v475, %v607
    %v609 = vand.u32 %v608, 4294901760
    %v610 = vsub.f32 %v608, %v609
    %v611 = vand.u32 %v610, 4294901760
    %612 = vmatpush.msra.mxu0 %v611
    %v613 = vand.u32 %v474, 4294901760
    %v614 = vsub.f32 %v474, %v613
    %v615 = vand.u32 %v614, 4294901760
    %v616 = vsub.f32 %v614, %v615
    %v617 = vand.u32 %v616, 4294901760
    %618 = vmatpush.msra.mxu0 %v617
    %v619 = vand.u32 %v473, 4294901760
    %v620 = vsub.f32 %v473, %v619
    %v621 = vand.u32 %v620, 4294901760
    %v622 = vsub.f32 %v620, %v621
    %v623 = vand.u32 %v622, 4294901760
    %624 = vmatpush.msra.mxu0 %v623
    %v625 = vand.u32 %v472, 4294901760
    %v626 = vsub.f32 %v472, %v625
    %v627 = vand.u32 %v626, 4294901760
    %v628 = vsub.f32 %v626, %v627
    %v629 = vand.u32 %v628, 4294901760
    %630 = vmatpush.msra.mxu0 %v629
    %v631 = vand.u32 %v471, 4294901760
    %v632 = vsub.f32 %v471, %v631
    %v633 = vand.u32 %v632, 4294901760
    %v634 = vsub.f32 %v632, %v633
    %v635 = vand.u32 %v634, 4294901760
    %636 = vmatpush.msra.mxu0 %v635
    %v637 = vand.u32 %v470, 4294901760
    %v638 = vsub.f32 %v470, %v637
    %v639 = vand.u32 %v638, 4294901760
    %v640 = vsub.f32 %v638, %v639
    %v641 = vand.u32 %v640, 4294901760
    %642 = vmatpush.msra.mxu0 %v641
    %v643 = vand.u32 %v468, 4294901760
    %644 = vmatmul.f32.gmra.mxu0 %v643
    %v645 = vpop.f32.mrf.mxu0
    %v646 = vadd.f32 %v545, %v645
    %647 = vdwg.mxu0
    %v648 = vand.u32 %v485, 4294901760
    %v649 = vsub.f32 %v485, %v648
    %650 = vmatpush.msra.mxu0 %v649
    %v651 = vand.u32 %v484, 4294901760
    %v652 = vsub.f32 %v484, %v651
    %653 = vmatpush.msra.mxu0 %v652
    %v654 = vand.u32 %v483, 4294901760
    %v655 = vsub.f32 %v483, %v654
    %656 = vmatpush.msra.mxu0 %v655
    %v657 = vand.u32 %v482, 4294901760
    %v658 = vsub.f32 %v482, %v657
    %659 = vmatpush.msra.mxu0 %v658
    %v660 = vand.u32 %v481, 4294901760
    %v661 = vsub.f32 %v481, %v660
    %662 = vmatpush.msra.mxu0 %v661
    %v663 = vand.u32 %v480, 4294901760
    %v664 = vsub.f32 %v480, %v663
    %665 = vmatpush.msra.mxu0 %v664
    %v666 = vand.u32 %v479, 4294901760
    %v667 = vsub.f32 %v479, %v666
    %668 = vmatpush.msra.mxu0 %v667
    %v669 = vand.u32 %v478, 4294901760
    %v670 = vsub.f32 %v478, %v669
    %671 = vmatpush.msra.mxu0 %v670
    %v672 = vand.u32 %v477, 4294901760
    %v673 = vsub.f32 %v477, %v672
    %674 = vmatpush.msra.mxu0 %v673
    %v675 = vand.u32 %v476, 4294901760
    %v676 = vsub.f32 %v476, %v675
    %677 = vmatpush.msra.mxu0 %v676
    %v678 = vand.u32 %v475, 4294901760
    %v679 = vsub.f32 %v475, %v678
    %680 = vmatpush.msra.mxu0 %v679
    %v681 = vand.u32 %v474, 4294901760
    %v682 = vsub.f32 %v474, %v681
    %683 = vmatpush.msra.mxu0 %v682
    %v684 = vand.u32 %v473, 4294901760
    %v685 = vsub.f32 %v473, %v684
    %686 = vmatpush.msra.mxu0 %v685
    %v687 = vand.u32 %v472, 4294901760
    %v688 = vsub.f32 %v472, %v687
    %689 = vmatpush.msra.mxu0 %v688
    %v690 = vand.u32 %v471, 4294901760
    %v691 = vsub.f32 %v471, %v690
    %692 = vmatpush.msra.mxu0 %v691
    %v693 = vand.u32 %v470, 4294901760
    %v694 = vsub.f32 %v470, %v693
    %695 = vmatpush.msra.mxu0 %v694
    %v696 = vand.u32 %v468, 4294901760
    %v697 = vsub.f32 %v468, %v696
    %698 = vmatmul.f32.gmra.mxu0 %v697
    %v699 = vpop.f32.mrf.mxu0
    %v700 = vadd.f32 %v646, %v699
    %701 = vdwg.mxu0
    %v702 = vand.u32 %v485, 4294901760
    %703 = vmatpush.msra.mxu0 %v702
    %v704 = vand.u32 %v484, 4294901760
    %705 = vmatpush.msra.mxu0 %v704
    %v706 = vand.u32 %v483, 4294901760
    %707 = vmatpush.msra.mxu0 %v706
    %v708 = vand.u32 %v482, 4294901760
    %709 = vmatpush.msra.mxu0 %v708
    %v710 = vand.u32 %v481, 4294901760
    %711 = vmatpush.msra.mxu0 %v710
    %v712 = vand.u32 %v480, 4294901760
    %713 = vmatpush.msra.mxu0 %v712
    %v714 = vand.u32 %v479, 4294901760
    %715 = vmatpush.msra.mxu0 %v714
    %v716 = vand.u32 %v478, 4294901760
    %717 = vmatpush.msra.mxu0 %v716
    %v718 = vand.u32 %v477, 4294901760
    %719 = vmatpush.msra.mxu0 %v718
    %v720 = vand.u32 %v476, 4294901760
    %721 = vmatpush.msra.mxu0 %v720
    %v722 = vand.u32 %v475, 4294901760
    %723 = vmatpush.msra.mxu0 %v722
    %v724 = vand.u32 %v474, 4294901760
    %725 = vmatpush.msra.mxu0 %v724
    %v726 = vand.u32 %v473, 4294901760
    %727 = vmatpush.msra.mxu0 %v726
    %v728 = vand.u32 %v472, 4294901760
    %729 = vmatpush.msra.mxu0 %v728
    %v730 = vand.u32 %v471, 4294901760
    %731 = vmatpush.msra.mxu0 %v730
    %v732 = vand.u32 %v470, 4294901760
    %733 = vmatpush.msra.mxu0 %v732
    %v734 = vand.u32 %v468, 4294901760
    %v735 = vsub.f32 %v468, %v734
    %v736 = vand.u32 %v735, 4294901760
    %737 = vmatmul.f32.gmra.mxu0 %v736
    %v738 = vpop.f32.mrf.mxu0
    %v739 = vadd.f32 %v700, %v738
    %740 = vdwg.mxu0
    %v741 = vand.u32 %v485, 4294901760
    %v742 = vsub.f32 %v485, %v741
    %v743 = vand.u32 %v742, 4294901760
    %744 = vmatpush.msra.mxu0 %v743
    %v745 = vand.u32 %v484, 4294901760
    %v746 = vsub.f32 %v484, %v745
    %v747 = vand.u32 %v746, 4294901760
    %748 = vmatpush.msra.mxu0 %v747
    %v749 = vand.u32 %v483, 4294901760
    %v750 = vsub.f32 %v483, %v749
    %v751 = vand.u32 %v750, 4294901760
    %752 = vmatpush.msra.mxu0 %v751
    %v753 = vand.u32 %v482, 4294901760
    %v754 = vsub.f32 %v482, %v753
    %v755 = vand.u32 %v754, 4294901760
    %756 = vmatpush.msra.mxu0 %v755
    %v757 = vand.u32 %v481, 4294901760
    %v758 = vsub.f32 %v481, %v757
    %v759 = vand.u32 %v758, 4294901760
    %760 = vmatpush.msra.mxu0 %v759
    %v761 = vand.u32 %v480, 4294901760
    %v762 = vsub.f32 %v480, %v761
    %v763 = vand.u32 %v762, 4294901760
    %764 = vmatpush.msra.mxu0 %v763
    %v765 = vand.u32 %v479, 4294901760
    %v766 = vsub.f32 %v479, %v765
    %v767 = vand.u32 %v766, 4294901760
    %768 = vmatpush.msra.mxu0 %v767
    %v769 = vand.u32 %v478, 4294901760
    %v770 = vsub.f32 %v478, %v769
    %v771 = vand.u32 %v770, 4294901760
    %772 = vmatpush.msra.mxu0 %v771
    %v773 = vand.u32 %v477, 4294901760
    %v774 = vsub.f32 %v477, %v773
    %v775 = vand.u32 %v774, 4294901760
    %776 = vmatpush.msra.mxu0 %v775
    %v777 = vand.u32 %v476, 4294901760
    %v778 = vsub.f32 %v476, %v777
    %v779 = vand.u32 %v778, 4294901760
    %780 = vmatpush.msra.mxu0 %v779
    %v781 = vand.u32 %v475, 4294901760
    %v782 = vsub.f32 %v475, %v781
    %v783 = vand.u32 %v782, 4294901760
    %784 = vmatpush.msra.mxu0 %v783
    %v785 = vand.u32 %v474, 4294901760
    %v786 = vsub.f32 %v474, %v785
    %v787 = vand.u32 %v786, 4294901760
    %788 = vmatpush.msra.mxu0 %v787
    %v789 = vand.u32 %v473, 4294901760
    %v790 = vsub.f32 %v473, %v789
    %v791 = vand.u32 %v790, 4294901760
    %792 = vmatpush.msra.mxu0 %v791
    %v793 = vand.u32 %v472, 4294901760
    %v794 = vsub.f32 %v472, %v793
    %v795 = vand.u32 %v794, 4294901760
    %796 = vmatpush.msra.mxu0 %v795
    %v797 = vand.u32 %v471, 4294901760
    %v798 = vsub.f32 %v471, %v797
    %v799 = vand.u32 %v798, 4294901760
    %800 = vmatpush.msra.mxu0 %v799
    %v801 = vand.u32 %v470, 4294901760
    %v802 = vsub.f32 %v470, %v801
    %v803 = vand.u32 %v802, 4294901760
    %804 = vmatpush.msra.mxu0 %v803
    %v805 = vand.u32 %v468, 4294901760
    %806 = vmatmul.f32.gmra.mxu0 %v805
    %v807 = vpop.f32.mrf.mxu0
    %v808 = vadd.f32 %v739, %v807
    %809 = vdwg.mxu0
    %v810 = vand.u32 %v485, 4294901760
    %811 = vmatpush.msra.mxu0 %v810
    %v812 = vand.u32 %v484, 4294901760
    %813 = vmatpush.msra.mxu0 %v812
    %v814 = vand.u32 %v483, 4294901760
    %815 = vmatpush.msra.mxu0 %v814
    %v816 = vand.u32 %v482, 4294901760
    %817 = vmatpush.msra.mxu0 %v816
    %v818 = vand.u32 %v481, 4294901760
    %819 = vmatpush.msra.mxu0 %v818
    %v820 = vand.u32 %v480, 4294901760
    %821 = vmatpush.msra.mxu0 %v820
    %v822 = vand.u32 %v479, 4294901760
    %823 = vmatpush.msra.mxu0 %v822
    %v824 = vand.u32 %v478, 4294901760
    %825 = vmatpush.msra.mxu0 %v824
    %v826 = vand.u32 %v477, 4294901760
    %827 = vmatpush.msra.mxu0 %v826
    %v828 = vand.u32 %v476, 4294901760
    %829 = vmatpush.msra.mxu0 %v828
    %v830 = vand.u32 %v475, 4294901760
    %831 = vmatpush.msra.mxu0 %v830
    %v832 = vand.u32 %v474, 4294901760
    %833 = vmatpush.msra.mxu0 %v832
    %v834 = vand.u32 %v473, 4294901760
    %835 = vmatpush.msra.mxu0 %v834
    %v836 = vand.u32 %v472, 4294901760
    %837 = vmatpush.msra.mxu0 %v836
    %v838 = vand.u32 %v471, 4294901760
    %839 = vmatpush.msra.mxu0 %v838
    %v840 = vand.u32 %v470, 4294901760
    %841 = vmatpush.msra.mxu0 %v840
    %v842 = vand.u32 %v468, 4294901760
    %843 = vmatmul.f32.gmra.mxu0 %v842
    %v844 = vpop.f32.mrf.mxu0
    %v845 = vadd.f32 %v808, %v844
    %846 = vdwg.mxu0
    %v847 = vand.u32 %v501, 4294901760
    %848 = vmatpush.msra.mxu0 %v847
    %v849 = vand.u32 %v500, 4294901760
    %850 = vmatpush.msra.mxu0 %v849
    %v851 = vand.u32 %v499, 4294901760
    %852 = vmatpush.msra.mxu0 %v851
    %v853 = vand.u32 %v498, 4294901760
    %854 = vmatpush.msra.mxu0 %v853
    %v855 = vand.u32 %v497, 4294901760
    %856 = vmatpush.msra.mxu0 %v855
    %v857 = vand.u32 %v496, 4294901760
    %858 = vmatpush.msra.mxu0 %v857
    %v859 = vand.u32 %v495, 4294901760
    %860 = vmatpush.msra.mxu0 %v859
    %v861 = vand.u32 %v494, 4294901760
    %862 = vmatpush.msra.mxu0 %v861
    %v863 = vand.u32 %v493, 4294901760
    %864 = vmatpush.msra.mxu0 %v863
    %v865 = vand.u32 %v492, 4294901760
    %866 = vmatpush.msra.mxu0 %v865
    %v867 = vand.u32 %v491, 4294901760
    %868 = vmatpush.msra.mxu0 %v867
    %v869 = vand.u32 %v490, 4294901760
    %870 = vmatpush.msra.mxu0 %v869
    %v871 = vand.u32 %v489, 4294901760
    %872 = vmatpush.msra.mxu0 %v871
    %v873 = vand.u32 %v488, 4294901760
    %874 = vmatpush.msra.mxu0 %v873
    %v875 = vand.u32 %v487, 4294901760
    %876 = vmatpush.msra.mxu0 %v875
    %v877 = vand.u32 %v486, 4294901760
    %878 = vmatpush.msra.mxu0 %v877
    %v879 = vand.u32 %v469, 4294901760
    %v880 = vsub.f32 %v469, %v879
    %v881 = vand.u32 %v880, 4294901760
    %v882 = vsub.f32 %v880, %v881
    %v883 = vand.u32 %v882, 4294901760
    %884 = vmatmul.f32.gmra.mxu0 %v883
    %v885 = vpop.f32.mrf.mxu0
    %v886 = vadd.f32 %v845, %v885
    %887 = vdwg.mxu0
    %v888 = vand.u32 %v501, 4294901760
    %v889 = vsub.f32 %v501, %v888
    %v890 = vand.u32 %v889, 4294901760
    %v891 = vsub.f32 %v889, %v890
    %v892 = vand.u32 %v891, 4294901760
    %893 = vmatpush.msra.mxu0 %v892
    %v894 = vand.u32 %v500, 4294901760
    %v895 = vsub.f32 %v500, %v894
    %v896 = vand.u32 %v895, 4294901760
    %v897 = vsub.f32 %v895, %v896
    %v898 = vand.u32 %v897, 4294901760
    %899 = vmatpush.msra.mxu0 %v898
    %v900 = vand.u32 %v499, 4294901760
    %v901 = vsub.f32 %v499, %v900
    %v902 = vand.u32 %v901, 4294901760
    %v903 = vsub.f32 %v901, %v902
    %v904 = vand.u32 %v903, 4294901760
    %905 = vmatpush.msra.mxu0 %v904
    %v906 = vand.u32 %v498, 4294901760
    %v907 = vsub.f32 %v498, %v906
    %v908 = vand.u32 %v907, 4294901760
    %v909 = vsub.f32 %v907, %v908
    %v910 = vand.u32 %v909, 4294901760
    %911 = vmatpush.msra.mxu0 %v910
    %v912 = vand.u32 %v497, 4294901760
    %v913 = vsub.f32 %v497, %v912
    %v914 = vand.u32 %v913, 4294901760
    %v915 = vsub.f32 %v913, %v914
    %v916 = vand.u32 %v915, 4294901760
    %917 = vmatpush.msra.mxu0 %v916
    %v918 = vand.u32 %v496, 4294901760
    %v919 = vsub.f32 %v496, %v918
    %v920 = vand.u32 %v919, 4294901760
    %v921 = vsub.f32 %v919, %v920
    %v922 = vand.u32 %v921, 4294901760
    %923 = vmatpush.msra.mxu0 %v922
    %v924 = vand.u32 %v495, 4294901760
    %v925 = vsub.f32 %v495, %v924
    %v926 = vand.u32 %v925, 4294901760
    %v927 = vsub.f32 %v925, %v926
    %v928 = vand.u32 %v927, 4294901760
    %929 = vmatpush.msra.mxu0 %v928
    %v930 = vand.u32 %v494, 4294901760
    %v931 = vsub.f32 %v494, %v930
    %v932 = vand.u32 %v931, 4294901760
    %v933 = vsub.f32 %v931, %v932
    %v934 = vand.u32 %v933, 4294901760
    %935 = vmatpush.msra.mxu0 %v934
    %v936 = vand.u32 %v493, 4294901760
    %v937 = vsub.f32 %v493, %v936
    %v938 = vand.u32 %v937, 4294901760
    %v939 = vsub.f32 %v937, %v938
    %v940 = vand.u32 %v939, 4294901760
    %941 = vmatpush.msra.mxu0 %v940
    %v942 = vand.u32 %v492, 4294901760
    %v943 = vsub.f32 %v492, %v942
    %v944 = vand.u32 %v943, 4294901760
    %v945 = vsub.f32 %v943, %v944
    %v946 = vand.u32 %v945, 4294901760
    %947 = vmatpush.msra.mxu0 %v946
    %v948 = vand.u32 %v491, 4294901760
    %v949 = vsub.f32 %v491, %v948
    %v950 = vand.u32 %v949, 4294901760
    %v951 = vsub.f32 %v949, %v950
    %v952 = vand.u32 %v951, 4294901760
    %953 = vmatpush.msra.mxu0 %v952
    %v954 = vand.u32 %v490, 4294901760
    %v955 = vsub.f32 %v490, %v954
    %v956 = vand.u32 %v955, 4294901760
    %v957 = vsub.f32 %v955, %v956
    %v958 = vand.u32 %v957, 4294901760
    %959 = vmatpush.msra.mxu0 %v958
    %v960 = vand.u32 %v489, 4294901760
    %v961 = vsub.f32 %v489, %v960
    %v962 = vand.u32 %v961, 4294901760
    %v963 = vsub.f32 %v961, %v962
    %v964 = vand.u32 %v963, 4294901760
    %965 = vmatpush.msra.mxu0 %v964
    %v966 = vand.u32 %v488, 4294901760
    %v967 = vsub.f32 %v488, %v966
    %v968 = vand.u32 %v967, 4294901760
    %v969 = vsub.f32 %v967, %v968
    %v970 = vand.u32 %v969, 4294901760
    %971 = vmatpush.msra.mxu0 %v970
    %v972 = vand.u32 %v487, 4294901760
    %v973 = vsub.f32 %v487, %v972
    %v974 = vand.u32 %v973, 4294901760
    %v975 = vsub.f32 %v973, %v974
    %v976 = vand.u32 %v975, 4294901760
    %977 = vmatpush.msra.mxu0 %v976
    %v978 = vand.u32 %v486, 4294901760
    %v979 = vsub.f32 %v486, %v978
    %v980 = vand.u32 %v979, 4294901760
    %v981 = vsub.f32 %v979, %v980
    %v982 = vand.u32 %v981, 4294901760
    %983 = vmatpush.msra.mxu0 %v982
    %v984 = vand.u32 %v469, 4294901760
    %985 = vmatmul.f32.gmra.mxu0 %v984
    %v986 = vpop.f32.mrf.mxu0
    %v987 = vadd.f32 %v886, %v986
    %988 = vdwg.mxu0
    %v989 = vand.u32 %v501, 4294901760
    %v990 = vsub.f32 %v501, %v989
    %991 = vmatpush.msra.mxu0 %v990
    %v992 = vand.u32 %v500, 4294901760
    %v993 = vsub.f32 %v500, %v992
    %994 = vmatpush.msra.mxu0 %v993
    %v995 = vand.u32 %v499, 4294901760
    %v996 = vsub.f32 %v499, %v995
    %997 = vmatpush.msra.mxu0 %v996
    %v998 = vand.u32 %v498, 4294901760
    %v999 = vsub.f32 %v498, %v998
    %1000 = vmatpush.msra.mxu0 %v999
    %v1001 = vand.u32 %v497, 4294901760
    %v1002 = vsub.f32 %v497, %v1001
    %1003 = vmatpush.msra.mxu0 %v1002
    %v1004 = vand.u32 %v496, 4294901760
    %v1005 = vsub.f32 %v496, %v1004
    %1006 = vmatpush.msra.mxu0 %v1005
    %v1007 = vand.u32 %v495, 4294901760
    %v1008 = vsub.f32 %v495, %v1007
    %1009 = vmatpush.msra.mxu0 %v1008
    %v1010 = vand.u32 %v494, 4294901760
    %v1011 = vsub.f32 %v494, %v1010
    %1012 = vmatpush.msra.mxu0 %v1011
    %v1013 = vand.u32 %v493, 4294901760
    %v1014 = vsub.f32 %v493, %v1013
    %1015 = vmatpush.msra.mxu0 %v1014
    %v1016 = vand.u32 %v492, 4294901760
    %v1017 = vsub.f32 %v492, %v1016
    %1018 = vmatpush.msra.mxu0 %v1017
    %v1019 = vand.u32 %v491, 4294901760
    %v1020 = vsub.f32 %v491, %v1019
    %1021 = vmatpush.msra.mxu0 %v1020
    %v1022 = vand.u32 %v490, 4294901760
    %v1023 = vsub.f32 %v490, %v1022
    %1024 = vmatpush.msra.mxu0 %v1023
    %v1025 = vand.u32 %v489, 4294901760
    %v1026 = vsub.f32 %v489, %v1025
    %1027 = vmatpush.msra.mxu0 %v1026
    %v1028 = vand.u32 %v488, 4294901760
    %v1029 = vsub.f32 %v488, %v1028
    %1030 = vmatpush.msra.mxu0 %v1029
    %v1031 = vand.u32 %v487, 4294901760
    %v1032 = vsub.f32 %v487, %v1031
    %1033 = vmatpush.msra.mxu0 %v1032
    %v1034 = vand.u32 %v486, 4294901760
    %v1035 = vsub.f32 %v486, %v1034
    %1036 = vmatpush.msra.mxu0 %v1035
    %v1037 = vand.u32 %v469, 4294901760
    %v1038 = vsub.f32 %v469, %v1037
    %1039 = vmatmul.f32.gmra.mxu0 %v1038
    %v1040 = vpop.f32.mrf.mxu0
    %v1041 = vadd.f32 %v987, %v1040
    %1042 = vdwg.mxu0
    %v1043 = vand.u32 %v501, 4294901760
    %1044 = vmatpush.msra.mxu0 %v1043
    %v1045 = vand.u32 %v500, 4294901760
    %1046 = vmatpush.msra.mxu0 %v1045
    %v1047 = vand.u32 %v499, 4294901760
    %1048 = vmatpush.msra.mxu0 %v1047
    %v1049 = vand.u32 %v498, 4294901760
    %1050 = vmatpush.msra.mxu0 %v1049
    %v1051 = vand.u32 %v497, 4294901760
    %1052 = vmatpush.msra.mxu0 %v1051
    %v1053 = vand.u32 %v496, 4294901760
    %1054 = vmatpush.msra.mxu0 %v1053
    %v1055 = vand.u32 %v495, 4294901760
    %1056 = vmatpush.msra.mxu0 %v1055
    %v1057 = vand.u32 %v494, 4294901760
    %1058 = vmatpush.msra.mxu0 %v1057
    %v1059 = vand.u32 %v493, 4294901760
    %1060 = vmatpush.msra.mxu0 %v1059
    %v1061 = vand.u32 %v492, 4294901760
    %1062 = vmatpush.msra.mxu0 %v1061
    %v1063 = vand.u32 %v491, 4294901760
    %1064 = vmatpush.msra.mxu0 %v1063
    %v1065 = vand.u32 %v490, 4294901760
    %1066 = vmatpush.msra.mxu0 %v1065
    %v1067 = vand.u32 %v489, 4294901760
    %1068 = vmatpush.msra.mxu0 %v1067
    %v1069 = vand.u32 %v488, 4294901760
    %1070 = vmatpush.msra.mxu0 %v1069
    %v1071 = vand.u32 %v487, 4294901760
    %1072 = vmatpush.msra.mxu0 %v1071
    %v1073 = vand.u32 %v486, 4294901760
    %1074 = vmatpush.msra.mxu0 %v1073
    %v1075 = vand.u32 %v469, 4294901760
    %v1076 = vsub.f32 %v469, %v1075
    %v1077 = vand.u32 %v1076, 4294901760
    %1078 = vmatmul.f32.gmra.mxu0 %v1077
    %v1079 = vpop.f32.mrf.mxu0
    %v1080 = vadd.f32 %v1041, %v1079
    %1081 = vdwg.mxu0
    %v1082 = vand.u32 %v501, 4294901760
    %v1083 = vsub.f32 %v501, %v1082
    %v1084 = vand.u32 %v1083, 4294901760
    %1085 = vmatpush.msra.mxu0 %v1084
    %v1086 = vand.u32 %v500, 4294901760
    %v1087 = vsub.f32 %v500, %v1086
    %v1088 = vand.u32 %v1087, 4294901760
    %1089 = vmatpush.msra.mxu0 %v1088
    %v1090 = vand.u32 %v499, 4294901760
    %v1091 = vsub.f32 %v499, %v1090
    %v1092 = vand.u32 %v1091, 4294901760
    %1093 = vmatpush.msra.mxu0 %v1092
    %v1094 = vand.u32 %v498, 4294901760
    %v1095 = vsub.f32 %v498, %v1094
    %v1096 = vand.u32 %v1095, 4294901760
    %1097 = vmatpush.msra.mxu0 %v1096
    %v1098 = vand.u32 %v497, 4294901760
    %v1099 = vsub.f32 %v497, %v1098
    %v1100 = vand.u32 %v1099, 4294901760
    %1101 = vmatpush.msra.mxu0 %v1100
    %v1102 = vand.u32 %v496, 4294901760
    %v1103 = vsub.f32 %v496, %v1102
    %v1104 = vand.u32 %v1103, 4294901760
    %1105 = vmatpush.msra.mxu0 %v1104
    %v1106 = vand.u32 %v495, 4294901760
    %v1107 = vsub.f32 %v495, %v1106
    %v1108 = vand.u32 %v1107, 4294901760
    %1109 = vmatpush.msra.mxu0 %v1108
    %v1110 = vand.u32 %v494, 4294901760
    %v1111 = vsub.f32 %v494, %v1110
    %v1112 = vand.u32 %v1111, 4294901760
    %1113 = vmatpush.msra.mxu0 %v1112
    %v1114 = vand.u32 %v493, 4294901760
    %v1115 = vsub.f32 %v493, %v1114
    %v1116 = vand.u32 %v1115, 4294901760
    %1117 = vmatpush.msra.mxu0 %v1116
    %v1118 = vand.u32 %v492, 4294901760
    %v1119 = vsub.f32 %v492, %v1118
    %v1120 = vand.u32 %v1119, 4294901760
    %1121 = vmatpush.msra.mxu0 %v1120
    %v1122 = vand.u32 %v491, 4294901760
    %v1123 = vsub.f32 %v491, %v1122
    %v1124 = vand.u32 %v1123, 4294901760
    %1125 = vmatpush.msra.mxu0 %v1124
    %v1126 = vand.u32 %v490, 4294901760
    %v1127 = vsub.f32 %v490, %v1126
    %v1128 = vand.u32 %v1127, 4294901760
    %1129 = vmatpush.msra.mxu0 %v1128
    %v1130 = vand.u32 %v489, 4294901760
    %v1131 = vsub.f32 %v489, %v1130
    %v1132 = vand.u32 %v1131, 4294901760
    %1133 = vmatpush.msra.mxu0 %v1132
    %v1134 = vand.u32 %v488, 4294901760
    %v1135 = vsub.f32 %v488, %v1134
    %v1136 = vand.u32 %v1135, 4294901760
    %1137 = vmatpush.msra.mxu0 %v1136
    %v1138 = vand.u32 %v487, 4294901760
    %v1139 = vsub.f32 %v487, %v1138
    %v1140 = vand.u32 %v1139, 4294901760
    %1141 = vmatpush.msra.mxu0 %v1140
    %v1142 = vand.u32 %v486, 4294901760
    %v1143 = vsub.f32 %v486, %v1142
    %v1144 = vand.u32 %v1143, 4294901760
    %1145 = vmatpush.msra.mxu0 %v1144
    %v1146 = vand.u32 %v469, 4294901760
    %1147 = vmatmul.f32.gmra.mxu0 %v1146
    %v1148 = vpop.f32.mrf.mxu0
    %v1149 = vadd.f32 %v1080, %v1148
    %1150 = vdwg.mxu0
    %v1151 = vand.u32 %v501, 4294901760
    %1152 = vmatpush.msra.mxu0 %v1151
    %v1153 = vand.u32 %v500, 4294901760
    %1154 = vmatpush.msra.mxu0 %v1153
    %v1155 = vand.u32 %v499, 4294901760
    %1156 = vmatpush.msra.mxu0 %v1155
    %v1157 = vand.u32 %v498, 4294901760
    %1158 = vmatpush.msra.mxu0 %v1157
    %v1159 = vand.u32 %v497, 4294901760
    %1160 = vmatpush.msra.mxu0 %v1159
    %v1161 = vand.u32 %v496, 4294901760
    %1162 = vmatpush.msra.mxu0 %v1161
    %v1163 = vand.u32 %v495, 4294901760
    %1164 = vmatpush.msra.mxu0 %v1163
    %v1165 = vand.u32 %v494, 4294901760
    %1166 = vmatpush.msra.mxu0 %v1165
    %v1167 = vand.u32 %v493, 4294901760
    %1168 = vmatpush.msra.mxu0 %v1167
    %v1169 = vand.u32 %v492, 4294901760
    %1170 = vmatpush.msra.mxu0 %v1169
    %v1171 = vand.u32 %v491, 4294901760
    %1172 = vmatpush.msra.mxu0 %v1171
    %v1173 = vand.u32 %v490, 4294901760
    %1174 = vmatpush.msra.mxu0 %v1173
    %v1175 = vand.u32 %v489, 4294901760
    %1176 = vmatpush.msra.mxu0 %v1175
    %v1177 = vand.u32 %v488, 4294901760
    %1178 = vmatpush.msra.mxu0 %v1177
    %v1179 = vand.u32 %v487, 4294901760
    %1180 = vmatpush.msra.mxu0 %v1179
    %v1181 = vand.u32 %v486, 4294901760
    %1182 = vmatpush.msra.mxu0 %v1181
    %v1183 = vand.u32 %v469, 4294901760
    %1184 = vmatmul.f32.gmra.mxu0 %v1183
    %v1185 = vpop.f32.mrf.mxu0
    %v1186 = vadd.f32 %v1149, %v1185
    %1187 = vdwg.mxu0
    %v1188 = vtanh.pop %v1186
    %v1189 = vld [vmem:[%s5] sm:$0xff]
    %v1190 = vld [vmem:[%s5 + $0x8] sm:$0xff]
    %v1191 = vld [vmem:[%s5 + $0x10] sm:$0xff]
    %v1192 = vld [vmem:[%s5 + $0x18] sm:$0xff]
    %v1193 = vld [vmem:[%s5 + $0x20] sm:$0xff]
    %v1194 = vld [vmem:[%s5 + $0x28] sm:$0xff]
    %v1195 = vld [vmem:[%s5 + $0x30] sm:$0xff]
    %v1196 = vld [vmem:[%s5 + $0x38] sm:$0xff]
    %v1197 = vld [vmem:[%s6] sm:$0x1]
    %v1199 = vperm.slane %v1197, 0
    %vm1201 = vcmask 523264
    %v1203 = vsel %vm1201, %v1188, 0
    %1205 = vmatpush.msra.mxu0 0.0
    %1206 = vmatpush.msra.mxu0 0.0
    %1207 = vmatpush.msra.mxu0 0.0
    %1208 = vmatpush.msra.mxu0 0.0
    %1209 = vmatpush.msra.mxu0 0.0
    %1210 = vmatpush.msra.mxu0 0.0
    %1211 = vmatpush.msra.mxu0 0.0
    %1212 = vmatpush.msra.mxu0 0.0
    %v1213 = vand.u32 %v1196, 4294901760
    %1214 = vmatpush.msra.mxu0 %v1213
    %v1215 = vand.u32 %v1195, 4294901760
    %1216 = vmatpush.msra.mxu0 %v1215
    %v1217 = vand.u32 %v1194, 4294901760
    %1218 = vmatpush.msra.mxu0 %v1217
    %v1219 = vand.u32 %v1193, 4294901760
    %1220 = vmatpush.msra.mxu0 %v1219
    %v1221 = vand.u32 %v1192, 4294901760
    %1222 = vmatpush.msra.mxu0 %v1221
    %v1223 = vand.u32 %v1191, 4294901760
    %1224 = vmatpush.msra.mxu0 %v1223
    %v1225 = vand.u32 %v1190, 4294901760
    %1226 = vmatpush.msra.mxu0 %v1225
    %v1227 = vand.u32 %v1189, 4294901760
    %1228 = vmatpush.msra.mxu0 %v1227
    %v1229 = vand.u32 %v1203, 4294901760
    %v1230 = vsub.f32 %v1203, %v1229
    %v1231 = vand.u32 %v1230, 4294901760
    %v1232 = vsub.f32 %v1230, %v1231
    %v1233 = vand.u32 %v1232, 4294901760
    %1234 = vmatmul.f32.gmra.mxu0 %v1233
    %v1235 = vpop.f32.mrf.mxu0
    %v1236 = vadd.f32 %v1199, %v1235
    %1237 = vdwg.mxu0
    %1238 = vmatpush.msra.mxu0 0.0
    %1239 = vmatpush.msra.mxu0 0.0
    %1240 = vmatpush.msra.mxu0 0.0
    %1241 = vmatpush.msra.mxu0 0.0
    %1242 = vmatpush.msra.mxu0 0.0
    %1243 = vmatpush.msra.mxu0 0.0
    %1244 = vmatpush.msra.mxu0 0.0
    %1245 = vmatpush.msra.mxu0 0.0
    %v1246 = vand.u32 %v1196, 4294901760
    %v1247 = vsub.f32 %v1196, %v1246
    %v1248 = vand.u32 %v1247, 4294901760
    %v1249 = vsub.f32 %v1247, %v1248
    %v1250 = vand.u32 %v1249, 4294901760
    %1251 = vmatpush.msra.mxu0 %v1250
    %v1252 = vand.u32 %v1195, 4294901760
    %v1253 = vsub.f32 %v1195, %v1252
    %v1254 = vand.u32 %v1253, 4294901760
    %v1255 = vsub.f32 %v1253, %v1254
    %v1256 = vand.u32 %v1255, 4294901760
    %1257 = vmatpush.msra.mxu0 %v1256
    %v1258 = vand.u32 %v1194, 4294901760
    %v1259 = vsub.f32 %v1194, %v1258
    %v1260 = vand.u32 %v1259, 4294901760
    %v1261 = vsub.f32 %v1259, %v1260
    %v1262 = vand.u32 %v1261, 4294901760
    %1263 = vmatpush.msra.mxu0 %v1262
    %v1264 = vand.u32 %v1193, 4294901760
    %v1265 = vsub.f32 %v1193, %v1264
    %v1266 = vand.u32 %v1265, 4294901760
    %v1267 = vsub.f32 %v1265, %v1266
    %v1268 = vand.u32 %v1267, 4294901760
    %1269 = vmatpush.msra.mxu0 %v1268
    %v1270 = vand.u32 %v1192, 4294901760
    %v1271 = vsub.f32 %v1192, %v1270
    %v1272 = vand.u32 %v1271, 4294901760
    %v1273 = vsub.f32 %v1271, %v1272
    %v1274 = vand.u32 %v1273, 4294901760
    %1275 = vmatpush.msra.mxu0 %v1274
    %v1276 = vand.u32 %v1191, 4294901760
    %v1277 = vsub.f32 %v1191, %v1276
    %v1278 = vand.u32 %v1277, 4294901760
    %v1279 = vsub.f32 %v1277, %v1278
    %v1280 = vand.u32 %v1279, 4294901760
    %1281 = vmatpush.msra.mxu0 %v1280
    %v1282 = vand.u32 %v1190, 4294901760
    %v1283 = vsub.f32 %v1190, %v1282
    %v1284 = vand.u32 %v1283, 4294901760
    %v1285 = vsub.f32 %v1283, %v1284
    %v1286 = vand.u32 %v1285, 4294901760
    %1287 = vmatpush.msra.mxu0 %v1286
    %v1288 = vand.u32 %v1189, 4294901760
    %v1289 = vsub.f32 %v1189, %v1288
    %v1290 = vand.u32 %v1289, 4294901760
    %v1291 = vsub.f32 %v1289, %v1290
    %v1292 = vand.u32 %v1291, 4294901760
    %1293 = vmatpush.msra.mxu0 %v1292
    %v1294 = vand.u32 %v1203, 4294901760
    %1295 = vmatmul.f32.gmra.mxu0 %v1294
    %v1296 = vpop.f32.mrf.mxu0
    %v1297 = vadd.f32 %v1236, %v1296
    %1298 = vdwg.mxu0
    %1299 = vmatpush.msra.mxu0 0.0
    %1300 = vmatpush.msra.mxu0 0.0
    %1301 = vmatpush.msra.mxu0 0.0
    %1302 = vmatpush.msra.mxu0 0.0
    %1303 = vmatpush.msra.mxu0 0.0
    %1304 = vmatpush.msra.mxu0 0.0
    %1305 = vmatpush.msra.mxu0 0.0
    %1306 = vmatpush.msra.mxu0 0.0
    %v1307 = vand.u32 %v1196, 4294901760
    %v1308 = vsub.f32 %v1196, %v1307
    %1309 = vmatpush.msra.mxu0 %v1308
    %v1310 = vand.u32 %v1195, 4294901760
    %v1311 = vsub.f32 %v1195, %v1310
    %1312 = vmatpush.msra.mxu0 %v1311
    %v1313 = vand.u32 %v1194, 4294901760
    %v1314 = vsub.f32 %v1194, %v1313
    %1315 = vmatpush.msra.mxu0 %v1314
    %v1316 = vand.u32 %v1193, 4294901760
    %v1317 = vsub.f32 %v1193, %v1316
    %1318 = vmatpush.msra.mxu0 %v1317
    %v1319 = vand.u32 %v1192, 4294901760
    %v1320 = vsub.f32 %v1192, %v1319
    %1321 = vmatpush.msra.mxu0 %v1320
    %v1322 = vand.u32 %v1191, 4294901760
    %v1323 = vsub.f32 %v1191, %v1322
    %1324 = vmatpush.msra.mxu0 %v1323
    %v1325 = vand.u32 %v1190, 4294901760
    %v1326 = vsub.f32 %v1190, %v1325
    %1327 = vmatpush.msra.mxu0 %v1326
    %v1328 = vand.u32 %v1189, 4294901760
    %v1329 = vsub.f32 %v1189, %v1328
    %1330 = vmatpush.msra.mxu0 %v1329
    %v1331 = vand.u32 %v1203, 4294901760
    %v1332 = vsub.f32 %v1203, %v1331
    %1333 = vmatmul.f32.gmra.mxu0 %v1332
    %v1334 = vpop.f32.mrf.mxu0
    %v1335 = vadd.f32 %v1297, %v1334
    %1336 = vdwg.mxu0
    %1337 = vmatpush.msra.mxu0 0.0
    %1338 = vmatpush.msra.mxu0 0.0
    %1339 = vmatpush.msra.mxu0 0.0
    %1340 = vmatpush.msra.mxu0 0.0
    %1341 = vmatpush.msra.mxu0 0.0
    %1342 = vmatpush.msra.mxu0 0.0
    %1343 = vmatpush.msra.mxu0 0.0
    %1344 = vmatpush.msra.mxu0 0.0
    %v1345 = vand.u32 %v1196, 4294901760
    %1346 = vmatpush.msra.mxu0 %v1345
    %v1347 = vand.u32 %v1195, 4294901760
    %1348 = vmatpush.msra.mxu0 %v1347
    %v1349 = vand.u32 %v1194, 4294901760
    %1350 = vmatpush.msra.mxu0 %v1349
    %v1351 = vand.u32 %v1193, 4294901760
    %1352 = vmatpush.msra.mxu0 %v1351
    %v1353 = vand.u32 %v1192, 4294901760
    %1354 = vmatpush.msra.mxu0 %v1353
    %v1355 = vand.u32 %v1191, 4294901760
    %1356 = vmatpush.msra.mxu0 %v1355
    %v1357 = vand.u32 %v1190, 4294901760
    %1358 = vmatpush.msra.mxu0 %v1357
    %v1359 = vand.u32 %v1189, 4294901760
    %1360 = vmatpush.msra.mxu0 %v1359
    %v1361 = vand.u32 %v1203, 4294901760
    %v1362 = vsub.f32 %v1203, %v1361
    %v1363 = vand.u32 %v1362, 4294901760
    %1364 = vmatmul.f32.gmra.mxu0 %v1363
    %v1365 = vpop.f32.mrf.mxu0
    %v1366 = vadd.f32 %v1335, %v1365
    %1367 = vdwg.mxu0
    %1368 = vmatpush.msra.mxu0 0.0
    %1369 = vmatpush.msra.mxu0 0.0
    %1370 = vmatpush.msra.mxu0 0.0
    %1371 = vmatpush.msra.mxu0 0.0
    %1372 = vmatpush.msra.mxu0 0.0
    %1373 = vmatpush.msra.mxu0 0.0
    %1374 = vmatpush.msra.mxu0 0.0
    %1375 = vmatpush.msra.mxu0 0.0
    %v1376 = vand.u32 %v1196, 4294901760
    %v1377 = vsub.f32 %v1196, %v1376
    %v1378 = vand.u32 %v1377, 4294901760
    %1379 = vmatpush.msra.mxu0 %v1378
    %v1380 = vand.u32 %v1195, 4294901760
    %v1381 = vsub.f32 %v1195, %v1380
    %v1382 = vand.u32 %v1381, 4294901760
    %1383 = vmatpush.msra.mxu0 %v1382
    %v1384 = vand.u32 %v1194, 4294901760
    %v1385 = vsub.f32 %v1194, %v1384
    %v1386 = vand.u32 %v1385, 4294901760
    %1387 = vmatpush.msra.mxu0 %v1386
    %v1388 = vand.u32 %v1193, 4294901760
    %v1389 = vsub.f32 %v1193, %v1388
    %v1390 = vand.u32 %v1389, 4294901760
    %1391 = vmatpush.msra.mxu0 %v1390
    %v1392 = vand.u32 %v1192, 4294901760
    %v1393 = vsub.f32 %v1192, %v1392
    %v1394 = vand.u32 %v1393, 4294901760
    %1395 = vmatpush.msra.mxu0 %v1394
    %v1396 = vand.u32 %v1191, 4294901760
    %v1397 = vsub.f32 %v1191, %v1396
    %v1398 = vand.u32 %v1397, 4294901760
    %1399 = vmatpush.msra.mxu0 %v1398
    %v1400 = vand.u32 %v1190, 4294901760
    %v1401 = vsub.f32 %v1190, %v1400
    %v1402 = vand.u32 %v1401, 4294901760
    %1403 = vmatpush.msra.mxu0 %v1402
    %v1404 = vand.u32 %v1189, 4294901760
    %v1405 = vsub.f32 %v1189, %v1404
    %v1406 = vand.u32 %v1405, 4294901760
    %1407 = vmatpush.msra.mxu0 %v1406
    %v1408 = vand.u32 %v1203, 4294901760
    %1409 = vmatmul.f32.gmra.mxu0 %v1408
    %v1410 = vpop.f32.mrf.mxu0
    %v1411 = vadd.f32 %v1366, %v1410
    %1412 = vdwg.mxu0
    %1413 = vmatpush.msra.mxu0 0.0
    %1414 = vmatpush.msra.mxu0 0.0
    %1415 = vmatpush.msra.mxu0 0.0
    %1416 = vmatpush.msra.mxu0 0.0
    %1417 = vmatpush.msra.mxu0 0.0
    %1418 = vmatpush.msra.mxu0 0.0
    %1419 = vmatpush.msra.mxu0 0.0
    %1420 = vmatpush.msra.mxu0 0.0
    %v1421 = vand.u32 %v1196, 4294901760
    %1422 = vmatpush.msra.mxu0 %v1421
    %v1423 = vand.u32 %v1195, 4294901760
    %1424 = vmatpush.msra.mxu0 %v1423
    %v1425 = vand.u32 %v1194, 4294901760
    %1426 = vmatpush.msra.mxu0 %v1425
    %v1427 = vand.u32 %v1193, 4294901760
    %1428 = vmatpush.msra.mxu0 %v1427
    %v1429 = vand.u32 %v1192, 4294901760
    %1430 = vmatpush.msra.mxu0 %v1429
    %v1431 = vand.u32 %v1191, 4294901760
    %1432 = vmatpush.msra.mxu0 %v1431
    %v1433 = vand.u32 %v1190, 4294901760
    %1434 = vmatpush.msra.mxu0 %v1433
    %v1435 = vand.u32 %v1189, 4294901760
    %1436 = vmatpush.msra.mxu0 %v1435
    %v1437 = vand.u32 %v1203, 4294901760
    %1438 = vmatmul.f32.gmra.mxu0 %v1437
    %v1439 = vpop.f32.mrf.mxu0
    %v1440 = vadd.f32 %v1411, %v1439
    %1441 = vdwg.mxu0
    %v1442 = vtanh.pop %v1440
    %v1443 = vld [vmem:[%s7] sm:$0xff]
    %v1444 = vld [vmem:[%s8] sm:$0x1]
    %v1446 = vperm.slane %v1444, 0
    %vm1448 = vcmask 64512
    %v1450 = vsel %vm1448, %v1442, 0
    %1452 = vmatpush.msra.mxu0 0.0
    %1453 = vmatpush.msra.mxu0 0.0
    %1454 = vmatpush.msra.mxu0 0.0
    %1455 = vmatpush.msra.mxu0 0.0
    %1456 = vmatpush.msra.mxu0 0.0
    %1457 = vmatpush.msra.mxu0 0.0
    %1458 = vmatpush.msra.mxu0 0.0
    %1459 = vmatpush.msra.mxu0 0.0
    %1460 = vmatpush.msra.mxu0 0.0
    %1461 = vmatpush.msra.mxu0 0.0
    %1462 = vmatpush.msra.mxu0 0.0
    %1463 = vmatpush.msra.mxu0 0.0
    %1464 = vmatpush.msra.mxu0 0.0
    %1465 = vmatpush.msra.mxu0 0.0
    %1466 = vmatpush.msra.mxu0 0.0
    %v1467 = vand.u32 %v1443, 4294901760
    %1468 = vmatpush.msra.mxu0 %v1467
    %v1469 = vand.u32 %v1450, 4294901760
    %v1470 = vsub.f32 %v1450, %v1469
    %v1471 = vand.u32 %v1470, 4294901760
    %v1472 = vsub.f32 %v1470, %v1471
    %v1473 = vand.u32 %v1472, 4294901760
    %1474 = vmatmul.f32.gmra.mxu0 %v1473
    %v1475 = vpop.f32.mrf.mxu0
    %v1476 = vadd.f32 %v1446, %v1475
    %1477 = vdwg.mxu0
    %1478 = vmatpush.msra.mxu0 0.0
    %1479 = vmatpush.msra.mxu0 0.0
    %1480 = vmatpush.msra.mxu0 0.0
    %1481 = vmatpush.msra.mxu0 0.0
    %1482 = vmatpush.msra.mxu0 0.0
    %1483 = vmatpush.msra.mxu0 0.0
    %1484 = vmatpush.msra.mxu0 0.0
    %1485 = vmatpush.msra.mxu0 0.0
    %1486 = vmatpush.msra.mxu0 0.0
    %1487 = vmatpush.msra.mxu0 0.0
    %1488 = vmatpush.msra.mxu0 0.0
    %1489 = vmatpush.msra.mxu0 0.0
    %1490 = vmatpush.msra.mxu0 0.0
    %1491 = vmatpush.msra.mxu0 0.0
    %1492 = vmatpush.msra.mxu0 0.0
    %v1493 = vand.u32 %v1443, 4294901760
    %v1494 = vsub.f32 %v1443, %v1493
    %v1495 = vand.u32 %v1494, 4294901760
    %v1496 = vsub.f32 %v1494, %v1495
    %v1497 = vand.u32 %v1496, 4294901760
    %1498 = vmatpush.msra.mxu0 %v1497
    %v1499 = vand.u32 %v1450, 4294901760
    %1500 = vmatmul.f32.gmra.mxu0 %v1499
    %v1501 = vpop.f32.mrf.mxu0
    %v1502 = vadd.f32 %v1476, %v1501
    %1503 = vdwg.mxu0
    %1504 = vmatpush.msra.mxu0 0.0
    %1505 = vmatpush.msra.mxu0 0.0
    %1506 = vmatpush.msra.mxu0 0.0
    %1507 = vmatpush.msra.mxu0 0.0
    %1508 = vmatpush.msra.mxu0 0.0
    %1509 = vmatpush.msra.mxu0 0.0
    %1510 = vmatpush.msra.mxu0 0.0
    %1511 = vmatpush.msra.mxu0 0.0
    %1512 = vmatpush.msra.mxu0 0.0
    %1513 = vmatpush.msra.mxu0 0.0
    %1514 = vmatpush.msra.mxu0 0.0
    %1515 = vmatpush.msra.mxu0 0.0
    %1516 = vmatpush.msra.mxu0 0.0
    %1517 = vmatpush.msra.mxu0 0.0
    %1518 = vmatpush.msra.mxu0 0.0
    %v1519 = vand.u32 %v1443, 4294901760
    %v1520 = vsub.f32 %v1443, %v1519
    %1521 = vmatpush.msra.mxu0 %v1520
    %v1522 = vand.u32 %v1450, 4294901760
    %v1523 = vsub.f32 %v1450, %v1522
    %1524 = vmatmul.f32.gmra.mxu0 %v1523
    %v1525 = vpop.f32.mrf.mxu0
    %v1526 = vadd.f32 %v1502, %v1525
    %1527 = vdwg.mxu0
    %1528 = vmatpush.msra.mxu0 0.0
    %1529 = vmatpush.msra.mxu0 0.0
    %1530 = vmatpush.msra.mxu0 0.0
    %1531 = vmatpush.msra.mxu0 0.0
    %1532 = vmatpush.msra.mxu0 0.0
    %1533 = vmatpush.msra.mxu0 0.0
    %1534 = vmatpush.msra.mxu0 0.0
    %1535 = vmatpush.msra.mxu0 0.0
    %1536 = vmatpush.msra.mxu0 0.0
    %1537 = vmatpush.msra.mxu0 0.0
    %1538 = vmatpush.msra.mxu0 0.0
    %1539 = vmatpush.msra.mxu0 0.0
    %1540 = vmatpush.msra.mxu0 0.0
    %1541 = vmatpush.msra.mxu0 0.0
    %1542 = vmatpush.msra.mxu0 0.0
    %v1543 = vand.u32 %v1443, 4294901760
    %1544 = vmatpush.msra.mxu0 %v1543
    %v1545 = vand.u32 %v1450, 4294901760
    %v1546 = vsub.f32 %v1450, %v1545
    %v1547 = vand.u32 %v1546, 4294901760
    %1548 = vmatmul.f32.gmra.mxu0 %v1547
    %v1549 = vpop.f32.mrf.mxu0
    %v1550 = vadd.f32 %v1526, %v1549
    %1551 = vdwg.mxu0
    %1552 = vmatpush.msra.mxu0 0.0
    %1553 = vmatpush.msra.mxu0 0.0
    %1554 = vmatpush.msra.mxu0 0.0
    %1555 = vmatpush.msra.mxu0 0.0
    %1556 = vmatpush.msra.mxu0 0.0
    %1557 = vmatpush.msra.mxu0 0.0
    %1558 = vmatpush.msra.mxu0 0.0
    %1559 = vmatpush.msra.mxu0 0.0
    %1560 = vmatpush.msra.mxu0 0.0
    %1561 = vmatpush.msra.mxu0 0.0
    %1562 = vmatpush.msra.mxu0 0.0
    %1563 = vmatpush.msra.mxu0 0.0
    %1564 = vmatpush.msra.mxu0 0.0
    %1565 = vmatpush.msra.mxu0 0.0
    %1566 = vmatpush.msra.mxu0 0.0
    %v1567 = vand.u32 %v1443, 4294901760
    %v1568 = vsub.f32 %v1443, %v1567
    %v1569 = vand.u32 %v1568, 4294901760
    %1570 = vmatpush.msra.mxu0 %v1569
    %v1571 = vand.u32 %v1450, 4294901760
    %1572 = vmatmul.f32.gmra.mxu0 %v1571
    %v1573 = vpop.f32.mrf.mxu0
    %v1574 = vadd.f32 %v1550, %v1573
    %1575 = vdwg.mxu0
    %1576 = vmatpush.msra.mxu0 0.0
    %1577 = vmatpush.msra.mxu0 0.0
    %1578 = vmatpush.msra.mxu0 0.0
    %1579 = vmatpush.msra.mxu0 0.0
    %1580 = vmatpush.msra.mxu0 0.0
    %1581 = vmatpush.msra.mxu0 0.0
    %1582 = vmatpush.msra.mxu0 0.0
    %1583 = vmatpush.msra.mxu0 0.0
    %1584 = vmatpush.msra.mxu0 0.0
    %1585 = vmatpush.msra.mxu0 0.0
    %1586 = vmatpush.msra.mxu0 0.0
    %1587 = vmatpush.msra.mxu0 0.0
    %1588 = vmatpush.msra.mxu0 0.0
    %1589 = vmatpush.msra.mxu0 0.0
    %1590 = vmatpush.msra.mxu0 0.0
    %v1591 = vand.u32 %v1443, 4294901760
    %1592 = vmatpush.msra.mxu0 %v1591
    %v1593 = vand.u32 %v1450, 4294901760
    %1594 = vmatmul.f32.gmra.mxu0 %v1593
    %v1595 = vpop.f32.mrf.mxu0
    %v1596 = vadd.f32 %v1574, %v1595
    %1597 = vdwg.mxu0
    %1598 = vst [vmem:[#allocation5 + $0x110] sm:$0xff] %v1596
    %v1599 = vld [vmem:[%s9] sm:$0xff]
    %v1600 = vld [vmem:[%s9 + $0x8] sm:$0xff]
    %v1601 = vld [vmem:[%s9 + $0x10] sm:$0xff]
    %v1602 = vld [vmem:[%s9 + $0x18] sm:$0xff]
    %v1603 = vld [vmem:[%s9 + $0x20] sm:$0xff]
    %v1604 = vld [vmem:[%s9 + $0x28] sm:$0xff]
    %v1605 = vld [vmem:[%s9 + $0x30] sm:$0xff]
    %v1606 = vld [vmem:[%s9 + $0x38] sm:$0xff]
    %v1607 = vld [vmem:[%s9 + $0x40] sm:$0xff]
    %v1608 = vld [vmem:[%s9 + $0x48] sm:$0xff]
    %v1609 = vld [vmem:[%s9 + $0x50] sm:$0xff]
    %v1610 = vld [vmem:[%s9 + $0x58] sm:$0xff]
    %v1611 = vld [vmem:[%s9 + $0x60] sm:$0xff]
    %v1612 = vld [vmem:[%s9 + $0x68] sm:$0xff]
    %v1613 = vld [vmem:[%s9 + $0x70] sm:$0xff]
    %v1614 = vld [vmem:[%s9 + $0x78] sm:$0xff]
    %v1615 = vld [vmem:[%s10] sm:$0x1]
    %v1617 = vperm.slane %v1615, 0
    %v1619 = vand.u32 %v1614, 4294901760
    %1620 = vmatpush.msra.mxu0 %v1619
    %v1621 = vand.u32 %v1613, 4294901760
    %1622 = vmatpush.msra.mxu0 %v1621
    %v1623 = vand.u32 %v1612, 4294901760
    %1624 = vmatpush.msra.mxu0 %v1623
    %v1625 = vand.u32 %v1611, 4294901760
    %1626 = vmatpush.msra.mxu0 %v1625
    %v1627 = vand.u32 %v1610, 4294901760
    %1628 = vmatpush.msra.mxu0 %v1627
    %v1629 = vand.u32 %v1609, 4294901760
    %1630 = vmatpush.msra.mxu0 %v1629
    %v1631 = vand.u32 %v1608, 4294901760
    %1632 = vmatpush.msra.mxu0 %v1631
    %v1633 = vand.u32 %v1607, 4294901760
    %1634 = vmatpush.msra.mxu0 %v1633
    %v1635 = vand.u32 %v1606, 4294901760
    %1636 = vmatpush.msra.mxu0 %v1635
    %v1637 = vand.u32 %v1605, 4294901760
    %1638 = vmatpush.msra.mxu0 %v1637
    %v1639 = vand.u32 %v1604, 4294901760
    %1640 = vmatpush.msra.mxu0 %v1639
    %v1641 = vand.u32 %v1603, 4294901760
    %1642 = vmatpush.msra.mxu0 %v1641
    %v1643 = vand.u32 %v1602, 4294901760
    %1644 = vmatpush.msra.mxu0 %v1643
    %v1645 = vand.u32 %v1601, 4294901760
    %1646 = vmatpush.msra.mxu0 %v1645
    %v1647 = vand.u32 %v1600, 4294901760
    %1648 = vmatpush.msra.mxu0 %v1647
    %v1649 = vand.u32 %v1599, 4294901760
    %1650 = vmatpush.msra.mxu0 %v1649
    %v1651 = vand.u32 %v1596, 4294901760
    %v1652 = vsub.f32 %v1596, %v1651
    %v1653 = vand.u32 %v1652, 4294901760
    %v1654 = vsub.f32 %v1652, %v1653
    %v1655 = vand.u32 %v1654, 4294901760
    %1656 = vmatmul.f32.gmra.mxu0 %v1655
    %v1657 = vpop.f32.mrf.mxu0
    %v1658 = vadd.f32 %v1617, %v1657
    %1659 = vdwg.mxu0
    %v1660 = vand.u32 %v1614, 4294901760
    %v1661 = vsub.f32 %v1614, %v1660
    %v1662 = vand.u32 %v1661, 4294901760
    %v1663 = vsub.f32 %v1661, %v1662
    %v1664 = vand.u32 %v1663, 4294901760
    %1665 = vmatpush.msra.mxu0 %v1664
    %v1666 = vand.u32 %v1613, 4294901760
    %v1667 = vsub.f32 %v1613, %v1666
    %v1668 = vand.u32 %v1667, 4294901760
    %v1669 = vsub.f32 %v1667, %v1668
    %v1670 = vand.u32 %v1669, 4294901760
    %1671 = vmatpush.msra.mxu0 %v1670
    %v1672 = vand.u32 %v1612, 4294901760
    %v1673 = vsub.f32 %v1612, %v1672
    %v1674 = vand.u32 %v1673, 4294901760
    %v1675 = vsub.f32 %v1673, %v1674
    %v1676 = vand.u32 %v1675, 4294901760
    %1677 = vmatpush.msra.mxu0 %v1676
    %v1678 = vand.u32 %v1611, 4294901760
    %v1679 = vsub.f32 %v1611, %v1678
    %v1680 = vand.u32 %v1679, 4294901760
    %v1681 = vsub.f32 %v1679, %v1680
    %v1682 = vand.u32 %v1681, 4294901760
    %1683 = vmatpush.msra.mxu0 %v1682
    %v1684 = vand.u32 %v1610, 4294901760
    %v1685 = vsub.f32 %v1610, %v1684
    %v1686 = vand.u32 %v1685, 4294901760
    %v1687 = vsub.f32 %v1685, %v1686
    %v1688 = vand.u32 %v1687, 4294901760
    %1689 = vmatpush.msra.mxu0 %v1688
    %v1690 = vand.u32 %v1609, 4294901760
    %v1691 = vsub.f32 %v1609, %v1690
    %v1692 = vand.u32 %v1691, 4294901760
    %v1693 = vsub.f32 %v1691, %v1692
    %v1694 = vand.u32 %v1693, 4294901760
    %1695 = vmatpush.msra.mxu0 %v1694
    %v1696 = vand.u32 %v1608, 4294901760
    %v1697 = vsub.f32 %v1608, %v1696
    %v1698 = vand.u32 %v1697, 4294901760
    %v1699 = vsub.f32 %v1697, %v1698
    %v1700 = vand.u32 %v1699, 4294901760
    %1701 = vmatpush.msra.mxu0 %v1700
    %v1702 = vand.u32 %v1607, 4294901760
    %v1703 = vsub.f32 %v1607, %v1702
    %v1704 = vand.u32 %v1703, 4294901760
    %v1705 = vsub.f32 %v1703, %v1704
    %v1706 = vand.u32 %v1705, 4294901760
    %1707 = vmatpush.msra.mxu0 %v1706
    %v1708 = vand.u32 %v1606, 4294901760
    %v1709 = vsub.f32 %v1606, %v1708
    %v1710 = vand.u32 %v1709, 4294901760
    %v1711 = vsub.f32 %v1709, %v1710
    %v1712 = vand.u32 %v1711, 4294901760
    %1713 = vmatpush.msra.mxu0 %v1712
    %v1714 = vand.u32 %v1605, 4294901760
    %v1715 = vsub.f32 %v1605, %v1714
    %v1716 = vand.u32 %v1715, 4294901760
    %v1717 = vsub.f32 %v1715, %v1716
    %v1718 = vand.u32 %v1717, 4294901760
    %1719 = vmatpush.msra.mxu0 %v1718
    %v1720 = vand.u32 %v1604, 4294901760
    %v1721 = vsub.f32 %v1604, %v1720
    %v1722 = vand.u32 %v1721, 4294901760
    %v1723 = vsub.f32 %v1721, %v1722
    %v1724 = vand.u32 %v1723, 4294901760
    %1725 = vmatpush.msra.mxu0 %v1724
    %v1726 = vand.u32 %v1603, 4294901760
    %v1727 = vsub.f32 %v1603, %v1726
    %v1728 = vand.u32 %v1727, 4294901760
    %v1729 = vsub.f32 %v1727, %v1728
    %v1730 = vand.u32 %v1729, 4294901760
    %1731 = vmatpush.msra.mxu0 %v1730
    %v1732 = vand.u32 %v1602, 4294901760
    %v1733 = vsub.f32 %v1602, %v1732
    %v1734 = vand.u32 %v1733, 4294901760
    %v1735 = vsub.f32 %v1733, %v1734
    %v1736 = vand.u32 %v1735, 4294901760
    %1737 = vmatpush.msra.mxu0 %v1736
    %v1738 = vand.u32 %v1601, 4294901760
    %v1739 = vsub.f32 %v1601, %v1738
    %v1740 = vand.u32 %v1739, 4294901760
    %v1741 = vsub.f32 %v1739, %v1740
    %v1742 = vand.u32 %v1741, 4294901760
    %1743 = vmatpush.msra.mxu0 %v1742
    %v1744 = vand.u32 %v1600, 4294901760
    %v1745 = vsub.f32 %v1600, %v1744
    %v1746 = vand.u32 %v1745, 4294901760
    %v1747 = vsub.f32 %v1745, %v1746
    %v1748 = vand.u32 %v1747, 4294901760
    %1749 = vmatpush.msra.mxu0 %v1748
    %v1750 = vand.u32 %v1599, 4294901760
    %v1751 = vsub.f32 %v1599, %v1750
    %v1752 = vand.u32 %v1751, 4294901760
    %v1753 = vsub.f32 %v1751, %v1752
    %v1754 = vand.u32 %v1753, 4294901760
    %1755 = vmatpush.msra.mxu0 %v1754
    %v1756 = vand.u32 %v1596, 4294901760
    %1757 = vmatmul.f32.gmra.mxu0 %v1756
    %v1758 = vpop.f32.mrf.mxu0
    %v1759 = vadd.f32 %v1658, %v1758
    %1760 = vdwg.mxu0
    %v1761 = vand.u32 %v1614, 4294901760
    %v1762 = vsub.f32 %v1614, %v1761
    %1763 = vmatpush.msra.mxu0 %v1762
    %v1764 = vand.u32 %v1613, 4294901760
    %v1765 = vsub.f32 %v1613, %v1764
    %1766 = vmatpush.msra.mxu0 %v1765
    %v1767 = vand.u32 %v1612, 4294901760
    %v1768 = vsub.f32 %v1612, %v1767
    %1769 = vmatpush.msra.mxu0 %v1768
    %v1770 = vand.u32 %v1611, 4294901760
    %v1771 = vsub.f32 %v1611, %v1770
    %1772 = vmatpush.msra.mxu0 %v1771
    %v1773 = vand.u32 %v1610, 4294901760
    %v1774 = vsub.f32 %v1610, %v1773
    %1775 = vmatpush.msra.mxu0 %v1774
    %v1776 = vand.u32 %v1609, 4294901760
    %v1777 = vsub.f32 %v1609, %v1776
    %1778 = vmatpush.msra.mxu0 %v1777
    %v1779 = vand.u32 %v1608, 4294901760
    %v1780 = vsub.f32 %v1608, %v1779
    %1781 = vmatpush.msra.mxu0 %v1780
    %v1782 = vand.u32 %v1607, 4294901760
    %v1783 = vsub.f32 %v1607, %v1782
    %1784 = vmatpush.msra.mxu0 %v1783
    %v1785 = vand.u32 %v1606, 4294901760
    %v1786 = vsub.f32 %v1606, %v1785
    %1787 = vmatpush.msra.mxu0 %v1786
    %v1788 = vand.u32 %v1605, 4294901760
    %v1789 = vsub.f32 %v1605, %v1788
    %1790 = vmatpush.msra.mxu0 %v1789
    %v1791 = vand.u32 %v1604, 4294901760
    %v1792 = vsub.f32 %v1604, %v1791
    %1793 = vmatpush.msra.mxu0 %v1792
    %v1794 = vand.u32 %v1603, 4294901760
    %v1795 = vsub.f32 %v1603, %v1794
    %1796 = vmatpush.msra.mxu0 %v1795
    %v1797 = vand.u32 %v1602, 4294901760
    %v1798 = vsub.f32 %v1602, %v1797
    %1799 = vmatpush.msra.mxu0 %v1798
    %v1800 = vand.u32 %v1601, 4294901760
    %v1801 = vsub.f32 %v1601, %v1800
    %1802 = vmatpush.msra.mxu0 %v1801
    %v1803 = vand.u32 %v1600, 4294901760
    %v1804 = vsub.f32 %v1600, %v1803
    %1805 = vmatpush.msra.mxu0 %v1804
    %v1806 = vand.u32 %v1599, 4294901760
    %v1807 = vsub.f32 %v1599, %v1806
    %1808 = vmatpush.msra.mxu0 %v1807
    %v1809 = vand.u32 %v1596, 4294901760
    %v1810 = vsub.f32 %v1596, %v1809
    %1811 = vmatmul.f32.gmra.mxu0 %v1810
    %v1812 = vpop.f32.mrf.mxu0
    %v1813 = vadd.f32 %v1759, %v1812
    %1814 = vdwg.mxu0
    %v1815 = vand.u32 %v1614, 4294901760
    %1816 = vmatpush.msra.mxu0 %v1815
    %v1817 = vand.u32 %v1613, 4294901760
    %1818 = vmatpush.msra.mxu0 %v1817
    %v1819 = vand.u32 %v1612, 4294901760
    %1820 = vmatpush.msra.mxu0 %v1819
    %v1821 = vand.u32 %v1611, 4294901760
    %1822 = vmatpush.msra.mxu0 %v1821
    %v1823 = vand.u32 %v1610, 4294901760
    %1824 = vmatpush.msra.mxu0 %v1823
    %v1825 = vand.u32 %v1609, 4294901760
    %1826 = vmatpush.msra.mxu0 %v1825
    %v1827 = vand.u32 %v1608, 4294901760
    %1828 = vmatpush.msra.mxu0 %v1827
    %v1829 = vand.u32 %v1607, 4294901760
    %1830 = vmatpush.msra.mxu0 %v1829
    %v1831 = vand.u32 %v1606, 4294901760
    %1832 = vmatpush.msra.mxu0 %v1831
    %v1833 = vand.u32 %v1605, 4294901760
    %1834 = vmatpush.msra.mxu0 %v1833
    %v1835 = vand.u32 %v1604, 4294901760
    %1836 = vmatpush.msra.mxu0 %v1835
    %v1837 = vand.u32 %v1603, 4294901760
    %1838 = vmatpush.msra.mxu0 %v1837
    %v1839 = vand.u32 %v1602, 4294901760
    %1840 = vmatpush.msra.mxu0 %v1839
    %v1841 = vand.u32 %v1601, 4294901760
    %1842 = vmatpush.msra.mxu0 %v1841
    %v1843 = vand.u32 %v1600, 4294901760
    %1844 = vmatpush.msra.mxu0 %v1843
    %v1845 = vand.u32 %v1599, 4294901760
    %1846 = vmatpush.msra.mxu0 %v1845
    %v1847 = vand.u32 %v1596, 4294901760
    %v1848 = vsub.f32 %v1596, %v1847
    %v1849 = vand.u32 %v1848, 4294901760
    %1850 = vmatmul.f32.gmra.mxu0 %v1849
    %v1851 = vpop.f32.mrf.mxu0
    %v1852 = vadd.f32 %v1813, %v1851
    %1853 = vdwg.mxu0
    %v1854 = vand.u32 %v1614, 4294901760
    %v1855 = vsub.f32 %v1614, %v1854
    %v1856 = vand.u32 %v1855, 4294901760
    %1857 = vmatpush.msra.mxu0 %v1856
    %v1858 = vand.u32 %v1613, 4294901760
    %v1859 = vsub.f32 %v1613, %v1858
    %v1860 = vand.u32 %v1859, 4294901760
    %1861 = vmatpush.msra.mxu0 %v1860
    %v1862 = vand.u32 %v1612, 4294901760
    %v1863 = vsub.f32 %v1612, %v1862
    %v1864 = vand.u32 %v1863, 4294901760
    %1865 = vmatpush.msra.mxu0 %v1864
    %v1866 = vand.u32 %v1611, 4294901760
    %v1867 = vsub.f32 %v1611, %v1866
    %v1868 = vand.u32 %v1867, 4294901760
    %1869 = vmatpush.msra.mxu0 %v1868
    %v1870 = vand.u32 %v1610, 4294901760
    %v1871 = vsub.f32 %v1610, %v1870
    %v1872 = vand.u32 %v1871, 4294901760
    %1873 = vmatpush.msra.mxu0 %v1872
    %v1874 = vand.u32 %v1609, 4294901760
    %v1875 = vsub.f32 %v1609, %v1874
    %v1876 = vand.u32 %v1875, 4294901760
    %1877 = vmatpush.msra.mxu0 %v1876
    %v1878 = vand.u32 %v1608, 4294901760
    %v1879 = vsub.f32 %v1608, %v1878
    %v1880 = vand.u32 %v1879, 4294901760
    %1881 = vmatpush.msra.mxu0 %v1880
    %v1882 = vand.u32 %v1607, 4294901760
    %v1883 = vsub.f32 %v1607, %v1882
    %v1884 = vand.u32 %v1883, 4294901760
    %1885 = vmatpush.msra.mxu0 %v1884
    %v1886 = vand.u32 %v1606, 4294901760
    %v1887 = vsub.f32 %v1606, %v1886
    %v1888 = vand.u32 %v1887, 4294901760
    %1889 = vmatpush.msra.mxu0 %v1888
    %v1890 = vand.u32 %v1605, 4294901760
    %v1891 = vsub.f32 %v1605, %v1890
    %v1892 = vand.u32 %v1891, 4294901760
    %1893 = vmatpush.msra.mxu0 %v1892
    %v1894 = vand.u32 %v1604, 4294901760
    %v1895 = vsub.f32 %v1604, %v1894
    %v1896 = vand.u32 %v1895, 4294901760
    %1897 = vmatpush.msra.mxu0 %v1896
    %v1898 = vand.u32 %v1603, 4294901760
    %v1899 = vsub.f32 %v1603, %v1898
    %v1900 = vand.u32 %v1899, 4294901760
    %1901 = vmatpush.msra.mxu0 %v1900
    %v1902 = vand.u32 %v1602, 4294901760
    %v1903 = vsub.f32 %v1602, %v1902
    %v1904 = vand.u32 %v1903, 4294901760
    %1905 = vmatpush.msra.mxu0 %v1904
    %v1906 = vand.u32 %v1601, 4294901760
    %v1907 = vsub.f32 %v1601, %v1906
    %v1908 = vand.u32 %v1907, 4294901760
    %1909 = vmatpush.msra.mxu0 %v1908
    %v1910 = vand.u32 %v1600, 4294901760
    %v1911 = vsub.f32 %v1600, %v1910
    %v1912 = vand.u32 %v1911, 4294901760
    %1913 = vmatpush.msra.mxu0 %v1912
    %v1914 = vand.u32 %v1599, 4294901760
    %v1915 = vsub.f32 %v1599, %v1914
    %v1916 = vand.u32 %v1915, 4294901760
    %1917 = vmatpush.msra.mxu0 %v1916
    %v1918 = vand.u32 %v1596, 4294901760
    %1919 = vmatmul.f32.gmra.mxu0 %v1918
    %v1920 = vpop.f32.mrf.mxu0
    %v1921 = vadd.f32 %v1852, %v1920
    %1922 = vdwg.mxu0
    %v1923 = vand.u32 %v1614, 4294901760
    %1924 = vmatpush.msra.mxu0 %v1923
    %v1925 = vand.u32 %v1613, 4294901760
    %1926 = vmatpush.msra.mxu0 %v1925
    %v1927 = vand.u32 %v1612, 4294901760
    %1928 = vmatpush.msra.mxu0 %v1927
    %v1929 = vand.u32 %v1611, 4294901760
    %1930 = vmatpush.msra.mxu0 %v1929
    %v1931 = vand.u32 %v1610, 4294901760
    %1932 = vmatpush.msra.mxu0 %v1931
    %v1933 = vand.u32 %v1609, 4294901760
    %1934 = vmatpush.msra.mxu0 %v1933
    %v1935 = vand.u32 %v1608, 4294901760
    %1936 = vmatpush.msra.mxu0 %v1935
    %v1937 = vand.u32 %v1607, 4294901760
    %1938 = vmatpush.msra.mxu0 %v1937
    %v1939 = vand.u32 %v1606, 4294901760
    %1940 = vmatpush.msra.mxu0 %v1939
    %v1941 = vand.u32 %v1605, 4294901760
    %1942 = vmatpush.msra.mxu0 %v1941
    %v1943 = vand.u32 %v1604, 4294901760
    %1944 = vmatpush.msra.mxu0 %v1943
    %v1945 = vand.u32 %v1603, 4294901760
    %1946 = vmatpush.msra.mxu0 %v1945
    %v1947 = vand.u32 %v1602, 4294901760
    %1948 = vmatpush.msra.mxu0 %v1947
    %v1949 = vand.u32 %v1601, 4294901760
    %1950 = vmatpush.msra.mxu0 %v1949
    %v1951 = vand.u32 %v1600, 4294901760
    %1952 = vmatpush.msra.mxu0 %v1951
    %v1953 = vand.u32 %v1599, 4294901760
    %1954 = vmatpush.msra.mxu0 %v1953
    %v1955 = vand.u32 %v1596, 4294901760
    %1956 = vmatmul.f32.gmra.mxu0 %v1955
    %v1957 = vpop.f32.mrf.mxu0
    %v1958 = vadd.f32 %v1921, %v1957
    %1959 = vdwg.mxu0
    %v1960 = vtanh.pop %v1958
    %v1961 = vld [vmem:[%s11] sm:$0xff]
    %v1962 = vld [vmem:[%s12] sm:$0x1]
    %v1964 = vperm.slane %v1962, 0
    %v1967 = vsel %vm1448, %v1960, 0
    %1969 = vmatpush.msra.mxu0 0.0
    %1970 = vmatpush.msra.mxu0 0.0
    %1971 = vmatpush.msra.mxu0 0.0
    %1972 = vmatpush.msra.mxu0 0.0
    %1973 = vmatpush.msra.mxu0 0.0
    %1974 = vmatpush.msra.mxu0 0.0
    %1975 = vmatpush.msra.mxu0 0.0
    %1976 = vmatpush.msra.mxu0 0.0
    %1977 = vmatpush.msra.mxu0 0.0
    %1978 = vmatpush.msra.mxu0 0.0
    %1979 = vmatpush.msra.mxu0 0.0
    %1980 = vmatpush.msra.mxu0 0.0
    %1981 = vmatpush.msra.mxu0 0.0
    %1982 = vmatpush.msra.mxu0 0.0
    %1983 = vmatpush.msra.mxu0 0.0
    %v1984 = vand.u32 %v1961, 4294901760
    %1985 = vmatpush.msra.mxu0 %v1984
    %v1986 = vand.u32 %v1967, 4294901760
    %v1987 = vsub.f32 %v1967, %v1986
    %v1988 = vand.u32 %v1987, 4294901760
    %v1989 = vsub.f32 %v1987, %v1988
    %v1990 = vand.u32 %v1989, 4294901760
    %1991 = vmatmul.f32.gmra.mxu0 %v1990
    %v1992 = vpop.f32.mrf.mxu0
    %v1993 = vadd.f32 %v1964, %v1992
    %1994 = vdwg.mxu0
    %1995 = vmatpush.msra.mxu0 0.0
    %1996 = vmatpush.msra.mxu0 0.0
    %1997 = vmatpush.msra.mxu0 0.0
    %1998 = vmatpush.msra.mxu0 0.0
    %1999 = vmatpush.msra.mxu0 0.0
    %2000 = vmatpush.msra.mxu0 0.0
    %2001 = vmatpush.msra.mxu0 0.0
    %2002 = vmatpush.msra.mxu0 0.0
    %2003 = vmatpush.msra.mxu0 0.0
    %2004 = vmatpush.msra.mxu0 0.0
    %2005 = vmatpush.msra.mxu0 0.0
    %2006 = vmatpush.msra.mxu0 0.0
    %2007 = vmatpush.msra.mxu0 0.0
    %2008 = vmatpush.msra.mxu0 0.0
    %2009 = vmatpush.msra.mxu0 0.0
    %v2010 = vand.u32 %v1961, 4294901760
    %v2011 = vsub.f32 %v1961, %v2010
    %v2012 = vand.u32 %v2011, 4294901760
    %v2013 = vsub.f32 %v2011, %v2012
    %v2014 = vand.u32 %v2013, 4294901760
    %2015 = vmatpush.msra.mxu0 %v2014
    %v2016 = vand.u32 %v1967, 4294901760
    %2017 = vmatmul.f32.gmra.mxu0 %v2016
    %v2018 = vpop.f32.mrf.mxu0
    %v2019 = vadd.f32 %v1993, %v2018
    %2020 = vdwg.mxu0
    %2021 = vmatpush.msra.mxu0 0.0
    %2022 = vmatpush.msra.mxu0 0.0
    %2023 = vmatpush.msra.mxu0 0.0
    %2024 = vmatpush.msra.mxu0 0.0
    %2025 = vmatpush.msra.mxu0 0.0
    %2026 = vmatpush.msra.mxu0 0.0
    %2027 = vmatpush.msra.mxu0 0.0
    %2028 = vmatpush.msra.mxu0 0.0
    %2029 = vmatpush.msra.mxu0 0.0
    %2030 = vmatpush.msra.mxu0 0.0
    %2031 = vmatpush.msra.mxu0 0.0
    %2032 = vmatpush.msra.mxu0 0.0
    %2033 = vmatpush.msra.mxu0 0.0
    %2034 = vmatpush.msra.mxu0 0.0
    %2035 = vmatpush.msra.mxu0 0.0
    %v2036 = vand.u32 %v1961, 4294901760
    %v2037 = vsub.f32 %v1961, %v2036
    %2038 = vmatpush.msra.mxu0 %v2037
    %v2039 = vand.u32 %v1967, 4294901760
    %v2040 = vsub.f32 %v1967, %v2039
    %2041 = vmatmul.f32.gmra.mxu0 %v2040
    %v2042 = vpop.f32.mrf.mxu0
    %v2043 = vadd.f32 %v2019, %v2042
    %2044 = vdwg.mxu0
    %2045 = vmatpush.msra.mxu0 0.0
    %2046 = vmatpush.msra.mxu0 0.0
    %2047 = vmatpush.msra.mxu0 0.0
    %2048 = vmatpush.msra.mxu0 0.0
    %2049 = vmatpush.msra.mxu0 0.0
    %2050 = vmatpush.msra.mxu0 0.0
    %2051 = vmatpush.msra.mxu0 0.0
    %2052 = vmatpush.msra.mxu0 0.0
    %2053 = vmatpush.msra.mxu0 0.0
    %2054 = vmatpush.msra.mxu0 0.0
    %2055 = vmatpush.msra.mxu0 0.0
    %2056 = vmatpush.msra.mxu0 0.0
    %2057 = vmatpush.msra.mxu0 0.0
    %2058 = vmatpush.msra.mxu0 0.0
    %2059 = vmatpush.msra.mxu0 0.0
    %v2060 = vand.u32 %v1961, 4294901760
    %2061 = vmatpush.msra.mxu0 %v2060
    %v2062 = vand.u32 %v1967, 4294901760
    %v2063 = vsub.f32 %v1967, %v2062
    %v2064 = vand.u32 %v2063, 4294901760
    %2065 = vmatmul.f32.gmra.mxu0 %v2064
    %v2066 = vpop.f32.mrf.mxu0
    %v2067 = vadd.f32 %v2043, %v2066
    %2068 = vdwg.mxu0
    %2069 = vmatpush.msra.mxu0 0.0
    %2070 = vmatpush.msra.mxu0 0.0
    %2071 = vmatpush.msra.mxu0 0.0
    %2072 = vmatpush.msra.mxu0 0.0
    %2073 = vmatpush.msra.mxu0 0.0
    %2074 = vmatpush.msra.mxu0 0.0
    %2075 = vmatpush.msra.mxu0 0.0
    %2076 = vmatpush.msra.mxu0 0.0
    %2077 = vmatpush.msra.mxu0 0.0
    %2078 = vmatpush.msra.mxu0 0.0
    %2079 = vmatpush.msra.mxu0 0.0
    %2080 = vmatpush.msra.mxu0 0.0
    %2081 = vmatpush.msra.mxu0 0.0
    %2082 = vmatpush.msra.mxu0 0.0
    %2083 = vmatpush.msra.mxu0 0.0
    %v2084 = vand.u32 %v1961, 4294901760
    %v2085 = vsub.f32 %v1961, %v2084
    %v2086 = vand.u32 %v2085, 4294901760
    %2087 = vmatpush.msra.mxu0 %v2086
    %v2088 = vand.u32 %v1967, 4294901760
    %2089 = vmatmul.f32.gmra.mxu0 %v2088
    %v2090 = vpop.f32.mrf.mxu0
    %v2091 = vadd.f32 %v2067, %v2090
    %2092 = vdwg.mxu0
    %2093 = vmatpush.msra.mxu0 0.0
    %2094 = vmatpush.msra.mxu0 0.0
    %2095 = vmatpush.msra.mxu0 0.0
    %2096 = vmatpush.msra.mxu0 0.0
    %2097 = vmatpush.msra.mxu0 0.0
    %2098 = vmatpush.msra.mxu0 0.0
    %2099 = vmatpush.msra.mxu0 0.0
    %2100 = vmatpush.msra.mxu0 0.0
    %2101 = vmatpush.msra.mxu0 0.0
    %2102 = vmatpush.msra.mxu0 0.0
    %2103 = vmatpush.msra.mxu0 0.0
    %2104 = vmatpush.msra.mxu0 0.0
    %2105 = vmatpush.msra.mxu0 0.0
    %2106 = vmatpush.msra.mxu0 0.0
    %2107 = vmatpush.msra.mxu0 0.0
    %v2108 = vand.u32 %v1961, 4294901760
    %2109 = vmatpush.msra.mxu0 %v2108
    %v2110 = vand.u32 %v1967, 4294901760
    %2111 = vmatmul.f32.gmra.mxu0 %v2110
    %v2112 = vpop.f32.mrf.mxu0
    %v2113 = vadd.f32 %v2091, %v2112
    %2114 = vdwg.mxu0
    %v2115 = vtanh.pop %v2113
    %v2116 = vld [vmem:[%s13] sm:$0xff]
    %v2117 = vld [vmem:[%s13 + $0x8] sm:$0xff]
    %v2118 = vld [vmem:[%s13 + $0x10] sm:$0xff]
    %v2119 = vld [vmem:[%s13 + $0x18] sm:$0xff]
    %v2120 = vld [vmem:[%s13 + $0x20] sm:$0xff]
    %v2121 = vld [vmem:[%s13 + $0x28] sm:$0xff]
    %v2122 = vld [vmem:[%s13 + $0x30] sm:$0xff]
    %v2123 = vld [vmem:[%s13 + $0x38] sm:$0xff]
    %v2124 = vld [vmem:[%s13 + $0x40] sm:$0xff]
    %v2125 = vld [vmem:[%s13 + $0x48] sm:$0xff]
    %v2126 = vld [vmem:[%s13 + $0x50] sm:$0xff]
    %v2127 = vld [vmem:[%s13 + $0x58] sm:$0xff]
    %v2128 = vld [vmem:[%s13 + $0x60] sm:$0xff]
    %v2129 = vld [vmem:[%s13 + $0x68] sm:$0xff]
    %v2130 = vld [vmem:[%s13 + $0x70] sm:$0xff]
    %v2131 = vld [vmem:[%s13 + $0x78] sm:$0xff]
    %v2132 = vld [vmem:[%s14] sm:$0x3]
    %v2134 = vperm.slane %v2132, 0
    %v2135 = vperm.slane %v2132, 1
    %v2139 = vsel %vm1201, %v2115, 0
    %2141 = vmatpush.msra.mxu0 0.0
    %2142 = vmatpush.msra.mxu0 0.0
    %2143 = vmatpush.msra.mxu0 0.0
    %2144 = vmatpush.msra.mxu0 0.0
    %2145 = vmatpush.msra.mxu0 0.0
    %2146 = vmatpush.msra.mxu0 0.0
    %2147 = vmatpush.msra.mxu0 0.0
    %2148 = vmatpush.msra.mxu0 0.0
    %v2149 = vand.u32 %v2130, 4294901760
    %2150 = vmatpush.msra.mxu0 %v2149
    %v2151 = vand.u32 %v2128, 4294901760
    %2152 = vmatpush.msra.mxu0 %v2151
    %v2153 = vand.u32 %v2126, 4294901760
    %2154 = vmatpush.msra.mxu0 %v2153
    %v2155 = vand.u32 %v2124, 4294901760
    %2156 = vmatpush.msra.mxu0 %v2155
    %v2157 = vand.u32 %v2122, 4294901760
    %2158 = vmatpush.msra.mxu0 %v2157
    %v2159 = vand.u32 %v2120, 4294901760
    %2160 = vmatpush.msra.mxu0 %v2159
    %v2161 = vand.u32 %v2118, 4294901760
    %2162 = vmatpush.msra.mxu0 %v2161
    %v2163 = vand.u32 %v2116, 4294901760
    %2164 = vmatpush.msra.mxu0 %v2163
    %v2165 = vand.u32 %v2139, 4294901760
    %v2166 = vsub.f32 %v2139, %v2165
    %v2167 = vand.u32 %v2166, 4294901760
    %v2168 = vsub.f32 %v2166, %v2167
    %v2169 = vand.u32 %v2168, 4294901760
    %2170 = vmatmul.f32.gmra.mxu0 %v2169
    %v2171 = vpop.f32.mrf.mxu0
    %v2172 = vadd.f32 %v2134, %v2171
    %2173 = vdwg.mxu0
    %2174 = vmatpush.msra.mxu0 0.0
    %2175 = vmatpush.msra.mxu0 0.0
    %2176 = vmatpush.msra.mxu0 0.0
    %2177 = vmatpush.msra.mxu0 0.0
    %2178 = vmatpush.msra.mxu0 0.0
    %2179 = vmatpush.msra.mxu0 0.0
    %2180 = vmatpush.msra.mxu0 0.0
    %2181 = vmatpush.msra.mxu0 0.0
    %v2182 = vand.u32 %v2130, 4294901760
    %v2183 = vsub.f32 %v2130, %v2182
    %v2184 = vand.u32 %v2183, 4294901760
    %v2185 = vsub.f32 %v2183, %v2184
    %v2186 = vand.u32 %v2185, 4294901760
    %2187 = vmatpush.msra.mxu0 %v2186
    %v2188 = vand.u32 %v2128, 4294901760
    %v2189 = vsub.f32 %v2128, %v2188
    %v2190 = vand.u32 %v2189, 4294901760
    %v2191 = vsub.f32 %v2189, %v2190
    %v2192 = vand.u32 %v2191, 4294901760
    %2193 = vmatpush.msra.mxu0 %v2192
    %v2194 = vand.u32 %v2126, 4294901760
    %v2195 = vsub.f32 %v2126, %v2194
    %v2196 = vand.u32 %v2195, 4294901760
    %v2197 = vsub.f32 %v2195, %v2196
    %v2198 = vand.u32 %v2197, 4294901760
    %2199 = vmatpush.msra.mxu0 %v2198
    %v2200 = vand.u32 %v2124, 4294901760
    %v2201 = vsub.f32 %v2124, %v2200
    %v2202 = vand.u32 %v2201, 4294901760
    %v2203 = vsub.f32 %v2201, %v2202
    %v2204 = vand.u32 %v2203, 4294901760
    %2205 = vmatpush.msra.mxu0 %v2204
    %v2206 = vand.u32 %v2122, 4294901760
    %v2207 = vsub.f32 %v2122, %v2206
    %v2208 = vand.u32 %v2207, 4294901760
    %v2209 = vsub.f32 %v2207, %v2208
    %v2210 = vand.u32 %v2209, 4294901760
    %2211 = vmatpush.msra.mxu0 %v2210
    %v2212 = vand.u32 %v2120, 4294901760
    %v2213 = vsub.f32 %v2120, %v2212
    %v2214 = vand.u32 %v2213, 4294901760
    %v2215 = vsub.f32 %v2213, %v2214
    %v2216 = vand.u32 %v2215, 4294901760
    %2217 = vmatpush.msra.mxu0 %v2216
    %v2218 = vand.u32 %v2118, 4294901760
    %v2219 = vsub.f32 %v2118, %v2218
    %v2220 = vand.u32 %v2219, 4294901760
    %v2221 = vsub.f32 %v2219, %v2220
    %v2222 = vand.u32 %v2221, 4294901760
    %2223 = vmatpush.msra.mxu0 %v2222
    %v2224 = vand.u32 %v2116, 4294901760
    %v2225 = vsub.f32 %v2116, %v2224
    %v2226 = vand.u32 %v2225, 4294901760
    %v2227 = vsub.f32 %v2225, %v2226
    %v2228 = vand.u32 %v2227, 4294901760
    %2229 = vmatpush.msra.mxu0 %v2228
    %v2230 = vand.u32 %v2139, 4294901760
    %2231 = vmatmul.f32.gmra.mxu0 %v2230
    %v2232 = vpop.f32.mrf.mxu0
    %v2233 = vadd.f32 %v2172, %v2232
    %2234 = vdwg.mxu0
    %2235 = vmatpush.msra.mxu0 0.0
    %2236 = vmatpush.msra.mxu0 0.0
    %2237 = vmatpush.msra.mxu0 0.0
    %2238 = vmatpush.msra.mxu0 0.0
    %2239 = vmatpush.msra.mxu0 0.0
    %2240 = vmatpush.msra.mxu0 0.0
    %2241 = vmatpush.msra.mxu0 0.0
    %2242 = vmatpush.msra.mxu0 0.0
    %v2243 = vand.u32 %v2130, 4294901760
    %v2244 = vsub.f32 %v2130, %v2243
    %2245 = vmatpush.msra.mxu0 %v2244
    %v2246 = vand.u32 %v2128, 4294901760
    %v2247 = vsub.f32 %v2128, %v2246
    %2248 = vmatpush.msra.mxu0 %v2247
    %v2249 = vand.u32 %v2126, 4294901760
    %v2250 = vsub.f32 %v2126, %v2249
    %2251 = vmatpush.msra.mxu0 %v2250
    %v2252 = vand.u32 %v2124, 4294901760
    %v2253 = vsub.f32 %v2124, %v2252
    %2254 = vmatpush.msra.mxu0 %v2253
    %v2255 = vand.u32 %v2122, 4294901760
    %v2256 = vsub.f32 %v2122, %v2255
    %2257 = vmatpush.msra.mxu0 %v2256
    %v2258 = vand.u32 %v2120, 4294901760
    %v2259 = vsub.f32 %v2120, %v2258
    %2260 = vmatpush.msra.mxu0 %v2259
    %v2261 = vand.u32 %v2118, 4294901760
    %v2262 = vsub.f32 %v2118, %v2261
    %2263 = vmatpush.msra.mxu0 %v2262
    %v2264 = vand.u32 %v2116, 4294901760
    %v2265 = vsub.f32 %v2116, %v2264
    %2266 = vmatpush.msra.mxu0 %v2265
    %v2267 = vand.u32 %v2139, 4294901760
    %v2268 = vsub.f32 %v2139, %v2267
    %2269 = vmatmul.f32.gmra.mxu0 %v2268
    %v2270 = vpop.f32.mrf.mxu0
    %v2271 = vadd.f32 %v2233, %v2270
    %2272 = vdwg.mxu0
    %2273 = vmatpush.msra.mxu0 0.0
    %2274 = vmatpush.msra.mxu0 0.0
    %2275 = vmatpush.msra.mxu0 0.0
    %2276 = vmatpush.msra.mxu0 0.0
    %2277 = vmatpush.msra.mxu0 0.0
    %2278 = vmatpush.msra.mxu0 0.0
    %2279 = vmatpush.msra.mxu0 0.0
    %2280 = vmatpush.msra.mxu0 0.0
    %v2281 = vand.u32 %v2130, 4294901760
    %2282 = vmatpush.msra.mxu0 %v2281
    %v2283 = vand.u32 %v2128, 4294901760
    %2284 = vmatpush.msra.mxu0 %v2283
    %v2285 = vand.u32 %v2126, 4294901760
    %2286 = vmatpush.msra.mxu0 %v2285
    %v2287 = vand.u32 %v2124, 4294901760
    %2288 = vmatpush.msra.mxu0 %v2287
    %v2289 = vand.u32 %v2122, 4294901760
    %2290 = vmatpush.msra.mxu0 %v2289
    %v2291 = vand.u32 %v2120, 4294901760
    %2292 = vmatpush.msra.mxu0 %v2291
    %v2293 = vand.u32 %v2118, 4294901760
    %2294 = vmatpush.msra.mxu0 %v2293
    %v2295 = vand.u32 %v2116, 4294901760
    %2296 = vmatpush.msra.mxu0 %v2295
    %v2297 = vand.u32 %v2139, 4294901760
    %v2298 = vsub.f32 %v2139, %v2297
    %v2299 = vand.u32 %v2298, 4294901760
    %2300 = vmatmul.f32.gmra.mxu0 %v2299
    %v2301 = vpop.f32.mrf.mxu0
    %v2302 = vadd.f32 %v2271, %v2301
    %2303 = vdwg.mxu0
    %2304 = vmatpush.msra.mxu0 0.0
    %2305 = vmatpush.msra.mxu0 0.0
    %2306 = vmatpush.msra.mxu0 0.0
    %2307 = vmatpush.msra.mxu0 0.0
    %2308 = vmatpush.msra.mxu0 0.0
    %2309 = vmatpush.msra.mxu0 0.0
    %2310 = vmatpush.msra.mxu0 0.0
    %2311 = vmatpush.msra.mxu0 0.0
    %v2312 = vand.u32 %v2130, 4294901760
    %v2313 = vsub.f32 %v2130, %v2312
    %v2314 = vand.u32 %v2313, 4294901760
    %2315 = vmatpush.msra.mxu0 %v2314
    %v2316 = vand.u32 %v2128, 4294901760
    %v2317 = vsub.f32 %v2128, %v2316
    %v2318 = vand.u32 %v2317, 4294901760
    %2319 = vmatpush.msra.mxu0 %v2318
    %v2320 = vand.u32 %v2126, 4294901760
    %v2321 = vsub.f32 %v2126, %v2320
    %v2322 = vand.u32 %v2321, 4294901760
    %2323 = vmatpush.msra.mxu0 %v2322
    %v2324 = vand.u32 %v2124, 4294901760
    %v2325 = vsub.f32 %v2124, %v2324
    %v2326 = vand.u32 %v2325, 4294901760
    %2327 = vmatpush.msra.mxu0 %v2326
    %v2328 = vand.u32 %v2122, 4294901760
    %v2329 = vsub.f32 %v2122, %v2328
    %v2330 = vand.u32 %v2329, 4294901760
    %2331 = vmatpush.msra.mxu0 %v2330
    %v2332 = vand.u32 %v2120, 4294901760
    %v2333 = vsub.f32 %v2120, %v2332
    %v2334 = vand.u32 %v2333, 4294901760
    %2335 = vmatpush.msra.mxu0 %v2334
    %v2336 = vand.u32 %v2118, 4294901760
    %v2337 = vsub.f32 %v2118, %v2336
    %v2338 = vand.u32 %v2337, 4294901760
    %2339 = vmatpush.msra.mxu0 %v2338
    %v2340 = vand.u32 %v2116, 4294901760
    %v2341 = vsub.f32 %v2116, %v2340
    %v2342 = vand.u32 %v2341, 4294901760
    %2343 = vmatpush.msra.mxu0 %v2342
    %v2344 = vand.u32 %v2139, 4294901760
    %2345 = vmatmul.f32.gmra.mxu0 %v2344
    %v2346 = vpop.f32.mrf.mxu0
    %v2347 = vadd.f32 %v2302, %v2346
    %2348 = vdwg.mxu0
    %2349 = vmatpush.msra.mxu0 0.0
    %2350 = vmatpush.msra.mxu0 0.0
    %2351 = vmatpush.msra.mxu0 0.0
    %2352 = vmatpush.msra.mxu0 0.0
    %2353 = vmatpush.msra.mxu0 0.0
    %2354 = vmatpush.msra.mxu0 0.0
    %2355 = vmatpush.msra.mxu0 0.0
    %2356 = vmatpush.msra.mxu0 0.0
    %v2357 = vand.u32 %v2130, 4294901760
    %2358 = vmatpush.msra.mxu0 %v2357
    %v2359 = vand.u32 %v2128, 4294901760
    %2360 = vmatpush.msra.mxu0 %v2359
    %v2361 = vand.u32 %v2126, 4294901760
    %2362 = vmatpush.msra.mxu0 %v2361
    %v2363 = vand.u32 %v2124, 4294901760
    %2364 = vmatpush.msra.mxu0 %v2363
    %v2365 = vand.u32 %v2122, 4294901760
    %2366 = vmatpush.msra.mxu0 %v2365
    %v2367 = vand.u32 %v2120, 4294901760
    %2368 = vmatpush.msra.mxu0 %v2367
    %v2369 = vand.u32 %v2118, 4294901760
    %2370 = vmatpush.msra.mxu0 %v2369
    %v2371 = vand.u32 %v2116, 4294901760
    %2372 = vmatpush.msra.mxu0 %v2371
    %v2373 = vand.u32 %v2139, 4294901760
    %2374 = vmatmul.f32.gmra.mxu0 %v2373
    %v2375 = vpop.f32.mrf.mxu0
    %v2376 = vadd.f32 %v2347, %v2375
    %2377 = vdwg.mxu0
    %2378 = vmatpush.msra.mxu0 0.0
    %2379 = vmatpush.msra.mxu0 0.0
    %2380 = vmatpush.msra.mxu0 0.0
    %2381 = vmatpush.msra.mxu0 0.0
    %2382 = vmatpush.msra.mxu0 0.0
    %2383 = vmatpush.msra.mxu0 0.0
    %2384 = vmatpush.msra.mxu0 0.0
    %2385 = vmatpush.msra.mxu0 0.0
    %v2386 = vand.u32 %v2131, 4294901760
    %2387 = vmatpush.msra.mxu0 %v2386
    %v2388 = vand.u32 %v2129, 4294901760
    %2389 = vmatpush.msra.mxu0 %v2388
    %v2390 = vand.u32 %v2127, 4294901760
    %2391 = vmatpush.msra.mxu0 %v2390
    %v2392 = vand.u32 %v2125, 4294901760
    %2393 = vmatpush.msra.mxu0 %v2392
    %v2394 = vand.u32 %v2123, 4294901760
    %2395 = vmatpush.msra.mxu0 %v2394
    %v2396 = vand.u32 %v2121, 4294901760
    %2397 = vmatpush.msra.mxu0 %v2396
    %v2398 = vand.u32 %v2119, 4294901760
    %2399 = vmatpush.msra.mxu0 %v2398
    %v2400 = vand.u32 %v2117, 4294901760
    %2401 = vmatpush.msra.mxu0 %v2400
    %v2402 = vand.u32 %v2139, 4294901760
    %v2403 = vsub.f32 %v2139, %v2402
    %v2404 = vand.u32 %v2403, 4294901760
    %v2405 = vsub.f32 %v2403, %v2404
    %v2406 = vand.u32 %v2405, 4294901760
    %2407 = vmatmul.f32.gmra.mxu0 %v2406
    %v2408 = vpop.f32.mrf.mxu0
    %v2409 = vadd.f32 %v2135, %v2408
    %2410 = vdwg.mxu0
    %2411 = vmatpush.msra.mxu0 0.0
    %2412 = vmatpush.msra.mxu0 0.0
    %2413 = vmatpush.msra.mxu0 0.0
    %2414 = vmatpush.msra.mxu0 0.0
    %2415 = vmatpush.msra.mxu0 0.0
    %2416 = vmatpush.msra.mxu0 0.0
    %2417 = vmatpush.msra.mxu0 0.0
    %2418 = vmatpush.msra.mxu0 0.0
    %v2419 = vand.u32 %v2131, 4294901760
    %v2420 = vsub.f32 %v2131, %v2419
    %v2421 = vand.u32 %v2420, 4294901760
    %v2422 = vsub.f32 %v2420, %v2421
    %v2423 = vand.u32 %v2422, 4294901760
    %2424 = vmatpush.msra.mxu0 %v2423
    %v2425 = vand.u32 %v2129, 4294901760
    %v2426 = vsub.f32 %v2129, %v2425
    %v2427 = vand.u32 %v2426, 4294901760
    %v2428 = vsub.f32 %v2426, %v2427
    %v2429 = vand.u32 %v2428, 4294901760
    %2430 = vmatpush.msra.mxu0 %v2429
    %v2431 = vand.u32 %v2127, 4294901760
    %v2432 = vsub.f32 %v2127, %v2431
    %v2433 = vand.u32 %v2432, 4294901760
    %v2434 = vsub.f32 %v2432, %v2433
    %v2435 = vand.u32 %v2434, 4294901760
    %2436 = vmatpush.msra.mxu0 %v2435
    %v2437 = vand.u32 %v2125, 4294901760
    %v2438 = vsub.f32 %v2125, %v2437
    %v2439 = vand.u32 %v2438, 4294901760
    %v2440 = vsub.f32 %v2438, %v2439
    %v2441 = vand.u32 %v2440, 4294901760
    %2442 = vmatpush.msra.mxu0 %v2441
    %v2443 = vand.u32 %v2123, 4294901760
    %v2444 = vsub.f32 %v2123, %v2443
    %v2445 = vand.u32 %v2444, 4294901760
    %v2446 = vsub.f32 %v2444, %v2445
    %v2447 = vand.u32 %v2446, 4294901760
    %2448 = vmatpush.msra.mxu0 %v2447
    %v2449 = vand.u32 %v2121, 4294901760
    %v2450 = vsub.f32 %v2121, %v2449
    %v2451 = vand.u32 %v2450, 4294901760
    %v2452 = vsub.f32 %v2450, %v2451
    %v2453 = vand.u32 %v2452, 4294901760
    %2454 = vmatpush.msra.mxu0 %v2453
    %v2455 = vand.u32 %v2119, 4294901760
    %v2456 = vsub.f32 %v2119, %v2455
    %v2457 = vand.u32 %v2456, 4294901760
    %v2458 = vsub.f32 %v2456, %v2457
    %v2459 = vand.u32 %v2458, 4294901760
    %2460 = vmatpush.msra.mxu0 %v2459
    %v2461 = vand.u32 %v2117, 4294901760
    %v2462 = vsub.f32 %v2117, %v2461
    %v2463 = vand.u32 %v2462, 4294901760
    %v2464 = vsub.f32 %v2462, %v2463
    %v2465 = vand.u32 %v2464, 4294901760
    %2466 = vmatpush.msra.mxu0 %v2465
    %v2467 = vand.u32 %v2139, 4294901760
    %2468 = vmatmul.f32.gmra.mxu0 %v2467
    %v2469 = vpop.f32.mrf.mxu0
    %v2470 = vadd.f32 %v2409, %v2469
    %2471 = vdwg.mxu0
    %2472 = vmatpush.msra.mxu0 0.0
    %2473 = vmatpush.msra.mxu0 0.0
    %2474 = vmatpush.msra.mxu0 0.0
    %2475 = vmatpush.msra.mxu0 0.0
    %2476 = vmatpush.msra.mxu0 0.0
    %2477 = vmatpush.msra.mxu0 0.0
    %2478 = vmatpush.msra.mxu0 0.0
    %2479 = vmatpush.msra.mxu0 0.0
    %v2480 = vand.u32 %v2131, 4294901760
    %v2481 = vsub.f32 %v2131, %v2480
    %2482 = vmatpush.msra.mxu0 %v2481
    %v2483 = vand.u32 %v2129, 4294901760
    %v2484 = vsub.f32 %v2129, %v2483
    %2485 = vmatpush.msra.mxu0 %v2484
    %v2486 = vand.u32 %v2127, 4294901760
    %v2487 = vsub.f32 %v2127, %v2486
    %2488 = vmatpush.msra.mxu0 %v2487
    %v2489 = vand.u32 %v2125, 4294901760
    %v2490 = vsub.f32 %v2125, %v2489
    %2491 = vmatpush.msra.mxu0 %v2490
    %v2492 = vand.u32 %v2123, 4294901760
    %v2493 = vsub.f32 %v2123, %v2492
    %2494 = vmatpush.msra.mxu0 %v2493
    %v2495 = vand.u32 %v2121, 4294901760
    %v2496 = vsub.f32 %v2121, %v2495
    %2497 = vmatpush.msra.mxu0 %v2496
    %v2498 = vand.u32 %v2119, 4294901760
    %v2499 = vsub.f32 %v2119, %v2498
    %2500 = vmatpush.msra.mxu0 %v2499
    %v2501 = vand.u32 %v2117, 4294901760
    %v2502 = vsub.f32 %v2117, %v2501
    %2503 = vmatpush.msra.mxu0 %v2502
    %v2504 = vand.u32 %v2139, 4294901760
    %v2505 = vsub.f32 %v2139, %v2504
    %2506 = vmatmul.f32.gmra.mxu0 %v2505
    %v2507 = vpop.f32.mrf.mxu0
    %v2508 = vadd.f32 %v2470, %v2507
    %2509 = vdwg.mxu0
    %2510 = vmatpush.msra.mxu0 0.0
    %2511 = vmatpush.msra.mxu0 0.0
    %2512 = vmatpush.msra.mxu0 0.0
    %2513 = vmatpush.msra.mxu0 0.0
    %2514 = vmatpush.msra.mxu0 0.0
    %2515 = vmatpush.msra.mxu0 0.0
    %2516 = vmatpush.msra.mxu0 0.0
    %2517 = vmatpush.msra.mxu0 0.0
    %v2518 = vand.u32 %v2131, 4294901760
    %2519 = vmatpush.msra.mxu0 %v2518
    %v2520 = vand.u32 %v2129, 4294901760
    %2521 = vmatpush.msra.mxu0 %v2520
    %v2522 = vand.u32 %v2127, 4294901760
    %2523 = vmatpush.msra.mxu0 %v2522
    %v2524 = vand.u32 %v2125, 4294901760
    %2525 = vmatpush.msra.mxu0 %v2524
    %v2526 = vand.u32 %v2123, 4294901760
    %2527 = vmatpush.msra.mxu0 %v2526
    %v2528 = vand.u32 %v2121, 4294901760
    %2529 = vmatpush.msra.mxu0 %v2528
    %v2530 = vand.u32 %v2119, 4294901760
    %2531 = vmatpush.msra.mxu0 %v2530
    %v2532 = vand.u32 %v2117, 4294901760
    %2533 = vmatpush.msra.mxu0 %v2532
    %v2534 = vand.u32 %v2139, 4294901760
    %v2535 = vsub.f32 %v2139, %v2534
    %v2536 = vand.u32 %v2535, 4294901760
    %2537 = vmatmul.f32.gmra.mxu0 %v2536
    %v2538 = vpop.f32.mrf.mxu0
    %v2539 = vadd.f32 %v2508, %v2538
    %2540 = vdwg.mxu0
    %2541 = vmatpush.msra.mxu0 0.0
    %2542 = vmatpush.msra.mxu0 0.0
    %2543 = vmatpush.msra.mxu0 0.0
    %2544 = vmatpush.msra.mxu0 0.0
    %2545 = vmatpush.msra.mxu0 0.0
    %2546 = vmatpush.msra.mxu0 0.0
    %2547 = vmatpush.msra.mxu0 0.0
    %2548 = vmatpush.msra.mxu0 0.0
    %v2549 = vand.u32 %v2131, 4294901760
    %v2550 = vsub.f32 %v2131, %v2549
    %v2551 = vand.u32 %v2550, 4294901760
    %2552 = vmatpush.msra.mxu0 %v2551
    %v2553 = vand.u32 %v2129, 4294901760
    %v2554 = vsub.f32 %v2129, %v2553
    %v2555 = vand.u32 %v2554, 4294901760
    %2556 = vmatpush.msra.mxu0 %v2555
    %v2557 = vand.u32 %v2127, 4294901760
    %v2558 = vsub.f32 %v2127, %v2557
    %v2559 = vand.u32 %v2558, 4294901760
    %2560 = vmatpush.msra.mxu0 %v2559
    %v2561 = vand.u32 %v2125, 4294901760
    %v2562 = vsub.f32 %v2125, %v2561
    %v2563 = vand.u32 %v2562, 4294901760
    %2564 = vmatpush.msra.mxu0 %v2563
    %v2565 = vand.u32 %v2123, 4294901760
    %v2566 = vsub.f32 %v2123, %v2565
    %v2567 = vand.u32 %v2566, 4294901760
    %2568 = vmatpush.msra.mxu0 %v2567
    %v2569 = vand.u32 %v2121, 4294901760
    %v2570 = vsub.f32 %v2121, %v2569
    %v2571 = vand.u32 %v2570, 4294901760
    %2572 = vmatpush.msra.mxu0 %v2571
    %v2573 = vand.u32 %v2119, 4294901760
    %v2574 = vsub.f32 %v2119, %v2573
    %v2575 = vand.u32 %v2574, 4294901760
    %2576 = vmatpush.msra.mxu0 %v2575
    %v2577 = vand.u32 %v2117, 4294901760
    %v2578 = vsub.f32 %v2117, %v2577
    %v2579 = vand.u32 %v2578, 4294901760
    %2580 = vmatpush.msra.mxu0 %v2579
    %v2581 = vand.u32 %v2139, 4294901760
    %2582 = vmatmul.f32.gmra.mxu0 %v2581
    %v2583 = vpop.f32.mrf.mxu0
    %v2584 = vadd.f32 %v2539, %v2583
    %2585 = vdwg.mxu0
    %2586 = vmatpush.msra.mxu0 0.0
    %2587 = vmatpush.msra.mxu0 0.0
    %2588 = vmatpush.msra.mxu0 0.0
    %2589 = vmatpush.msra.mxu0 0.0
    %2590 = vmatpush.msra.mxu0 0.0
    %2591 = vmatpush.msra.mxu0 0.0
    %2592 = vmatpush.msra.mxu0 0.0
    %2593 = vmatpush.msra.mxu0 0.0
    %v2594 = vand.u32 %v2131, 4294901760
    %2595 = vmatpush.msra.mxu0 %v2594
    %v2596 = vand.u32 %v2129, 4294901760
    %2597 = vmatpush.msra.mxu0 %v2596
    %v2598 = vand.u32 %v2127, 4294901760
    %2599 = vmatpush.msra.mxu0 %v2598
    %v2600 = vand.u32 %v2125, 4294901760
    %2601 = vmatpush.msra.mxu0 %v2600
    %v2602 = vand.u32 %v2123, 4294901760
    %2603 = vmatpush.msra.mxu0 %v2602
    %v2604 = vand.u32 %v2121, 4294901760
    %2605 = vmatpush.msra.mxu0 %v2604
    %v2606 = vand.u32 %v2119, 4294901760
    %2607 = vmatpush.msra.mxu0 %v2606
    %v2608 = vand.u32 %v2117, 4294901760
    %2609 = vmatpush.msra.mxu0 %v2608
    %v2610 = vand.u32 %v2139, 4294901760
    %2611 = vmatmul.f32.gmra.mxu0 %v2610
    %v2612 = vpop.f32.mrf.mxu0
    %v2613 = vadd.f32 %v2584, %v2612
    %2614 = vdwg.mxu0
    %v2615 = vtanh.pop %v2376
    %v2616 = vtanh.pop %v2613
    %v2617 = vld [vmem:[%s15] sm:$0xff]
    %v2618 = vld [vmem:[%s15 + $0x8] sm:$0xff]
    %v2619 = vld [vmem:[%s15 + $0x10] sm:$0xff]
    %v2620 = vld [vmem:[%s15 + $0x18] sm:$0xff]
    %v2621 = vld [vmem:[%s15 + $0x20] sm:$0xff]
    %v2622 = vld [vmem:[%s15 + $0x28] sm:$0xff]
    %v2623 = vld [vmem:[%s15 + $0x30] sm:$0xff]
    %v2624 = vld [vmem:[%s15 + $0x38] sm:$0xff]
    %v2625 = vld [vmem:[%s15 + $0x40] sm:$0xff]
    %v2626 = vld [vmem:[%s15 + $0x48] sm:$0xff]
    %v2627 = vld [vmem:[%s15 + $0x50] sm:$0xff]
    %v2628 = vld [vmem:[%s15 + $0x58] sm:$0xff]
    %v2629 = vld [vmem:[%s15 + $0x60] sm:$0xff]
    %v2630 = vld [vmem:[%s15 + $0x68] sm:$0xff]
    %v2631 = vld [vmem:[%s15 + $0x70] sm:$0xff]
    %v2632 = vld [vmem:[%s15 + $0x78] sm:$0xff]
    %v2633 = vld [vmem:[%s15 + $0x80] sm:$0xff]
    %v2634 = vld [vmem:[%s15 + $0x88] sm:$0xff]
    %v2635 = vld [vmem:[%s15 + $0x90] sm:$0xff]
    %v2636 = vld [vmem:[%s15 + $0x98] sm:$0xff]
    %v2637 = vld [vmem:[%s15 + $0xa0] sm:$0xff]
    %v2638 = vld [vmem:[%s15 + $0xa8] sm:$0xff]
    %v2639 = vld [vmem:[%s15 + $0xb0] sm:$0xff]
    %v2640 = vld [vmem:[%s15 + $0xb8] sm:$0xff]
    %v2641 = vld [vmem:[%s15 + $0xc0] sm:$0xff]
    %v2642 = vld [vmem:[%s15 + $0xc8] sm:$0xff]
    %v2643 = vld [vmem:[%s15 + $0xd0] sm:$0xff]
    %v2644 = vld [vmem:[%s15 + $0xd8] sm:$0xff]
    %v2645 = vld [vmem:[%s15 + $0xe0] sm:$0xff]
    %v2646 = vld [vmem:[%s15 + $0xe8] sm:$0xff]
    %v2647 = vld [vmem:[%s15 + $0xf0] sm:$0xff]
    %v2648 = vld [vmem:[%s15 + $0xf8] sm:$0xff]
    %v2649 = vld [vmem:[%s16] sm:$0x1]
    %v2651 = vperm.slane %v2649, 0
    %v2653 = vand.u32 %v2632, 4294901760
    %2654 = vmatpush.msra.mxu0 %v2653
    %v2655 = vand.u32 %v2631, 4294901760
    %2656 = vmatpush.msra.mxu0 %v2655
    %v2657 = vand.u32 %v2630, 4294901760
    %2658 = vmatpush.msra.mxu0 %v2657
    %v2659 = vand.u32 %v2629, 4294901760
    %2660 = vmatpush.msra.mxu0 %v2659
    %v2661 = vand.u32 %v2628, 4294901760
    %2662 = vmatpush.msra.mxu0 %v2661
    %v2663 = vand.u32 %v2627, 4294901760
    %2664 = vmatpush.msra.mxu0 %v2663
    %v2665 = vand.u32 %v2626, 4294901760
    %2666 = vmatpush.msra.mxu0 %v2665
    %v2667 = vand.u32 %v2625, 4294901760
    %2668 = vmatpush.msra.mxu0 %v2667
    %v2669 = vand.u32 %v2624, 4294901760
    %2670 = vmatpush.msra.mxu0 %v2669
    %v2671 = vand.u32 %v2623, 4294901760
    %2672 = vmatpush.msra.mxu0 %v2671
    %v2673 = vand.u32 %v2622, 4294901760
    %2674 = vmatpush.msra.mxu0 %v2673
    %v2675 = vand.u32 %v2621, 4294901760
    %2676 = vmatpush.msra.mxu0 %v2675
    %v2677 = vand.u32 %v2620, 4294901760
    %2678 = vmatpush.msra.mxu0 %v2677
    %v2679 = vand.u32 %v2619, 4294901760
    %2680 = vmatpush.msra.mxu0 %v2679
    %v2681 = vand.u32 %v2618, 4294901760
    %2682 = vmatpush.msra.mxu0 %v2681
    %v2683 = vand.u32 %v2617, 4294901760
    %2684 = vmatpush.msra.mxu0 %v2683
    %v2685 = vand.u32 %v2615, 4294901760
    %v2686 = vsub.f32 %v2615, %v2685
    %v2687 = vand.u32 %v2686, 4294901760
    %v2688 = vsub.f32 %v2686, %v2687
    %v2689 = vand.u32 %v2688, 4294901760
    %2690 = vmatmul.f32.gmra.mxu0 %v2689
    %v2691 = vpop.f32.mrf.mxu0
    %v2692 = vadd.f32 %v2651, %v2691
    %2693 = vdwg.mxu0
    %v2694 = vand.u32 %v2632, 4294901760
    %v2695 = vsub.f32 %v2632, %v2694
    %v2696 = vand.u32 %v2695, 4294901760
    %v2697 = vsub.f32 %v2695, %v2696
    %v2698 = vand.u32 %v2697, 4294901760
    %2699 = vmatpush.msra.mxu0 %v2698
    %v2700 = vand.u32 %v2631, 4294901760
    %v2701 = vsub.f32 %v2631, %v2700
    %v2702 = vand.u32 %v2701, 4294901760
    %v2703 = vsub.f32 %v2701, %v2702
    %v2704 = vand.u32 %v2703, 4294901760
    %2705 = vmatpush.msra.mxu0 %v2704
    %v2706 = vand.u32 %v2630, 4294901760
    %v2707 = vsub.f32 %v2630, %v2706
    %v2708 = vand.u32 %v2707, 4294901760
    %v2709 = vsub.f32 %v2707, %v2708
    %v2710 = vand.u32 %v2709, 4294901760
    %2711 = vmatpush.msra.mxu0 %v2710
    %v2712 = vand.u32 %v2629, 4294901760
    %v2713 = vsub.f32 %v2629, %v2712
    %v2714 = vand.u32 %v2713, 4294901760
    %v2715 = vsub.f32 %v2713, %v2714
    %v2716 = vand.u32 %v2715, 4294901760
    %2717 = vmatpush.msra.mxu0 %v2716
    %v2718 = vand.u32 %v2628, 4294901760
    %v2719 = vsub.f32 %v2628, %v2718
    %v2720 = vand.u32 %v2719, 4294901760
    %v2721 = vsub.f32 %v2719, %v2720
    %v2722 = vand.u32 %v2721, 4294901760
    %2723 = vmatpush.msra.mxu0 %v2722
    %v2724 = vand.u32 %v2627, 4294901760
    %v2725 = vsub.f32 %v2627, %v2724
    %v2726 = vand.u32 %v2725, 4294901760
    %v2727 = vsub.f32 %v2725, %v2726
    %v2728 = vand.u32 %v2727, 4294901760
    %2729 = vmatpush.msra.mxu0 %v2728
    %v2730 = vand.u32 %v2626, 4294901760
    %v2731 = vsub.f32 %v2626, %v2730
    %v2732 = vand.u32 %v2731, 4294901760
    %v2733 = vsub.f32 %v2731, %v2732
    %v2734 = vand.u32 %v2733, 4294901760
    %2735 = vmatpush.msra.mxu0 %v2734
    %v2736 = vand.u32 %v2625, 4294901760
    %v2737 = vsub.f32 %v2625, %v2736
    %v2738 = vand.u32 %v2737, 4294901760
    %v2739 = vsub.f32 %v2737, %v2738
    %v2740 = vand.u32 %v2739, 4294901760
    %2741 = vmatpush.msra.mxu0 %v2740
    %v2742 = vand.u32 %v2624, 4294901760
    %v2743 = vsub.f32 %v2624, %v2742
    %v2744 = vand.u32 %v2743, 4294901760
    %v2745 = vsub.f32 %v2743, %v2744
    %v2746 = vand.u32 %v2745, 4294901760
    %2747 = vmatpush.msra.mxu0 %v2746
    %v2748 = vand.u32 %v2623, 4294901760
    %v2749 = vsub.f32 %v2623, %v2748
    %v2750 = vand.u32 %v2749, 4294901760
    %v2751 = vsub.f32 %v2749, %v2750
    %v2752 = vand.u32 %v2751, 4294901760
    %2753 = vmatpush.msra.mxu0 %v2752
    %v2754 = vand.u32 %v2622, 4294901760
    %v2755 = vsub.f32 %v2622, %v2754
    %v2756 = vand.u32 %v2755, 4294901760
    %v2757 = vsub.f32 %v2755, %v2756
    %v2758 = vand.u32 %v2757, 4294901760
    %2759 = vmatpush.msra.mxu0 %v2758
    %v2760 = vand.u32 %v2621, 4294901760
    %v2761 = vsub.f32 %v2621, %v2760
    %v2762 = vand.u32 %v2761, 4294901760
    %v2763 = vsub.f32 %v2761, %v2762
    %v2764 = vand.u32 %v2763, 4294901760
    %2765 = vmatpush.msra.mxu0 %v2764
    %v2766 = vand.u32 %v2620, 4294901760
    %v2767 = vsub.f32 %v2620, %v2766
    %v2768 = vand.u32 %v2767, 4294901760
    %v2769 = vsub.f32 %v2767, %v2768
    %v2770 = vand.u32 %v2769, 4294901760
    %2771 = vmatpush.msra.mxu0 %v2770
    %v2772 = vand.u32 %v2619, 4294901760
    %v2773 = vsub.f32 %v2619, %v2772
    %v2774 = vand.u32 %v2773, 4294901760
    %v2775 = vsub.f32 %v2773, %v2774
    %v2776 = vand.u32 %v2775, 4294901760
    %2777 = vmatpush.msra.mxu0 %v2776
    %v2778 = vand.u32 %v2618, 4294901760
    %v2779 = vsub.f32 %v2618, %v2778
    %v2780 = vand.u32 %v2779, 4294901760
    %v2781 = vsub.f32 %v2779, %v2780
    %v2782 = vand.u32 %v2781, 4294901760
    %2783 = vmatpush.msra.mxu0 %v2782
    %v2784 = vand.u32 %v2617, 4294901760
    %v2785 = vsub.f32 %v2617, %v2784
    %v2786 = vand.u32 %v2785, 4294901760
    %v2787 = vsub.f32 %v2785, %v2786
    %v2788 = vand.u32 %v2787, 4294901760
    %2789 = vmatpush.msra.mxu0 %v2788
    %v2790 = vand.u32 %v2615, 4294901760
    %2791 = vmatmul.f32.gmra.mxu0 %v2790
    %v2792 = vpop.f32.mrf.mxu0
    %v2793 = vadd.f32 %v2692, %v2792
    %2794 = vdwg.mxu0
    %v2795 = vand.u32 %v2632, 4294901760
    %v2796 = vsub.f32 %v2632, %v2795
    %2797 = vmatpush.msra.mxu0 %v2796
    %v2798 = vand.u32 %v2631, 4294901760
    %v2799 = vsub.f32 %v2631, %v2798
    %2800 = vmatpush.msra.mxu0 %v2799
    %v2801 = vand.u32 %v2630, 4294901760
    %v2802 = vsub.f32 %v2630, %v2801
    %2803 = vmatpush.msra.mxu0 %v2802
    %v2804 = vand.u32 %v2629, 4294901760
    %v2805 = vsub.f32 %v2629, %v2804
    %2806 = vmatpush.msra.mxu0 %v2805
    %v2807 = vand.u32 %v2628, 4294901760
    %v2808 = vsub.f32 %v2628, %v2807
    %2809 = vmatpush.msra.mxu0 %v2808
    %v2810 = vand.u32 %v2627, 4294901760
    %v2811 = vsub.f32 %v2627, %v2810
    %2812 = vmatpush.msra.mxu0 %v2811
    %v2813 = vand.u32 %v2626, 4294901760
    %v2814 = vsub.f32 %v2626, %v2813
    %2815 = vmatpush.msra.mxu0 %v2814
    %v2816 = vand.u32 %v2625, 4294901760
    %v2817 = vsub.f32 %v2625, %v2816
    %2818 = vmatpush.msra.mxu0 %v2817
    %v2819 = vand.u32 %v2624, 4294901760
    %v2820 = vsub.f32 %v2624, %v2819
    %2821 = vmatpush.msra.mxu0 %v2820
    %v2822 = vand.u32 %v2623, 4294901760
    %v2823 = vsub.f32 %v2623, %v2822
    %2824 = vmatpush.msra.mxu0 %v2823
    %v2825 = vand.u32 %v2622, 4294901760
    %v2826 = vsub.f32 %v2622, %v2825
    %2827 = vmatpush.msra.mxu0 %v2826
    %v2828 = vand.u32 %v2621, 4294901760
    %v2829 = vsub.f32 %v2621, %v2828
    %2830 = vmatpush.msra.mxu0 %v2829
    %v2831 = vand.u32 %v2620, 4294901760
    %v2832 = vsub.f32 %v2620, %v2831
    %2833 = vmatpush.msra.mxu0 %v2832
    %v2834 = vand.u32 %v2619, 4294901760
    %v2835 = vsub.f32 %v2619, %v2834
    %2836 = vmatpush.msra.mxu0 %v2835
    %v2837 = vand.u32 %v2618, 4294901760
    %v2838 = vsub.f32 %v2618, %v2837
    %2839 = vmatpush.msra.mxu0 %v2838
    %v2840 = vand.u32 %v2617, 4294901760
    %v2841 = vsub.f32 %v2617, %v2840
    %2842 = vmatpush.msra.mxu0 %v2841
    %v2843 = vand.u32 %v2615, 4294901760
    %v2844 = vsub.f32 %v2615, %v2843
    %2845 = vmatmul.f32.gmra.mxu0 %v2844
    %v2846 = vpop.f32.mrf.mxu0
    %v2847 = vadd.f32 %v2793, %v2846
    %2848 = vdwg.mxu0
    %v2849 = vand.u32 %v2632, 4294901760
    %2850 = vmatpush.msra.mxu0 %v2849
    %v2851 = vand.u32 %v2631, 4294901760
    %2852 = vmatpush.msra.mxu0 %v2851
    %v2853 = vand.u32 %v2630, 4294901760
    %2854 = vmatpush.msra.mxu0 %v2853
    %v2855 = vand.u32 %v2629, 4294901760
    %2856 = vmatpush.msra.mxu0 %v2855
    %v2857 = vand.u32 %v2628, 4294901760
    %2858 = vmatpush.msra.mxu0 %v2857
    %v2859 = vand.u32 %v2627, 4294901760
    %2860 = vmatpush.msra.mxu0 %v2859
    %v2861 = vand.u32 %v2626, 4294901760
    %2862 = vmatpush.msra.mxu0 %v2861
    %v2863 = vand.u32 %v2625, 4294901760
    %2864 = vmatpush.msra.mxu0 %v2863
    %v2865 = vand.u32 %v2624, 4294901760
    %2866 = vmatpush.msra.mxu0 %v2865
    %v2867 = vand.u32 %v2623, 4294901760
    %2868 = vmatpush.msra.mxu0 %v2867
    %v2869 = vand.u32 %v2622, 4294901760
    %2870 = vmatpush.msra.mxu0 %v2869
    %v2871 = vand.u32 %v2621, 4294901760
    %2872 = vmatpush.msra.mxu0 %v2871
    %v2873 = vand.u32 %v2620, 4294901760
    %2874 = vmatpush.msra.mxu0 %v2873
    %v2875 = vand.u32 %v2619, 4294901760
    %2876 = vmatpush.msra.mxu0 %v2875
    %v2877 = vand.u32 %v2618, 4294901760
    %2878 = vmatpush.msra.mxu0 %v2877
    %v2879 = vand.u32 %v2617, 4294901760
    %2880 = vmatpush.msra.mxu0 %v2879
    %v2881 = vand.u32 %v2615, 4294901760
    %v2882 = vsub.f32 %v2615, %v2881
    %v2883 = vand.u32 %v2882, 4294901760
    %2884 = vmatmul.f32.gmra.mxu0 %v2883
    %v2885 = vpop.f32.mrf.mxu0
    %v2886 = vadd.f32 %v2847, %v2885
    %2887 = vdwg.mxu0
    %v2888 = vand.u32 %v2632, 4294901760
    %v2889 = vsub.f32 %v2632, %v2888
    %v2890 = vand.u32 %v2889, 4294901760
    %2891 = vmatpush.msra.mxu0 %v2890
    %v2892 = vand.u32 %v2631, 4294901760
    %v2893 = vsub.f32 %v2631, %v2892
    %v2894 = vand.u32 %v2893, 4294901760
    %2895 = vmatpush.msra.mxu0 %v2894
    %v2896 = vand.u32 %v2630, 4294901760
    %v2897 = vsub.f32 %v2630, %v2896
    %v2898 = vand.u32 %v2897, 4294901760
    %2899 = vmatpush.msra.mxu0 %v2898
    %v2900 = vand.u32 %v2629, 4294901760
    %v2901 = vsub.f32 %v2629, %v2900
    %v2902 = vand.u32 %v2901, 4294901760
    %2903 = vmatpush.msra.mxu0 %v2902
    %v2904 = vand.u32 %v2628, 4294901760
    %v2905 = vsub.f32 %v2628, %v2904
    %v2906 = vand.u32 %v2905, 4294901760
    %2907 = vmatpush.msra.mxu0 %v2906
    %v2908 = vand.u32 %v2627, 4294901760
    %v2909 = vsub.f32 %v2627, %v2908
    %v2910 = vand.u32 %v2909, 4294901760
    %2911 = vmatpush.msra.mxu0 %v2910
    %v2912 = vand.u32 %v2626, 4294901760
    %v2913 = vsub.f32 %v2626, %v2912
    %v2914 = vand.u32 %v2913, 4294901760
    %2915 = vmatpush.msra.mxu0 %v2914
    %v2916 = vand.u32 %v2625, 4294901760
    %v2917 = vsub.f32 %v2625, %v2916
    %v2918 = vand.u32 %v2917, 4294901760
    %2919 = vmatpush.msra.mxu0 %v2918
    %v2920 = vand.u32 %v2624, 4294901760
    %v2921 = vsub.f32 %v2624, %v2920
    %v2922 = vand.u32 %v2921, 4294901760
    %2923 = vmatpush.msra.mxu0 %v2922
    %v2924 = vand.u32 %v2623, 4294901760
    %v2925 = vsub.f32 %v2623, %v2924
    %v2926 = vand.u32 %v2925, 4294901760
    %2927 = vmatpush.msra.mxu0 %v2926
    %v2928 = vand.u32 %v2622, 4294901760
    %v2929 = vsub.f32 %v2622, %v2928
    %v2930 = vand.u32 %v2929, 4294901760
    %2931 = vmatpush.msra.mxu0 %v2930
    %v2932 = vand.u32 %v2621, 4294901760
    %v2933 = vsub.f32 %v2621, %v2932
    %v2934 = vand.u32 %v2933, 4294901760
    %2935 = vmatpush.msra.mxu0 %v2934
    %v2936 = vand.u32 %v2620, 4294901760
    %v2937 = vsub.f32 %v2620, %v2936
    %v2938 = vand.u32 %v2937, 4294901760
    %2939 = vmatpush.msra.mxu0 %v2938
    %v2940 = vand.u32 %v2619, 4294901760
    %v2941 = vsub.f32 %v2619, %v2940
    %v2942 = vand.u32 %v2941, 4294901760
    %2943 = vmatpush.msra.mxu0 %v2942
    %v2944 = vand.u32 %v2618, 4294901760
    %v2945 = vsub.f32 %v2618, %v2944
    %v2946 = vand.u32 %v2945, 4294901760
    %2947 = vmatpush.msra.mxu0 %v2946
    %v2948 = vand.u32 %v2617, 4294901760
    %v2949 = vsub.f32 %v2617, %v2948
    %v2950 = vand.u32 %v2949, 4294901760
    %2951 = vmatpush.msra.mxu0 %v2950
    %v2952 = vand.u32 %v2615, 4294901760
    %2953 = vmatmul.f32.gmra.mxu0 %v2952
    %v2954 = vpop.f32.mrf.mxu0
    %v2955 = vadd.f32 %v2886, %v2954
    %2956 = vdwg.mxu0
    %v2957 = vand.u32 %v2632, 4294901760
    %2958 = vmatpush.msra.mxu0 %v2957
    %v2959 = vand.u32 %v2631, 4294901760
    %2960 = vmatpush.msra.mxu0 %v2959
    %v2961 = vand.u32 %v2630, 4294901760
    %2962 = vmatpush.msra.mxu0 %v2961
    %v2963 = vand.u32 %v2629, 4294901760
    %2964 = vmatpush.msra.mxu0 %v2963
    %v2965 = vand.u32 %v2628, 4294901760
    %2966 = vmatpush.msra.mxu0 %v2965
    %v2967 = vand.u32 %v2627, 4294901760
    %2968 = vmatpush.msra.mxu0 %v2967
    %v2969 = vand.u32 %v2626, 4294901760
    %2970 = vmatpush.msra.mxu0 %v2969
    %v2971 = vand.u32 %v2625, 4294901760
    %2972 = vmatpush.msra.mxu0 %v2971
    %v2973 = vand.u32 %v2624, 4294901760
    %2974 = vmatpush.msra.mxu0 %v2973
    %v2975 = vand.u32 %v2623, 4294901760
    %2976 = vmatpush.msra.mxu0 %v2975
    %v2977 = vand.u32 %v2622, 4294901760
    %2978 = vmatpush.msra.mxu0 %v2977
    %v2979 = vand.u32 %v2621, 4294901760
    %2980 = vmatpush.msra.mxu0 %v2979
    %v2981 = vand.u32 %v2620, 4294901760
    %2982 = vmatpush.msra.mxu0 %v2981
    %v2983 = vand.u32 %v2619, 4294901760
    %2984 = vmatpush.msra.mxu0 %v2983
    %v2985 = vand.u32 %v2618, 4294901760
    %2986 = vmatpush.msra.mxu0 %v2985
    %v2987 = vand.u32 %v2617, 4294901760
    %2988 = vmatpush.msra.mxu0 %v2987
    %v2989 = vand.u32 %v2615, 4294901760
    %2990 = vmatmul.f32.gmra.mxu0 %v2989
    %v2991 = vpop.f32.mrf.mxu0
    %v2992 = vadd.f32 %v2955, %v2991
    %2993 = vdwg.mxu0
    %v2994 = vand.u32 %v2648, 4294901760
    %2995 = vmatpush.msra.mxu0 %v2994
    %v2996 = vand.u32 %v2647, 4294901760
    %2997 = vmatpush.msra.mxu0 %v2996
    %v2998 = vand.u32 %v2646, 4294901760
    %2999 = vmatpush.msra.mxu0 %v2998
    %v3000 = vand.u32 %v2645, 4294901760
    %3001 = vmatpush.msra.mxu0 %v3000
    %v3002 = vand.u32 %v2644, 4294901760
    %3003 = vmatpush.msra.mxu0 %v3002
    %v3004 = vand.u32 %v2643, 4294901760
    %3005 = vmatpush.msra.mxu0 %v3004
    %v3006 = vand.u32 %v2642, 4294901760
    %3007 = vmatpush.msra.mxu0 %v3006
    %v3008 = vand.u32 %v2641, 4294901760
    %3009 = vmatpush.msra.mxu0 %v3008
    %v3010 = vand.u32 %v2640, 4294901760
    %3011 = vmatpush.msra.mxu0 %v3010
    %v3012 = vand.u32 %v2639, 4294901760
    %3013 = vmatpush.msra.mxu0 %v3012
    %v3014 = vand.u32 %v2638, 4294901760
    %3015 = vmatpush.msra.mxu0 %v3014
    %v3016 = vand.u32 %v2637, 4294901760
    %3017 = vmatpush.msra.mxu0 %v3016
    %v3018 = vand.u32 %v2636, 4294901760
    %3019 = vmatpush.msra.mxu0 %v3018
    %v3020 = vand.u32 %v2635, 4294901760
    %3021 = vmatpush.msra.mxu0 %v3020
    %v3022 = vand.u32 %v2634, 4294901760
    %3023 = vmatpush.msra.mxu0 %v3022
    %v3024 = vand.u32 %v2633, 4294901760
    %3025 = vmatpush.msra.mxu0 %v3024
    %v3026 = vand.u32 %v2616, 4294901760
    %v3027 = vsub.f32 %v2616, %v3026
    %v3028 = vand.u32 %v3027, 4294901760
    %v3029 = vsub.f32 %v3027, %v3028
    %v3030 = vand.u32 %v3029, 4294901760
    %3031 = vmatmul.f32.gmra.mxu0 %v3030
    %v3032 = vpop.f32.mrf.mxu0
    %v3033 = vadd.f32 %v2992, %v3032
    %3034 = vdwg.mxu0
    %v3035 = vand.u32 %v2648, 4294901760
    %v3036 = vsub.f32 %v2648, %v3035
    %v3037 = vand.u32 %v3036, 4294901760
    %v3038 = vsub.f32 %v3036, %v3037
    %v3039 = vand.u32 %v3038, 4294901760
    %3040 = vmatpush.msra.mxu0 %v3039
    %v3041 = vand.u32 %v2647, 4294901760
    %v3042 = vsub.f32 %v2647, %v3041
    %v3043 = vand.u32 %v3042, 4294901760
    %v3044 = vsub.f32 %v3042, %v3043
    %v3045 = vand.u32 %v3044, 4294901760
    %3046 = vmatpush.msra.mxu0 %v3045
    %v3047 = vand.u32 %v2646, 4294901760
    %v3048 = vsub.f32 %v2646, %v3047
    %v3049 = vand.u32 %v3048, 4294901760
    %v3050 = vsub.f32 %v3048, %v3049
    %v3051 = vand.u32 %v3050, 4294901760
    %3052 = vmatpush.msra.mxu0 %v3051
    %v3053 = vand.u32 %v2645, 4294901760
    %v3054 = vsub.f32 %v2645, %v3053
    %v3055 = vand.u32 %v3054, 4294901760
    %v3056 = vsub.f32 %v3054, %v3055
    %v3057 = vand.u32 %v3056, 4294901760
    %3058 = vmatpush.msra.mxu0 %v3057
    %v3059 = vand.u32 %v2644, 4294901760
    %v3060 = vsub.f32 %v2644, %v3059
    %v3061 = vand.u32 %v3060, 4294901760
    %v3062 = vsub.f32 %v3060, %v3061
    %v3063 = vand.u32 %v3062, 4294901760
    %3064 = vmatpush.msra.mxu0 %v3063
    %v3065 = vand.u32 %v2643, 4294901760
    %v3066 = vsub.f32 %v2643, %v3065
    %v3067 = vand.u32 %v3066, 4294901760
    %v3068 = vsub.f32 %v3066, %v3067
    %v3069 = vand.u32 %v3068, 4294901760
    %3070 = vmatpush.msra.mxu0 %v3069
    %v3071 = vand.u32 %v2642, 4294901760
    %v3072 = vsub.f32 %v2642, %v3071
    %v3073 = vand.u32 %v3072, 4294901760
    %v3074 = vsub.f32 %v3072, %v3073
    %v3075 = vand.u32 %v3074, 4294901760
    %3076 = vmatpush.msra.mxu0 %v3075
    %v3077 = vand.u32 %v2641, 4294901760
    %v3078 = vsub.f32 %v2641, %v3077
    %v3079 = vand.u32 %v3078, 4294901760
    %v3080 = vsub.f32 %v3078, %v3079
    %v3081 = vand.u32 %v3080, 4294901760
    %3082 = vmatpush.msra.mxu0 %v3081
    %v3083 = vand.u32 %v2640, 4294901760
    %v3084 = vsub.f32 %v2640, %v3083
    %v3085 = vand.u32 %v3084, 4294901760
    %v3086 = vsub.f32 %v3084, %v3085
    %v3087 = vand.u32 %v3086, 4294901760
    %3088 = vmatpush.msra.mxu0 %v3087
    %v3089 = vand.u32 %v2639, 4294901760
    %v3090 = vsub.f32 %v2639, %v3089
    %v3091 = vand.u32 %v3090, 4294901760
    %v3092 = vsub.f32 %v3090, %v3091
    %v3093 = vand.u32 %v3092, 4294901760
    %3094 = vmatpush.msra.mxu0 %v3093
    %v3095 = vand.u32 %v2638, 4294901760
    %v3096 = vsub.f32 %v2638, %v3095
    %v3097 = vand.u32 %v3096, 4294901760
    %v3098 = vsub.f32 %v3096, %v3097
    %v3099 = vand.u32 %v3098, 4294901760
    %3100 = vmatpush.msra.mxu0 %v3099
    %v3101 = vand.u32 %v2637, 4294901760
    %v3102 = vsub.f32 %v2637, %v3101
    %v3103 = vand.u32 %v3102, 4294901760
    %v3104 = vsub.f32 %v3102, %v3103
    %v3105 = vand.u32 %v3104, 4294901760
    %3106 = vmatpush.msra.mxu0 %v3105
    %v3107 = vand.u32 %v2636, 4294901760
    %v3108 = vsub.f32 %v2636, %v3107
    %v3109 = vand.u32 %v3108, 4294901760
    %v3110 = vsub.f32 %v3108, %v3109
    %v3111 = vand.u32 %v3110, 4294901760
    %3112 = vmatpush.msra.mxu0 %v3111
    %v3113 = vand.u32 %v2635, 4294901760
    %v3114 = vsub.f32 %v2635, %v3113
    %v3115 = vand.u32 %v3114, 4294901760
    %v3116 = vsub.f32 %v3114, %v3115
    %v3117 = vand.u32 %v3116, 4294901760
    %3118 = vmatpush.msra.mxu0 %v3117
    %v3119 = vand.u32 %v2634, 4294901760
    %v3120 = vsub.f32 %v2634, %v3119
    %v3121 = vand.u32 %v3120, 4294901760
    %v3122 = vsub.f32 %v3120, %v3121
    %v3123 = vand.u32 %v3122, 4294901760
    %3124 = vmatpush.msra.mxu0 %v3123
    %v3125 = vand.u32 %v2633, 4294901760
    %v3126 = vsub.f32 %v2633, %v3125
    %v3127 = vand.u32 %v3126, 4294901760
    %v3128 = vsub.f32 %v3126, %v3127
    %v3129 = vand.u32 %v3128, 4294901760
    %3130 = vmatpush.msra.mxu0 %v3129
    %v3131 = vand.u32 %v2616, 4294901760
    %3132 = vmatmul.f32.gmra.mxu0 %v3131
    %v3133 = vpop.f32.mrf.mxu0
    %v3134 = vadd.f32 %v3033, %v3133
    %3135 = vdwg.mxu0
    %v3136 = vand.u32 %v2648, 4294901760
    %v3137 = vsub.f32 %v2648, %v3136
    %3138 = vmatpush.msra.mxu0 %v3137
    %v3139 = vand.u32 %v2647, 4294901760
    %v3140 = vsub.f32 %v2647, %v3139
    %3141 = vmatpush.msra.mxu0 %v3140
    %v3142 = vand.u32 %v2646, 4294901760
    %v3143 = vsub.f32 %v2646, %v3142
    %3144 = vmatpush.msra.mxu0 %v3143
    %v3145 = vand.u32 %v2645, 4294901760
    %v3146 = vsub.f32 %v2645, %v3145
    %3147 = vmatpush.msra.mxu0 %v3146
    %v3148 = vand.u32 %v2644, 4294901760
    %v3149 = vsub.f32 %v2644, %v3148
    %3150 = vmatpush.msra.mxu0 %v3149
    %v3151 = vand.u32 %v2643, 4294901760
    %v3152 = vsub.f32 %v2643, %v3151
    %3153 = vmatpush.msra.mxu0 %v3152
    %v3154 = vand.u32 %v2642, 4294901760
    %v3155 = vsub.f32 %v2642, %v3154
    %3156 = vmatpush.msra.mxu0 %v3155
    %v3157 = vand.u32 %v2641, 4294901760
    %v3158 = vsub.f32 %v2641, %v3157
    %3159 = vmatpush.msra.mxu0 %v3158
    %v3160 = vand.u32 %v2640, 4294901760
    %v3161 = vsub.f32 %v2640, %v3160
    %3162 = vmatpush.msra.mxu0 %v3161
    %v3163 = vand.u32 %v2639, 4294901760
    %v3164 = vsub.f32 %v2639, %v3163
    %3165 = vmatpush.msra.mxu0 %v3164
    %v3166 = vand.u32 %v2638, 4294901760
    %v3167 = vsub.f32 %v2638, %v3166
    %3168 = vmatpush.msra.mxu0 %v3167
    %v3169 = vand.u32 %v2637, 4294901760
    %v3170 = vsub.f32 %v2637, %v3169
    %3171 = vmatpush.msra.mxu0 %v3170
    %v3172 = vand.u32 %v2636, 4294901760
    %v3173 = vsub.f32 %v2636, %v3172
    %3174 = vmatpush.msra.mxu0 %v3173
    %v3175 = vand.u32 %v2635, 4294901760
    %v3176 = vsub.f32 %v2635, %v3175
    %3177 = vmatpush.msra.mxu0 %v3176
    %v3178 = vand.u32 %v2634, 4294901760
    %v3179 = vsub.f32 %v2634, %v3178
    %3180 = vmatpush.msra.mxu0 %v3179
    %v3181 = vand.u32 %v2633, 4294901760
    %v3182 = vsub.f32 %v2633, %v3181
    %3183 = vmatpush.msra.mxu0 %v3182
    %v3184 = vand.u32 %v2616, 4294901760
    %v3185 = vsub.f32 %v2616, %v3184
    %3186 = vmatmul.f32.gmra.mxu0 %v3185
    %v3187 = vpop.f32.mrf.mxu0
    %v3188 = vadd.f32 %v3134, %v3187
    %3189 = vdwg.mxu0
    %v3190 = vand.u32 %v2648, 4294901760
    %3191 = vmatpush.msra.mxu0 %v3190
    %v3192 = vand.u32 %v2647, 4294901760
    %3193 = vmatpush.msra.mxu0 %v3192
    %v3194 = vand.u32 %v2646, 4294901760
    %3195 = vmatpush.msra.mxu0 %v3194
    %v3196 = vand.u32 %v2645, 4294901760
    %3197 = vmatpush.msra.mxu0 %v3196
    %v3198 = vand.u32 %v2644, 4294901760
    %3199 = vmatpush.msra.mxu0 %v3198
    %v3200 = vand.u32 %v2643, 4294901760
    %3201 = vmatpush.msra.mxu0 %v3200
    %v3202 = vand.u32 %v2642, 4294901760
    %3203 = vmatpush.msra.mxu0 %v3202
    %v3204 = vand.u32 %v2641, 4294901760
    %3205 = vmatpush.msra.mxu0 %v3204
    %v3206 = vand.u32 %v2640, 4294901760
    %3207 = vmatpush.msra.mxu0 %v3206
    %v3208 = vand.u32 %v2639, 4294901760
    %3209 = vmatpush.msra.mxu0 %v3208
    %v3210 = vand.u32 %v2638, 4294901760
    %3211 = vmatpush.msra.mxu0 %v3210
    %v3212 = vand.u32 %v2637, 4294901760
    %3213 = vmatpush.msra.mxu0 %v3212
    %v3214 = vand.u32 %v2636, 4294901760
    %3215 = vmatpush.msra.mxu0 %v3214
    %v3216 = vand.u32 %v2635, 4294901760
    %3217 = vmatpush.msra.mxu0 %v3216
    %v3218 = vand.u32 %v2634, 4294901760
    %3219 = vmatpush.msra.mxu0 %v3218
    %v3220 = vand.u32 %v2633, 4294901760
    %3221 = vmatpush.msra.mxu0 %v3220
    %v3222 = vand.u32 %v2616, 4294901760
    %v3223 = vsub.f32 %v2616, %v3222
    %v3224 = vand.u32 %v3223, 4294901760
    %3225 = vmatmul.f32.gmra.mxu0 %v3224
    %v3226 = vpop.f32.mrf.mxu0
    %v3227 = vadd.f32 %v3188, %v3226
    %3228 = vdwg.mxu0
    %v3229 = vand.u32 %v2648, 4294901760
    %v3230 = vsub.f32 %v2648, %v3229
    %v3231 = vand.u32 %v3230, 4294901760
    %3232 = vmatpush.msra.mxu0 %v3231
    %v3233 = vand.u32 %v2647, 4294901760
    %v3234 = vsub.f32 %v2647, %v3233
    %v3235 = vand.u32 %v3234, 4294901760
    %3236 = vmatpush.msra.mxu0 %v3235
    %v3237 = vand.u32 %v2646, 4294901760
    %v3238 = vsub.f32 %v2646, %v3237
    %v3239 = vand.u32 %v3238, 4294901760
    %3240 = vmatpush.msra.mxu0 %v3239
    %v3241 = vand.u32 %v2645, 4294901760
    %v3242 = vsub.f32 %v2645, %v3241
    %v3243 = vand.u32 %v3242, 4294901760
    %3244 = vmatpush.msra.mxu0 %v3243
    %v3245 = vand.u32 %v2644, 4294901760
    %v3246 = vsub.f32 %v2644, %v3245
    %v3247 = vand.u32 %v3246, 4294901760
    %3248 = vmatpush.msra.mxu0 %v3247
    %v3249 = vand.u32 %v2643, 4294901760
    %v3250 = vsub.f32 %v2643, %v3249
    %v3251 = vand.u32 %v3250, 4294901760
    %3252 = vmatpush.msra.mxu0 %v3251
    %v3253 = vand.u32 %v2642, 4294901760
    %v3254 = vsub.f32 %v2642, %v3253
    %v3255 = vand.u32 %v3254, 4294901760
    %3256 = vmatpush.msra.mxu0 %v3255
    %v3257 = vand.u32 %v2641, 4294901760
    %v3258 = vsub.f32 %v2641, %v3257
    %v3259 = vand.u32 %v3258, 4294901760
    %3260 = vmatpush.msra.mxu0 %v3259
    %v3261 = vand.u32 %v2640, 4294901760
    %v3262 = vsub.f32 %v2640, %v3261
    %v3263 = vand.u32 %v3262, 4294901760
    %3264 = vmatpush.msra.mxu0 %v3263
    %v3265 = vand.u32 %v2639, 4294901760
    %v3266 = vsub.f32 %v2639, %v3265
    %v3267 = vand.u32 %v3266, 4294901760
    %3268 = vmatpush.msra.mxu0 %v3267
    %v3269 = vand.u32 %v2638, 4294901760
    %v3270 = vsub.f32 %v2638, %v3269
    %v3271 = vand.u32 %v3270, 4294901760
    %3272 = vmatpush.msra.mxu0 %v3271
    %v3273 = vand.u32 %v2637, 4294901760
    %v3274 = vsub.f32 %v2637, %v3273
    %v3275 = vand.u32 %v3274, 4294901760
    %3276 = vmatpush.msra.mxu0 %v3275
    %v3277 = vand.u32 %v2636, 4294901760
    %v3278 = vsub.f32 %v2636, %v3277
    %v3279 = vand.u32 %v3278, 4294901760
    %3280 = vmatpush.msra.mxu0 %v3279
    %v3281 = vand.u32 %v2635, 4294901760
    %v3282 = vsub.f32 %v2635, %v3281
    %v3283 = vand.u32 %v3282, 4294901760
    %3284 = vmatpush.msra.mxu0 %v3283
    %v3285 = vand.u32 %v2634, 4294901760
    %v3286 = vsub.f32 %v2634, %v3285
    %v3287 = vand.u32 %v3286, 4294901760
    %3288 = vmatpush.msra.mxu0 %v3287
    %v3289 = vand.u32 %v2633, 4294901760
    %v3290 = vsub.f32 %v2633, %v3289
    %v3291 = vand.u32 %v3290, 4294901760
    %3292 = vmatpush.msra.mxu0 %v3291
    %v3293 = vand.u32 %v2616, 4294901760
    %3294 = vmatmul.f32.gmra.mxu0 %v3293
    %v3295 = vpop.f32.mrf.mxu0
    %v3296 = vadd.f32 %v3227, %v3295
    %3297 = vdwg.mxu0
    %v3298 = vand.u32 %v2648, 4294901760
    %3299 = vmatpush.msra.mxu0 %v3298
    %v3300 = vand.u32 %v2647, 4294901760
    %3301 = vmatpush.msra.mxu0 %v3300
    %v3302 = vand.u32 %v2646, 4294901760
    %3303 = vmatpush.msra.mxu0 %v3302
    %v3304 = vand.u32 %v2645, 4294901760
    %3305 = vmatpush.msra.mxu0 %v3304
    %v3306 = vand.u32 %v2644, 4294901760
    %3307 = vmatpush.msra.mxu0 %v3306
    %v3308 = vand.u32 %v2643, 4294901760
    %3309 = vmatpush.msra.mxu0 %v3308
    %v3310 = vand.u32 %v2642, 4294901760
    %3311 = vmatpush.msra.mxu0 %v3310
    %v3312 = vand.u32 %v2641, 4294901760
    %3313 = vmatpush.msra.mxu0 %v3312
    %v3314 = vand.u32 %v2640, 4294901760
    %3315 = vmatpush.msra.mxu0 %v3314
    %v3316 = vand.u32 %v2639, 4294901760
    %3317 = vmatpush.msra.mxu0 %v3316
    %v3318 = vand.u32 %v2638, 4294901760
    %3319 = vmatpush.msra.mxu0 %v3318
    %v3320 = vand.u32 %v2637, 4294901760
    %3321 = vmatpush.msra.mxu0 %v3320
    %v3322 = vand.u32 %v2636, 4294901760
    %3323 = vmatpush.msra.mxu0 %v3322
    %v3324 = vand.u32 %v2635, 4294901760
    %3325 = vmatpush.msra.mxu0 %v3324
    %v3326 = vand.u32 %v2634, 4294901760
    %3327 = vmatpush.msra.mxu0 %v3326
    %v3328 = vand.u32 %v2633, 4294901760
    %3329 = vmatpush.msra.mxu0 %v3328
    %v3330 = vand.u32 %v2616, 4294901760
    %3331 = vmatmul.f32.gmra.mxu0 %v3330
    %v3332 = vpop.f32.mrf.mxu0
    %v3333 = vadd.f32 %v3296, %v3332
    %3334 = vdwg.mxu0
    %v3335 = vtanh.pop %v3333
    %v3336 = vld [vmem:[#allocation2] sm:$0xff]
    %v3337 = vld [vmem:[#allocation2 + $0x8] sm:$0xff]
    %v3338 = vld [vmem:[#allocation2 + $0x10] sm:$0xff]
    %v3339 = vld [vmem:[#allocation2 + $0x18] sm:$0xff]
    %v3340 = vld [vmem:[#allocation2 + $0x20] sm:$0xff]
    %v3341 = vld [vmem:[#allocation2 + $0x28] sm:$0xff]
    %v3342 = vld [vmem:[#allocation2 + $0x30] sm:$0xff]
    %v3343 = vld [vmem:[#allocation2 + $0x38] sm:$0xff]
    %v3344 = vld [vmem:[#allocation2 + $0x40] sm:$0xff]
    %v3345 = vld [vmem:[#allocation2 + $0x48] sm:$0xff]
    %v3346 = vld [vmem:[#allocation2 + $0x50] sm:$0xff]
    %v3347 = vld [vmem:[#allocation2 + $0x58] sm:$0xff]
    %v3348 = vld [vmem:[#allocation2 + $0x60] sm:$0xff]
    %v3349 = vld [vmem:[#allocation2 + $0x68] sm:$0xff]
    %v3350 = vld [vmem:[#allocation2 + $0x70] sm:$0xff]
    %v3351 = vld [vmem:[#allocation2 + $0x78] sm:$0xff]
    %v3352 = vld [vmem:[#allocation2 + $0x80] sm:$0xff]
    %v3353 = vld [vmem:[#allocation2 + $0x88] sm:$0xff]
    %v3354 = vld [vmem:[#allocation2 + $0x90] sm:$0xff]
    %v3355 = vld [vmem:[#allocation2 + $0x98] sm:$0xff]
    %v3356 = vld [vmem:[#allocation2 + $0xa0] sm:$0xff]
    %v3357 = vld [vmem:[#allocation2 + $0xa8] sm:$0xff]
    %v3358 = vld [vmem:[#allocation2 + $0xb0] sm:$0xff]
    %v3359 = vld [vmem:[#allocation2 + $0xb8] sm:$0xff]
    %v3360 = vld [vmem:[#allocation2 + $0xc0] sm:$0xff]
    %v3361 = vld [vmem:[#allocation2 + $0xc8] sm:$0xff]
    %v3362 = vld [vmem:[#allocation2 + $0xd0] sm:$0xff]
    %v3363 = vld [vmem:[#allocation2 + $0xd8] sm:$0xff]
    %v3364 = vld [vmem:[#allocation2 + $0xe0] sm:$0xff]
    %v3365 = vld [vmem:[#allocation2 + $0xe8] sm:$0xff]
    %v3366 = vld [vmem:[#allocation2 + $0xf0] sm:$0xff]
    %v3367 = vld [vmem:[#allocation2 + $0xf8] sm:$0xff]
    %v3368 = vld [vmem:[#allocation2 + $0x100] sm:$0xff]
    %v3369 = vld [vmem:[#allocation2 + $0x108] sm:$0xff]
    %v3370 = vld [vmem:[#allocation2 + $0x110] sm:$0xff]
    %v3371 = vld [vmem:[#allocation2 + $0x118] sm:$0xff]
    %v3372 = vld [vmem:[#allocation2 + $0x120] sm:$0xff]
    %v3373 = vld [vmem:[#allocation2 + $0x128] sm:$0xff]
    %v3374 = vld [vmem:[#allocation2 + $0x130] sm:$0xff]
    %v3375 = vld [vmem:[#allocation2 + $0x138] sm:$0xff]
    %v3376 = vld [vmem:[#allocation2 + $0x140] sm:$0xff]
    %v3377 = vld [vmem:[#allocation2 + $0x148] sm:$0xff]
    %v3378 = vld [vmem:[#allocation2 + $0x150] sm:$0xff]
    %v3379 = vld [vmem:[#allocation2 + $0x158] sm:$0xff]
    %v3380 = vld [vmem:[#allocation2 + $0x160] sm:$0xff]
    %v3381 = vld [vmem:[#allocation2 + $0x168] sm:$0xff]
    %v3382 = vld [vmem:[#allocation2 + $0x170] sm:$0xff]
    %v3383 = vld [vmem:[#allocation2 + $0x178] sm:$0xff]
    %v3384 = vld [vmem:[#allocation2 + $0x180] sm:$0xff]
    %v3385 = vld [vmem:[#allocation2 + $0x188] sm:$0xff]
    %v3386 = vld [vmem:[#allocation2 + $0x190] sm:$0xff]
    %v3387 = vld [vmem:[#allocation2 + $0x198] sm:$0xff]
    %v3388 = vld [vmem:[#allocation2 + $0x1a0] sm:$0xff]
    %v3389 = vld [vmem:[#allocation2 + $0x1a8] sm:$0xff]
    %v3390 = vld [vmem:[#allocation2 + $0x1b0] sm:$0xff]
    %v3391 = vld [vmem:[#allocation2 + $0x1b8] sm:$0xff]
    %v3392 = vld [vmem:[#allocation2 + $0x1c0] sm:$0xff]
    %v3393 = vld [vmem:[#allocation2 + $0x1c8] sm:$0xff]
    %v3394 = vld [vmem:[#allocation2 + $0x1d0] sm:$0xff]
    %v3395 = vld [vmem:[#allocation2 + $0x1d8] sm:$0xff]
    %v3396 = vld [vmem:[#allocation2 + $0x1e0] sm:$0xff]
    %v3397 = vld [vmem:[#allocation2 + $0x1e8] sm:$0xff]
    %v3398 = vld [vmem:[#allocation2 + $0x1f0] sm:$0xff]
    %v3399 = vld [vmem:[#allocation2 + $0x1f8] sm:$0xff]
    %v3400 = vld [vmem:[#allocation2 + $0x200] sm:$0xff]
    %v3401 = vld [vmem:[#allocation2 + $0x208] sm:$0xff]
    %v3402 = vld [vmem:[#allocation2 + $0x210] sm:$0xff]
    %v3403 = vld [vmem:[#allocation2 + $0x218] sm:$0xff]
    %v3404 = vld [vmem:[#allocation2 + $0x220] sm:$0xff]
    %v3405 = vld [vmem:[#allocation2 + $0x228] sm:$0xff]
    %v3406 = vld [vmem:[#allocation2 + $0x230] sm:$0xff]
    %v3407 = vld [vmem:[#allocation2 + $0x238] sm:$0xff]
    %v3408 = vld [vmem:[#allocation2 + $0x240] sm:$0xff]
    %v3409 = vld [vmem:[#allocation2 + $0x248] sm:$0xff]
    %v3410 = vld [vmem:[#allocation2 + $0x250] sm:$0xff]
    %v3411 = vld [vmem:[#allocation2 + $0x258] sm:$0xff]
    %v3412 = vld [vmem:[#allocation2 + $0x260] sm:$0xff]
    %v3413 = vld [vmem:[#allocation2 + $0x268] sm:$0xff]
    %v3414 = vld [vmem:[#allocation2 + $0x270] sm:$0xff]
    %v3415 = vld [vmem:[#allocation2 + $0x278] sm:$0xff]
    %v3416 = vld [vmem:[#allocation2 + $0x280] sm:$0xff]
    %v3417 = vld [vmem:[#allocation2 + $0x288] sm:$0xff]
    %v3418 = vld [vmem:[#allocation2 + $0x290] sm:$0xff]
    %v3419 = vld [vmem:[#allocation2 + $0x298] sm:$0xff]
    %v3420 = vld [vmem:[#allocation2 + $0x2a0] sm:$0xff]
    %v3421 = vld [vmem:[#allocation2 + $0x2a8] sm:$0xff]
    %v3422 = vld [vmem:[#allocation2 + $0x2b0] sm:$0xff]
    %v3423 = vld [vmem:[#allocation2 + $0x2b8] sm:$0xff]
    %v3424 = vld [vmem:[#allocation2 + $0x2c0] sm:$0xff]
    %v3425 = vld [vmem:[#allocation2 + $0x2c8] sm:$0xff]
    %v3426 = vld [vmem:[#allocation2 + $0x2d0] sm:$0xff]
    %v3427 = vld [vmem:[#allocation2 + $0x2d8] sm:$0xff]
    %v3428 = vld [vmem:[#allocation2 + $0x2e0] sm:$0xff]
    %v3429 = vld [vmem:[#allocation2 + $0x2e8] sm:$0xff]
    %v3430 = vld [vmem:[#allocation2 + $0x2f0] sm:$0xff]
    %v3431 = vld [vmem:[#allocation2 + $0x2f8] sm:$0xff]
    %v3432 = vld [vmem:[#allocation2 + $0x300] sm:$0xff]
    %v3433 = vld [vmem:[#allocation2 + $0x308] sm:$0xff]
    %v3434 = vld [vmem:[#allocation2 + $0x310] sm:$0xff]
    %v3435 = vld [vmem:[#allocation2 + $0x318] sm:$0xff]
    %v3436 = vld [vmem:[#allocation2 + $0x320] sm:$0xff]
    %v3437 = vld [vmem:[#allocation2 + $0x328] sm:$0xff]
    %v3438 = vld [vmem:[#allocation2 + $0x330] sm:$0xff]
    %v3439 = vld [vmem:[#allocation2 + $0x338] sm:$0xff]
    %v3440 = vld [vmem:[#allocation2 + $0x340] sm:$0xff]
    %v3441 = vld [vmem:[#allocation2 + $0x348] sm:$0xff]
    %v3442 = vld [vmem:[#allocation2 + $0x350] sm:$0xff]
    %v3443 = vld [vmem:[#allocation2 + $0x358] sm:$0xff]
    %v3444 = vld [vmem:[#allocation2 + $0x360] sm:$0xff]
    %v3445 = vld [vmem:[#allocation2 + $0x368] sm:$0xff]
    %v3446 = vld [vmem:[#allocation2 + $0x370] sm:$0xff]
    %v3447 = vld [vmem:[#allocation2 + $0x378] sm:$0xff]
    %v3448 = vld [vmem:[#allocation2 + $0x380] sm:$0xff]
    %v3449 = vld [vmem:[#allocation2 + $0x388] sm:$0xff]
    %v3450 = vld [vmem:[#allocation2 + $0x390] sm:$0xff]
    %v3451 = vld [vmem:[#allocation2 + $0x398] sm:$0xff]
    %v3452 = vld [vmem:[#allocation2 + $0x3a0] sm:$0xff]
    %v3453 = vld [vmem:[#allocation2 + $0x3a8] sm:$0xff]
    %v3454 = vld [vmem:[#allocation2 + $0x3b0] sm:$0xff]
    %v3455 = vld [vmem:[#allocation2 + $0x3b8] sm:$0xff]
    %v3456 = vld [vmem:[#allocation2 + $0x3c0] sm:$0xff]
    %v3457 = vld [vmem:[#allocation2 + $0x3c8] sm:$0xff]
    %v3458 = vld [vmem:[#allocation2 + $0x3d0] sm:$0xff]
    %v3459 = vld [vmem:[#allocation2 + $0x3d8] sm:$0xff]
    %v3460 = vld [vmem:[#allocation2 + $0x3e0] sm:$0xff]
    %v3461 = vld [vmem:[#allocation2 + $0x3e8] sm:$0xff]
    %v3462 = vld [vmem:[#allocation2 + $0x3f0] sm:$0xff]
    %v3463 = vld [vmem:[#allocation2 + $0x3f8] sm:$0xff]
    %v3464 = vld [vmem:[#allocation2 + $0x400] sm:$0xff]
    %v3465 = vld [vmem:[#allocation2 + $0x408] sm:$0xff]
    %v3466 = vld [vmem:[#allocation2 + $0x410] sm:$0xff]
    %v3467 = vld [vmem:[#allocation2 + $0x418] sm:$0xff]
    %v3468 = vld [vmem:[#allocation2 + $0x420] sm:$0xff]
    %v3469 = vld [vmem:[#allocation2 + $0x428] sm:$0xff]
    %v3470 = vld [vmem:[#allocation2 + $0x430] sm:$0xff]
    %v3471 = vld [vmem:[#allocation2 + $0x438] sm:$0xff]
    %v3472 = vld [vmem:[#allocation2 + $0x440] sm:$0xff]
    %v3473 = vld [vmem:[#allocation2 + $0x448] sm:$0xff]
    %v3474 = vld [vmem:[#allocation2 + $0x450] sm:$0xff]
    %v3475 = vld [vmem:[#allocation2 + $0x458] sm:$0xff]
    %v3476 = vld [vmem:[#allocation2 + $0x460] sm:$0xff]
    %v3477 = vld [vmem:[#allocation2 + $0x468] sm:$0xff]
    %v3478 = vld [vmem:[#allocation2 + $0x470] sm:$0xff]
    %v3479 = vld [vmem:[#allocation2 + $0x478] sm:$0xff]
    %v3480 = vld [vmem:[#allocation2 + $0x480] sm:$0xff]
    %v3481 = vld [vmem:[#allocation2 + $0x488] sm:$0xff]
    %v3482 = vld [vmem:[#allocation2 + $0x490] sm:$0xff]
    %v3483 = vld [vmem:[#allocation2 + $0x498] sm:$0xff]
    %v3484 = vld [vmem:[#allocation2 + $0x4a0] sm:$0xff]
    %v3485 = vld [vmem:[#allocation2 + $0x4a8] sm:$0xff]
    %v3486 = vld [vmem:[#allocation2 + $0x4b0] sm:$0xff]
    %v3487 = vld [vmem:[#allocation2 + $0x4b8] sm:$0xff]
    %v3488 = vld [vmem:[#allocation2 + $0x4c0] sm:$0xff]
    %v3489 = vld [vmem:[#allocation2 + $0x4c8] sm:$0xff]
    %v3490 = vld [vmem:[#allocation2 + $0x4d0] sm:$0xff]
    %v3491 = vld [vmem:[#allocation2 + $0x4d8] sm:$0xff]
    %v3492 = vld [vmem:[#allocation2 + $0x4e0] sm:$0xff]
    %v3493 = vld [vmem:[#allocation2 + $0x4e8] sm:$0xff]
    %v3494 = vld [vmem:[#allocation2 + $0x4f0] sm:$0xff]
    %v3495 = vld [vmem:[#allocation2 + $0x4f8] sm:$0xff]
    %v3496 = vld [vmem:[#allocation2 + $0x500] sm:$0xff]
    %v3497 = vld [vmem:[#allocation2 + $0x508] sm:$0xff]
    %v3498 = vld [vmem:[#allocation2 + $0x510] sm:$0xff]
    %v3499 = vld [vmem:[#allocation2 + $0x518] sm:$0xff]
    %v3500 = vld [vmem:[#allocation2 + $0x520] sm:$0xff]
    %v3501 = vld [vmem:[#allocation2 + $0x528] sm:$0xff]
    %v3502 = vld [vmem:[#allocation2 + $0x530] sm:$0xff]
    %v3503 = vld [vmem:[#allocation2 + $0x538] sm:$0xff]
    %v3504 = vld [vmem:[#allocation2 + $0x540] sm:$0xff]
    %v3505 = vld [vmem:[#allocation2 + $0x548] sm:$0xff]
    %v3506 = vld [vmem:[#allocation2 + $0x550] sm:$0xff]
    %v3507 = vld [vmem:[#allocation2 + $0x558] sm:$0xff]
    %v3508 = vld [vmem:[#allocation2 + $0x560] sm:$0xff]
    %v3509 = vld [vmem:[#allocation2 + $0x568] sm:$0xff]
    %v3510 = vld [vmem:[#allocation2 + $0x570] sm:$0xff]
    %v3511 = vld [vmem:[#allocation2 + $0x578] sm:$0xff]
    %v3512 = vld [vmem:[#allocation2 + $0x580] sm:$0xff]
    %v3513 = vld [vmem:[#allocation2 + $0x588] sm:$0xff]
    %v3514 = vld [vmem:[#allocation2 + $0x590] sm:$0xff]
    %v3515 = vld [vmem:[#allocation2 + $0x598] sm:$0xff]
    %v3516 = vld [vmem:[#allocation2 + $0x5a0] sm:$0xff]
    %v3517 = vld [vmem:[#allocation2 + $0x5a8] sm:$0xff]
    %v3518 = vld [vmem:[#allocation2 + $0x5b0] sm:$0xff]
    %v3519 = vld [vmem:[#allocation2 + $0x5b8] sm:$0xff]
    %v3520 = vld [vmem:[#allocation2 + $0x5c0] sm:$0xff]
    %v3521 = vld [vmem:[#allocation2 + $0x5c8] sm:$0xff]
    %v3522 = vld [vmem:[#allocation2 + $0x5d0] sm:$0xff]
    %v3523 = vld [vmem:[#allocation2 + $0x5d8] sm:$0xff]
    %v3524 = vld [vmem:[#allocation2 + $0x5e0] sm:$0xff]
    %v3525 = vld [vmem:[#allocation2 + $0x5e8] sm:$0xff]
    %v3526 = vld [vmem:[#allocation2 + $0x5f0] sm:$0xff]
    %v3527 = vld [vmem:[#allocation2 + $0x5f8] sm:$0xff]
    %v3528 = vld [vmem:[#allocation2 + $0x600] sm:$0xff]
    %v3529 = vld [vmem:[#allocation2 + $0x608] sm:$0xff]
    %v3530 = vld [vmem:[#allocation2 + $0x610] sm:$0xff]
    %v3531 = vld [vmem:[#allocation2 + $0x618] sm:$0xff]
    %v3532 = vld [vmem:[#allocation2 + $0x620] sm:$0xff]
    %v3533 = vld [vmem:[#allocation2 + $0x628] sm:$0xff]
    %v3534 = vld [vmem:[#allocation2 + $0x630] sm:$0xff]
    %v3535 = vld [vmem:[#allocation2 + $0x638] sm:$0xff]
    %v3536 = vld [vmem:[#allocation2 + $0x640] sm:$0xff]
    %v3537 = vld [vmem:[#allocation2 + $0x648] sm:$0xff]
    %v3538 = vld [vmem:[#allocation2 + $0x650] sm:$0xff]
    %v3539 = vld [vmem:[#allocation2 + $0x658] sm:$0xff]
    %v3540 = vld [vmem:[#allocation2 + $0x660] sm:$0x3]
    %v3541 = vld [vmem:[#allocation2 + $0x668] sm:$0x3]
    %v3542 = vld [vmem:[#allocation2 + $0x670] sm:$0x3]
    %v3543 = vld [vmem:[#allocation2 + $0x678] sm:$0x3]
    %v3544 = vld [vmem:[#allocation2 + $0x680] sm:$0x3]
    %v3545 = vld [vmem:[#allocation2 + $0x688] sm:$0x3]
    %v3546 = vld [vmem:[#allocation2 + $0x690] sm:$0x3]
    %v3547 = vld [vmem:[#allocation2 + $0x698] sm:$0x3]
    %v3548 = vld [vmem:[#allocation2 + $0x6a0] sm:$0x3]
    %v3549 = vld [vmem:[#allocation2 + $0x6a8] sm:$0x3]
    %v3550 = vld [vmem:[#allocation2 + $0x6b0] sm:$0x3]
    %v3551 = vld [vmem:[#allocation2 + $0x6b8] sm:$0x3]
    %v3552 = vld [vmem:[#allocation2 + $0x6c0] sm:$0x3]
    %v3553 = vld [vmem:[#allocation2 + $0x6c8] sm:$0x3]
    %v3554 = vld [vmem:[#allocation2 + $0x6d0] sm:$0x3]
    %v3555 = vld [vmem:[#allocation2 + $0x6d8] sm:$0x3]
    %v3556 = vld [vmem:[#allocation2 + $0x6e0] sm:$0x3]
    %v3557 = vld [vmem:[#allocation2 + $0x6e8] sm:$0x3]
    %v3558 = vld [vmem:[#allocation2 + $0x6f0] sm:$0x3]
    %v3559 = vld [vmem:[#allocation2 + $0x6f8] sm:$0x3]
    %v3560 = vld [vmem:[#allocation2 + $0x700] sm:$0x3]
    %v3561 = vld [vmem:[#allocation2 + $0x708] sm:$0x3]
    %v3562 = vld [vmem:[#allocation2 + $0x710] sm:$0x3]
    %v3563 = vld [vmem:[#allocation2 + $0x718] sm:$0x3]
    %v3564 = vld [vmem:[#allocation2 + $0x720] sm:$0x3]
    %v3565 = vld [vmem:[#allocation2 + $0x728] sm:$0x3]
    %v3566 = vld [vmem:[#allocation2 + $0x730] sm:$0x3]
    %v3567 = vld [vmem:[#allocation2 + $0x738] sm:$0x3]
    %v3568 = vld [vmem:[#allocation2 + $0x740] sm:$0x3]
    %v3569 = vld [vmem:[#allocation2 + $0x748] sm:$0x3]
    %v3570 = vld [vmem:[#allocation2 + $0x750] sm:$0x3]
    %v3571 = vld [vmem:[#allocation2 + $0x758] sm:$0x3]
    %v3572 = vld [vmem:[#allocation2 + $0x760] sm:$0x3]
    %v3573 = vld [vmem:[#allocation2 + $0x768] sm:$0x3]
    %v3574 = vld [vmem:[%s18] sm:$0xff]
    %v3575 = vld [vmem:[%s18 + $0x8] sm:$0xff]
    %v3576 = vld [vmem:[%s18 + $0x10] sm:$0xff]
    %v3577 = vld [vmem:[%s18 + $0x18] sm:$0xff]
    %v3578 = vld [vmem:[%s18 + $0x20] sm:$0x3]
    %v3584 = vperm.slane %v3574, 0
    %v3585 = vperm.slane %v3574, 1
    %v3586 = vperm.slane %v3574, 2
    %v3587 = vperm.slane %v3574, 3
    %v3588 = vperm.slane %v3574, 4
    %v3589 = vperm.slane %v3574, 5
    %v3590 = vperm.slane %v3574, 6
    %v3591 = vperm.slane %v3574, 7
    %v3592 = vperm.slane %v3575, 0
    %v3593 = vperm.slane %v3575, 1
    %v3594 = vperm.slane %v3575, 2
    %v3595 = vperm.slane %v3575, 3
    %v3596 = vperm.slane %v3575, 4
    %v3597 = vperm.slane %v3575, 5
    %v3598 = vperm.slane %v3575, 6
    %v3599 = vperm.slane %v3575, 7
    %v3600 = vperm.slane %v3576, 0
    %v3601 = vperm.slane %v3576, 1
    %v3602 = vperm.slane %v3576, 2
    %v3603 = vperm.slane %v3576, 3
    %v3604 = vperm.slane %v3576, 4
    %v3605 = vperm.slane %v3576, 5
    %v3606 = vperm.slane %v3576, 6
    %v3607 = vperm.slane %v3576, 7
    %v3608 = vperm.slane %v3577, 0
    %v3609 = vperm.slane %v3577, 1
    %v3610 = vperm.slane %v3577, 2
    %v3611 = vperm.slane %v3577, 3
    %v3612 = vperm.slane %v3577, 4
    %v3613 = vperm.slane %v3577, 5
    %v3614 = vperm.slane %v3577, 6
    %v3615 = vperm.slane %v3577, 7
    %v3616 = vperm.slane %v3578, 0
    %v3617 = vperm.slane %v3578, 1
    %vm3652 = vcmask 408576
    %v3654 = vsel %vm3652, %v3335, 0
    %vm3656 = vcmask 1041408
    %v3658 = vsel %vm3656, %v3540, 0
    %v3661 = vsel %vm3656, %v3541, 0
    %v3664 = vsel %vm3656, %v3542, 0
    %v3667 = vsel %vm3656, %v3543, 0
    %v3670 = vsel %vm3656, %v3544, 0
    %v3673 = vsel %vm3656, %v3545, 0
    %v3676 = vsel %vm3656, %v3546, 0
    %v3679 = vsel %vm3656, %v3547, 0
    %v3682 = vsel %vm3656, %v3548, 0
    %v3685 = vsel %vm3656, %v3549, 0
    %v3688 = vsel %vm3656, %v3550, 0
    %v3691 = vsel %vm3656, %v3551, 0
    %v3694 = vsel %vm3656, %v3552, 0
    %v3697 = vsel %vm3656, %v3553, 0
    %v3700 = vsel %vm3656, %v3554, 0
    %v3703 = vsel %vm3656, %v3555, 0
    %v3706 = vsel %vm3656, %v3556, 0
    %v3709 = vsel %vm3656, %v3557, 0
    %v3712 = vsel %vm3656, %v3558, 0
    %v3715 = vsel %vm3656, %v3559, 0
    %v3718 = vsel %vm3656, %v3560, 0
    %v3721 = vsel %vm3656, %v3561, 0
    %v3724 = vsel %vm3656, %v3562, 0
    %v3727 = vsel %vm3656, %v3563, 0
    %v3730 = vsel %vm3656, %v3564, 0
    %v3733 = vsel %vm3656, %v3565, 0
    %v3736 = vsel %vm3656, %v3566, 0
    %v3739 = vsel %vm3656, %v3567, 0
    %v3742 = vsel %vm3656, %v3568, 0
    %v3745 = vsel %vm3656, %v3569, 0
    %v3748 = vsel %vm3656, %v3570, 0
    %v3751 = vsel %vm3656, %v3571, 0
    %v3754 = vsel %vm3656, %v3572, 0
    %v3757 = vsel %vm3656, %v3573, 0
    %3759 = vmatpush.msra.mxu0 0.0
    %3760 = vmatpush.msra.mxu0 0.0
    %3761 = vmatpush.msra.mxu0 0.0
    %3762 = vmatpush.msra.mxu0 0.0
    %3763 = vmatpush.msra.mxu0 0.0
    %3764 = vmatpush.msra.mxu0 0.0
    %3765 = vmatpush.msra.mxu0 0.0
    %3766 = vmatpush.msra.mxu0 0.0
    %3767 = vmatpush.msra.mxu0 0.0
    %v3768 = vand.u32 %v3658, 4294901760
    %3769 = vmatpush.msra.mxu0 %v3768
    %v3770 = vand.u32 %v3506, 4294901760
    %3771 = vmatpush.msra.mxu0 %v3770
    %v3772 = vand.u32 %v3472, 4294901760
    %3773 = vmatpush.msra.mxu0 %v3772
    %v3774 = vand.u32 %v3438, 4294901760
    %3775 = vmatpush.msra.mxu0 %v3774
    %v3776 = vand.u32 %v3404, 4294901760
    %3777 = vmatpush.msra.mxu0 %v3776
    %v3778 = vand.u32 %v3370, 4294901760
    %3779 = vmatpush.msra.mxu0 %v3778
    %v3780 = vand.u32 %v3336, 4294901760
    %3781 = vmatpush.msra.mxu0 %v3780
    %v3782 = vand.u32 %v3654, 4294901760
    %v3783 = vsub.f32 %v3654, %v3782
    %v3784 = vand.u32 %v3783, 4294901760
    %v3785 = vsub.f32 %v3783, %v3784
    %v3786 = vand.u32 %v3785, 4294901760
    %3787 = vmatmul.f32.gmra.mxu0 %v3786
    %v3788 = vpop.f32.mrf.mxu0
    %v3789 = vadd.f32 %v3584, %v3788
    %3790 = vdwg.mxu0
    %3791 = vmatpush.msra.mxu0 0.0
    %3792 = vmatpush.msra.mxu0 0.0
    %3793 = vmatpush.msra.mxu0 0.0
    %3794 = vmatpush.msra.mxu0 0.0
    %3795 = vmatpush.msra.mxu0 0.0
    %3796 = vmatpush.msra.mxu0 0.0
    %3797 = vmatpush.msra.mxu0 0.0
    %3798 = vmatpush.msra.mxu0 0.0
    %3799 = vmatpush.msra.mxu0 0.0
    %v3800 = vand.u32 %v3658, 4294901760
    %v3801 = vsub.f32 %v3658, %v3800
    %v3802 = vand.u32 %v3801, 4294901760
    %v3803 = vsub.f32 %v3801, %v3802
    %v3804 = vand.u32 %v3803, 4294901760
    %3805 = vmatpush.msra.mxu0 %v3804
    %v3806 = vand.u32 %v3506, 4294901760
    %v3807 = vsub.f32 %v3506, %v3806
    %v3808 = vand.u32 %v3807, 4294901760
    %v3809 = vsub.f32 %v3807, %v3808
    %v3810 = vand.u32 %v3809, 4294901760
    %3811 = vmatpush.msra.mxu0 %v3810
    %v3812 = vand.u32 %v3472, 4294901760
    %v3813 = vsub.f32 %v3472, %v3812
    %v3814 = vand.u32 %v3813, 4294901760
    %v3815 = vsub.f32 %v3813, %v3814
    %v3816 = vand.u32 %v3815, 4294901760
    %3817 = vmatpush.msra.mxu0 %v3816
    %v3818 = vand.u32 %v3438, 4294901760
    %v3819 = vsub.f32 %v3438, %v3818
    %v3820 = vand.u32 %v3819, 4294901760
    %v3821 = vsub.f32 %v3819, %v3820
    %v3822 = vand.u32 %v3821, 4294901760
    %3823 = vmatpush.msra.mxu0 %v3822
    %v3824 = vand.u32 %v3404, 4294901760
    %v3825 = vsub.f32 %v3404, %v3824
    %v3826 = vand.u32 %v3825, 4294901760
    %v3827 = vsub.f32 %v3825, %v3826
    %v3828 = vand.u32 %v3827, 4294901760
    %3829 = vmatpush.msra.mxu0 %v3828
    %v3830 = vand.u32 %v3370, 4294901760
    %v3831 = vsub.f32 %v3370, %v3830
    %v3832 = vand.u32 %v3831, 4294901760
    %v3833 = vsub.f32 %v3831, %v3832
    %v3834 = vand.u32 %v3833, 4294901760
    %3835 = vmatpush.msra.mxu0 %v3834
    %v3836 = vand.u32 %v3336, 4294901760
    %v3837 = vsub.f32 %v3336, %v3836
    %v3838 = vand.u32 %v3837, 4294901760
    %v3839 = vsub.f32 %v3837, %v3838
    %v3840 = vand.u32 %v3839, 4294901760
    %3841 = vmatpush.msra.mxu0 %v3840
    %v3842 = vand.u32 %v3654, 4294901760
    %3843 = vmatmul.f32.gmra.mxu0 %v3842
    %v3844 = vpop.f32.mrf.mxu0
    %v3845 = vadd.f32 %v3789, %v3844
    %3846 = vdwg.mxu0
    %3847 = vmatpush.msra.mxu0 0.0
    %3848 = vmatpush.msra.mxu0 0.0
    %3849 = vmatpush.msra.mxu0 0.0
    %3850 = vmatpush.msra.mxu0 0.0
    %3851 = vmatpush.msra.mxu0 0.0
    %3852 = vmatpush.msra.mxu0 0.0
    %3853 = vmatpush.msra.mxu0 0.0
    %3854 = vmatpush.msra.mxu0 0.0
    %3855 = vmatpush.msra.mxu0 0.0
    %v3856 = vand.u32 %v3658, 4294901760
    %v3857 = vsub.f32 %v3658, %v3856
    %3858 = vmatpush.msra.mxu0 %v3857
    %v3859 = vand.u32 %v3506, 4294901760
    %v3860 = vsub.f32 %v3506, %v3859
    %3861 = vmatpush.msra.mxu0 %v3860
    %v3862 = vand.u32 %v3472, 4294901760
    %v3863 = vsub.f32 %v3472, %v3862
    %3864 = vmatpush.msra.mxu0 %v3863
    %v3865 = vand.u32 %v3438, 4294901760
    %v3866 = vsub.f32 %v3438, %v3865
    %3867 = vmatpush.msra.mxu0 %v3866
    %v3868 = vand.u32 %v3404, 4294901760
    %v3869 = vsub.f32 %v3404, %v3868
    %3870 = vmatpush.msra.mxu0 %v3869
    %v3871 = vand.u32 %v3370, 4294901760
    %v3872 = vsub.f32 %v3370, %v3871
    %3873 = vmatpush.msra.mxu0 %v3872
    %v3874 = vand.u32 %v3336, 4294901760
    %v3875 = vsub.f32 %v3336, %v3874
    %3876 = vmatpush.msra.mxu0 %v3875
    %v3877 = vand.u32 %v3654, 4294901760
    %v3878 = vsub.f32 %v3654, %v3877
    %3879 = vmatmul.f32.gmra.mxu0 %v3878
    %v3880 = vpop.f32.mrf.mxu0
    %v3881 = vadd.f32 %v3845, %v3880
    %3882 = vdwg.mxu0
    %3883 = vmatpush.msra.mxu0 0.0
    %3884 = vmatpush.msra.mxu0 0.0
    %3885 = vmatpush.msra.mxu0 0.0
    %3886 = vmatpush.msra.mxu0 0.0
    %3887 = vmatpush.msra.mxu0 0.0
    %3888 = vmatpush.msra.mxu0 0.0
    %3889 = vmatpush.msra.mxu0 0.0
    %3890 = vmatpush.msra.mxu0 0.0
    %3891 = vmatpush.msra.mxu0 0.0
    %v3892 = vand.u32 %v3658, 4294901760
    %3893 = vmatpush.msra.mxu0 %v3892
    %v3894 = vand.u32 %v3506, 4294901760
    %3895 = vmatpush.msra.mxu0 %v3894
    %v3896 = vand.u32 %v3472, 4294901760
    %3897 = vmatpush.msra.mxu0 %v3896
    %v3898 = vand.u32 %v3438, 4294901760
    %3899 = vmatpush.msra.mxu0 %v3898
    %v3900 = vand.u32 %v3404, 4294901760
    %3901 = vmatpush.msra.mxu0 %v3900
    %v3902 = vand.u32 %v3370, 4294901760
    %3903 = vmatpush.msra.mxu0 %v3902
    %v3904 = vand.u32 %v3336, 4294901760
    %3905 = vmatpush.msra.mxu0 %v3904
    %v3906 = vand.u32 %v3654, 4294901760
    %v3907 = vsub.f32 %v3654, %v3906
    %v3908 = vand.u32 %v3907, 4294901760
    %3909 = vmatmul.f32.gmra.mxu0 %v3908
    %v3910 = vpop.f32.mrf.mxu0
    %v3911 = vadd.f32 %v3881, %v3910
    %3912 = vdwg.mxu0
    %3913 = vmatpush.msra.mxu0 0.0
    %3914 = vmatpush.msra.mxu0 0.0
    %3915 = vmatpush.msra.mxu0 0.0
    %3916 = vmatpush.msra.mxu0 0.0
    %3917 = vmatpush.msra.mxu0 0.0
    %3918 = vmatpush.msra.mxu0 0.0
    %3919 = vmatpush.msra.mxu0 0.0
    %3920 = vmatpush.msra.mxu0 0.0
    %3921 = vmatpush.msra.mxu0 0.0
    %v3922 = vand.u32 %v3658, 4294901760
    %v3923 = vsub.f32 %v3658, %v3922
    %v3924 = vand.u32 %v3923, 4294901760
    %3925 = vmatpush.msra.mxu0 %v3924
    %v3926 = vand.u32 %v3506, 4294901760
    %v3927 = vsub.f32 %v3506, %v3926
    %v3928 = vand.u32 %v3927, 4294901760
    %3929 = vmatpush.msra.mxu0 %v3928
    %v3930 = vand.u32 %v3472, 4294901760
    %v3931 = vsub.f32 %v3472, %v3930
    %v3932 = vand.u32 %v3931, 4294901760
    %3933 = vmatpush.msra.mxu0 %v3932
    %v3934 = vand.u32 %v3438, 4294901760
    %v3935 = vsub.f32 %v3438, %v3934
    %v3936 = vand.u32 %v3935, 4294901760
    %3937 = vmatpush.msra.mxu0 %v3936
    %v3938 = vand.u32 %v3404, 4294901760
    %v3939 = vsub.f32 %v3404, %v3938
    %v3940 = vand.u32 %v3939, 4294901760
    %3941 = vmatpush.msra.mxu0 %v3940
    %v3942 = vand.u32 %v3370, 4294901760
    %v3943 = vsub.f32 %v3370, %v3942
    %v3944 = vand.u32 %v3943, 4294901760
    %3945 = vmatpush.msra.mxu0 %v3944
    %v3946 = vand.u32 %v3336, 4294901760
    %v3947 = vsub.f32 %v3336, %v3946
    %v3948 = vand.u32 %v3947, 4294901760
    %3949 = vmatpush.msra.mxu0 %v3948
    %v3950 = vand.u32 %v3654, 4294901760
    %3951 = vmatmul.f32.gmra.mxu0 %v3950
    %v3952 = vpop.f32.mrf.mxu0
    %v3953 = vadd.f32 %v3911, %v3952
    %3954 = vdwg.mxu0
    %3955 = vmatpush.msra.mxu0 0.0
    %3956 = vmatpush.msra.mxu0 0.0
    %3957 = vmatpush.msra.mxu0 0.0
    %3958 = vmatpush.msra.mxu0 0.0
    %3959 = vmatpush.msra.mxu0 0.0
    %3960 = vmatpush.msra.mxu0 0.0
    %3961 = vmatpush.msra.mxu0 0.0
    %3962 = vmatpush.msra.mxu0 0.0
    %3963 = vmatpush.msra.mxu0 0.0
    %v3964 = vand.u32 %v3658, 4294901760
    %3965 = vmatpush.msra.mxu0 %v3964
    %v3966 = vand.u32 %v3506, 4294901760
    %3967 = vmatpush.msra.mxu0 %v3966
    %v3968 = vand.u32 %v3472, 4294901760
    %3969 = vmatpush.msra.mxu0 %v3968
    %v3970 = vand.u32 %v3438, 4294901760
    %3971 = vmatpush.msra.mxu0 %v3970
    %v3972 = vand.u32 %v3404, 4294901760
    %3973 = vmatpush.msra.mxu0 %v3972
    %v3974 = vand.u32 %v3370, 4294901760
    %3975 = vmatpush.msra.mxu0 %v3974
    %v3976 = vand.u32 %v3336, 4294901760
    %3977 = vmatpush.msra.mxu0 %v3976
    %v3978 = vand.u32 %v3654, 4294901760
    %3979 = vmatmul.f32.gmra.mxu0 %v3978
    %v3980 = vpop.f32.mrf.mxu0
    %v3981 = vadd.f32 %v3953, %v3980
    %3982 = vdwg.mxu0
    %3983 = vmatpush.msra.mxu0 0.0
    %3984 = vmatpush.msra.mxu0 0.0
    %3985 = vmatpush.msra.mxu0 0.0
    %3986 = vmatpush.msra.mxu0 0.0
    %3987 = vmatpush.msra.mxu0 0.0
    %3988 = vmatpush.msra.mxu0 0.0
    %3989 = vmatpush.msra.mxu0 0.0
    %3990 = vmatpush.msra.mxu0 0.0
    %3991 = vmatpush.msra.mxu0 0.0
    %v3992 = vand.u32 %v3661, 4294901760
    %3993 = vmatpush.msra.mxu0 %v3992
    %v3994 = vand.u32 %v3507, 4294901760
    %3995 = vmatpush.msra.mxu0 %v3994
    %v3996 = vand.u32 %v3473, 4294901760
    %3997 = vmatpush.msra.mxu0 %v3996
    %v3998 = vand.u32 %v3439, 4294901760
    %3999 = vmatpush.msra.mxu0 %v3998
    %v4000 = vand.u32 %v3405, 4294901760
    %4001 = vmatpush.msra.mxu0 %v4000
    %v4002 = vand.u32 %v3371, 4294901760
    %4003 = vmatpush.msra.mxu0 %v4002
    %v4004 = vand.u32 %v3337, 4294901760
    %4005 = vmatpush.msra.mxu0 %v4004
    %v4006 = vand.u32 %v3654, 4294901760
    %v4007 = vsub.f32 %v3654, %v4006
    %v4008 = vand.u32 %v4007, 4294901760
    %v4009 = vsub.f32 %v4007, %v4008
    %v4010 = vand.u32 %v4009, 4294901760
    %4011 = vmatmul.f32.gmra.mxu0 %v4010
    %v4012 = vpop.f32.mrf.mxu0
    %v4013 = vadd.f32 %v3585, %v4012
    %4014 = vdwg.mxu0
    %4015 = vmatpush.msra.mxu0 0.0
    %4016 = vmatpush.msra.mxu0 0.0
    %4017 = vmatpush.msra.mxu0 0.0
    %4018 = vmatpush.msra.mxu0 0.0
    %4019 = vmatpush.msra.mxu0 0.0
    %4020 = vmatpush.msra.mxu0 0.0
    %4021 = vmatpush.msra.mxu0 0.0
    %4022 = vmatpush.msra.mxu0 0.0
    %4023 = vmatpush.msra.mxu0 0.0
    %v4024 = vand.u32 %v3661, 4294901760
    %v4025 = vsub.f32 %v3661, %v4024
    %v4026 = vand.u32 %v4025, 4294901760
    %v4027 = vsub.f32 %v4025, %v4026
    %v4028 = vand.u32 %v4027, 4294901760
    %4029 = vmatpush.msra.mxu0 %v4028
    %v4030 = vand.u32 %v3507, 4294901760
    %v4031 = vsub.f32 %v3507, %v4030
    %v4032 = vand.u32 %v4031, 4294901760
    %v4033 = vsub.f32 %v4031, %v4032
    %v4034 = vand.u32 %v4033, 4294901760
    %4035 = vmatpush.msra.mxu0 %v4034
    %v4036 = vand.u32 %v3473, 4294901760
    %v4037 = vsub.f32 %v3473, %v4036
    %v4038 = vand.u32 %v4037, 4294901760
    %v4039 = vsub.f32 %v4037, %v4038
    %v4040 = vand.u32 %v4039, 4294901760
    %4041 = vmatpush.msra.mxu0 %v4040
    %v4042 = vand.u32 %v3439, 4294901760
    %v4043 = vsub.f32 %v3439, %v4042
    %v4044 = vand.u32 %v4043, 4294901760
    %v4045 = vsub.f32 %v4043, %v4044
    %v4046 = vand.u32 %v4045, 4294901760
    %4047 = vmatpush.msra.mxu0 %v4046
    %v4048 = vand.u32 %v3405, 4294901760
    %v4049 = vsub.f32 %v3405, %v4048
    %v4050 = vand.u32 %v4049, 4294901760
    %v4051 = vsub.f32 %v4049, %v4050
    %v4052 = vand.u32 %v4051, 4294901760
    %4053 = vmatpush.msra.mxu0 %v4052
    %v4054 = vand.u32 %v3371, 4294901760
    %v4055 = vsub.f32 %v3371, %v4054
    %v4056 = vand.u32 %v4055, 4294901760
    %v4057 = vsub.f32 %v4055, %v4056
    %v4058 = vand.u32 %v4057, 4294901760
    %4059 = vmatpush.msra.mxu0 %v4058
    %v4060 = vand.u32 %v3337, 4294901760
    %v4061 = vsub.f32 %v3337, %v4060
    %v4062 = vand.u32 %v4061, 4294901760
    %v4063 = vsub.f32 %v4061, %v4062
    %v4064 = vand.u32 %v4063, 4294901760
    %4065 = vmatpush.msra.mxu0 %v4064
    %v4066 = vand.u32 %v3654, 4294901760
    %4067 = vmatmul.f32.gmra.mxu0 %v4066
    %v4068 = vpop.f32.mrf.mxu0
    %v4069 = vadd.f32 %v4013, %v4068
    %4070 = vdwg.mxu0
    %4071 = vmatpush.msra.mxu0 0.0
    %4072 = vmatpush.msra.mxu0 0.0
    %4073 = vmatpush.msra.mxu0 0.0
    %4074 = vmatpush.msra.mxu0 0.0
    %4075 = vmatpush.msra.mxu0 0.0
    %4076 = vmatpush.msra.mxu0 0.0
    %4077 = vmatpush.msra.mxu0 0.0
    %4078 = vmatpush.msra.mxu0 0.0
    %4079 = vmatpush.msra.mxu0 0.0
    %v4080 = vand.u32 %v3661, 4294901760
    %v4081 = vsub.f32 %v3661, %v4080
    %4082 = vmatpush.msra.mxu0 %v4081
    %v4083 = vand.u32 %v3507, 4294901760
    %v4084 = vsub.f32 %v3507, %v4083
    %4085 = vmatpush.msra.mxu0 %v4084
    %v4086 = vand.u32 %v3473, 4294901760
    %v4087 = vsub.f32 %v3473, %v4086
    %4088 = vmatpush.msra.mxu0 %v4087
    %v4089 = vand.u32 %v3439, 4294901760
    %v4090 = vsub.f32 %v3439, %v4089
    %4091 = vmatpush.msra.mxu0 %v4090
    %v4092 = vand.u32 %v3405, 4294901760
    %v4093 = vsub.f32 %v3405, %v4092
    %4094 = vmatpush.msra.mxu0 %v4093
    %v4095 = vand.u32 %v3371, 4294901760
    %v4096 = vsub.f32 %v3371, %v4095
    %4097 = vmatpush.msra.mxu0 %v4096
    %v4098 = vand.u32 %v3337, 4294901760
    %v4099 = vsub.f32 %v3337, %v4098
    %4100 = vmatpush.msra.mxu0 %v4099
    %v4101 = vand.u32 %v3654, 4294901760
    %v4102 = vsub.f32 %v3654, %v4101
    %4103 = vmatmul.f32.gmra.mxu0 %v4102
    %v4104 = vpop.f32.mrf.mxu0
    %v4105 = vadd.f32 %v4069, %v4104
    %4106 = vdwg.mxu0
    %4107 = vmatpush.msra.mxu0 0.0
    %4108 = vmatpush.msra.mxu0 0.0
    %4109 = vmatpush.msra.mxu0 0.0
    %4110 = vmatpush.msra.mxu0 0.0
    %4111 = vmatpush.msra.mxu0 0.0
    %4112 = vmatpush.msra.mxu0 0.0
    %4113 = vmatpush.msra.mxu0 0.0
    %4114 = vmatpush.msra.mxu0 0.0
    %4115 = vmatpush.msra.mxu0 0.0
    %v4116 = vand.u32 %v3661, 4294901760
    %4117 = vmatpush.msra.mxu0 %v4116
    %v4118 = vand.u32 %v3507, 4294901760
    %4119 = vmatpush.msra.mxu0 %v4118
    %v4120 = vand.u32 %v3473, 4294901760
    %4121 = vmatpush.msra.mxu0 %v4120
    %v4122 = vand.u32 %v3439, 4294901760
    %4123 = vmatpush.msra.mxu0 %v4122
    %v4124 = vand.u32 %v3405, 4294901760
    %4125 = vmatpush.msra.mxu0 %v4124
    %v4126 = vand.u32 %v3371, 4294901760
    %4127 = vmatpush.msra.mxu0 %v4126
    %v4128 = vand.u32 %v3337, 4294901760
    %4129 = vmatpush.msra.mxu0 %v4128
    %v4130 = vand.u32 %v3654, 4294901760
    %v4131 = vsub.f32 %v3654, %v4130
    %v4132 = vand.u32 %v4131, 4294901760
    %4133 = vmatmul.f32.gmra.mxu0 %v4132
    %v4134 = vpop.f32.mrf.mxu0
    %v4135 = vadd.f32 %v4105, %v4134
    %4136 = vdwg.mxu0
    %4137 = vmatpush.msra.mxu0 0.0
    %4138 = vmatpush.msra.mxu0 0.0
    %4139 = vmatpush.msra.mxu0 0.0
    %4140 = vmatpush.msra.mxu0 0.0
    %4141 = vmatpush.msra.mxu0 0.0
    %4142 = vmatpush.msra.mxu0 0.0
    %4143 = vmatpush.msra.mxu0 0.0
    %4144 = vmatpush.msra.mxu0 0.0
    %4145 = vmatpush.msra.mxu0 0.0
    %v4146 = vand.u32 %v3661, 4294901760
    %v4147 = vsub.f32 %v3661, %v4146
    %v4148 = vand.u32 %v4147, 4294901760
    %4149 = vmatpush.msra.mxu0 %v4148
    %v4150 = vand.u32 %v3507, 4294901760
    %v4151 = vsub.f32 %v3507, %v4150
    %v4152 = vand.u32 %v4151, 4294901760
    %4153 = vmatpush.msra.mxu0 %v4152
    %v4154 = vand.u32 %v3473, 4294901760
    %v4155 = vsub.f32 %v3473, %v4154
    %v4156 = vand.u32 %v4155, 4294901760
    %4157 = vmatpush.msra.mxu0 %v4156
    %v4158 = vand.u32 %v3439, 4294901760
    %v4159 = vsub.f32 %v3439, %v4158
    %v4160 = vand.u32 %v4159, 4294901760
    %4161 = vmatpush.msra.mxu0 %v4160
    %v4162 = vand.u32 %v3405, 4294901760
    %v4163 = vsub.f32 %v3405, %v4162
    %v4164 = vand.u32 %v4163, 4294901760
    %4165 = vmatpush.msra.mxu0 %v4164
    %v4166 = vand.u32 %v3371, 4294901760
    %v4167 = vsub.f32 %v3371, %v4166
    %v4168 = vand.u32 %v4167, 4294901760
    %4169 = vmatpush.msra.mxu0 %v4168
    %v4170 = vand.u32 %v3337, 4294901760
    %v4171 = vsub.f32 %v3337, %v4170
    %v4172 = vand.u32 %v4171, 4294901760
    %4173 = vmatpush.msra.mxu0 %v4172
    %v4174 = vand.u32 %v3654, 4294901760
    %4175 = vmatmul.f32.gmra.mxu0 %v4174
    %v4176 = vpop.f32.mrf.mxu0
    %v4177 = vadd.f32 %v4135, %v4176
    %4178 = vdwg.mxu0
    %4179 = vmatpush.msra.mxu0 0.0
    %4180 = vmatpush.msra.mxu0 0.0
    %4181 = vmatpush.msra.mxu0 0.0
    %4182 = vmatpush.msra.mxu0 0.0
    %4183 = vmatpush.msra.mxu0 0.0
    %4184 = vmatpush.msra.mxu0 0.0
    %4185 = vmatpush.msra.mxu0 0.0
    %4186 = vmatpush.msra.mxu0 0.0
    %4187 = vmatpush.msra.mxu0 0.0
    %v4188 = vand.u32 %v3661, 4294901760
    %4189 = vmatpush.msra.mxu0 %v4188
    %v4190 = vand.u32 %v3507, 4294901760
    %4191 = vmatpush.msra.mxu0 %v4190
    %v4192 = vand.u32 %v3473, 4294901760
    %4193 = vmatpush.msra.mxu0 %v4192
    %v4194 = vand.u32 %v3439, 4294901760
    %4195 = vmatpush.msra.mxu0 %v4194
    %v4196 = vand.u32 %v3405, 4294901760
    %4197 = vmatpush.msra.mxu0 %v4196
    %v4198 = vand.u32 %v3371, 4294901760
    %4199 = vmatpush.msra.mxu0 %v4198
    %v4200 = vand.u32 %v3337, 4294901760
    %4201 = vmatpush.msra.mxu0 %v4200
    %v4202 = vand.u32 %v3654, 4294901760
    %4203 = vmatmul.f32.gmra.mxu0 %v4202
    %v4204 = vpop.f32.mrf.mxu0
    %v4205 = vadd.f32 %v4177, %v4204
    %4206 = vdwg.mxu0
    %4207 = vmatpush.msra.mxu0 0.0
    %4208 = vmatpush.msra.mxu0 0.0
    %4209 = vmatpush.msra.mxu0 0.0
    %4210 = vmatpush.msra.mxu0 0.0
    %4211 = vmatpush.msra.mxu0 0.0
    %4212 = vmatpush.msra.mxu0 0.0
    %4213 = vmatpush.msra.mxu0 0.0
    %4214 = vmatpush.msra.mxu0 0.0
    %4215 = vmatpush.msra.mxu0 0.0
    %v4216 = vand.u32 %v3664, 4294901760
    %4217 = vmatpush.msra.mxu0 %v4216
    %v4218 = vand.u32 %v3508, 4294901760
    %4219 = vmatpush.msra.mxu0 %v4218
    %v4220 = vand.u32 %v3474, 4294901760
    %4221 = vmatpush.msra.mxu0 %v4220
    %v4222 = vand.u32 %v3440, 4294901760
    %4223 = vmatpush.msra.mxu0 %v4222
    %v4224 = vand.u32 %v3406, 4294901760
    %4225 = vmatpush.msra.mxu0 %v4224
    %v4226 = vand.u32 %v3372, 4294901760
    %4227 = vmatpush.msra.mxu0 %v4226
    %v4228 = vand.u32 %v3338, 4294901760
    %4229 = vmatpush.msra.mxu0 %v4228
    %v4230 = vand.u32 %v3654, 4294901760
    %v4231 = vsub.f32 %v3654, %v4230
    %v4232 = vand.u32 %v4231, 4294901760
    %v4233 = vsub.f32 %v4231, %v4232
    %v4234 = vand.u32 %v4233, 4294901760
    %4235 = vmatmul.f32.gmra.mxu0 %v4234
    %v4236 = vpop.f32.mrf.mxu0
    %v4237 = vadd.f32 %v3586, %v4236
    %4238 = vdwg.mxu0
    %4239 = vmatpush.msra.mxu0 0.0
    %4240 = vmatpush.msra.mxu0 0.0
    %4241 = vmatpush.msra.mxu0 0.0
    %4242 = vmatpush.msra.mxu0 0.0
    %4243 = vmatpush.msra.mxu0 0.0
    %4244 = vmatpush.msra.mxu0 0.0
    %4245 = vmatpush.msra.mxu0 0.0
    %4246 = vmatpush.msra.mxu0 0.0
    %4247 = vmatpush.msra.mxu0 0.0
    %v4248 = vand.u32 %v3664, 4294901760
    %v4249 = vsub.f32 %v3664, %v4248
    %v4250 = vand.u32 %v4249, 4294901760
    %v4251 = vsub.f32 %v4249, %v4250
    %v4252 = vand.u32 %v4251, 4294901760
    %4253 = vmatpush.msra.mxu0 %v4252
    %v4254 = vand.u32 %v3508, 4294901760
    %v4255 = vsub.f32 %v3508, %v4254
    %v4256 = vand.u32 %v4255, 4294901760
    %v4257 = vsub.f32 %v4255, %v4256
    %v4258 = vand.u32 %v4257, 4294901760
    %4259 = vmatpush.msra.mxu0 %v4258
    %v4260 = vand.u32 %v3474, 4294901760
    %v4261 = vsub.f32 %v3474, %v4260
    %v4262 = vand.u32 %v4261, 4294901760
    %v4263 = vsub.f32 %v4261, %v4262
    %v4264 = vand.u32 %v4263, 4294901760
    %4265 = vmatpush.msra.mxu0 %v4264
    %v4266 = vand.u32 %v3440, 4294901760
    %v4267 = vsub.f32 %v3440, %v4266
    %v4268 = vand.u32 %v4267, 4294901760
    %v4269 = vsub.f32 %v4267, %v4268
    %v4270 = vand.u32 %v4269, 4294901760
    %4271 = vmatpush.msra.mxu0 %v4270
    %v4272 = vand.u32 %v3406, 4294901760
    %v4273 = vsub.f32 %v3406, %v4272
    %v4274 = vand.u32 %v4273, 4294901760
    %v4275 = vsub.f32 %v4273, %v4274
    %v4276 = vand.u32 %v4275, 4294901760
    %4277 = vmatpush.msra.mxu0 %v4276
    %v4278 = vand.u32 %v3372, 4294901760
    %v4279 = vsub.f32 %v3372, %v4278
    %v4280 = vand.u32 %v4279, 4294901760
    %v4281 = vsub.f32 %v4279, %v4280
    %v4282 = vand.u32 %v4281, 4294901760
    %4283 = vmatpush.msra.mxu0 %v4282
    %v4284 = vand.u32 %v3338, 4294901760
    %v4285 = vsub.f32 %v3338, %v4284
    %v4286 = vand.u32 %v4285, 4294901760
    %v4287 = vsub.f32 %v4285, %v4286
    %v4288 = vand.u32 %v4287, 4294901760
    %4289 = vmatpush.msra.mxu0 %v4288
    %v4290 = vand.u32 %v3654, 4294901760
    %4291 = vmatmul.f32.gmra.mxu0 %v4290
    %v4292 = vpop.f32.mrf.mxu0
    %v4293 = vadd.f32 %v4237, %v4292
    %4294 = vdwg.mxu0
    %4295 = vmatpush.msra.mxu0 0.0
    %4296 = vmatpush.msra.mxu0 0.0
    %4297 = vmatpush.msra.mxu0 0.0
    %4298 = vmatpush.msra.mxu0 0.0
    %4299 = vmatpush.msra.mxu0 0.0
    %4300 = vmatpush.msra.mxu0 0.0
    %4301 = vmatpush.msra.mxu0 0.0
    %4302 = vmatpush.msra.mxu0 0.0
    %4303 = vmatpush.msra.mxu0 0.0
    %v4304 = vand.u32 %v3664, 4294901760
    %v4305 = vsub.f32 %v3664, %v4304
    %4306 = vmatpush.msra.mxu0 %v4305
    %v4307 = vand.u32 %v3508, 4294901760
    %v4308 = vsub.f32 %v3508, %v4307
    %4309 = vmatpush.msra.mxu0 %v4308
    %v4310 = vand.u32 %v3474, 4294901760
    %v4311 = vsub.f32 %v3474, %v4310
    %4312 = vmatpush.msra.mxu0 %v4311
    %v4313 = vand.u32 %v3440, 4294901760
    %v4314 = vsub.f32 %v3440, %v4313
    %4315 = vmatpush.msra.mxu0 %v4314
    %v4316 = vand.u32 %v3406, 4294901760
    %v4317 = vsub.f32 %v3406, %v4316
    %4318 = vmatpush.msra.mxu0 %v4317
    %v4319 = vand.u32 %v3372, 4294901760
    %v4320 = vsub.f32 %v3372, %v4319
    %4321 = vmatpush.msra.mxu0 %v4320
    %v4322 = vand.u32 %v3338, 4294901760
    %v4323 = vsub.f32 %v3338, %v4322
    %4324 = vmatpush.msra.mxu0 %v4323
    %v4325 = vand.u32 %v3654, 4294901760
    %v4326 = vsub.f32 %v3654, %v4325
    %4327 = vmatmul.f32.gmra.mxu0 %v4326
    %v4328 = vpop.f32.mrf.mxu0
    %v4329 = vadd.f32 %v4293, %v4328
    %4330 = vdwg.mxu0
    %4331 = vmatpush.msra.mxu0 0.0
    %4332 = vmatpush.msra.mxu0 0.0
    %4333 = vmatpush.msra.mxu0 0.0
    %4334 = vmatpush.msra.mxu0 0.0
    %4335 = vmatpush.msra.mxu0 0.0
    %4336 = vmatpush.msra.mxu0 0.0
    %4337 = vmatpush.msra.mxu0 0.0
    %4338 = vmatpush.msra.mxu0 0.0
    %4339 = vmatpush.msra.mxu0 0.0
    %v4340 = vand.u32 %v3664, 4294901760
    %4341 = vmatpush.msra.mxu0 %v4340
    %v4342 = vand.u32 %v3508, 4294901760
    %4343 = vmatpush.msra.mxu0 %v4342
    %v4344 = vand.u32 %v3474, 4294901760
    %4345 = vmatpush.msra.mxu0 %v4344
    %v4346 = vand.u32 %v3440, 4294901760
    %4347 = vmatpush.msra.mxu0 %v4346
    %v4348 = vand.u32 %v3406, 4294901760
    %4349 = vmatpush.msra.mxu0 %v4348
    %v4350 = vand.u32 %v3372, 4294901760
    %4351 = vmatpush.msra.mxu0 %v4350
    %v4352 = vand.u32 %v3338, 4294901760
    %4353 = vmatpush.msra.mxu0 %v4352
    %v4354 = vand.u32 %v3654, 4294901760
    %v4355 = vsub.f32 %v3654, %v4354
    %v4356 = vand.u32 %v4355, 4294901760
    %4357 = vmatmul.f32.gmra.mxu0 %v4356
    %v4358 = vpop.f32.mrf.mxu0
    %v4359 = vadd.f32 %v4329, %v4358
    %4360 = vdwg.mxu0
    %4361 = vmatpush.msra.mxu0 0.0
    %4362 = vmatpush.msra.mxu0 0.0
    %4363 = vmatpush.msra.mxu0 0.0
    %4364 = vmatpush.msra.mxu0 0.0
    %4365 = vmatpush.msra.mxu0 0.0
    %4366 = vmatpush.msra.mxu0 0.0
    %4367 = vmatpush.msra.mxu0 0.0
    %4368 = vmatpush.msra.mxu0 0.0
    %4369 = vmatpush.msra.mxu0 0.0
    %v4370 = vand.u32 %v3664, 4294901760
    %v4371 = vsub.f32 %v3664, %v4370
    %v4372 = vand.u32 %v4371, 4294901760
    %4373 = vmatpush.msra.mxu0 %v4372
    %v4374 = vand.u32 %v3508, 4294901760
    %v4375 = vsub.f32 %v3508, %v4374
    %v4376 = vand.u32 %v4375, 4294901760
    %4377 = vmatpush.msra.mxu0 %v4376
    %v4378 = vand.u32 %v3474, 4294901760
    %v4379 = vsub.f32 %v3474, %v4378
    %v4380 = vand.u32 %v4379, 4294901760
    %4381 = vmatpush.msra.mxu0 %v4380
    %v4382 = vand.u32 %v3440, 4294901760
    %v4383 = vsub.f32 %v3440, %v4382
    %v4384 = vand.u32 %v4383, 4294901760
    %4385 = vmatpush.msra.mxu0 %v4384
    %v4386 = vand.u32 %v3406, 4294901760
    %v4387 = vsub.f32 %v3406, %v4386
    %v4388 = vand.u32 %v4387, 4294901760
    %4389 = vmatpush.msra.mxu0 %v4388
    %v4390 = vand.u32 %v3372, 4294901760
    %v4391 = vsub.f32 %v3372, %v4390
    %v4392 = vand.u32 %v4391, 4294901760
    %4393 = vmatpush.msra.mxu0 %v4392
    %v4394 = vand.u32 %v3338, 4294901760
    %v4395 = vsub.f32 %v3338, %v4394
    %v4396 = vand.u32 %v4395, 4294901760
    %4397 = vmatpush.msra.mxu0 %v4396
    %v4398 = vand.u32 %v3654, 4294901760
    %4399 = vmatmul.f32.gmra.mxu0 %v4398
    %v4400 = vpop.f32.mrf.mxu0
    %v4401 = vadd.f32 %v4359, %v4400
    %4402 = vdwg.mxu0
    %4403 = vmatpush.msra.mxu0 0.0
    %4404 = vmatpush.msra.mxu0 0.0
    %4405 = vmatpush.msra.mxu0 0.0
    %4406 = vmatpush.msra.mxu0 0.0
    %4407 = vmatpush.msra.mxu0 0.0
    %4408 = vmatpush.msra.mxu0 0.0
    %4409 = vmatpush.msra.mxu0 0.0
    %4410 = vmatpush.msra.mxu0 0.0
    %4411 = vmatpush.msra.mxu0 0.0
    %v4412 = vand.u32 %v3664, 4294901760
    %4413 = vmatpush.msra.mxu0 %v4412
    %v4414 = vand.u32 %v3508, 4294901760
    %4415 = vmatpush.msra.mxu0 %v4414
    %v4416 = vand.u32 %v3474, 4294901760
    %4417 = vmatpush.msra.mxu0 %v4416
    %v4418 = vand.u32 %v3440, 4294901760
    %4419 = vmatpush.msra.mxu0 %v4418
    %v4420 = vand.u32 %v3406, 4294901760
    %4421 = vmatpush.msra.mxu0 %v4420
    %v4422 = vand.u32 %v3372, 4294901760
    %4423 = vmatpush.msra.mxu0 %v4422
    %v4424 = vand.u32 %v3338, 4294901760
    %4425 = vmatpush.msra.mxu0 %v4424
    %v4426 = vand.u32 %v3654, 4294901760
    %4427 = vmatmul.f32.gmra.mxu0 %v4426
    %v4428 = vpop.f32.mrf.mxu0
    %v4429 = vadd.f32 %v4401, %v4428
    %4430 = vdwg.mxu0
    %4431 = vmatpush.msra.mxu0 0.0
    %4432 = vmatpush.msra.mxu0 0.0
    %4433 = vmatpush.msra.mxu0 0.0
    %4434 = vmatpush.msra.mxu0 0.0
    %4435 = vmatpush.msra.mxu0 0.0
    %4436 = vmatpush.msra.mxu0 0.0
    %4437 = vmatpush.msra.mxu0 0.0
    %4438 = vmatpush.msra.mxu0 0.0
    %4439 = vmatpush.msra.mxu0 0.0
    %v4440 = vand.u32 %v3667, 4294901760
    %4441 = vmatpush.msra.mxu0 %v4440
    %v4442 = vand.u32 %v3509, 4294901760
    %4443 = vmatpush.msra.mxu0 %v4442
    %v4444 = vand.u32 %v3475, 4294901760
    %4445 = vmatpush.msra.mxu0 %v4444
    %v4446 = vand.u32 %v3441, 4294901760
    %4447 = vmatpush.msra.mxu0 %v4446
    %v4448 = vand.u32 %v3407, 4294901760
    %4449 = vmatpush.msra.mxu0 %v4448
    %v4450 = vand.u32 %v3373, 4294901760
    %4451 = vmatpush.msra.mxu0 %v4450
    %v4452 = vand.u32 %v3339, 4294901760
    %4453 = vmatpush.msra.mxu0 %v4452
    %v4454 = vand.u32 %v3654, 4294901760
    %v4455 = vsub.f32 %v3654, %v4454
    %v4456 = vand.u32 %v4455, 4294901760
    %v4457 = vsub.f32 %v4455, %v4456
    %v4458 = vand.u32 %v4457, 4294901760
    %4459 = vmatmul.f32.gmra.mxu0 %v4458
    %v4460 = vpop.f32.mrf.mxu0
    %v4461 = vadd.f32 %v3587, %v4460
    %4462 = vdwg.mxu0
    %4463 = vmatpush.msra.mxu0 0.0
    %4464 = vmatpush.msra.mxu0 0.0
    %4465 = vmatpush.msra.mxu0 0.0
    %4466 = vmatpush.msra.mxu0 0.0
    %4467 = vmatpush.msra.mxu0 0.0
    %4468 = vmatpush.msra.mxu0 0.0
    %4469 = vmatpush.msra.mxu0 0.0
    %4470 = vmatpush.msra.mxu0 0.0
    %4471 = vmatpush.msra.mxu0 0.0
    %v4472 = vand.u32 %v3667, 4294901760
    %v4473 = vsub.f32 %v3667, %v4472
    %v4474 = vand.u32 %v4473, 4294901760
    %v4475 = vsub.f32 %v4473, %v4474
    %v4476 = vand.u32 %v4475, 4294901760
    %4477 = vmatpush.msra.mxu0 %v4476
    %v4478 = vand.u32 %v3509, 4294901760
    %v4479 = vsub.f32 %v3509, %v4478
    %v4480 = vand.u32 %v4479, 4294901760
    %v4481 = vsub.f32 %v4479, %v4480
    %v4482 = vand.u32 %v4481, 4294901760
    %4483 = vmatpush.msra.mxu0 %v4482
    %v4484 = vand.u32 %v3475, 4294901760
    %v4485 = vsub.f32 %v3475, %v4484
    %v4486 = vand.u32 %v4485, 4294901760
    %v4487 = vsub.f32 %v4485, %v4486
    %v4488 = vand.u32 %v4487, 4294901760
    %4489 = vmatpush.msra.mxu0 %v4488
    %v4490 = vand.u32 %v3441, 4294901760
    %v4491 = vsub.f32 %v3441, %v4490
    %v4492 = vand.u32 %v4491, 4294901760
    %v4493 = vsub.f32 %v4491, %v4492
    %v4494 = vand.u32 %v4493, 4294901760
    %4495 = vmatpush.msra.mxu0 %v4494
    %v4496 = vand.u32 %v3407, 4294901760
    %v4497 = vsub.f32 %v3407, %v4496
    %v4498 = vand.u32 %v4497, 4294901760
    %v4499 = vsub.f32 %v4497, %v4498
    %v4500 = vand.u32 %v4499, 4294901760
    %4501 = vmatpush.msra.mxu0 %v4500
    %v4502 = vand.u32 %v3373, 4294901760
    %v4503 = vsub.f32 %v3373, %v4502
    %v4504 = vand.u32 %v4503, 4294901760
    %v4505 = vsub.f32 %v4503, %v4504
    %v4506 = vand.u32 %v4505, 4294901760
    %4507 = vmatpush.msra.mxu0 %v4506
    %v4508 = vand.u32 %v3339, 4294901760
    %v4509 = vsub.f32 %v3339, %v4508
    %v4510 = vand.u32 %v4509, 4294901760
    %v4511 = vsub.f32 %v4509, %v4510
    %v4512 = vand.u32 %v4511, 4294901760
    %4513 = vmatpush.msra.mxu0 %v4512
    %v4514 = vand.u32 %v3654, 4294901760
    %4515 = vmatmul.f32.gmra.mxu0 %v4514
    %v4516 = vpop.f32.mrf.mxu0
    %v4517 = vadd.f32 %v4461, %v4516
    %4518 = vdwg.mxu0
    %4519 = vmatpush.msra.mxu0 0.0
    %4520 = vmatpush.msra.mxu0 0.0
    %4521 = vmatpush.msra.mxu0 0.0
    %4522 = vmatpush.msra.mxu0 0.0
    %4523 = vmatpush.msra.mxu0 0.0
    %4524 = vmatpush.msra.mxu0 0.0
    %4525 = vmatpush.msra.mxu0 0.0
    %4526 = vmatpush.msra.mxu0 0.0
    %4527 = vmatpush.msra.mxu0 0.0
    %v4528 = vand.u32 %v3667, 4294901760
    %v4529 = vsub.f32 %v3667, %v4528
    %4530 = vmatpush.msra.mxu0 %v4529
    %v4531 = vand.u32 %v3509, 4294901760
    %v4532 = vsub.f32 %v3509, %v4531
    %4533 = vmatpush.msra.mxu0 %v4532
    %v4534 = vand.u32 %v3475, 4294901760
    %v4535 = vsub.f32 %v3475, %v4534
    %4536 = vmatpush.msra.mxu0 %v4535
    %v4537 = vand.u32 %v3441, 4294901760
    %v4538 = vsub.f32 %v3441, %v4537
    %4539 = vmatpush.msra.mxu0 %v4538
    %v4540 = vand.u32 %v3407, 4294901760
    %v4541 = vsub.f32 %v3407, %v4540
    %4542 = vmatpush.msra.mxu0 %v4541
    %v4543 = vand.u32 %v3373, 4294901760
    %v4544 = vsub.f32 %v3373, %v4543
    %4545 = vmatpush.msra.mxu0 %v4544
    %v4546 = vand.u32 %v3339, 4294901760
    %v4547 = vsub.f32 %v3339, %v4546
    %4548 = vmatpush.msra.mxu0 %v4547
    %v4549 = vand.u32 %v3654, 4294901760
    %v4550 = vsub.f32 %v3654, %v4549
    %4551 = vmatmul.f32.gmra.mxu0 %v4550
    %v4552 = vpop.f32.mrf.mxu0
    %v4553 = vadd.f32 %v4517, %v4552
    %4554 = vdwg.mxu0
    %4555 = vmatpush.msra.mxu0 0.0
    %4556 = vmatpush.msra.mxu0 0.0
    %4557 = vmatpush.msra.mxu0 0.0
    %4558 = vmatpush.msra.mxu0 0.0
    %4559 = vmatpush.msra.mxu0 0.0
    %4560 = vmatpush.msra.mxu0 0.0
    %4561 = vmatpush.msra.mxu0 0.0
    %4562 = vmatpush.msra.mxu0 0.0
    %4563 = vmatpush.msra.mxu0 0.0
    %v4564 = vand.u32 %v3667, 4294901760
    %4565 = vmatpush.msra.mxu0 %v4564
    %v4566 = vand.u32 %v3509, 4294901760
    %4567 = vmatpush.msra.mxu0 %v4566
    %v4568 = vand.u32 %v3475, 4294901760
    %4569 = vmatpush.msra.mxu0 %v4568
    %v4570 = vand.u32 %v3441, 4294901760
    %4571 = vmatpush.msra.mxu0 %v4570
    %v4572 = vand.u32 %v3407, 4294901760
    %4573 = vmatpush.msra.mxu0 %v4572
    %v4574 = vand.u32 %v3373, 4294901760
    %4575 = vmatpush.msra.mxu0 %v4574
    %v4576 = vand.u32 %v3339, 4294901760
    %4577 = vmatpush.msra.mxu0 %v4576
    %v4578 = vand.u32 %v3654, 4294901760
    %v4579 = vsub.f32 %v3654, %v4578
    %v4580 = vand.u32 %v4579, 4294901760
    %4581 = vmatmul.f32.gmra.mxu0 %v4580
    %v4582 = vpop.f32.mrf.mxu0
    %v4583 = vadd.f32 %v4553, %v4582
    %4584 = vdwg.mxu0
    %4585 = vmatpush.msra.mxu0 0.0
    %4586 = vmatpush.msra.mxu0 0.0
    %4587 = vmatpush.msra.mxu0 0.0
    %4588 = vmatpush.msra.mxu0 0.0
    %4589 = vmatpush.msra.mxu0 0.0
    %4590 = vmatpush.msra.mxu0 0.0
    %4591 = vmatpush.msra.mxu0 0.0
    %4592 = vmatpush.msra.mxu0 0.0
    %4593 = vmatpush.msra.mxu0 0.0
    %v4594 = vand.u32 %v3667, 4294901760
    %v4595 = vsub.f32 %v3667, %v4594
    %v4596 = vand.u32 %v4595, 4294901760
    %4597 = vmatpush.msra.mxu0 %v4596
    %v4598 = vand.u32 %v3509, 4294901760
    %v4599 = vsub.f32 %v3509, %v4598
    %v4600 = vand.u32 %v4599, 4294901760
    %4601 = vmatpush.msra.mxu0 %v4600
    %v4602 = vand.u32 %v3475, 4294901760
    %v4603 = vsub.f32 %v3475, %v4602
    %v4604 = vand.u32 %v4603, 4294901760
    %4605 = vmatpush.msra.mxu0 %v4604
    %v4606 = vand.u32 %v3441, 4294901760
    %v4607 = vsub.f32 %v3441, %v4606
    %v4608 = vand.u32 %v4607, 4294901760
    %4609 = vmatpush.msra.mxu0 %v4608
    %v4610 = vand.u32 %v3407, 4294901760
    %v4611 = vsub.f32 %v3407, %v4610
    %v4612 = vand.u32 %v4611, 4294901760
    %4613 = vmatpush.msra.mxu0 %v4612
    %v4614 = vand.u32 %v3373, 4294901760
    %v4615 = vsub.f32 %v3373, %v4614
    %v4616 = vand.u32 %v4615, 4294901760
    %4617 = vmatpush.msra.mxu0 %v4616
    %v4618 = vand.u32 %v3339, 4294901760
    %v4619 = vsub.f32 %v3339, %v4618
    %v4620 = vand.u32 %v4619, 4294901760
    %4621 = vmatpush.msra.mxu0 %v4620
    %v4622 = vand.u32 %v3654, 4294901760
    %4623 = vmatmul.f32.gmra.mxu0 %v4622
    %v4624 = vpop.f32.mrf.mxu0
    %v4625 = vadd.f32 %v4583, %v4624
    %4626 = vdwg.mxu0
    %4627 = vmatpush.msra.mxu0 0.0
    %4628 = vmatpush.msra.mxu0 0.0
    %4629 = vmatpush.msra.mxu0 0.0
    %4630 = vmatpush.msra.mxu0 0.0
    %4631 = vmatpush.msra.mxu0 0.0
    %4632 = vmatpush.msra.mxu0 0.0
    %4633 = vmatpush.msra.mxu0 0.0
    %4634 = vmatpush.msra.mxu0 0.0
    %4635 = vmatpush.msra.mxu0 0.0
    %v4636 = vand.u32 %v3667, 4294901760
    %4637 = vmatpush.msra.mxu0 %v4636
    %v4638 = vand.u32 %v3509, 4294901760
    %4639 = vmatpush.msra.mxu0 %v4638
    %v4640 = vand.u32 %v3475, 4294901760
    %4641 = vmatpush.msra.mxu0 %v4640
    %v4642 = vand.u32 %v3441, 4294901760
    %4643 = vmatpush.msra.mxu0 %v4642
    %v4644 = vand.u32 %v3407, 4294901760
    %4645 = vmatpush.msra.mxu0 %v4644
    %v4646 = vand.u32 %v3373, 4294901760
    %4647 = vmatpush.msra.mxu0 %v4646
    %v4648 = vand.u32 %v3339, 4294901760
    %4649 = vmatpush.msra.mxu0 %v4648
    %v4650 = vand.u32 %v3654, 4294901760
    %4651 = vmatmul.f32.gmra.mxu0 %v4650
    %v4652 = vpop.f32.mrf.mxu0
    %v4653 = vadd.f32 %v4625, %v4652
    %4654 = vdwg.mxu0
    %4655 = vmatpush.msra.mxu0 0.0
    %4656 = vmatpush.msra.mxu0 0.0
    %4657 = vmatpush.msra.mxu0 0.0
    %4658 = vmatpush.msra.mxu0 0.0
    %4659 = vmatpush.msra.mxu0 0.0
    %4660 = vmatpush.msra.mxu0 0.0
    %4661 = vmatpush.msra.mxu0 0.0
    %4662 = vmatpush.msra.mxu0 0.0
    %4663 = vmatpush.msra.mxu0 0.0
    %v4664 = vand.u32 %v3670, 4294901760
    %4665 = vmatpush.msra.mxu0 %v4664
    %v4666 = vand.u32 %v3510, 4294901760
    %4667 = vmatpush.msra.mxu0 %v4666
    %v4668 = vand.u32 %v3476, 4294901760
    %4669 = vmatpush.msra.mxu0 %v4668
    %v4670 = vand.u32 %v3442, 4294901760
    %4671 = vmatpush.msra.mxu0 %v4670
    %v4672 = vand.u32 %v3408, 4294901760
    %4673 = vmatpush.msra.mxu0 %v4672
    %v4674 = vand.u32 %v3374, 4294901760
    %4675 = vmatpush.msra.mxu0 %v4674
    %v4676 = vand.u32 %v3340, 4294901760
    %4677 = vmatpush.msra.mxu0 %v4676
    %v4678 = vand.u32 %v3654, 4294901760
    %v4679 = vsub.f32 %v3654, %v4678
    %v4680 = vand.u32 %v4679, 4294901760
    %v4681 = vsub.f32 %v4679, %v4680
    %v4682 = vand.u32 %v4681, 4294901760
    %4683 = vmatmul.f32.gmra.mxu0 %v4682
    %v4684 = vpop.f32.mrf.mxu0
    %v4685 = vadd.f32 %v3588, %v4684
    %4686 = vdwg.mxu0
    %4687 = vmatpush.msra.mxu0 0.0
    %4688 = vmatpush.msra.mxu0 0.0
    %4689 = vmatpush.msra.mxu0 0.0
    %4690 = vmatpush.msra.mxu0 0.0
    %4691 = vmatpush.msra.mxu0 0.0
    %4692 = vmatpush.msra.mxu0 0.0
    %4693 = vmatpush.msra.mxu0 0.0
    %4694 = vmatpush.msra.mxu0 0.0
    %4695 = vmatpush.msra.mxu0 0.0
    %v4696 = vand.u32 %v3670, 4294901760
    %v4697 = vsub.f32 %v3670, %v4696
    %v4698 = vand.u32 %v4697, 4294901760
    %v4699 = vsub.f32 %v4697, %v4698
    %v4700 = vand.u32 %v4699, 4294901760
    %4701 = vmatpush.msra.mxu0 %v4700
    %v4702 = vand.u32 %v3510, 4294901760
    %v4703 = vsub.f32 %v3510, %v4702
    %v4704 = vand.u32 %v4703, 4294901760
    %v4705 = vsub.f32 %v4703, %v4704
    %v4706 = vand.u32 %v4705, 4294901760
    %4707 = vmatpush.msra.mxu0 %v4706
    %v4708 = vand.u32 %v3476, 4294901760
    %v4709 = vsub.f32 %v3476, %v4708
    %v4710 = vand.u32 %v4709, 4294901760
    %v4711 = vsub.f32 %v4709, %v4710
    %v4712 = vand.u32 %v4711, 4294901760
    %4713 = vmatpush.msra.mxu0 %v4712
    %v4714 = vand.u32 %v3442, 4294901760
    %v4715 = vsub.f32 %v3442, %v4714
    %v4716 = vand.u32 %v4715, 4294901760
    %v4717 = vsub.f32 %v4715, %v4716
    %v4718 = vand.u32 %v4717, 4294901760
    %4719 = vmatpush.msra.mxu0 %v4718
    %v4720 = vand.u32 %v3408, 4294901760
    %v4721 = vsub.f32 %v3408, %v4720
    %v4722 = vand.u32 %v4721, 4294901760
    %v4723 = vsub.f32 %v4721, %v4722
    %v4724 = vand.u32 %v4723, 4294901760
    %4725 = vmatpush.msra.mxu0 %v4724
    %v4726 = vand.u32 %v3374, 4294901760
    %v4727 = vsub.f32 %v3374, %v4726
    %v4728 = vand.u32 %v4727, 4294901760
    %v4729 = vsub.f32 %v4727, %v4728
    %v4730 = vand.u32 %v4729, 4294901760
    %4731 = vmatpush.msra.mxu0 %v4730
    %v4732 = vand.u32 %v3340, 4294901760
    %v4733 = vsub.f32 %v3340, %v4732
    %v4734 = vand.u32 %v4733, 4294901760
    %v4735 = vsub.f32 %v4733, %v4734
    %v4736 = vand.u32 %v4735, 4294901760
    %4737 = vmatpush.msra.mxu0 %v4736
    %v4738 = vand.u32 %v3654, 4294901760
    %4739 = vmatmul.f32.gmra.mxu0 %v4738
    %v4740 = vpop.f32.mrf.mxu0
    %v4741 = vadd.f32 %v4685, %v4740
    %4742 = vdwg.mxu0
    %4743 = vmatpush.msra.mxu0 0.0
    %4744 = vmatpush.msra.mxu0 0.0
    %4745 = vmatpush.msra.mxu0 0.0
    %4746 = vmatpush.msra.mxu0 0.0
    %4747 = vmatpush.msra.mxu0 0.0
    %4748 = vmatpush.msra.mxu0 0.0
    %4749 = vmatpush.msra.mxu0 0.0
    %4750 = vmatpush.msra.mxu0 0.0
    %4751 = vmatpush.msra.mxu0 0.0
    %v4752 = vand.u32 %v3670, 4294901760
    %v4753 = vsub.f32 %v3670, %v4752
    %4754 = vmatpush.msra.mxu0 %v4753
    %v4755 = vand.u32 %v3510, 4294901760
    %v4756 = vsub.f32 %v3510, %v4755
    %4757 = vmatpush.msra.mxu0 %v4756
    %v4758 = vand.u32 %v3476, 4294901760
    %v4759 = vsub.f32 %v3476, %v4758
    %4760 = vmatpush.msra.mxu0 %v4759
    %v4761 = vand.u32 %v3442, 4294901760
    %v4762 = vsub.f32 %v3442, %v4761
    %4763 = vmatpush.msra.mxu0 %v4762
    %v4764 = vand.u32 %v3408, 4294901760
    %v4765 = vsub.f32 %v3408, %v4764
    %4766 = vmatpush.msra.mxu0 %v4765
    %v4767 = vand.u32 %v3374, 4294901760
    %v4768 = vsub.f32 %v3374, %v4767
    %4769 = vmatpush.msra.mxu0 %v4768
    %v4770 = vand.u32 %v3340, 4294901760
    %v4771 = vsub.f32 %v3340, %v4770
    %4772 = vmatpush.msra.mxu0 %v4771
    %v4773 = vand.u32 %v3654, 4294901760
    %v4774 = vsub.f32 %v3654, %v4773
    %4775 = vmatmul.f32.gmra.mxu0 %v4774
    %v4776 = vpop.f32.mrf.mxu0
    %v4777 = vadd.f32 %v4741, %v4776
    %4778 = vdwg.mxu0
    %4779 = vmatpush.msra.mxu0 0.0
    %4780 = vmatpush.msra.mxu0 0.0
    %4781 = vmatpush.msra.mxu0 0.0
    %4782 = vmatpush.msra.mxu0 0.0
    %4783 = vmatpush.msra.mxu0 0.0
    %4784 = vmatpush.msra.mxu0 0.0
    %4785 = vmatpush.msra.mxu0 0.0
    %4786 = vmatpush.msra.mxu0 0.0
    %4787 = vmatpush.msra.mxu0 0.0
    %v4788 = vand.u32 %v3670, 4294901760
    %4789 = vmatpush.msra.mxu0 %v4788
    %v4790 = vand.u32 %v3510, 4294901760
    %4791 = vmatpush.msra.mxu0 %v4790
    %v4792 = vand.u32 %v3476, 4294901760
    %4793 = vmatpush.msra.mxu0 %v4792
    %v4794 = vand.u32 %v3442, 4294901760
    %4795 = vmatpush.msra.mxu0 %v4794
    %v4796 = vand.u32 %v3408, 4294901760
    %4797 = vmatpush.msra.mxu0 %v4796
    %v4798 = vand.u32 %v3374, 4294901760
    %4799 = vmatpush.msra.mxu0 %v4798
    %v4800 = vand.u32 %v3340, 4294901760
    %4801 = vmatpush.msra.mxu0 %v4800
    %v4802 = vand.u32 %v3654, 4294901760
    %v4803 = vsub.f32 %v3654, %v4802
    %v4804 = vand.u32 %v4803, 4294901760
    %4805 = vmatmul.f32.gmra.mxu0 %v4804
    %v4806 = vpop.f32.mrf.mxu0
    %v4807 = vadd.f32 %v4777, %v4806
    %4808 = vdwg.mxu0
    %4809 = vmatpush.msra.mxu0 0.0
    %4810 = vmatpush.msra.mxu0 0.0
    %4811 = vmatpush.msra.mxu0 0.0
    %4812 = vmatpush.msra.mxu0 0.0
    %4813 = vmatpush.msra.mxu0 0.0
    %4814 = vmatpush.msra.mxu0 0.0
    %4815 = vmatpush.msra.mxu0 0.0
    %4816 = vmatpush.msra.mxu0 0.0
    %4817 = vmatpush.msra.mxu0 0.0
    %v4818 = vand.u32 %v3670, 4294901760
    %v4819 = vsub.f32 %v3670, %v4818
    %v4820 = vand.u32 %v4819, 4294901760
    %4821 = vmatpush.msra.mxu0 %v4820
    %v4822 = vand.u32 %v3510, 4294901760
    %v4823 = vsub.f32 %v3510, %v4822
    %v4824 = vand.u32 %v4823, 4294901760
    %4825 = vmatpush.msra.mxu0 %v4824
    %v4826 = vand.u32 %v3476, 4294901760
    %v4827 = vsub.f32 %v3476, %v4826
    %v4828 = vand.u32 %v4827, 4294901760
    %4829 = vmatpush.msra.mxu0 %v4828
    %v4830 = vand.u32 %v3442, 4294901760
    %v4831 = vsub.f32 %v3442, %v4830
    %v4832 = vand.u32 %v4831, 4294901760
    %4833 = vmatpush.msra.mxu0 %v4832
    %v4834 = vand.u32 %v3408, 4294901760
    %v4835 = vsub.f32 %v3408, %v4834
    %v4836 = vand.u32 %v4835, 4294901760
    %4837 = vmatpush.msra.mxu0 %v4836
    %v4838 = vand.u32 %v3374, 4294901760
    %v4839 = vsub.f32 %v3374, %v4838
    %v4840 = vand.u32 %v4839, 4294901760
    %4841 = vmatpush.msra.mxu0 %v4840
    %v4842 = vand.u32 %v3340, 4294901760
    %v4843 = vsub.f32 %v3340, %v4842
    %v4844 = vand.u32 %v4843, 4294901760
    %4845 = vmatpush.msra.mxu0 %v4844
    %v4846 = vand.u32 %v3654, 4294901760
    %4847 = vmatmul.f32.gmra.mxu0 %v4846
    %v4848 = vpop.f32.mrf.mxu0
    %v4849 = vadd.f32 %v4807, %v4848
    %4850 = vdwg.mxu0
    %4851 = vmatpush.msra.mxu0 0.0
    %4852 = vmatpush.msra.mxu0 0.0
    %4853 = vmatpush.msra.mxu0 0.0
    %4854 = vmatpush.msra.mxu0 0.0
    %4855 = vmatpush.msra.mxu0 0.0
    %4856 = vmatpush.msra.mxu0 0.0
    %4857 = vmatpush.msra.mxu0 0.0
    %4858 = vmatpush.msra.mxu0 0.0
    %4859 = vmatpush.msra.mxu0 0.0
    %v4860 = vand.u32 %v3670, 4294901760
    %4861 = vmatpush.msra.mxu0 %v4860
    %v4862 = vand.u32 %v3510, 4294901760
    %4863 = vmatpush.msra.mxu0 %v4862
    %v4864 = vand.u32 %v3476, 4294901760
    %4865 = vmatpush.msra.mxu0 %v4864
    %v4866 = vand.u32 %v3442, 4294901760
    %4867 = vmatpush.msra.mxu0 %v4866
    %v4868 = vand.u32 %v3408, 4294901760
    %4869 = vmatpush.msra.mxu0 %v4868
    %v4870 = vand.u32 %v3374, 4294901760
    %4871 = vmatpush.msra.mxu0 %v4870
    %v4872 = vand.u32 %v3340, 4294901760
    %4873 = vmatpush.msra.mxu0 %v4872
    %v4874 = vand.u32 %v3654, 4294901760
    %4875 = vmatmul.f32.gmra.mxu0 %v4874
    %v4876 = vpop.f32.mrf.mxu0
    %v4877 = vadd.f32 %v4849, %v4876
    %4878 = vdwg.mxu0
    %4879 = vmatpush.msra.mxu0 0.0
    %4880 = vmatpush.msra.mxu0 0.0
    %4881 = vmatpush.msra.mxu0 0.0
    %4882 = vmatpush.msra.mxu0 0.0
    %4883 = vmatpush.msra.mxu0 0.0
    %4884 = vmatpush.msra.mxu0 0.0
    %4885 = vmatpush.msra.mxu0 0.0
    %4886 = vmatpush.msra.mxu0 0.0
    %4887 = vmatpush.msra.mxu0 0.0
    %v4888 = vand.u32 %v3673, 4294901760
    %4889 = vmatpush.msra.mxu0 %v4888
    %v4890 = vand.u32 %v3511, 4294901760
    %4891 = vmatpush.msra.mxu0 %v4890
    %v4892 = vand.u32 %v3477, 4294901760
    %4893 = vmatpush.msra.mxu0 %v4892
    %v4894 = vand.u32 %v3443, 4294901760
    %4895 = vmatpush.msra.mxu0 %v4894
    %v4896 = vand.u32 %v3409, 4294901760
    %4897 = vmatpush.msra.mxu0 %v4896
    %v4898 = vand.u32 %v3375, 4294901760
    %4899 = vmatpush.msra.mxu0 %v4898
    %v4900 = vand.u32 %v3341, 4294901760
    %4901 = vmatpush.msra.mxu0 %v4900
    %v4902 = vand.u32 %v3654, 4294901760
    %v4903 = vsub.f32 %v3654, %v4902
    %v4904 = vand.u32 %v4903, 4294901760
    %v4905 = vsub.f32 %v4903, %v4904
    %v4906 = vand.u32 %v4905, 4294901760
    %4907 = vmatmul.f32.gmra.mxu0 %v4906
    %v4908 = vpop.f32.mrf.mxu0
    %v4909 = vadd.f32 %v3589, %v4908
    %4910 = vdwg.mxu0
    %4911 = vmatpush.msra.mxu0 0.0
    %4912 = vmatpush.msra.mxu0 0.0
    %4913 = vmatpush.msra.mxu0 0.0
    %4914 = vmatpush.msra.mxu0 0.0
    %4915 = vmatpush.msra.mxu0 0.0
    %4916 = vmatpush.msra.mxu0 0.0
    %4917 = vmatpush.msra.mxu0 0.0
    %4918 = vmatpush.msra.mxu0 0.0
    %4919 = vmatpush.msra.mxu0 0.0
    %v4920 = vand.u32 %v3673, 4294901760
    %v4921 = vsub.f32 %v3673, %v4920
    %v4922 = vand.u32 %v4921, 4294901760
    %v4923 = vsub.f32 %v4921, %v4922
    %v4924 = vand.u32 %v4923, 4294901760
    %4925 = vmatpush.msra.mxu0 %v4924
    %v4926 = vand.u32 %v3511, 4294901760
    %v4927 = vsub.f32 %v3511, %v4926
    %v4928 = vand.u32 %v4927, 4294901760
    %v4929 = vsub.f32 %v4927, %v4928
    %v4930 = vand.u32 %v4929, 4294901760
    %4931 = vmatpush.msra.mxu0 %v4930
    %v4932 = vand.u32 %v3477, 4294901760
    %v4933 = vsub.f32 %v3477, %v4932
    %v4934 = vand.u32 %v4933, 4294901760
    %v4935 = vsub.f32 %v4933, %v4934
    %v4936 = vand.u32 %v4935, 4294901760
    %4937 = vmatpush.msra.mxu0 %v4936
    %v4938 = vand.u32 %v3443, 4294901760
    %v4939 = vsub.f32 %v3443, %v4938
    %v4940 = vand.u32 %v4939, 4294901760
    %v4941 = vsub.f32 %v4939, %v4940
    %v4942 = vand.u32 %v4941, 4294901760
    %4943 = vmatpush.msra.mxu0 %v4942
    %v4944 = vand.u32 %v3409, 4294901760
    %v4945 = vsub.f32 %v3409, %v4944
    %v4946 = vand.u32 %v4945, 4294901760
    %v4947 = vsub.f32 %v4945, %v4946
    %v4948 = vand.u32 %v4947, 4294901760
    %4949 = vmatpush.msra.mxu0 %v4948
    %v4950 = vand.u32 %v3375, 4294901760
    %v4951 = vsub.f32 %v3375, %v4950
    %v4952 = vand.u32 %v4951, 4294901760
    %v4953 = vsub.f32 %v4951, %v4952
    %v4954 = vand.u32 %v4953, 4294901760
    %4955 = vmatpush.msra.mxu0 %v4954
    %v4956 = vand.u32 %v3341, 4294901760
    %v4957 = vsub.f32 %v3341, %v4956
    %v4958 = vand.u32 %v4957, 4294901760
    %v4959 = vsub.f32 %v4957, %v4958
    %v4960 = vand.u32 %v4959, 4294901760
    %4961 = vmatpush.msra.mxu0 %v4960
    %v4962 = vand.u32 %v3654, 4294901760
    %4963 = vmatmul.f32.gmra.mxu0 %v4962
    %v4964 = vpop.f32.mrf.mxu0
    %v4965 = vadd.f32 %v4909, %v4964
    %4966 = vdwg.mxu0
    %4967 = vmatpush.msra.mxu0 0.0
    %4968 = vmatpush.msra.mxu0 0.0
    %4969 = vmatpush.msra.mxu0 0.0
    %4970 = vmatpush.msra.mxu0 0.0
    %4971 = vmatpush.msra.mxu0 0.0
    %4972 = vmatpush.msra.mxu0 0.0
    %4973 = vmatpush.msra.mxu0 0.0
    %4974 = vmatpush.msra.mxu0 0.0
    %4975 = vmatpush.msra.mxu0 0.0
    %v4976 = vand.u32 %v3673, 4294901760
    %v4977 = vsub.f32 %v3673, %v4976
    %4978 = vmatpush.msra.mxu0 %v4977
    %v4979 = vand.u32 %v3511, 4294901760
    %v4980 = vsub.f32 %v3511, %v4979
    %4981 = vmatpush.msra.mxu0 %v4980
    %v4982 = vand.u32 %v3477, 4294901760
    %v4983 = vsub.f32 %v3477, %v4982
    %4984 = vmatpush.msra.mxu0 %v4983
    %v4985 = vand.u32 %v3443, 4294901760
    %v4986 = vsub.f32 %v3443, %v4985
    %4987 = vmatpush.msra.mxu0 %v4986
    %v4988 = vand.u32 %v3409, 4294901760
    %v4989 = vsub.f32 %v3409, %v4988
    %4990 = vmatpush.msra.mxu0 %v4989
    %v4991 = vand.u32 %v3375, 4294901760
    %v4992 = vsub.f32 %v3375, %v4991
    %4993 = vmatpush.msra.mxu0 %v4992
    %v4994 = vand.u32 %v3341, 4294901760
    %v4995 = vsub.f32 %v3341, %v4994
    %4996 = vmatpush.msra.mxu0 %v4995
    %v4997 = vand.u32 %v3654, 4294901760
    %v4998 = vsub.f32 %v3654, %v4997
    %4999 = vmatmul.f32.gmra.mxu0 %v4998
    %v5000 = vpop.f32.mrf.mxu0
    %v5001 = vadd.f32 %v4965, %v5000
    %5002 = vdwg.mxu0
    %5003 = vmatpush.msra.mxu0 0.0
    %5004 = vmatpush.msra.mxu0 0.0
    %5005 = vmatpush.msra.mxu0 0.0
    %5006 = vmatpush.msra.mxu0 0.0
    %5007 = vmatpush.msra.mxu0 0.0
    %5008 = vmatpush.msra.mxu0 0.0
    %5009 = vmatpush.msra.mxu0 0.0
    %5010 = vmatpush.msra.mxu0 0.0
    %5011 = vmatpush.msra.mxu0 0.0
    %v5012 = vand.u32 %v3673, 4294901760
    %5013 = vmatpush.msra.mxu0 %v5012
    %v5014 = vand.u32 %v3511, 4294901760
    %5015 = vmatpush.msra.mxu0 %v5014
    %v5016 = vand.u32 %v3477, 4294901760
    %5017 = vmatpush.msra.mxu0 %v5016
    %v5018 = vand.u32 %v3443, 4294901760
    %5019 = vmatpush.msra.mxu0 %v5018
    %v5020 = vand.u32 %v3409, 4294901760
    %5021 = vmatpush.msra.mxu0 %v5020
    %v5022 = vand.u32 %v3375, 4294901760
    %5023 = vmatpush.msra.mxu0 %v5022
    %v5024 = vand.u32 %v3341, 4294901760
    %5025 = vmatpush.msra.mxu0 %v5024
    %v5026 = vand.u32 %v3654, 4294901760
    %v5027 = vsub.f32 %v3654, %v5026
    %v5028 = vand.u32 %v5027, 4294901760
    %5029 = vmatmul.f32.gmra.mxu0 %v5028
    %v5030 = vpop.f32.mrf.mxu0
    %v5031 = vadd.f32 %v5001, %v5030
    %5032 = vdwg.mxu0
    %5033 = vmatpush.msra.mxu0 0.0
    %5034 = vmatpush.msra.mxu0 0.0
    %5035 = vmatpush.msra.mxu0 0.0
    %5036 = vmatpush.msra.mxu0 0.0
    %5037 = vmatpush.msra.mxu0 0.0
    %5038 = vmatpush.msra.mxu0 0.0
    %5039 = vmatpush.msra.mxu0 0.0
    %5040 = vmatpush.msra.mxu0 0.0
    %5041 = vmatpush.msra.mxu0 0.0
    %v5042 = vand.u32 %v3673, 4294901760
    %v5043 = vsub.f32 %v3673, %v5042
    %v5044 = vand.u32 %v5043, 4294901760
    %5045 = vmatpush.msra.mxu0 %v5044
    %v5046 = vand.u32 %v3511, 4294901760
    %v5047 = vsub.f32 %v3511, %v5046
    %v5048 = vand.u32 %v5047, 4294901760
    %5049 = vmatpush.msra.mxu0 %v5048
    %v5050 = vand.u32 %v3477, 4294901760
    %v5051 = vsub.f32 %v3477, %v5050
    %v5052 = vand.u32 %v5051, 4294901760
    %5053 = vmatpush.msra.mxu0 %v5052
    %v5054 = vand.u32 %v3443, 4294901760
    %v5055 = vsub.f32 %v3443, %v5054
    %v5056 = vand.u32 %v5055, 4294901760
    %5057 = vmatpush.msra.mxu0 %v5056
    %v5058 = vand.u32 %v3409, 4294901760
    %v5059 = vsub.f32 %v3409, %v5058
    %v5060 = vand.u32 %v5059, 4294901760
    %5061 = vmatpush.msra.mxu0 %v5060
    %v5062 = vand.u32 %v3375, 4294901760
    %v5063 = vsub.f32 %v3375, %v5062
    %v5064 = vand.u32 %v5063, 4294901760
    %5065 = vmatpush.msra.mxu0 %v5064
    %v5066 = vand.u32 %v3341, 4294901760
    %v5067 = vsub.f32 %v3341, %v5066
    %v5068 = vand.u32 %v5067, 4294901760
    %5069 = vmatpush.msra.mxu0 %v5068
    %v5070 = vand.u32 %v3654, 4294901760
    %5071 = vmatmul.f32.gmra.mxu0 %v5070
    %v5072 = vpop.f32.mrf.mxu0
    %v5073 = vadd.f32 %v5031, %v5072
    %5074 = vdwg.mxu0
    %5075 = vmatpush.msra.mxu0 0.0
    %5076 = vmatpush.msra.mxu0 0.0
    %5077 = vmatpush.msra.mxu0 0.0
    %5078 = vmatpush.msra.mxu0 0.0
    %5079 = vmatpush.msra.mxu0 0.0
    %5080 = vmatpush.msra.mxu0 0.0
    %5081 = vmatpush.msra.mxu0 0.0
    %5082 = vmatpush.msra.mxu0 0.0
    %5083 = vmatpush.msra.mxu0 0.0
    %v5084 = vand.u32 %v3673, 4294901760
    %5085 = vmatpush.msra.mxu0 %v5084
    %v5086 = vand.u32 %v3511, 4294901760
    %5087 = vmatpush.msra.mxu0 %v5086
    %v5088 = vand.u32 %v3477, 4294901760
    %5089 = vmatpush.msra.mxu0 %v5088
    %v5090 = vand.u32 %v3443, 4294901760
    %5091 = vmatpush.msra.mxu0 %v5090
    %v5092 = vand.u32 %v3409, 4294901760
    %5093 = vmatpush.msra.mxu0 %v5092
    %v5094 = vand.u32 %v3375, 4294901760
    %5095 = vmatpush.msra.mxu0 %v5094
    %v5096 = vand.u32 %v3341, 4294901760
    %5097 = vmatpush.msra.mxu0 %v5096
    %v5098 = vand.u32 %v3654, 4294901760
    %5099 = vmatmul.f32.gmra.mxu0 %v5098
    %v5100 = vpop.f32.mrf.mxu0
    %v5101 = vadd.f32 %v5073, %v5100
    %5102 = vdwg.mxu0
    %5103 = vmatpush.msra.mxu0 0.0
    %5104 = vmatpush.msra.mxu0 0.0
    %5105 = vmatpush.msra.mxu0 0.0
    %5106 = vmatpush.msra.mxu0 0.0
    %5107 = vmatpush.msra.mxu0 0.0
    %5108 = vmatpush.msra.mxu0 0.0
    %5109 = vmatpush.msra.mxu0 0.0
    %5110 = vmatpush.msra.mxu0 0.0
    %5111 = vmatpush.msra.mxu0 0.0
    %v5112 = vand.u32 %v3676, 4294901760
    %5113 = vmatpush.msra.mxu0 %v5112
    %v5114 = vand.u32 %v3512, 4294901760
    %5115 = vmatpush.msra.mxu0 %v5114
    %v5116 = vand.u32 %v3478, 4294901760
    %5117 = vmatpush.msra.mxu0 %v5116
    %v5118 = vand.u32 %v3444, 4294901760
    %5119 = vmatpush.msra.mxu0 %v5118
    %v5120 = vand.u32 %v3410, 4294901760
    %5121 = vmatpush.msra.mxu0 %v5120
    %v5122 = vand.u32 %v3376, 4294901760
    %5123 = vmatpush.msra.mxu0 %v5122
    %v5124 = vand.u32 %v3342, 4294901760
    %5125 = vmatpush.msra.mxu0 %v5124
    %v5126 = vand.u32 %v3654, 4294901760
    %v5127 = vsub.f32 %v3654, %v5126
    %v5128 = vand.u32 %v5127, 4294901760
    %v5129 = vsub.f32 %v5127, %v5128
    %v5130 = vand.u32 %v5129, 4294901760
    %5131 = vmatmul.f32.gmra.mxu0 %v5130
    %v5132 = vpop.f32.mrf.mxu0
    %v5133 = vadd.f32 %v3590, %v5132
    %5134 = vdwg.mxu0
    %5135 = vmatpush.msra.mxu0 0.0
    %5136 = vmatpush.msra.mxu0 0.0
    %5137 = vmatpush.msra.mxu0 0.0
    %5138 = vmatpush.msra.mxu0 0.0
    %5139 = vmatpush.msra.mxu0 0.0
    %5140 = vmatpush.msra.mxu0 0.0
    %5141 = vmatpush.msra.mxu0 0.0
    %5142 = vmatpush.msra.mxu0 0.0
    %5143 = vmatpush.msra.mxu0 0.0
    %v5144 = vand.u32 %v3676, 4294901760
    %v5145 = vsub.f32 %v3676, %v5144
    %v5146 = vand.u32 %v5145, 4294901760
    %v5147 = vsub.f32 %v5145, %v5146
    %v5148 = vand.u32 %v5147, 4294901760
    %5149 = vmatpush.msra.mxu0 %v5148
    %v5150 = vand.u32 %v3512, 4294901760
    %v5151 = vsub.f32 %v3512, %v5150
    %v5152 = vand.u32 %v5151, 4294901760
    %v5153 = vsub.f32 %v5151, %v5152
    %v5154 = vand.u32 %v5153, 4294901760
    %5155 = vmatpush.msra.mxu0 %v5154
    %v5156 = vand.u32 %v3478, 4294901760
    %v5157 = vsub.f32 %v3478, %v5156
    %v5158 = vand.u32 %v5157, 4294901760
    %v5159 = vsub.f32 %v5157, %v5158
    %v5160 = vand.u32 %v5159, 4294901760
    %5161 = vmatpush.msra.mxu0 %v5160
    %v5162 = vand.u32 %v3444, 4294901760
    %v5163 = vsub.f32 %v3444, %v5162
    %v5164 = vand.u32 %v5163, 4294901760
    %v5165 = vsub.f32 %v5163, %v5164
    %v5166 = vand.u32 %v5165, 4294901760
    %5167 = vmatpush.msra.mxu0 %v5166
    %v5168 = vand.u32 %v3410, 4294901760
    %v5169 = vsub.f32 %v3410, %v5168
    %v5170 = vand.u32 %v5169, 4294901760
    %v5171 = vsub.f32 %v5169, %v5170
    %v5172 = vand.u32 %v5171, 4294901760
    %5173 = vmatpush.msra.mxu0 %v5172
    %v5174 = vand.u32 %v3376, 4294901760
    %v5175 = vsub.f32 %v3376, %v5174
    %v5176 = vand.u32 %v5175, 4294901760
    %v5177 = vsub.f32 %v5175, %v5176
    %v5178 = vand.u32 %v5177, 4294901760
    %5179 = vmatpush.msra.mxu0 %v5178
    %v5180 = vand.u32 %v3342, 4294901760
    %v5181 = vsub.f32 %v3342, %v5180
    %v5182 = vand.u32 %v5181, 4294901760
    %v5183 = vsub.f32 %v5181, %v5182
    %v5184 = vand.u32 %v5183, 4294901760
    %5185 = vmatpush.msra.mxu0 %v5184
    %v5186 = vand.u32 %v3654, 4294901760
    %5187 = vmatmul.f32.gmra.mxu0 %v5186
    %v5188 = vpop.f32.mrf.mxu0
    %v5189 = vadd.f32 %v5133, %v5188
    %5190 = vdwg.mxu0
    %5191 = vmatpush.msra.mxu0 0.0
    %5192 = vmatpush.msra.mxu0 0.0
    %5193 = vmatpush.msra.mxu0 0.0
    %5194 = vmatpush.msra.mxu0 0.0
    %5195 = vmatpush.msra.mxu0 0.0
    %5196 = vmatpush.msra.mxu0 0.0
    %5197 = vmatpush.msra.mxu0 0.0
    %5198 = vmatpush.msra.mxu0 0.0
    %5199 = vmatpush.msra.mxu0 0.0
    %v5200 = vand.u32 %v3676, 4294901760
    %v5201 = vsub.f32 %v3676, %v5200
    %5202 = vmatpush.msra.mxu0 %v5201
    %v5203 = vand.u32 %v3512, 4294901760
    %v5204 = vsub.f32 %v3512, %v5203
    %5205 = vmatpush.msra.mxu0 %v5204
    %v5206 = vand.u32 %v3478, 4294901760
    %v5207 = vsub.f32 %v3478, %v5206
    %5208 = vmatpush.msra.mxu0 %v5207
    %v5209 = vand.u32 %v3444, 4294901760
    %v5210 = vsub.f32 %v3444, %v5209
    %5211 = vmatpush.msra.mxu0 %v5210
    %v5212 = vand.u32 %v3410, 4294901760
    %v5213 = vsub.f32 %v3410, %v5212
    %5214 = vmatpush.msra.mxu0 %v5213
    %v5215 = vand.u32 %v3376, 4294901760
    %v5216 = vsub.f32 %v3376, %v5215
    %5217 = vmatpush.msra.mxu0 %v5216
    %v5218 = vand.u32 %v3342, 4294901760
    %v5219 = vsub.f32 %v3342, %v5218
    %5220 = vmatpush.msra.mxu0 %v5219
    %v5221 = vand.u32 %v3654, 4294901760
    %v5222 = vsub.f32 %v3654, %v5221
    %5223 = vmatmul.f32.gmra.mxu0 %v5222
    %v5224 = vpop.f32.mrf.mxu0
    %v5225 = vadd.f32 %v5189, %v5224
    %5226 = vdwg.mxu0
    %5227 = vmatpush.msra.mxu0 0.0
    %5228 = vmatpush.msra.mxu0 0.0
    %5229 = vmatpush.msra.mxu0 0.0
    %5230 = vmatpush.msra.mxu0 0.0
    %5231 = vmatpush.msra.mxu0 0.0
    %5232 = vmatpush.msra.mxu0 0.0
    %5233 = vmatpush.msra.mxu0 0.0
    %5234 = vmatpush.msra.mxu0 0.0
    %5235 = vmatpush.msra.mxu0 0.0
    %v5236 = vand.u32 %v3676, 4294901760
    %5237 = vmatpush.msra.mxu0 %v5236
    %v5238 = vand.u32 %v3512, 4294901760
    %5239 = vmatpush.msra.mxu0 %v5238
    %v5240 = vand.u32 %v3478, 4294901760
    %5241 = vmatpush.msra.mxu0 %v5240
    %v5242 = vand.u32 %v3444, 4294901760
    %5243 = vmatpush.msra.mxu0 %v5242
    %v5244 = vand.u32 %v3410, 4294901760
    %5245 = vmatpush.msra.mxu0 %v5244
    %v5246 = vand.u32 %v3376, 4294901760
    %5247 = vmatpush.msra.mxu0 %v5246
    %v5248 = vand.u32 %v3342, 4294901760
    %5249 = vmatpush.msra.mxu0 %v5248
    %v5250 = vand.u32 %v3654, 4294901760
    %v5251 = vsub.f32 %v3654, %v5250
    %v5252 = vand.u32 %v5251, 4294901760
    %5253 = vmatmul.f32.gmra.mxu0 %v5252
    %v5254 = vpop.f32.mrf.mxu0
    %v5255 = vadd.f32 %v5225, %v5254
    %5256 = vdwg.mxu0
    %5257 = vmatpush.msra.mxu0 0.0
    %5258 = vmatpush.msra.mxu0 0.0
    %5259 = vmatpush.msra.mxu0 0.0
    %5260 = vmatpush.msra.mxu0 0.0
    %5261 = vmatpush.msra.mxu0 0.0
    %5262 = vmatpush.msra.mxu0 0.0
    %5263 = vmatpush.msra.mxu0 0.0
    %5264 = vmatpush.msra.mxu0 0.0
    %5265 = vmatpush.msra.mxu0 0.0
    %v5266 = vand.u32 %v3676, 4294901760
    %v5267 = vsub.f32 %v3676, %v5266
    %v5268 = vand.u32 %v5267, 4294901760
    %5269 = vmatpush.msra.mxu0 %v5268
    %v5270 = vand.u32 %v3512, 4294901760
    %v5271 = vsub.f32 %v3512, %v5270
    %v5272 = vand.u32 %v5271, 4294901760
    %5273 = vmatpush.msra.mxu0 %v5272
    %v5274 = vand.u32 %v3478, 4294901760
    %v5275 = vsub.f32 %v3478, %v5274
    %v5276 = vand.u32 %v5275, 4294901760
    %5277 = vmatpush.msra.mxu0 %v5276
    %v5278 = vand.u32 %v3444, 4294901760
    %v5279 = vsub.f32 %v3444, %v5278
    %v5280 = vand.u32 %v5279, 4294901760
    %5281 = vmatpush.msra.mxu0 %v5280
    %v5282 = vand.u32 %v3410, 4294901760
    %v5283 = vsub.f32 %v3410, %v5282
    %v5284 = vand.u32 %v5283, 4294901760
    %5285 = vmatpush.msra.mxu0 %v5284
    %v5286 = vand.u32 %v3376, 4294901760
    %v5287 = vsub.f32 %v3376, %v5286
    %v5288 = vand.u32 %v5287, 4294901760
    %5289 = vmatpush.msra.mxu0 %v5288
    %v5290 = vand.u32 %v3342, 4294901760
    %v5291 = vsub.f32 %v3342, %v5290
    %v5292 = vand.u32 %v5291, 4294901760
    %5293 = vmatpush.msra.mxu0 %v5292
    %v5294 = vand.u32 %v3654, 4294901760
    %5295 = vmatmul.f32.gmra.mxu0 %v5294
    %v5296 = vpop.f32.mrf.mxu0
    %v5297 = vadd.f32 %v5255, %v5296
    %5298 = vdwg.mxu0
    %5299 = vmatpush.msra.mxu0 0.0
    %5300 = vmatpush.msra.mxu0 0.0
    %5301 = vmatpush.msra.mxu0 0.0
    %5302 = vmatpush.msra.mxu0 0.0
    %5303 = vmatpush.msra.mxu0 0.0
    %5304 = vmatpush.msra.mxu0 0.0
    %5305 = vmatpush.msra.mxu0 0.0
    %5306 = vmatpush.msra.mxu0 0.0
    %5307 = vmatpush.msra.mxu0 0.0
    %v5308 = vand.u32 %v3676, 4294901760
    %5309 = vmatpush.msra.mxu0 %v5308
    %v5310 = vand.u32 %v3512, 4294901760
    %5311 = vmatpush.msra.mxu0 %v5310
    %v5312 = vand.u32 %v3478, 4294901760
    %5313 = vmatpush.msra.mxu0 %v5312
    %v5314 = vand.u32 %v3444, 4294901760
    %5315 = vmatpush.msra.mxu0 %v5314
    %v5316 = vand.u32 %v3410, 4294901760
    %5317 = vmatpush.msra.mxu0 %v5316
    %v5318 = vand.u32 %v3376, 4294901760
    %5319 = vmatpush.msra.mxu0 %v5318
    %v5320 = vand.u32 %v3342, 4294901760
    %5321 = vmatpush.msra.mxu0 %v5320
    %v5322 = vand.u32 %v3654, 4294901760
    %5323 = vmatmul.f32.gmra.mxu0 %v5322
    %v5324 = vpop.f32.mrf.mxu0
    %v5325 = vadd.f32 %v5297, %v5324
    %5326 = vdwg.mxu0
    %5327 = vmatpush.msra.mxu0 0.0
    %5328 = vmatpush.msra.mxu0 0.0
    %5329 = vmatpush.msra.mxu0 0.0
    %5330 = vmatpush.msra.mxu0 0.0
    %5331 = vmatpush.msra.mxu0 0.0
    %5332 = vmatpush.msra.mxu0 0.0
    %5333 = vmatpush.msra.mxu0 0.0
    %5334 = vmatpush.msra.mxu0 0.0
    %5335 = vmatpush.msra.mxu0 0.0
    %v5336 = vand.u32 %v3679, 4294901760
    %5337 = vmatpush.msra.mxu0 %v5336
    %v5338 = vand.u32 %v3513, 4294901760
    %5339 = vmatpush.msra.mxu0 %v5338
    %v5340 = vand.u32 %v3479, 4294901760
    %5341 = vmatpush.msra.mxu0 %v5340
    %v5342 = vand.u32 %v3445, 4294901760
    %5343 = vmatpush.msra.mxu0 %v5342
    %v5344 = vand.u32 %v3411, 4294901760
    %5345 = vmatpush.msra.mxu0 %v5344
    %v5346 = vand.u32 %v3377, 4294901760
    %5347 = vmatpush.msra.mxu0 %v5346
    %v5348 = vand.u32 %v3343, 4294901760
    %5349 = vmatpush.msra.mxu0 %v5348
    %v5350 = vand.u32 %v3654, 4294901760
    %v5351 = vsub.f32 %v3654, %v5350
    %v5352 = vand.u32 %v5351, 4294901760
    %v5353 = vsub.f32 %v5351, %v5352
    %v5354 = vand.u32 %v5353, 4294901760
    %5355 = vmatmul.f32.gmra.mxu0 %v5354
    %v5356 = vpop.f32.mrf.mxu0
    %v5357 = vadd.f32 %v3591, %v5356
    %5358 = vdwg.mxu0
    %5359 = vmatpush.msra.mxu0 0.0
    %5360 = vmatpush.msra.mxu0 0.0
    %5361 = vmatpush.msra.mxu0 0.0
    %5362 = vmatpush.msra.mxu0 0.0
    %5363 = vmatpush.msra.mxu0 0.0
    %5364 = vmatpush.msra.mxu0 0.0
    %5365 = vmatpush.msra.mxu0 0.0
    %5366 = vmatpush.msra.mxu0 0.0
    %5367 = vmatpush.msra.mxu0 0.0
    %v5368 = vand.u32 %v3679, 4294901760
    %v5369 = vsub.f32 %v3679, %v5368
    %v5370 = vand.u32 %v5369, 4294901760
    %v5371 = vsub.f32 %v5369, %v5370
    %v5372 = vand.u32 %v5371, 4294901760
    %5373 = vmatpush.msra.mxu0 %v5372
    %v5374 = vand.u32 %v3513, 4294901760
    %v5375 = vsub.f32 %v3513, %v5374
    %v5376 = vand.u32 %v5375, 4294901760
    %v5377 = vsub.f32 %v5375, %v5376
    %v5378 = vand.u32 %v5377, 4294901760
    %5379 = vmatpush.msra.mxu0 %v5378
    %v5380 = vand.u32 %v3479, 4294901760
    %v5381 = vsub.f32 %v3479, %v5380
    %v5382 = vand.u32 %v5381, 4294901760
    %v5383 = vsub.f32 %v5381, %v5382
    %v5384 = vand.u32 %v5383, 4294901760
    %5385 = vmatpush.msra.mxu0 %v5384
    %v5386 = vand.u32 %v3445, 4294901760
    %v5387 = vsub.f32 %v3445, %v5386
    %v5388 = vand.u32 %v5387, 4294901760
    %v5389 = vsub.f32 %v5387, %v5388
    %v5390 = vand.u32 %v5389, 4294901760
    %5391 = vmatpush.msra.mxu0 %v5390
    %v5392 = vand.u32 %v3411, 4294901760
    %v5393 = vsub.f32 %v3411, %v5392
    %v5394 = vand.u32 %v5393, 4294901760
    %v5395 = vsub.f32 %v5393, %v5394
    %v5396 = vand.u32 %v5395, 4294901760
    %5397 = vmatpush.msra.mxu0 %v5396
    %v5398 = vand.u32 %v3377, 4294901760
    %v5399 = vsub.f32 %v3377, %v5398
    %v5400 = vand.u32 %v5399, 4294901760
    %v5401 = vsub.f32 %v5399, %v5400
    %v5402 = vand.u32 %v5401, 4294901760
    %5403 = vmatpush.msra.mxu0 %v5402
    %v5404 = vand.u32 %v3343, 4294901760
    %v5405 = vsub.f32 %v3343, %v5404
    %v5406 = vand.u32 %v5405, 4294901760
    %v5407 = vsub.f32 %v5405, %v5406
    %v5408 = vand.u32 %v5407, 4294901760
    %5409 = vmatpush.msra.mxu0 %v5408
    %v5410 = vand.u32 %v3654, 4294901760
    %5411 = vmatmul.f32.gmra.mxu0 %v5410
    %v5412 = vpop.f32.mrf.mxu0
    %v5413 = vadd.f32 %v5357, %v5412
    %5414 = vdwg.mxu0
    %5415 = vmatpush.msra.mxu0 0.0
    %5416 = vmatpush.msra.mxu0 0.0
    %5417 = vmatpush.msra.mxu0 0.0
    %5418 = vmatpush.msra.mxu0 0.0
    %5419 = vmatpush.msra.mxu0 0.0
    %5420 = vmatpush.msra.mxu0 0.0
    %5421 = vmatpush.msra.mxu0 0.0
    %5422 = vmatpush.msra.mxu0 0.0
    %5423 = vmatpush.msra.mxu0 0.0
    %v5424 = vand.u32 %v3679, 4294901760
    %v5425 = vsub.f32 %v3679, %v5424
    %5426 = vmatpush.msra.mxu0 %v5425
    %v5427 = vand.u32 %v3513, 4294901760
    %v5428 = vsub.f32 %v3513, %v5427
    %5429 = vmatpush.msra.mxu0 %v5428
    %v5430 = vand.u32 %v3479, 4294901760
    %v5431 = vsub.f32 %v3479, %v5430
    %5432 = vmatpush.msra.mxu0 %v5431
    %v5433 = vand.u32 %v3445, 4294901760
    %v5434 = vsub.f32 %v3445, %v5433
    %5435 = vmatpush.msra.mxu0 %v5434
    %v5436 = vand.u32 %v3411, 4294901760
    %v5437 = vsub.f32 %v3411, %v5436
    %5438 = vmatpush.msra.mxu0 %v5437
    %v5439 = vand.u32 %v3377, 4294901760
    %v5440 = vsub.f32 %v3377, %v5439
    %5441 = vmatpush.msra.mxu0 %v5440
    %v5442 = vand.u32 %v3343, 4294901760
    %v5443 = vsub.f32 %v3343, %v5442
    %5444 = vmatpush.msra.mxu0 %v5443
    %v5445 = vand.u32 %v3654, 4294901760
    %v5446 = vsub.f32 %v3654, %v5445
    %5447 = vmatmul.f32.gmra.mxu0 %v5446
    %v5448 = vpop.f32.mrf.mxu0
    %v5449 = vadd.f32 %v5413, %v5448
    %5450 = vdwg.mxu0
    %5451 = vmatpush.msra.mxu0 0.0
    %5452 = vmatpush.msra.mxu0 0.0
    %5453 = vmatpush.msra.mxu0 0.0
    %5454 = vmatpush.msra.mxu0 0.0
    %5455 = vmatpush.msra.mxu0 0.0
    %5456 = vmatpush.msra.mxu0 0.0
    %5457 = vmatpush.msra.mxu0 0.0
    %5458 = vmatpush.msra.mxu0 0.0
    %5459 = vmatpush.msra.mxu0 0.0
    %v5460 = vand.u32 %v3679, 4294901760
    %5461 = vmatpush.msra.mxu0 %v5460
    %v5462 = vand.u32 %v3513, 4294901760
    %5463 = vmatpush.msra.mxu0 %v5462
    %v5464 = vand.u32 %v3479, 4294901760
    %5465 = vmatpush.msra.mxu0 %v5464
    %v5466 = vand.u32 %v3445, 4294901760
    %5467 = vmatpush.msra.mxu0 %v5466
    %v5468 = vand.u32 %v3411, 4294901760
    %5469 = vmatpush.msra.mxu0 %v5468
    %v5470 = vand.u32 %v3377, 4294901760
    %5471 = vmatpush.msra.mxu0 %v5470
    %v5472 = vand.u32 %v3343, 4294901760
    %5473 = vmatpush.msra.mxu0 %v5472
    %v5474 = vand.u32 %v3654, 4294901760
    %v5475 = vsub.f32 %v3654, %v5474
    %v5476 = vand.u32 %v5475, 4294901760
    %5477 = vmatmul.f32.gmra.mxu0 %v5476
    %v5478 = vpop.f32.mrf.mxu0
    %v5479 = vadd.f32 %v5449, %v5478
    %5480 = vdwg.mxu0
    %5481 = vmatpush.msra.mxu0 0.0
    %5482 = vmatpush.msra.mxu0 0.0
    %5483 = vmatpush.msra.mxu0 0.0
    %5484 = vmatpush.msra.mxu0 0.0
    %5485 = vmatpush.msra.mxu0 0.0
    %5486 = vmatpush.msra.mxu0 0.0
    %5487 = vmatpush.msra.mxu0 0.0
    %5488 = vmatpush.msra.mxu0 0.0
    %5489 = vmatpush.msra.mxu0 0.0
    %v5490 = vand.u32 %v3679, 4294901760
    %v5491 = vsub.f32 %v3679, %v5490
    %v5492 = vand.u32 %v5491, 4294901760
    %5493 = vmatpush.msra.mxu0 %v5492
    %v5494 = vand.u32 %v3513, 4294901760
    %v5495 = vsub.f32 %v3513, %v5494
    %v5496 = vand.u32 %v5495, 4294901760
    %5497 = vmatpush.msra.mxu0 %v5496
    %v5498 = vand.u32 %v3479, 4294901760
    %v5499 = vsub.f32 %v3479, %v5498
    %v5500 = vand.u32 %v5499, 4294901760
    %5501 = vmatpush.msra.mxu0 %v5500
    %v5502 = vand.u32 %v3445, 4294901760
    %v5503 = vsub.f32 %v3445, %v5502
    %v5504 = vand.u32 %v5503, 4294901760
    %5505 = vmatpush.msra.mxu0 %v5504
    %v5506 = vand.u32 %v3411, 4294901760
    %v5507 = vsub.f32 %v3411, %v5506
    %v5508 = vand.u32 %v5507, 4294901760
    %5509 = vmatpush.msra.mxu0 %v5508
    %v5510 = vand.u32 %v3377, 4294901760
    %v5511 = vsub.f32 %v3377, %v5510
    %v5512 = vand.u32 %v5511, 4294901760
    %5513 = vmatpush.msra.mxu0 %v5512
    %v5514 = vand.u32 %v3343, 4294901760
    %v5515 = vsub.f32 %v3343, %v5514
    %v5516 = vand.u32 %v5515, 4294901760
    %5517 = vmatpush.msra.mxu0 %v5516
    %v5518 = vand.u32 %v3654, 4294901760
    %5519 = vmatmul.f32.gmra.mxu0 %v5518
    %v5520 = vpop.f32.mrf.mxu0
    %v5521 = vadd.f32 %v5479, %v5520
    %5522 = vdwg.mxu0
    %5523 = vmatpush.msra.mxu0 0.0
    %5524 = vmatpush.msra.mxu0 0.0
    %5525 = vmatpush.msra.mxu0 0.0
    %5526 = vmatpush.msra.mxu0 0.0
    %5527 = vmatpush.msra.mxu0 0.0
    %5528 = vmatpush.msra.mxu0 0.0
    %5529 = vmatpush.msra.mxu0 0.0
    %5530 = vmatpush.msra.mxu0 0.0
    %5531 = vmatpush.msra.mxu0 0.0
    %v5532 = vand.u32 %v3679, 4294901760
    %5533 = vmatpush.msra.mxu0 %v5532
    %v5534 = vand.u32 %v3513, 4294901760
    %5535 = vmatpush.msra.mxu0 %v5534
    %v5536 = vand.u32 %v3479, 4294901760
    %5537 = vmatpush.msra.mxu0 %v5536
    %v5538 = vand.u32 %v3445, 4294901760
    %5539 = vmatpush.msra.mxu0 %v5538
    %v5540 = vand.u32 %v3411, 4294901760
    %5541 = vmatpush.msra.mxu0 %v5540
    %v5542 = vand.u32 %v3377, 4294901760
    %5543 = vmatpush.msra.mxu0 %v5542
    %v5544 = vand.u32 %v3343, 4294901760
    %5545 = vmatpush.msra.mxu0 %v5544
    %v5546 = vand.u32 %v3654, 4294901760
    %5547 = vmatmul.f32.gmra.mxu0 %v5546
    %v5548 = vpop.f32.mrf.mxu0
    %v5549 = vadd.f32 %v5521, %v5548
    %5550 = vdwg.mxu0
    %5551 = vmatpush.msra.mxu0 0.0
    %5552 = vmatpush.msra.mxu0 0.0
    %5553 = vmatpush.msra.mxu0 0.0
    %5554 = vmatpush.msra.mxu0 0.0
    %5555 = vmatpush.msra.mxu0 0.0
    %5556 = vmatpush.msra.mxu0 0.0
    %5557 = vmatpush.msra.mxu0 0.0
    %5558 = vmatpush.msra.mxu0 0.0
    %5559 = vmatpush.msra.mxu0 0.0
    %v5560 = vand.u32 %v3682, 4294901760
    %5561 = vmatpush.msra.mxu0 %v5560
    %v5562 = vand.u32 %v3514, 4294901760
    %5563 = vmatpush.msra.mxu0 %v5562
    %v5564 = vand.u32 %v3480, 4294901760
    %5565 = vmatpush.msra.mxu0 %v5564
    %v5566 = vand.u32 %v3446, 4294901760
    %5567 = vmatpush.msra.mxu0 %v5566
    %v5568 = vand.u32 %v3412, 4294901760
    %5569 = vmatpush.msra.mxu0 %v5568
    %v5570 = vand.u32 %v3378, 4294901760
    %5571 = vmatpush.msra.mxu0 %v5570
    %v5572 = vand.u32 %v3344, 4294901760
    %5573 = vmatpush.msra.mxu0 %v5572
    %v5574 = vand.u32 %v3654, 4294901760
    %v5575 = vsub.f32 %v3654, %v5574
    %v5576 = vand.u32 %v5575, 4294901760
    %v5577 = vsub.f32 %v5575, %v5576
    %v5578 = vand.u32 %v5577, 4294901760
    %5579 = vmatmul.f32.gmra.mxu0 %v5578
    %v5580 = vpop.f32.mrf.mxu0
    %v5581 = vadd.f32 %v3592, %v5580
    %5582 = vdwg.mxu0
    %5583 = vmatpush.msra.mxu0 0.0
    %5584 = vmatpush.msra.mxu0 0.0
    %5585 = vmatpush.msra.mxu0 0.0
    %5586 = vmatpush.msra.mxu0 0.0
    %5587 = vmatpush.msra.mxu0 0.0
    %5588 = vmatpush.msra.mxu0 0.0
    %5589 = vmatpush.msra.mxu0 0.0
    %5590 = vmatpush.msra.mxu0 0.0
    %5591 = vmatpush.msra.mxu0 0.0
    %v5592 = vand.u32 %v3682, 4294901760
    %v5593 = vsub.f32 %v3682, %v5592
    %v5594 = vand.u32 %v5593, 4294901760
    %v5595 = vsub.f32 %v5593, %v5594
    %v5596 = vand.u32 %v5595, 4294901760
    %5597 = vmatpush.msra.mxu0 %v5596
    %v5598 = vand.u32 %v3514, 4294901760
    %v5599 = vsub.f32 %v3514, %v5598
    %v5600 = vand.u32 %v5599, 4294901760
    %v5601 = vsub.f32 %v5599, %v5600
    %v5602 = vand.u32 %v5601, 4294901760
    %5603 = vmatpush.msra.mxu0 %v5602
    %v5604 = vand.u32 %v3480, 4294901760
    %v5605 = vsub.f32 %v3480, %v5604
    %v5606 = vand.u32 %v5605, 4294901760
    %v5607 = vsub.f32 %v5605, %v5606
    %v5608 = vand.u32 %v5607, 4294901760
    %5609 = vmatpush.msra.mxu0 %v5608
    %v5610 = vand.u32 %v3446, 4294901760
    %v5611 = vsub.f32 %v3446, %v5610
    %v5612 = vand.u32 %v5611, 4294901760
    %v5613 = vsub.f32 %v5611, %v5612
    %v5614 = vand.u32 %v5613, 4294901760
    %5615 = vmatpush.msra.mxu0 %v5614
    %v5616 = vand.u32 %v3412, 4294901760
    %v5617 = vsub.f32 %v3412, %v5616
    %v5618 = vand.u32 %v5617, 4294901760
    %v5619 = vsub.f32 %v5617, %v5618
    %v5620 = vand.u32 %v5619, 4294901760
    %5621 = vmatpush.msra.mxu0 %v5620
    %v5622 = vand.u32 %v3378, 4294901760
    %v5623 = vsub.f32 %v3378, %v5622
    %v5624 = vand.u32 %v5623, 4294901760
    %v5625 = vsub.f32 %v5623, %v5624
    %v5626 = vand.u32 %v5625, 4294901760
    %5627 = vmatpush.msra.mxu0 %v5626
    %v5628 = vand.u32 %v3344, 4294901760
    %v5629 = vsub.f32 %v3344, %v5628
    %v5630 = vand.u32 %v5629, 4294901760
    %v5631 = vsub.f32 %v5629, %v5630
    %v5632 = vand.u32 %v5631, 4294901760
    %5633 = vmatpush.msra.mxu0 %v5632
    %v5634 = vand.u32 %v3654, 4294901760
    %5635 = vmatmul.f32.gmra.mxu0 %v5634
    %v5636 = vpop.f32.mrf.mxu0
    %v5637 = vadd.f32 %v5581, %v5636
    %5638 = vdwg.mxu0
    %5639 = vmatpush.msra.mxu0 0.0
    %5640 = vmatpush.msra.mxu0 0.0
    %5641 = vmatpush.msra.mxu0 0.0
    %5642 = vmatpush.msra.mxu0 0.0
    %5643 = vmatpush.msra.mxu0 0.0
    %5644 = vmatpush.msra.mxu0 0.0
    %5645 = vmatpush.msra.mxu0 0.0
    %5646 = vmatpush.msra.mxu0 0.0
    %5647 = vmatpush.msra.mxu0 0.0
    %v5648 = vand.u32 %v3682, 4294901760
    %v5649 = vsub.f32 %v3682, %v5648
    %5650 = vmatpush.msra.mxu0 %v5649
    %v5651 = vand.u32 %v3514, 4294901760
    %v5652 = vsub.f32 %v3514, %v5651
    %5653 = vmatpush.msra.mxu0 %v5652
    %v5654 = vand.u32 %v3480, 4294901760
    %v5655 = vsub.f32 %v3480, %v5654
    %5656 = vmatpush.msra.mxu0 %v5655
    %v5657 = vand.u32 %v3446, 4294901760
    %v5658 = vsub.f32 %v3446, %v5657
    %5659 = vmatpush.msra.mxu0 %v5658
    %v5660 = vand.u32 %v3412, 4294901760
    %v5661 = vsub.f32 %v3412, %v5660
    %5662 = vmatpush.msra.mxu0 %v5661
    %v5663 = vand.u32 %v3378, 4294901760
    %v5664 = vsub.f32 %v3378, %v5663
    %5665 = vmatpush.msra.mxu0 %v5664
    %v5666 = vand.u32 %v3344, 4294901760
    %v5667 = vsub.f32 %v3344, %v5666
    %5668 = vmatpush.msra.mxu0 %v5667
    %v5669 = vand.u32 %v3654, 4294901760
    %v5670 = vsub.f32 %v3654, %v5669
    %5671 = vmatmul.f32.gmra.mxu0 %v5670
    %v5672 = vpop.f32.mrf.mxu0
    %v5673 = vadd.f32 %v5637, %v5672
    %5674 = vdwg.mxu0
    %5675 = vmatpush.msra.mxu0 0.0
    %5676 = vmatpush.msra.mxu0 0.0
    %5677 = vmatpush.msra.mxu0 0.0
    %5678 = vmatpush.msra.mxu0 0.0
    %5679 = vmatpush.msra.mxu0 0.0
    %5680 = vmatpush.msra.mxu0 0.0
    %5681 = vmatpush.msra.mxu0 0.0
    %5682 = vmatpush.msra.mxu0 0.0
    %5683 = vmatpush.msra.mxu0 0.0
    %v5684 = vand.u32 %v3682, 4294901760
    %5685 = vmatpush.msra.mxu0 %v5684
    %v5686 = vand.u32 %v3514, 4294901760
    %5687 = vmatpush.msra.mxu0 %v5686
    %v5688 = vand.u32 %v3480, 4294901760
    %5689 = vmatpush.msra.mxu0 %v5688
    %v5690 = vand.u32 %v3446, 4294901760
    %5691 = vmatpush.msra.mxu0 %v5690
    %v5692 = vand.u32 %v3412, 4294901760
    %5693 = vmatpush.msra.mxu0 %v5692
    %v5694 = vand.u32 %v3378, 4294901760
    %5695 = vmatpush.msra.mxu0 %v5694
    %v5696 = vand.u32 %v3344, 4294901760
    %5697 = vmatpush.msra.mxu0 %v5696
    %v5698 = vand.u32 %v3654, 4294901760
    %v5699 = vsub.f32 %v3654, %v5698
    %v5700 = vand.u32 %v5699, 4294901760
    %5701 = vmatmul.f32.gmra.mxu0 %v5700
    %v5702 = vpop.f32.mrf.mxu0
    %v5703 = vadd.f32 %v5673, %v5702
    %5704 = vdwg.mxu0
    %5705 = vmatpush.msra.mxu0 0.0
    %5706 = vmatpush.msra.mxu0 0.0
    %5707 = vmatpush.msra.mxu0 0.0
    %5708 = vmatpush.msra.mxu0 0.0
    %5709 = vmatpush.msra.mxu0 0.0
    %5710 = vmatpush.msra.mxu0 0.0
    %5711 = vmatpush.msra.mxu0 0.0
    %5712 = vmatpush.msra.mxu0 0.0
    %5713 = vmatpush.msra.mxu0 0.0
    %v5714 = vand.u32 %v3682, 4294901760
    %v5715 = vsub.f32 %v3682, %v5714
    %v5716 = vand.u32 %v5715, 4294901760
    %5717 = vmatpush.msra.mxu0 %v5716
    %v5718 = vand.u32 %v3514, 4294901760
    %v5719 = vsub.f32 %v3514, %v5718
    %v5720 = vand.u32 %v5719, 4294901760
    %5721 = vmatpush.msra.mxu0 %v5720
    %v5722 = vand.u32 %v3480, 4294901760
    %v5723 = vsub.f32 %v3480, %v5722
    %v5724 = vand.u32 %v5723, 4294901760
    %5725 = vmatpush.msra.mxu0 %v5724
    %v5726 = vand.u32 %v3446, 4294901760
    %v5727 = vsub.f32 %v3446, %v5726
    %v5728 = vand.u32 %v5727, 4294901760
    %5729 = vmatpush.msra.mxu0 %v5728
    %v5730 = vand.u32 %v3412, 4294901760
    %v5731 = vsub.f32 %v3412, %v5730
    %v5732 = vand.u32 %v5731, 4294901760
    %5733 = vmatpush.msra.mxu0 %v5732
    %v5734 = vand.u32 %v3378, 4294901760
    %v5735 = vsub.f32 %v3378, %v5734
    %v5736 = vand.u32 %v5735, 4294901760
    %5737 = vmatpush.msra.mxu0 %v5736
    %v5738 = vand.u32 %v3344, 4294901760
    %v5739 = vsub.f32 %v3344, %v5738
    %v5740 = vand.u32 %v5739, 4294901760
    %5741 = vmatpush.msra.mxu0 %v5740
    %v5742 = vand.u32 %v3654, 4294901760
    %5743 = vmatmul.f32.gmra.mxu0 %v5742
    %v5744 = vpop.f32.mrf.mxu0
    %v5745 = vadd.f32 %v5703, %v5744
    %5746 = vdwg.mxu0
    %5747 = vmatpush.msra.mxu0 0.0
    %5748 = vmatpush.msra.mxu0 0.0
    %5749 = vmatpush.msra.mxu0 0.0
    %5750 = vmatpush.msra.mxu0 0.0
    %5751 = vmatpush.msra.mxu0 0.0
    %5752 = vmatpush.msra.mxu0 0.0
    %5753 = vmatpush.msra.mxu0 0.0
    %5754 = vmatpush.msra.mxu0 0.0
    %5755 = vmatpush.msra.mxu0 0.0
    %v5756 = vand.u32 %v3682, 4294901760
    %5757 = vmatpush.msra.mxu0 %v5756
    %v5758 = vand.u32 %v3514, 4294901760
    %5759 = vmatpush.msra.mxu0 %v5758
    %v5760 = vand.u32 %v3480, 4294901760
    %5761 = vmatpush.msra.mxu0 %v5760
    %v5762 = vand.u32 %v3446, 4294901760
    %5763 = vmatpush.msra.mxu0 %v5762
    %v5764 = vand.u32 %v3412, 4294901760
    %5765 = vmatpush.msra.mxu0 %v5764
    %v5766 = vand.u32 %v3378, 4294901760
    %5767 = vmatpush.msra.mxu0 %v5766
    %v5768 = vand.u32 %v3344, 4294901760
    %5769 = vmatpush.msra.mxu0 %v5768
    %v5770 = vand.u32 %v3654, 4294901760
    %5771 = vmatmul.f32.gmra.mxu0 %v5770
    %v5772 = vpop.f32.mrf.mxu0
    %v5773 = vadd.f32 %v5745, %v5772
    %5774 = vdwg.mxu0
    %5775 = vmatpush.msra.mxu0 0.0
    %5776 = vmatpush.msra.mxu0 0.0
    %5777 = vmatpush.msra.mxu0 0.0
    %5778 = vmatpush.msra.mxu0 0.0
    %5779 = vmatpush.msra.mxu0 0.0
    %5780 = vmatpush.msra.mxu0 0.0
    %5781 = vmatpush.msra.mxu0 0.0
    %5782 = vmatpush.msra.mxu0 0.0
    %5783 = vmatpush.msra.mxu0 0.0
    %v5784 = vand.u32 %v3685, 4294901760
    %5785 = vmatpush.msra.mxu0 %v5784
    %v5786 = vand.u32 %v3515, 4294901760
    %5787 = vmatpush.msra.mxu0 %v5786
    %v5788 = vand.u32 %v3481, 4294901760
    %5789 = vmatpush.msra.mxu0 %v5788
    %v5790 = vand.u32 %v3447, 4294901760
    %5791 = vmatpush.msra.mxu0 %v5790
    %v5792 = vand.u32 %v3413, 4294901760
    %5793 = vmatpush.msra.mxu0 %v5792
    %v5794 = vand.u32 %v3379, 4294901760
    %5795 = vmatpush.msra.mxu0 %v5794
    %v5796 = vand.u32 %v3345, 4294901760
    %5797 = vmatpush.msra.mxu0 %v5796
    %v5798 = vand.u32 %v3654, 4294901760
    %v5799 = vsub.f32 %v3654, %v5798
    %v5800 = vand.u32 %v5799, 4294901760
    %v5801 = vsub.f32 %v5799, %v5800
    %v5802 = vand.u32 %v5801, 4294901760
    %5803 = vmatmul.f32.gmra.mxu0 %v5802
    %v5804 = vpop.f32.mrf.mxu0
    %v5805 = vadd.f32 %v3593, %v5804
    %5806 = vdwg.mxu0
    %5807 = vmatpush.msra.mxu0 0.0
    %5808 = vmatpush.msra.mxu0 0.0
    %5809 = vmatpush.msra.mxu0 0.0
    %5810 = vmatpush.msra.mxu0 0.0
    %5811 = vmatpush.msra.mxu0 0.0
    %5812 = vmatpush.msra.mxu0 0.0
    %5813 = vmatpush.msra.mxu0 0.0
    %5814 = vmatpush.msra.mxu0 0.0
    %5815 = vmatpush.msra.mxu0 0.0
    %v5816 = vand.u32 %v3685, 4294901760
    %v5817 = vsub.f32 %v3685, %v5816
    %v5818 = vand.u32 %v5817, 4294901760
    %v5819 = vsub.f32 %v5817, %v5818
    %v5820 = vand.u32 %v5819, 4294901760
    %5821 = vmatpush.msra.mxu0 %v5820
    %v5822 = vand.u32 %v3515, 4294901760
    %v5823 = vsub.f32 %v3515, %v5822
    %v5824 = vand.u32 %v5823, 4294901760
    %v5825 = vsub.f32 %v5823, %v5824
    %v5826 = vand.u32 %v5825, 4294901760
    %5827 = vmatpush.msra.mxu0 %v5826
    %v5828 = vand.u32 %v3481, 4294901760
    %v5829 = vsub.f32 %v3481, %v5828
    %v5830 = vand.u32 %v5829, 4294901760
    %v5831 = vsub.f32 %v5829, %v5830
    %v5832 = vand.u32 %v5831, 4294901760
    %5833 = vmatpush.msra.mxu0 %v5832
    %v5834 = vand.u32 %v3447, 4294901760
    %v5835 = vsub.f32 %v3447, %v5834
    %v5836 = vand.u32 %v5835, 4294901760
    %v5837 = vsub.f32 %v5835, %v5836
    %v5838 = vand.u32 %v5837, 4294901760
    %5839 = vmatpush.msra.mxu0 %v5838
    %v5840 = vand.u32 %v3413, 4294901760
    %v5841 = vsub.f32 %v3413, %v5840
    %v5842 = vand.u32 %v5841, 4294901760
    %v5843 = vsub.f32 %v5841, %v5842
    %v5844 = vand.u32 %v5843, 4294901760
    %5845 = vmatpush.msra.mxu0 %v5844
    %v5846 = vand.u32 %v3379, 4294901760
    %v5847 = vsub.f32 %v3379, %v5846
    %v5848 = vand.u32 %v5847, 4294901760
    %v5849 = vsub.f32 %v5847, %v5848
    %v5850 = vand.u32 %v5849, 4294901760
    %5851 = vmatpush.msra.mxu0 %v5850
    %v5852 = vand.u32 %v3345, 4294901760
    %v5853 = vsub.f32 %v3345, %v5852
    %v5854 = vand.u32 %v5853, 4294901760
    %v5855 = vsub.f32 %v5853, %v5854
    %v5856 = vand.u32 %v5855, 4294901760
    %5857 = vmatpush.msra.mxu0 %v5856
    %v5858 = vand.u32 %v3654, 4294901760
    %5859 = vmatmul.f32.gmra.mxu0 %v5858
    %v5860 = vpop.f32.mrf.mxu0
    %v5861 = vadd.f32 %v5805, %v5860
    %5862 = vdwg.mxu0
    %5863 = vmatpush.msra.mxu0 0.0
    %5864 = vmatpush.msra.mxu0 0.0
    %5865 = vmatpush.msra.mxu0 0.0
    %5866 = vmatpush.msra.mxu0 0.0
    %5867 = vmatpush.msra.mxu0 0.0
    %5868 = vmatpush.msra.mxu0 0.0
    %5869 = vmatpush.msra.mxu0 0.0
    %5870 = vmatpush.msra.mxu0 0.0
    %5871 = vmatpush.msra.mxu0 0.0
    %v5872 = vand.u32 %v3685, 4294901760
    %v5873 = vsub.f32 %v3685, %v5872
    %5874 = vmatpush.msra.mxu0 %v5873
    %v5875 = vand.u32 %v3515, 4294901760
    %v5876 = vsub.f32 %v3515, %v5875
    %5877 = vmatpush.msra.mxu0 %v5876
    %v5878 = vand.u32 %v3481, 4294901760
    %v5879 = vsub.f32 %v3481, %v5878
    %5880 = vmatpush.msra.mxu0 %v5879
    %v5881 = vand.u32 %v3447, 4294901760
    %v5882 = vsub.f32 %v3447, %v5881
    %5883 = vmatpush.msra.mxu0 %v5882
    %v5884 = vand.u32 %v3413, 4294901760
    %v5885 = vsub.f32 %v3413, %v5884
    %5886 = vmatpush.msra.mxu0 %v5885
    %v5887 = vand.u32 %v3379, 4294901760
    %v5888 = vsub.f32 %v3379, %v5887
    %5889 = vmatpush.msra.mxu0 %v5888
    %v5890 = vand.u32 %v3345, 4294901760
    %v5891 = vsub.f32 %v3345, %v5890
    %5892 = vmatpush.msra.mxu0 %v5891
    %v5893 = vand.u32 %v3654, 4294901760
    %v5894 = vsub.f32 %v3654, %v5893
    %5895 = vmatmul.f32.gmra.mxu0 %v5894
    %v5896 = vpop.f32.mrf.mxu0
    %v5897 = vadd.f32 %v5861, %v5896
    %5898 = vdwg.mxu0
    %5899 = vmatpush.msra.mxu0 0.0
    %5900 = vmatpush.msra.mxu0 0.0
    %5901 = vmatpush.msra.mxu0 0.0
    %5902 = vmatpush.msra.mxu0 0.0
    %5903 = vmatpush.msra.mxu0 0.0
    %5904 = vmatpush.msra.mxu0 0.0
    %5905 = vmatpush.msra.mxu0 0.0
    %5906 = vmatpush.msra.mxu0 0.0
    %5907 = vmatpush.msra.mxu0 0.0
    %v5908 = vand.u32 %v3685, 4294901760
    %5909 = vmatpush.msra.mxu0 %v5908
    %v5910 = vand.u32 %v3515, 4294901760
    %5911 = vmatpush.msra.mxu0 %v5910
    %v5912 = vand.u32 %v3481, 4294901760
    %5913 = vmatpush.msra.mxu0 %v5912
    %v5914 = vand.u32 %v3447, 4294901760
    %5915 = vmatpush.msra.mxu0 %v5914
    %v5916 = vand.u32 %v3413, 4294901760
    %5917 = vmatpush.msra.mxu0 %v5916
    %v5918 = vand.u32 %v3379, 4294901760
    %5919 = vmatpush.msra.mxu0 %v5918
    %v5920 = vand.u32 %v3345, 4294901760
    %5921 = vmatpush.msra.mxu0 %v5920
    %v5922 = vand.u32 %v3654, 4294901760
    %v5923 = vsub.f32 %v3654, %v5922
    %v5924 = vand.u32 %v5923, 4294901760
    %5925 = vmatmul.f32.gmra.mxu0 %v5924
    %v5926 = vpop.f32.mrf.mxu0
    %v5927 = vadd.f32 %v5897, %v5926
    %5928 = vdwg.mxu0
    %5929 = vmatpush.msra.mxu0 0.0
    %5930 = vmatpush.msra.mxu0 0.0
    %5931 = vmatpush.msra.mxu0 0.0
    %5932 = vmatpush.msra.mxu0 0.0
    %5933 = vmatpush.msra.mxu0 0.0
    %5934 = vmatpush.msra.mxu0 0.0
    %5935 = vmatpush.msra.mxu0 0.0
    %5936 = vmatpush.msra.mxu0 0.0
    %5937 = vmatpush.msra.mxu0 0.0
    %v5938 = vand.u32 %v3685, 4294901760
    %v5939 = vsub.f32 %v3685, %v5938
    %v5940 = vand.u32 %v5939, 4294901760
    %5941 = vmatpush.msra.mxu0 %v5940
    %v5942 = vand.u32 %v3515, 4294901760
    %v5943 = vsub.f32 %v3515, %v5942
    %v5944 = vand.u32 %v5943, 4294901760
    %5945 = vmatpush.msra.mxu0 %v5944
    %v5946 = vand.u32 %v3481, 4294901760
    %v5947 = vsub.f32 %v3481, %v5946
    %v5948 = vand.u32 %v5947, 4294901760
    %5949 = vmatpush.msra.mxu0 %v5948
    %v5950 = vand.u32 %v3447, 4294901760
    %v5951 = vsub.f32 %v3447, %v5950
    %v5952 = vand.u32 %v5951, 4294901760
    %5953 = vmatpush.msra.mxu0 %v5952
    %v5954 = vand.u32 %v3413, 4294901760
    %v5955 = vsub.f32 %v3413, %v5954
    %v5956 = vand.u32 %v5955, 4294901760
    %5957 = vmatpush.msra.mxu0 %v5956
    %v5958 = vand.u32 %v3379, 4294901760
    %v5959 = vsub.f32 %v3379, %v5958
    %v5960 = vand.u32 %v5959, 4294901760
    %5961 = vmatpush.msra.mxu0 %v5960
    %v5962 = vand.u32 %v3345, 4294901760
    %v5963 = vsub.f32 %v3345, %v5962
    %v5964 = vand.u32 %v5963, 4294901760
    %5965 = vmatpush.msra.mxu0 %v5964
    %v5966 = vand.u32 %v3654, 4294901760
    %5967 = vmatmul.f32.gmra.mxu0 %v5966
    %v5968 = vpop.f32.mrf.mxu0
    %v5969 = vadd.f32 %v5927, %v5968
    %5970 = vdwg.mxu0
    %5971 = vmatpush.msra.mxu0 0.0
    %5972 = vmatpush.msra.mxu0 0.0
    %5973 = vmatpush.msra.mxu0 0.0
    %5974 = vmatpush.msra.mxu0 0.0
    %5975 = vmatpush.msra.mxu0 0.0
    %5976 = vmatpush.msra.mxu0 0.0
    %5977 = vmatpush.msra.mxu0 0.0
    %5978 = vmatpush.msra.mxu0 0.0
    %5979 = vmatpush.msra.mxu0 0.0
    %v5980 = vand.u32 %v3685, 4294901760
    %5981 = vmatpush.msra.mxu0 %v5980
    %v5982 = vand.u32 %v3515, 4294901760
    %5983 = vmatpush.msra.mxu0 %v5982
    %v5984 = vand.u32 %v3481, 4294901760
    %5985 = vmatpush.msra.mxu0 %v5984
    %v5986 = vand.u32 %v3447, 4294901760
    %5987 = vmatpush.msra.mxu0 %v5986
    %v5988 = vand.u32 %v3413, 4294901760
    %5989 = vmatpush.msra.mxu0 %v5988
    %v5990 = vand.u32 %v3379, 4294901760
    %5991 = vmatpush.msra.mxu0 %v5990
    %v5992 = vand.u32 %v3345, 4294901760
    %5993 = vmatpush.msra.mxu0 %v5992
    %v5994 = vand.u32 %v3654, 4294901760
    %5995 = vmatmul.f32.gmra.mxu0 %v5994
    %v5996 = vpop.f32.mrf.mxu0
    %v5997 = vadd.f32 %v5969, %v5996
    %5998 = vdwg.mxu0
    %5999 = vmatpush.msra.mxu0 0.0
    %6000 = vmatpush.msra.mxu0 0.0
    %6001 = vmatpush.msra.mxu0 0.0
    %6002 = vmatpush.msra.mxu0 0.0
    %6003 = vmatpush.msra.mxu0 0.0
    %6004 = vmatpush.msra.mxu0 0.0
    %6005 = vmatpush.msra.mxu0 0.0
    %6006 = vmatpush.msra.mxu0 0.0
    %6007 = vmatpush.msra.mxu0 0.0
    %v6008 = vand.u32 %v3688, 4294901760
    %6009 = vmatpush.msra.mxu0 %v6008
    %v6010 = vand.u32 %v3516, 4294901760
    %6011 = vmatpush.msra.mxu0 %v6010
    %v6012 = vand.u32 %v3482, 4294901760
    %6013 = vmatpush.msra.mxu0 %v6012
    %v6014 = vand.u32 %v3448, 4294901760
    %6015 = vmatpush.msra.mxu0 %v6014
    %v6016 = vand.u32 %v3414, 4294901760
    %6017 = vmatpush.msra.mxu0 %v6016
    %v6018 = vand.u32 %v3380, 4294901760
    %6019 = vmatpush.msra.mxu0 %v6018
    %v6020 = vand.u32 %v3346, 4294901760
    %6021 = vmatpush.msra.mxu0 %v6020
    %v6022 = vand.u32 %v3654, 4294901760
    %v6023 = vsub.f32 %v3654, %v6022
    %v6024 = vand.u32 %v6023, 4294901760
    %v6025 = vsub.f32 %v6023, %v6024
    %v6026 = vand.u32 %v6025, 4294901760
    %6027 = vmatmul.f32.gmra.mxu0 %v6026
    %v6028 = vpop.f32.mrf.mxu0
    %v6029 = vadd.f32 %v3594, %v6028
    %6030 = vdwg.mxu0
    %6031 = vmatpush.msra.mxu0 0.0
    %6032 = vmatpush.msra.mxu0 0.0
    %6033 = vmatpush.msra.mxu0 0.0
    %6034 = vmatpush.msra.mxu0 0.0
    %6035 = vmatpush.msra.mxu0 0.0
    %6036 = vmatpush.msra.mxu0 0.0
    %6037 = vmatpush.msra.mxu0 0.0
    %6038 = vmatpush.msra.mxu0 0.0
    %6039 = vmatpush.msra.mxu0 0.0
    %v6040 = vand.u32 %v3688, 4294901760
    %v6041 = vsub.f32 %v3688, %v6040
    %v6042 = vand.u32 %v6041, 4294901760
    %v6043 = vsub.f32 %v6041, %v6042
    %v6044 = vand.u32 %v6043, 4294901760
    %6045 = vmatpush.msra.mxu0 %v6044
    %v6046 = vand.u32 %v3516, 4294901760
    %v6047 = vsub.f32 %v3516, %v6046
    %v6048 = vand.u32 %v6047, 4294901760
    %v6049 = vsub.f32 %v6047, %v6048
    %v6050 = vand.u32 %v6049, 4294901760
    %6051 = vmatpush.msra.mxu0 %v6050
    %v6052 = vand.u32 %v3482, 4294901760
    %v6053 = vsub.f32 %v3482, %v6052
    %v6054 = vand.u32 %v6053, 4294901760
    %v6055 = vsub.f32 %v6053, %v6054
    %v6056 = vand.u32 %v6055, 4294901760
    %6057 = vmatpush.msra.mxu0 %v6056
    %v6058 = vand.u32 %v3448, 4294901760
    %v6059 = vsub.f32 %v3448, %v6058
    %v6060 = vand.u32 %v6059, 4294901760
    %v6061 = vsub.f32 %v6059, %v6060
    %v6062 = vand.u32 %v6061, 4294901760
    %6063 = vmatpush.msra.mxu0 %v6062
    %v6064 = vand.u32 %v3414, 4294901760
    %v6065 = vsub.f32 %v3414, %v6064
    %v6066 = vand.u32 %v6065, 4294901760
    %v6067 = vsub.f32 %v6065, %v6066
    %v6068 = vand.u32 %v6067, 4294901760
    %6069 = vmatpush.msra.mxu0 %v6068
    %v6070 = vand.u32 %v3380, 4294901760
    %v6071 = vsub.f32 %v3380, %v6070
    %v6072 = vand.u32 %v6071, 4294901760
    %v6073 = vsub.f32 %v6071, %v6072
    %v6074 = vand.u32 %v6073, 4294901760
    %6075 = vmatpush.msra.mxu0 %v6074
    %v6076 = vand.u32 %v3346, 4294901760
    %v6077 = vsub.f32 %v3346, %v6076
    %v6078 = vand.u32 %v6077, 4294901760
    %v6079 = vsub.f32 %v6077, %v6078
    %v6080 = vand.u32 %v6079, 4294901760
    %6081 = vmatpush.msra.mxu0 %v6080
    %v6082 = vand.u32 %v3654, 4294901760
    %6083 = vmatmul.f32.gmra.mxu0 %v6082
    %v6084 = vpop.f32.mrf.mxu0
    %v6085 = vadd.f32 %v6029, %v6084
    %6086 = vdwg.mxu0
    %6087 = vmatpush.msra.mxu0 0.0
    %6088 = vmatpush.msra.mxu0 0.0
    %6089 = vmatpush.msra.mxu0 0.0
    %6090 = vmatpush.msra.mxu0 0.0
    %6091 = vmatpush.msra.mxu0 0.0
    %6092 = vmatpush.msra.mxu0 0.0
    %6093 = vmatpush.msra.mxu0 0.0
    %6094 = vmatpush.msra.mxu0 0.0
    %6095 = vmatpush.msra.mxu0 0.0
    %v6096 = vand.u32 %v3688, 4294901760
    %v6097 = vsub.f32 %v3688, %v6096
    %6098 = vmatpush.msra.mxu0 %v6097
    %v6099 = vand.u32 %v3516, 4294901760
    %v6100 = vsub.f32 %v3516, %v6099
    %6101 = vmatpush.msra.mxu0 %v6100
    %v6102 = vand.u32 %v3482, 4294901760
    %v6103 = vsub.f32 %v3482, %v6102
    %6104 = vmatpush.msra.mxu0 %v6103
    %v6105 = vand.u32 %v3448, 4294901760
    %v6106 = vsub.f32 %v3448, %v6105
    %6107 = vmatpush.msra.mxu0 %v6106
    %v6108 = vand.u32 %v3414, 4294901760
    %v6109 = vsub.f32 %v3414, %v6108
    %6110 = vmatpush.msra.mxu0 %v6109
    %v6111 = vand.u32 %v3380, 4294901760
    %v6112 = vsub.f32 %v3380, %v6111
    %6113 = vmatpush.msra.mxu0 %v6112
    %v6114 = vand.u32 %v3346, 4294901760
    %v6115 = vsub.f32 %v3346, %v6114
    %6116 = vmatpush.msra.mxu0 %v6115
    %v6117 = vand.u32 %v3654, 4294901760
    %v6118 = vsub.f32 %v3654, %v6117
    %6119 = vmatmul.f32.gmra.mxu0 %v6118
    %v6120 = vpop.f32.mrf.mxu0
    %v6121 = vadd.f32 %v6085, %v6120
    %6122 = vdwg.mxu0
    %6123 = vmatpush.msra.mxu0 0.0
    %6124 = vmatpush.msra.mxu0 0.0
    %6125 = vmatpush.msra.mxu0 0.0
    %6126 = vmatpush.msra.mxu0 0.0
    %6127 = vmatpush.msra.mxu0 0.0
    %6128 = vmatpush.msra.mxu0 0.0
    %6129 = vmatpush.msra.mxu0 0.0
    %6130 = vmatpush.msra.mxu0 0.0
    %6131 = vmatpush.msra.mxu0 0.0
    %v6132 = vand.u32 %v3688, 4294901760
    %6133 = vmatpush.msra.mxu0 %v6132
    %v6134 = vand.u32 %v3516, 4294901760
    %6135 = vmatpush.msra.mxu0 %v6134
    %v6136 = vand.u32 %v3482, 4294901760
    %6137 = vmatpush.msra.mxu0 %v6136
    %v6138 = vand.u32 %v3448, 4294901760
    %6139 = vmatpush.msra.mxu0 %v6138
    %v6140 = vand.u32 %v3414, 4294901760
    %6141 = vmatpush.msra.mxu0 %v6140
    %v6142 = vand.u32 %v3380, 4294901760
    %6143 = vmatpush.msra.mxu0 %v6142
    %v6144 = vand.u32 %v3346, 4294901760
    %6145 = vmatpush.msra.mxu0 %v6144
    %v6146 = vand.u32 %v3654, 4294901760
    %v6147 = vsub.f32 %v3654, %v6146
    %v6148 = vand.u32 %v6147, 4294901760
    %6149 = vmatmul.f32.gmra.mxu0 %v6148
    %v6150 = vpop.f32.mrf.mxu0
    %v6151 = vadd.f32 %v6121, %v6150
    %6152 = vdwg.mxu0
    %6153 = vmatpush.msra.mxu0 0.0
    %6154 = vmatpush.msra.mxu0 0.0
    %6155 = vmatpush.msra.mxu0 0.0
    %6156 = vmatpush.msra.mxu0 0.0
    %6157 = vmatpush.msra.mxu0 0.0
    %6158 = vmatpush.msra.mxu0 0.0
    %6159 = vmatpush.msra.mxu0 0.0
    %6160 = vmatpush.msra.mxu0 0.0
    %6161 = vmatpush.msra.mxu0 0.0
    %v6162 = vand.u32 %v3688, 4294901760
    %v6163 = vsub.f32 %v3688, %v6162
    %v6164 = vand.u32 %v6163, 4294901760
    %6165 = vmatpush.msra.mxu0 %v6164
    %v6166 = vand.u32 %v3516, 4294901760
    %v6167 = vsub.f32 %v3516, %v6166
    %v6168 = vand.u32 %v6167, 4294901760
    %6169 = vmatpush.msra.mxu0 %v6168
    %v6170 = vand.u32 %v3482, 4294901760
    %v6171 = vsub.f32 %v3482, %v6170
    %v6172 = vand.u32 %v6171, 4294901760
    %6173 = vmatpush.msra.mxu0 %v6172
    %v6174 = vand.u32 %v3448, 4294901760
    %v6175 = vsub.f32 %v3448, %v6174
    %v6176 = vand.u32 %v6175, 4294901760
    %6177 = vmatpush.msra.mxu0 %v6176
    %v6178 = vand.u32 %v3414, 4294901760
    %v6179 = vsub.f32 %v3414, %v6178
    %v6180 = vand.u32 %v6179, 4294901760
    %6181 = vmatpush.msra.mxu0 %v6180
    %v6182 = vand.u32 %v3380, 4294901760
    %v6183 = vsub.f32 %v3380, %v6182
    %v6184 = vand.u32 %v6183, 4294901760
    %6185 = vmatpush.msra.mxu0 %v6184
    %v6186 = vand.u32 %v3346, 4294901760
    %v6187 = vsub.f32 %v3346, %v6186
    %v6188 = vand.u32 %v6187, 4294901760
    %6189 = vmatpush.msra.mxu0 %v6188
    %v6190 = vand.u32 %v3654, 4294901760
    %6191 = vmatmul.f32.gmra.mxu0 %v6190
    %v6192 = vpop.f32.mrf.mxu0
    %v6193 = vadd.f32 %v6151, %v6192
    %6194 = vdwg.mxu0
    %6195 = vmatpush.msra.mxu0 0.0
    %6196 = vmatpush.msra.mxu0 0.0
    %6197 = vmatpush.msra.mxu0 0.0
    %6198 = vmatpush.msra.mxu0 0.0
    %6199 = vmatpush.msra.mxu0 0.0
    %6200 = vmatpush.msra.mxu0 0.0
    %6201 = vmatpush.msra.mxu0 0.0
    %6202 = vmatpush.msra.mxu0 0.0
    %6203 = vmatpush.msra.mxu0 0.0
    %v6204 = vand.u32 %v3688, 4294901760
    %6205 = vmatpush.msra.mxu0 %v6204
    %v6206 = vand.u32 %v3516, 4294901760
    %6207 = vmatpush.msra.mxu0 %v6206
    %v6208 = vand.u32 %v3482, 4294901760
    %6209 = vmatpush.msra.mxu0 %v6208
    %v6210 = vand.u32 %v3448, 4294901760
    %6211 = vmatpush.msra.mxu0 %v6210
    %v6212 = vand.u32 %v3414, 4294901760
    %6213 = vmatpush.msra.mxu0 %v6212
    %v6214 = vand.u32 %v3380, 4294901760
    %6215 = vmatpush.msra.mxu0 %v6214
    %v6216 = vand.u32 %v3346, 4294901760
    %6217 = vmatpush.msra.mxu0 %v6216
    %v6218 = vand.u32 %v3654, 4294901760
    %6219 = vmatmul.f32.gmra.mxu0 %v6218
    %v6220 = vpop.f32.mrf.mxu0
    %v6221 = vadd.f32 %v6193, %v6220
    %6222 = vdwg.mxu0
    %6223 = vmatpush.msra.mxu0 0.0
    %6224 = vmatpush.msra.mxu0 0.0
    %6225 = vmatpush.msra.mxu0 0.0
    %6226 = vmatpush.msra.mxu0 0.0
    %6227 = vmatpush.msra.mxu0 0.0
    %6228 = vmatpush.msra.mxu0 0.0
    %6229 = vmatpush.msra.mxu0 0.0
    %6230 = vmatpush.msra.mxu0 0.0
    %6231 = vmatpush.msra.mxu0 0.0
    %v6232 = vand.u32 %v3691, 4294901760
    %6233 = vmatpush.msra.mxu0 %v6232
    %v6234 = vand.u32 %v3517, 4294901760
    %6235 = vmatpush.msra.mxu0 %v6234
    %v6236 = vand.u32 %v3483, 4294901760
    %6237 = vmatpush.msra.mxu0 %v6236
    %v6238 = vand.u32 %v3449, 4294901760
    %6239 = vmatpush.msra.mxu0 %v6238
    %v6240 = vand.u32 %v3415, 4294901760
    %6241 = vmatpush.msra.mxu0 %v6240
    %v6242 = vand.u32 %v3381, 4294901760
    %6243 = vmatpush.msra.mxu0 %v6242
    %v6244 = vand.u32 %v3347, 4294901760
    %6245 = vmatpush.msra.mxu0 %v6244
    %v6246 = vand.u32 %v3654, 4294901760
    %v6247 = vsub.f32 %v3654, %v6246
    %v6248 = vand.u32 %v6247, 4294901760
    %v6249 = vsub.f32 %v6247, %v6248
    %v6250 = vand.u32 %v6249, 4294901760
    %6251 = vmatmul.f32.gmra.mxu0 %v6250
    %v6252 = vpop.f32.mrf.mxu0
    %v6253 = vadd.f32 %v3595, %v6252
    %6254 = vdwg.mxu0
    %6255 = vmatpush.msra.mxu0 0.0
    %6256 = vmatpush.msra.mxu0 0.0
    %6257 = vmatpush.msra.mxu0 0.0
    %6258 = vmatpush.msra.mxu0 0.0
    %6259 = vmatpush.msra.mxu0 0.0
    %6260 = vmatpush.msra.mxu0 0.0
    %6261 = vmatpush.msra.mxu0 0.0
    %6262 = vmatpush.msra.mxu0 0.0
    %6263 = vmatpush.msra.mxu0 0.0
    %v6264 = vand.u32 %v3691, 4294901760
    %v6265 = vsub.f32 %v3691, %v6264
    %v6266 = vand.u32 %v6265, 4294901760
    %v6267 = vsub.f32 %v6265, %v6266
    %v6268 = vand.u32 %v6267, 4294901760
    %6269 = vmatpush.msra.mxu0 %v6268
    %v6270 = vand.u32 %v3517, 4294901760
    %v6271 = vsub.f32 %v3517, %v6270
    %v6272 = vand.u32 %v6271, 4294901760
    %v6273 = vsub.f32 %v6271, %v6272
    %v6274 = vand.u32 %v6273, 4294901760
    %6275 = vmatpush.msra.mxu0 %v6274
    %v6276 = vand.u32 %v3483, 4294901760
    %v6277 = vsub.f32 %v3483, %v6276
    %v6278 = vand.u32 %v6277, 4294901760
    %v6279 = vsub.f32 %v6277, %v6278
    %v6280 = vand.u32 %v6279, 4294901760
    %6281 = vmatpush.msra.mxu0 %v6280
    %v6282 = vand.u32 %v3449, 4294901760
    %v6283 = vsub.f32 %v3449, %v6282
    %v6284 = vand.u32 %v6283, 4294901760
    %v6285 = vsub.f32 %v6283, %v6284
    %v6286 = vand.u32 %v6285, 4294901760
    %6287 = vmatpush.msra.mxu0 %v6286
    %v6288 = vand.u32 %v3415, 4294901760
    %v6289 = vsub.f32 %v3415, %v6288
    %v6290 = vand.u32 %v6289, 4294901760
    %v6291 = vsub.f32 %v6289, %v6290
    %v6292 = vand.u32 %v6291, 4294901760
    %6293 = vmatpush.msra.mxu0 %v6292
    %v6294 = vand.u32 %v3381, 4294901760
    %v6295 = vsub.f32 %v3381, %v6294
    %v6296 = vand.u32 %v6295, 4294901760
    %v6297 = vsub.f32 %v6295, %v6296
    %v6298 = vand.u32 %v6297, 4294901760
    %6299 = vmatpush.msra.mxu0 %v6298
    %v6300 = vand.u32 %v3347, 4294901760
    %v6301 = vsub.f32 %v3347, %v6300
    %v6302 = vand.u32 %v6301, 4294901760
    %v6303 = vsub.f32 %v6301, %v6302
    %v6304 = vand.u32 %v6303, 4294901760
    %6305 = vmatpush.msra.mxu0 %v6304
    %v6306 = vand.u32 %v3654, 4294901760
    %6307 = vmatmul.f32.gmra.mxu0 %v6306
    %v6308 = vpop.f32.mrf.mxu0
    %v6309 = vadd.f32 %v6253, %v6308
    %6310 = vdwg.mxu0
    %6311 = vmatpush.msra.mxu0 0.0
    %6312 = vmatpush.msra.mxu0 0.0
    %6313 = vmatpush.msra.mxu0 0.0
    %6314 = vmatpush.msra.mxu0 0.0
    %6315 = vmatpush.msra.mxu0 0.0
    %6316 = vmatpush.msra.mxu0 0.0
    %6317 = vmatpush.msra.mxu0 0.0
    %6318 = vmatpush.msra.mxu0 0.0
    %6319 = vmatpush.msra.mxu0 0.0
    %v6320 = vand.u32 %v3691, 4294901760
    %v6321 = vsub.f32 %v3691, %v6320
    %6322 = vmatpush.msra.mxu0 %v6321
    %v6323 = vand.u32 %v3517, 4294901760
    %v6324 = vsub.f32 %v3517, %v6323
    %6325 = vmatpush.msra.mxu0 %v6324
    %v6326 = vand.u32 %v3483, 4294901760
    %v6327 = vsub.f32 %v3483, %v6326
    %6328 = vmatpush.msra.mxu0 %v6327
    %v6329 = vand.u32 %v3449, 4294901760
    %v6330 = vsub.f32 %v3449, %v6329
    %6331 = vmatpush.msra.mxu0 %v6330
    %v6332 = vand.u32 %v3415, 4294901760
    %v6333 = vsub.f32 %v3415, %v6332
    %6334 = vmatpush.msra.mxu0 %v6333
    %v6335 = vand.u32 %v3381, 4294901760
    %v6336 = vsub.f32 %v3381, %v6335
    %6337 = vmatpush.msra.mxu0 %v6336
    %v6338 = vand.u32 %v3347, 4294901760
    %v6339 = vsub.f32 %v3347, %v6338
    %6340 = vmatpush.msra.mxu0 %v6339
    %v6341 = vand.u32 %v3654, 4294901760
    %v6342 = vsub.f32 %v3654, %v6341
    %6343 = vmatmul.f32.gmra.mxu0 %v6342
    %v6344 = vpop.f32.mrf.mxu0
    %v6345 = vadd.f32 %v6309, %v6344
    %6346 = vdwg.mxu0
    %6347 = vmatpush.msra.mxu0 0.0
    %6348 = vmatpush.msra.mxu0 0.0
    %6349 = vmatpush.msra.mxu0 0.0
    %6350 = vmatpush.msra.mxu0 0.0
    %6351 = vmatpush.msra.mxu0 0.0
    %6352 = vmatpush.msra.mxu0 0.0
    %6353 = vmatpush.msra.mxu0 0.0
    %6354 = vmatpush.msra.mxu0 0.0
    %6355 = vmatpush.msra.mxu0 0.0
    %v6356 = vand.u32 %v3691, 4294901760
    %6357 = vmatpush.msra.mxu0 %v6356
    %v6358 = vand.u32 %v3517, 4294901760
    %6359 = vmatpush.msra.mxu0 %v6358
    %v6360 = vand.u32 %v3483, 4294901760
    %6361 = vmatpush.msra.mxu0 %v6360
    %v6362 = vand.u32 %v3449, 4294901760
    %6363 = vmatpush.msra.mxu0 %v6362
    %v6364 = vand.u32 %v3415, 4294901760
    %6365 = vmatpush.msra.mxu0 %v6364
    %v6366 = vand.u32 %v3381, 4294901760
    %6367 = vmatpush.msra.mxu0 %v6366
    %v6368 = vand.u32 %v3347, 4294901760
    %6369 = vmatpush.msra.mxu0 %v6368
    %v6370 = vand.u32 %v3654, 4294901760
    %v6371 = vsub.f32 %v3654, %v6370
    %v6372 = vand.u32 %v6371, 4294901760
    %6373 = vmatmul.f32.gmra.mxu0 %v6372
    %v6374 = vpop.f32.mrf.mxu0
    %v6375 = vadd.f32 %v6345, %v6374
    %6376 = vdwg.mxu0
    %6377 = vmatpush.msra.mxu0 0.0
    %6378 = vmatpush.msra.mxu0 0.0
    %6379 = vmatpush.msra.mxu0 0.0
    %6380 = vmatpush.msra.mxu0 0.0
    %6381 = vmatpush.msra.mxu0 0.0
    %6382 = vmatpush.msra.mxu0 0.0
    %6383 = vmatpush.msra.mxu0 0.0
    %6384 = vmatpush.msra.mxu0 0.0
    %6385 = vmatpush.msra.mxu0 0.0
    %v6386 = vand.u32 %v3691, 4294901760
    %v6387 = vsub.f32 %v3691, %v6386
    %v6388 = vand.u32 %v6387, 4294901760
    %6389 = vmatpush.msra.mxu0 %v6388
    %v6390 = vand.u32 %v3517, 4294901760
    %v6391 = vsub.f32 %v3517, %v6390
    %v6392 = vand.u32 %v6391, 4294901760
    %6393 = vmatpush.msra.mxu0 %v6392
    %v6394 = vand.u32 %v3483, 4294901760
    %v6395 = vsub.f32 %v3483, %v6394
    %v6396 = vand.u32 %v6395, 4294901760
    %6397 = vmatpush.msra.mxu0 %v6396
    %v6398 = vand.u32 %v3449, 4294901760
    %v6399 = vsub.f32 %v3449, %v6398
    %v6400 = vand.u32 %v6399, 4294901760
    %6401 = vmatpush.msra.mxu0 %v6400
    %v6402 = vand.u32 %v3415, 4294901760
    %v6403 = vsub.f32 %v3415, %v6402
    %v6404 = vand.u32 %v6403, 4294901760
    %6405 = vmatpush.msra.mxu0 %v6404
    %v6406 = vand.u32 %v3381, 4294901760
    %v6407 = vsub.f32 %v3381, %v6406
    %v6408 = vand.u32 %v6407, 4294901760
    %6409 = vmatpush.msra.mxu0 %v6408
    %v6410 = vand.u32 %v3347, 4294901760
    %v6411 = vsub.f32 %v3347, %v6410
    %v6412 = vand.u32 %v6411, 4294901760
    %6413 = vmatpush.msra.mxu0 %v6412
    %v6414 = vand.u32 %v3654, 4294901760
    %6415 = vmatmul.f32.gmra.mxu0 %v6414
    %v6416 = vpop.f32.mrf.mxu0
    %v6417 = vadd.f32 %v6375, %v6416
    %6418 = vdwg.mxu0
    %6419 = vmatpush.msra.mxu0 0.0
    %6420 = vmatpush.msra.mxu0 0.0
    %6421 = vmatpush.msra.mxu0 0.0
    %6422 = vmatpush.msra.mxu0 0.0
    %6423 = vmatpush.msra.mxu0 0.0
    %6424 = vmatpush.msra.mxu0 0.0
    %6425 = vmatpush.msra.mxu0 0.0
    %6426 = vmatpush.msra.mxu0 0.0
    %6427 = vmatpush.msra.mxu0 0.0
    %v6428 = vand.u32 %v3691, 4294901760
    %6429 = vmatpush.msra.mxu0 %v6428
    %v6430 = vand.u32 %v3517, 4294901760
    %6431 = vmatpush.msra.mxu0 %v6430
    %v6432 = vand.u32 %v3483, 4294901760
    %6433 = vmatpush.msra.mxu0 %v6432
    %v6434 = vand.u32 %v3449, 4294901760
    %6435 = vmatpush.msra.mxu0 %v6434
    %v6436 = vand.u32 %v3415, 4294901760
    %6437 = vmatpush.msra.mxu0 %v6436
    %v6438 = vand.u32 %v3381, 4294901760
    %6439 = vmatpush.msra.mxu0 %v6438
    %v6440 = vand.u32 %v3347, 4294901760
    %6441 = vmatpush.msra.mxu0 %v6440
    %v6442 = vand.u32 %v3654, 4294901760
    %6443 = vmatmul.f32.gmra.mxu0 %v6442
    %v6444 = vpop.f32.mrf.mxu0
    %v6445 = vadd.f32 %v6417, %v6444
    %6446 = vdwg.mxu0
    %6447 = vmatpush.msra.mxu0 0.0
    %6448 = vmatpush.msra.mxu0 0.0
    %6449 = vmatpush.msra.mxu0 0.0
    %6450 = vmatpush.msra.mxu0 0.0
    %6451 = vmatpush.msra.mxu0 0.0
    %6452 = vmatpush.msra.mxu0 0.0
    %6453 = vmatpush.msra.mxu0 0.0
    %6454 = vmatpush.msra.mxu0 0.0
    %6455 = vmatpush.msra.mxu0 0.0
    %v6456 = vand.u32 %v3694, 4294901760
    %6457 = vmatpush.msra.mxu0 %v6456
    %v6458 = vand.u32 %v3518, 4294901760
    %6459 = vmatpush.msra.mxu0 %v6458
    %v6460 = vand.u32 %v3484, 4294901760
    %6461 = vmatpush.msra.mxu0 %v6460
    %v6462 = vand.u32 %v3450, 4294901760
    %6463 = vmatpush.msra.mxu0 %v6462
    %v6464 = vand.u32 %v3416, 4294901760
    %6465 = vmatpush.msra.mxu0 %v6464
    %v6466 = vand.u32 %v3382, 4294901760
    %6467 = vmatpush.msra.mxu0 %v6466
    %v6468 = vand.u32 %v3348, 4294901760
    %6469 = vmatpush.msra.mxu0 %v6468
    %v6470 = vand.u32 %v3654, 4294901760
    %v6471 = vsub.f32 %v3654, %v6470
    %v6472 = vand.u32 %v6471, 4294901760
    %v6473 = vsub.f32 %v6471, %v6472
    %v6474 = vand.u32 %v6473, 4294901760
    %6475 = vmatmul.f32.gmra.mxu0 %v6474
    %v6476 = vpop.f32.mrf.mxu0
    %v6477 = vadd.f32 %v3596, %v6476
    %6478 = vdwg.mxu0
    %6479 = vmatpush.msra.mxu0 0.0
    %6480 = vmatpush.msra.mxu0 0.0
    %6481 = vmatpush.msra.mxu0 0.0
    %6482 = vmatpush.msra.mxu0 0.0
    %6483 = vmatpush.msra.mxu0 0.0
    %6484 = vmatpush.msra.mxu0 0.0
    %6485 = vmatpush.msra.mxu0 0.0
    %6486 = vmatpush.msra.mxu0 0.0
    %6487 = vmatpush.msra.mxu0 0.0
    %v6488 = vand.u32 %v3694, 4294901760
    %v6489 = vsub.f32 %v3694, %v6488
    %v6490 = vand.u32 %v6489, 4294901760
    %v6491 = vsub.f32 %v6489, %v6490
    %v6492 = vand.u32 %v6491, 4294901760
    %6493 = vmatpush.msra.mxu0 %v6492
    %v6494 = vand.u32 %v3518, 4294901760
    %v6495 = vsub.f32 %v3518, %v6494
    %v6496 = vand.u32 %v6495, 4294901760
    %v6497 = vsub.f32 %v6495, %v6496
    %v6498 = vand.u32 %v6497, 4294901760
    %6499 = vmatpush.msra.mxu0 %v6498
    %v6500 = vand.u32 %v3484, 4294901760
    %v6501 = vsub.f32 %v3484, %v6500
    %v6502 = vand.u32 %v6501, 4294901760
    %v6503 = vsub.f32 %v6501, %v6502
    %v6504 = vand.u32 %v6503, 4294901760
    %6505 = vmatpush.msra.mxu0 %v6504
    %v6506 = vand.u32 %v3450, 4294901760
    %v6507 = vsub.f32 %v3450, %v6506
    %v6508 = vand.u32 %v6507, 4294901760
    %v6509 = vsub.f32 %v6507, %v6508
    %v6510 = vand.u32 %v6509, 4294901760
    %6511 = vmatpush.msra.mxu0 %v6510
    %v6512 = vand.u32 %v3416, 4294901760
    %v6513 = vsub.f32 %v3416, %v6512
    %v6514 = vand.u32 %v6513, 4294901760
    %v6515 = vsub.f32 %v6513, %v6514
    %v6516 = vand.u32 %v6515, 4294901760
    %6517 = vmatpush.msra.mxu0 %v6516
    %v6518 = vand.u32 %v3382, 4294901760
    %v6519 = vsub.f32 %v3382, %v6518
    %v6520 = vand.u32 %v6519, 4294901760
    %v6521 = vsub.f32 %v6519, %v6520
    %v6522 = vand.u32 %v6521, 4294901760
    %6523 = vmatpush.msra.mxu0 %v6522
    %v6524 = vand.u32 %v3348, 4294901760
    %v6525 = vsub.f32 %v3348, %v6524
    %v6526 = vand.u32 %v6525, 4294901760
    %v6527 = vsub.f32 %v6525, %v6526
    %v6528 = vand.u32 %v6527, 4294901760
    %6529 = vmatpush.msra.mxu0 %v6528
    %v6530 = vand.u32 %v3654, 4294901760
    %6531 = vmatmul.f32.gmra.mxu0 %v6530
    %v6532 = vpop.f32.mrf.mxu0
    %v6533 = vadd.f32 %v6477, %v6532
    %6534 = vdwg.mxu0
    %6535 = vmatpush.msra.mxu0 0.0
    %6536 = vmatpush.msra.mxu0 0.0
    %6537 = vmatpush.msra.mxu0 0.0
    %6538 = vmatpush.msra.mxu0 0.0
    %6539 = vmatpush.msra.mxu0 0.0
    %6540 = vmatpush.msra.mxu0 0.0
    %6541 = vmatpush.msra.mxu0 0.0
    %6542 = vmatpush.msra.mxu0 0.0
    %6543 = vmatpush.msra.mxu0 0.0
    %v6544 = vand.u32 %v3694, 4294901760
    %v6545 = vsub.f32 %v3694, %v6544
    %6546 = vmatpush.msra.mxu0 %v6545
    %v6547 = vand.u32 %v3518, 4294901760
    %v6548 = vsub.f32 %v3518, %v6547
    %6549 = vmatpush.msra.mxu0 %v6548
    %v6550 = vand.u32 %v3484, 4294901760
    %v6551 = vsub.f32 %v3484, %v6550
    %6552 = vmatpush.msra.mxu0 %v6551
    %v6553 = vand.u32 %v3450, 4294901760
    %v6554 = vsub.f32 %v3450, %v6553
    %6555 = vmatpush.msra.mxu0 %v6554
    %v6556 = vand.u32 %v3416, 4294901760
    %v6557 = vsub.f32 %v3416, %v6556
    %6558 = vmatpush.msra.mxu0 %v6557
    %v6559 = vand.u32 %v3382, 4294901760
    %v6560 = vsub.f32 %v3382, %v6559
    %6561 = vmatpush.msra.mxu0 %v6560
    %v6562 = vand.u32 %v3348, 4294901760
    %v6563 = vsub.f32 %v3348, %v6562
    %6564 = vmatpush.msra.mxu0 %v6563
    %v6565 = vand.u32 %v3654, 4294901760
    %v6566 = vsub.f32 %v3654, %v6565
    %6567 = vmatmul.f32.gmra.mxu0 %v6566
    %v6568 = vpop.f32.mrf.mxu0
    %v6569 = vadd.f32 %v6533, %v6568
    %6570 = vdwg.mxu0
    %6571 = vmatpush.msra.mxu0 0.0
    %6572 = vmatpush.msra.mxu0 0.0
    %6573 = vmatpush.msra.mxu0 0.0
    %6574 = vmatpush.msra.mxu0 0.0
    %6575 = vmatpush.msra.mxu0 0.0
    %6576 = vmatpush.msra.mxu0 0.0
    %6577 = vmatpush.msra.mxu0 0.0
    %6578 = vmatpush.msra.mxu0 0.0
    %6579 = vmatpush.msra.mxu0 0.0
    %v6580 = vand.u32 %v3694, 4294901760
    %6581 = vmatpush.msra.mxu0 %v6580
    %v6582 = vand.u32 %v3518, 4294901760
    %6583 = vmatpush.msra.mxu0 %v6582
    %v6584 = vand.u32 %v3484, 4294901760
    %6585 = vmatpush.msra.mxu0 %v6584
    %v6586 = vand.u32 %v3450, 4294901760
    %6587 = vmatpush.msra.mxu0 %v6586
    %v6588 = vand.u32 %v3416, 4294901760
    %6589 = vmatpush.msra.mxu0 %v6588
    %v6590 = vand.u32 %v3382, 4294901760
    %6591 = vmatpush.msra.mxu0 %v6590
    %v6592 = vand.u32 %v3348, 4294901760
    %6593 = vmatpush.msra.mxu0 %v6592
    %v6594 = vand.u32 %v3654, 4294901760
    %v6595 = vsub.f32 %v3654, %v6594
    %v6596 = vand.u32 %v6595, 4294901760
    %6597 = vmatmul.f32.gmra.mxu0 %v6596
    %v6598 = vpop.f32.mrf.mxu0
    %v6599 = vadd.f32 %v6569, %v6598
    %6600 = vdwg.mxu0
    %6601 = vmatpush.msra.mxu0 0.0
    %6602 = vmatpush.msra.mxu0 0.0
    %6603 = vmatpush.msra.mxu0 0.0
    %6604 = vmatpush.msra.mxu0 0.0
    %6605 = vmatpush.msra.mxu0 0.0
    %6606 = vmatpush.msra.mxu0 0.0
    %6607 = vmatpush.msra.mxu0 0.0
    %6608 = vmatpush.msra.mxu0 0.0
    %6609 = vmatpush.msra.mxu0 0.0
    %v6610 = vand.u32 %v3694, 4294901760
    %v6611 = vsub.f32 %v3694, %v6610
    %v6612 = vand.u32 %v6611, 4294901760
    %6613 = vmatpush.msra.mxu0 %v6612
    %v6614 = vand.u32 %v3518, 4294901760
    %v6615 = vsub.f32 %v3518, %v6614
    %v6616 = vand.u32 %v6615, 4294901760
    %6617 = vmatpush.msra.mxu0 %v6616
    %v6618 = vand.u32 %v3484, 4294901760
    %v6619 = vsub.f32 %v3484, %v6618
    %v6620 = vand.u32 %v6619, 4294901760
    %6621 = vmatpush.msra.mxu0 %v6620
    %v6622 = vand.u32 %v3450, 4294901760
    %v6623 = vsub.f32 %v3450, %v6622
    %v6624 = vand.u32 %v6623, 4294901760
    %6625 = vmatpush.msra.mxu0 %v6624
    %v6626 = vand.u32 %v3416, 4294901760
    %v6627 = vsub.f32 %v3416, %v6626
    %v6628 = vand.u32 %v6627, 4294901760
    %6629 = vmatpush.msra.mxu0 %v6628
    %v6630 = vand.u32 %v3382, 4294901760
    %v6631 = vsub.f32 %v3382, %v6630
    %v6632 = vand.u32 %v6631, 4294901760
    %6633 = vmatpush.msra.mxu0 %v6632
    %v6634 = vand.u32 %v3348, 4294901760
    %v6635 = vsub.f32 %v3348, %v6634
    %v6636 = vand.u32 %v6635, 4294901760
    %6637 = vmatpush.msra.mxu0 %v6636
    %v6638 = vand.u32 %v3654, 4294901760
    %6639 = vmatmul.f32.gmra.mxu0 %v6638
    %v6640 = vpop.f32.mrf.mxu0
    %v6641 = vadd.f32 %v6599, %v6640
    %6642 = vdwg.mxu0
    %6643 = vmatpush.msra.mxu0 0.0
    %6644 = vmatpush.msra.mxu0 0.0
    %6645 = vmatpush.msra.mxu0 0.0
    %6646 = vmatpush.msra.mxu0 0.0
    %6647 = vmatpush.msra.mxu0 0.0
    %6648 = vmatpush.msra.mxu0 0.0
    %6649 = vmatpush.msra.mxu0 0.0
    %6650 = vmatpush.msra.mxu0 0.0
    %6651 = vmatpush.msra.mxu0 0.0
    %v6652 = vand.u32 %v3694, 4294901760
    %6653 = vmatpush.msra.mxu0 %v6652
    %v6654 = vand.u32 %v3518, 4294901760
    %6655 = vmatpush.msra.mxu0 %v6654
    %v6656 = vand.u32 %v3484, 4294901760
    %6657 = vmatpush.msra.mxu0 %v6656
    %v6658 = vand.u32 %v3450, 4294901760
    %6659 = vmatpush.msra.mxu0 %v6658
    %v6660 = vand.u32 %v3416, 4294901760
    %6661 = vmatpush.msra.mxu0 %v6660
    %v6662 = vand.u32 %v3382, 4294901760
    %6663 = vmatpush.msra.mxu0 %v6662
    %v6664 = vand.u32 %v3348, 4294901760
    %6665 = vmatpush.msra.mxu0 %v6664
    %v6666 = vand.u32 %v3654, 4294901760
    %6667 = vmatmul.f32.gmra.mxu0 %v6666
    %v6668 = vpop.f32.mrf.mxu0
    %v6669 = vadd.f32 %v6641, %v6668
    %6670 = vdwg.mxu0
    %6671 = vmatpush.msra.mxu0 0.0
    %6672 = vmatpush.msra.mxu0 0.0
    %6673 = vmatpush.msra.mxu0 0.0
    %6674 = vmatpush.msra.mxu0 0.0
    %6675 = vmatpush.msra.mxu0 0.0
    %6676 = vmatpush.msra.mxu0 0.0
    %6677 = vmatpush.msra.mxu0 0.0
    %6678 = vmatpush.msra.mxu0 0.0
    %6679 = vmatpush.msra.mxu0 0.0
    %v6680 = vand.u32 %v3697, 4294901760
    %6681 = vmatpush.msra.mxu0 %v6680
    %v6682 = vand.u32 %v3519, 4294901760
    %6683 = vmatpush.msra.mxu0 %v6682
    %v6684 = vand.u32 %v3485, 4294901760
    %6685 = vmatpush.msra.mxu0 %v6684
    %v6686 = vand.u32 %v3451, 4294901760
    %6687 = vmatpush.msra.mxu0 %v6686
    %v6688 = vand.u32 %v3417, 4294901760
    %6689 = vmatpush.msra.mxu0 %v6688
    %v6690 = vand.u32 %v3383, 4294901760
    %6691 = vmatpush.msra.mxu0 %v6690
    %v6692 = vand.u32 %v3349, 4294901760
    %6693 = vmatpush.msra.mxu0 %v6692
    %v6694 = vand.u32 %v3654, 4294901760
    %v6695 = vsub.f32 %v3654, %v6694
    %v6696 = vand.u32 %v6695, 4294901760
    %v6697 = vsub.f32 %v6695, %v6696
    %v6698 = vand.u32 %v6697, 4294901760
    %6699 = vmatmul.f32.gmra.mxu0 %v6698
    %v6700 = vpop.f32.mrf.mxu0
    %v6701 = vadd.f32 %v3597, %v6700
    %6702 = vdwg.mxu0
    %6703 = vmatpush.msra.mxu0 0.0
    %6704 = vmatpush.msra.mxu0 0.0
    %6705 = vmatpush.msra.mxu0 0.0
    %6706 = vmatpush.msra.mxu0 0.0
    %6707 = vmatpush.msra.mxu0 0.0
    %6708 = vmatpush.msra.mxu0 0.0
    %6709 = vmatpush.msra.mxu0 0.0
    %6710 = vmatpush.msra.mxu0 0.0
    %6711 = vmatpush.msra.mxu0 0.0
    %v6712 = vand.u32 %v3697, 4294901760
    %v6713 = vsub.f32 %v3697, %v6712
    %v6714 = vand.u32 %v6713, 4294901760
    %v6715 = vsub.f32 %v6713, %v6714
    %v6716 = vand.u32 %v6715, 4294901760
    %6717 = vmatpush.msra.mxu0 %v6716
    %v6718 = vand.u32 %v3519, 4294901760
    %v6719 = vsub.f32 %v3519, %v6718
    %v6720 = vand.u32 %v6719, 4294901760
    %v6721 = vsub.f32 %v6719, %v6720
    %v6722 = vand.u32 %v6721, 4294901760
    %6723 = vmatpush.msra.mxu0 %v6722
    %v6724 = vand.u32 %v3485, 4294901760
    %v6725 = vsub.f32 %v3485, %v6724
    %v6726 = vand.u32 %v6725, 4294901760
    %v6727 = vsub.f32 %v6725, %v6726
    %v6728 = vand.u32 %v6727, 4294901760
    %6729 = vmatpush.msra.mxu0 %v6728
    %v6730 = vand.u32 %v3451, 4294901760
    %v6731 = vsub.f32 %v3451, %v6730
    %v6732 = vand.u32 %v6731, 4294901760
    %v6733 = vsub.f32 %v6731, %v6732
    %v6734 = vand.u32 %v6733, 4294901760
    %6735 = vmatpush.msra.mxu0 %v6734
    %v6736 = vand.u32 %v3417, 4294901760
    %v6737 = vsub.f32 %v3417, %v6736
    %v6738 = vand.u32 %v6737, 4294901760
    %v6739 = vsub.f32 %v6737, %v6738
    %v6740 = vand.u32 %v6739, 4294901760
    %6741 = vmatpush.msra.mxu0 %v6740
    %v6742 = vand.u32 %v3383, 4294901760
    %v6743 = vsub.f32 %v3383, %v6742
    %v6744 = vand.u32 %v6743, 4294901760
    %v6745 = vsub.f32 %v6743, %v6744
    %v6746 = vand.u32 %v6745, 4294901760
    %6747 = vmatpush.msra.mxu0 %v6746
    %v6748 = vand.u32 %v3349, 4294901760
    %v6749 = vsub.f32 %v3349, %v6748
    %v6750 = vand.u32 %v6749, 4294901760
    %v6751 = vsub.f32 %v6749, %v6750
    %v6752 = vand.u32 %v6751, 4294901760
    %6753 = vmatpush.msra.mxu0 %v6752
    %v6754 = vand.u32 %v3654, 4294901760
    %6755 = vmatmul.f32.gmra.mxu0 %v6754
    %v6756 = vpop.f32.mrf.mxu0
    %v6757 = vadd.f32 %v6701, %v6756
    %6758 = vdwg.mxu0
    %6759 = vmatpush.msra.mxu0 0.0
    %6760 = vmatpush.msra.mxu0 0.0
    %6761 = vmatpush.msra.mxu0 0.0
    %6762 = vmatpush.msra.mxu0 0.0
    %6763 = vmatpush.msra.mxu0 0.0
    %6764 = vmatpush.msra.mxu0 0.0
    %6765 = vmatpush.msra.mxu0 0.0
    %6766 = vmatpush.msra.mxu0 0.0
    %6767 = vmatpush.msra.mxu0 0.0
    %v6768 = vand.u32 %v3697, 4294901760
    %v6769 = vsub.f32 %v3697, %v6768
    %6770 = vmatpush.msra.mxu0 %v6769
    %v6771 = vand.u32 %v3519, 4294901760
    %v6772 = vsub.f32 %v3519, %v6771
    %6773 = vmatpush.msra.mxu0 %v6772
    %v6774 = vand.u32 %v3485, 4294901760
    %v6775 = vsub.f32 %v3485, %v6774
    %6776 = vmatpush.msra.mxu0 %v6775
    %v6777 = vand.u32 %v3451, 4294901760
    %v6778 = vsub.f32 %v3451, %v6777
    %6779 = vmatpush.msra.mxu0 %v6778
    %v6780 = vand.u32 %v3417, 4294901760
    %v6781 = vsub.f32 %v3417, %v6780
    %6782 = vmatpush.msra.mxu0 %v6781
    %v6783 = vand.u32 %v3383, 4294901760
    %v6784 = vsub.f32 %v3383, %v6783
    %6785 = vmatpush.msra.mxu0 %v6784
    %v6786 = vand.u32 %v3349, 4294901760
    %v6787 = vsub.f32 %v3349, %v6786
    %6788 = vmatpush.msra.mxu0 %v6787
    %v6789 = vand.u32 %v3654, 4294901760
    %v6790 = vsub.f32 %v3654, %v6789
    %6791 = vmatmul.f32.gmra.mxu0 %v6790
    %v6792 = vpop.f32.mrf.mxu0
    %v6793 = vadd.f32 %v6757, %v6792
    %6794 = vdwg.mxu0
    %6795 = vmatpush.msra.mxu0 0.0
    %6796 = vmatpush.msra.mxu0 0.0
    %6797 = vmatpush.msra.mxu0 0.0
    %6798 = vmatpush.msra.mxu0 0.0
    %6799 = vmatpush.msra.mxu0 0.0
    %6800 = vmatpush.msra.mxu0 0.0
    %6801 = vmatpush.msra.mxu0 0.0
    %6802 = vmatpush.msra.mxu0 0.0
    %6803 = vmatpush.msra.mxu0 0.0
    %v6804 = vand.u32 %v3697, 4294901760
    %6805 = vmatpush.msra.mxu0 %v6804
    %v6806 = vand.u32 %v3519, 4294901760
    %6807 = vmatpush.msra.mxu0 %v6806
    %v6808 = vand.u32 %v3485, 4294901760
    %6809 = vmatpush.msra.mxu0 %v6808
    %v6810 = vand.u32 %v3451, 4294901760
    %6811 = vmatpush.msra.mxu0 %v6810
    %v6812 = vand.u32 %v3417, 4294901760
    %6813 = vmatpush.msra.mxu0 %v6812
    %v6814 = vand.u32 %v3383, 4294901760
    %6815 = vmatpush.msra.mxu0 %v6814
    %v6816 = vand.u32 %v3349, 4294901760
    %6817 = vmatpush.msra.mxu0 %v6816
    %v6818 = vand.u32 %v3654, 4294901760
    %v6819 = vsub.f32 %v3654, %v6818
    %v6820 = vand.u32 %v6819, 4294901760
    %6821 = vmatmul.f32.gmra.mxu0 %v6820
    %v6822 = vpop.f32.mrf.mxu0
    %v6823 = vadd.f32 %v6793, %v6822
    %6824 = vdwg.mxu0
    %6825 = vmatpush.msra.mxu0 0.0
    %6826 = vmatpush.msra.mxu0 0.0
    %6827 = vmatpush.msra.mxu0 0.0
    %6828 = vmatpush.msra.mxu0 0.0
    %6829 = vmatpush.msra.mxu0 0.0
    %6830 = vmatpush.msra.mxu0 0.0
    %6831 = vmatpush.msra.mxu0 0.0
    %6832 = vmatpush.msra.mxu0 0.0
    %6833 = vmatpush.msra.mxu0 0.0
    %v6834 = vand.u32 %v3697, 4294901760
    %v6835 = vsub.f32 %v3697, %v6834
    %v6836 = vand.u32 %v6835, 4294901760
    %6837 = vmatpush.msra.mxu0 %v6836
    %v6838 = vand.u32 %v3519, 4294901760
    %v6839 = vsub.f32 %v3519, %v6838
    %v6840 = vand.u32 %v6839, 4294901760
    %6841 = vmatpush.msra.mxu0 %v6840
    %v6842 = vand.u32 %v3485, 4294901760
    %v6843 = vsub.f32 %v3485, %v6842
    %v6844 = vand.u32 %v6843, 4294901760
    %6845 = vmatpush.msra.mxu0 %v6844
    %v6846 = vand.u32 %v3451, 4294901760
    %v6847 = vsub.f32 %v3451, %v6846
    %v6848 = vand.u32 %v6847, 4294901760
    %6849 = vmatpush.msra.mxu0 %v6848
    %v6850 = vand.u32 %v3417, 4294901760
    %v6851 = vsub.f32 %v3417, %v6850
    %v6852 = vand.u32 %v6851, 4294901760
    %6853 = vmatpush.msra.mxu0 %v6852
    %v6854 = vand.u32 %v3383, 4294901760
    %v6855 = vsub.f32 %v3383, %v6854
    %v6856 = vand.u32 %v6855, 4294901760
    %6857 = vmatpush.msra.mxu0 %v6856
    %v6858 = vand.u32 %v3349, 4294901760
    %v6859 = vsub.f32 %v3349, %v6858
    %v6860 = vand.u32 %v6859, 4294901760
    %6861 = vmatpush.msra.mxu0 %v6860
    %v6862 = vand.u32 %v3654, 4294901760
    %6863 = vmatmul.f32.gmra.mxu0 %v6862
    %v6864 = vpop.f32.mrf.mxu0
    %v6865 = vadd.f32 %v6823, %v6864
    %6866 = vdwg.mxu0
    %6867 = vmatpush.msra.mxu0 0.0
    %6868 = vmatpush.msra.mxu0 0.0
    %6869 = vmatpush.msra.mxu0 0.0
    %6870 = vmatpush.msra.mxu0 0.0
    %6871 = vmatpush.msra.mxu0 0.0
    %6872 = vmatpush.msra.mxu0 0.0
    %6873 = vmatpush.msra.mxu0 0.0
    %6874 = vmatpush.msra.mxu0 0.0
    %6875 = vmatpush.msra.mxu0 0.0
    %v6876 = vand.u32 %v3697, 4294901760
    %6877 = vmatpush.msra.mxu0 %v6876
    %v6878 = vand.u32 %v3519, 4294901760
    %6879 = vmatpush.msra.mxu0 %v6878
    %v6880 = vand.u32 %v3485, 4294901760
    %6881 = vmatpush.msra.mxu0 %v6880
    %v6882 = vand.u32 %v3451, 4294901760
    %6883 = vmatpush.msra.mxu0 %v6882
    %v6884 = vand.u32 %v3417, 4294901760
    %6885 = vmatpush.msra.mxu0 %v6884
    %v6886 = vand.u32 %v3383, 4294901760
    %6887 = vmatpush.msra.mxu0 %v6886
    %v6888 = vand.u32 %v3349, 4294901760
    %6889 = vmatpush.msra.mxu0 %v6888
    %v6890 = vand.u32 %v3654, 4294901760
    %6891 = vmatmul.f32.gmra.mxu0 %v6890
    %v6892 = vpop.f32.mrf.mxu0
    %v6893 = vadd.f32 %v6865, %v6892
    %6894 = vdwg.mxu0
    %6895 = vmatpush.msra.mxu0 0.0
    %6896 = vmatpush.msra.mxu0 0.0
    %6897 = vmatpush.msra.mxu0 0.0
    %6898 = vmatpush.msra.mxu0 0.0
    %6899 = vmatpush.msra.mxu0 0.0
    %6900 = vmatpush.msra.mxu0 0.0
    %6901 = vmatpush.msra.mxu0 0.0
    %6902 = vmatpush.msra.mxu0 0.0
    %6903 = vmatpush.msra.mxu0 0.0
    %v6904 = vand.u32 %v3700, 4294901760
    %6905 = vmatpush.msra.mxu0 %v6904
    %v6906 = vand.u32 %v3520, 4294901760
    %6907 = vmatpush.msra.mxu0 %v6906
    %v6908 = vand.u32 %v3486, 4294901760
    %6909 = vmatpush.msra.mxu0 %v6908
    %v6910 = vand.u32 %v3452, 4294901760
    %6911 = vmatpush.msra.mxu0 %v6910
    %v6912 = vand.u32 %v3418, 4294901760
    %6913 = vmatpush.msra.mxu0 %v6912
    %v6914 = vand.u32 %v3384, 4294901760
    %6915 = vmatpush.msra.mxu0 %v6914
    %v6916 = vand.u32 %v3350, 4294901760
    %6917 = vmatpush.msra.mxu0 %v6916
    %v6918 = vand.u32 %v3654, 4294901760
    %v6919 = vsub.f32 %v3654, %v6918
    %v6920 = vand.u32 %v6919, 4294901760
    %v6921 = vsub.f32 %v6919, %v6920
    %v6922 = vand.u32 %v6921, 4294901760
    %6923 = vmatmul.f32.gmra.mxu0 %v6922
    %v6924 = vpop.f32.mrf.mxu0
    %v6925 = vadd.f32 %v3598, %v6924
    %6926 = vdwg.mxu0
    %6927 = vmatpush.msra.mxu0 0.0
    %6928 = vmatpush.msra.mxu0 0.0
    %6929 = vmatpush.msra.mxu0 0.0
    %6930 = vmatpush.msra.mxu0 0.0
    %6931 = vmatpush.msra.mxu0 0.0
    %6932 = vmatpush.msra.mxu0 0.0
    %6933 = vmatpush.msra.mxu0 0.0
    %6934 = vmatpush.msra.mxu0 0.0
    %6935 = vmatpush.msra.mxu0 0.0
    %v6936 = vand.u32 %v3700, 4294901760
    %v6937 = vsub.f32 %v3700, %v6936
    %v6938 = vand.u32 %v6937, 4294901760
    %v6939 = vsub.f32 %v6937, %v6938
    %v6940 = vand.u32 %v6939, 4294901760
    %6941 = vmatpush.msra.mxu0 %v6940
    %v6942 = vand.u32 %v3520, 4294901760
    %v6943 = vsub.f32 %v3520, %v6942
    %v6944 = vand.u32 %v6943, 4294901760
    %v6945 = vsub.f32 %v6943, %v6944
    %v6946 = vand.u32 %v6945, 4294901760
    %6947 = vmatpush.msra.mxu0 %v6946
    %v6948 = vand.u32 %v3486, 4294901760
    %v6949 = vsub.f32 %v3486, %v6948
    %v6950 = vand.u32 %v6949, 4294901760
    %v6951 = vsub.f32 %v6949, %v6950
    %v6952 = vand.u32 %v6951, 4294901760
    %6953 = vmatpush.msra.mxu0 %v6952
    %v6954 = vand.u32 %v3452, 4294901760
    %v6955 = vsub.f32 %v3452, %v6954
    %v6956 = vand.u32 %v6955, 4294901760
    %v6957 = vsub.f32 %v6955, %v6956
    %v6958 = vand.u32 %v6957, 4294901760
    %6959 = vmatpush.msra.mxu0 %v6958
    %v6960 = vand.u32 %v3418, 4294901760
    %v6961 = vsub.f32 %v3418, %v6960
    %v6962 = vand.u32 %v6961, 4294901760
    %v6963 = vsub.f32 %v6961, %v6962
    %v6964 = vand.u32 %v6963, 4294901760
    %6965 = vmatpush.msra.mxu0 %v6964
    %v6966 = vand.u32 %v3384, 4294901760
    %v6967 = vsub.f32 %v3384, %v6966
    %v6968 = vand.u32 %v6967, 4294901760
    %v6969 = vsub.f32 %v6967, %v6968
    %v6970 = vand.u32 %v6969, 4294901760
    %6971 = vmatpush.msra.mxu0 %v6970
    %v6972 = vand.u32 %v3350, 4294901760
    %v6973 = vsub.f32 %v3350, %v6972
    %v6974 = vand.u32 %v6973, 4294901760
    %v6975 = vsub.f32 %v6973, %v6974
    %v6976 = vand.u32 %v6975, 4294901760
    %6977 = vmatpush.msra.mxu0 %v6976
    %v6978 = vand.u32 %v3654, 4294901760
    %6979 = vmatmul.f32.gmra.mxu0 %v6978
    %v6980 = vpop.f32.mrf.mxu0
    %v6981 = vadd.f32 %v6925, %v6980
    %6982 = vdwg.mxu0
    %6983 = vmatpush.msra.mxu0 0.0
    %6984 = vmatpush.msra.mxu0 0.0
    %6985 = vmatpush.msra.mxu0 0.0
    %6986 = vmatpush.msra.mxu0 0.0
    %6987 = vmatpush.msra.mxu0 0.0
    %6988 = vmatpush.msra.mxu0 0.0
    %6989 = vmatpush.msra.mxu0 0.0
    %6990 = vmatpush.msra.mxu0 0.0
    %6991 = vmatpush.msra.mxu0 0.0
    %v6992 = vand.u32 %v3700, 4294901760
    %v6993 = vsub.f32 %v3700, %v6992
    %6994 = vmatpush.msra.mxu0 %v6993
    %v6995 = vand.u32 %v3520, 4294901760
    %v6996 = vsub.f32 %v3520, %v6995
    %6997 = vmatpush.msra.mxu0 %v6996
    %v6998 = vand.u32 %v3486, 4294901760
    %v6999 = vsub.f32 %v3486, %v6998
    %7000 = vmatpush.msra.mxu0 %v6999
    %v7001 = vand.u32 %v3452, 4294901760
    %v7002 = vsub.f32 %v3452, %v7001
    %7003 = vmatpush.msra.mxu0 %v7002
    %v7004 = vand.u32 %v3418, 4294901760
    %v7005 = vsub.f32 %v3418, %v7004
    %7006 = vmatpush.msra.mxu0 %v7005
    %v7007 = vand.u32 %v3384, 4294901760
    %v7008 = vsub.f32 %v3384, %v7007
    %7009 = vmatpush.msra.mxu0 %v7008
    %v7010 = vand.u32 %v3350, 4294901760
    %v7011 = vsub.f32 %v3350, %v7010
    %7012 = vmatpush.msra.mxu0 %v7011
    %v7013 = vand.u32 %v3654, 4294901760
    %v7014 = vsub.f32 %v3654, %v7013
    %7015 = vmatmul.f32.gmra.mxu0 %v7014
    %v7016 = vpop.f32.mrf.mxu0
    %v7017 = vadd.f32 %v6981, %v7016
    %7018 = vdwg.mxu0
    %7019 = vmatpush.msra.mxu0 0.0
    %7020 = vmatpush.msra.mxu0 0.0
    %7021 = vmatpush.msra.mxu0 0.0
    %7022 = vmatpush.msra.mxu0 0.0
    %7023 = vmatpush.msra.mxu0 0.0
    %7024 = vmatpush.msra.mxu0 0.0
    %7025 = vmatpush.msra.mxu0 0.0
    %7026 = vmatpush.msra.mxu0 0.0
    %7027 = vmatpush.msra.mxu0 0.0
    %v7028 = vand.u32 %v3700, 4294901760
    %7029 = vmatpush.msra.mxu0 %v7028
    %v7030 = vand.u32 %v3520, 4294901760
    %7031 = vmatpush.msra.mxu0 %v7030
    %v7032 = vand.u32 %v3486, 4294901760
    %7033 = vmatpush.msra.mxu0 %v7032
    %v7034 = vand.u32 %v3452, 4294901760
    %7035 = vmatpush.msra.mxu0 %v7034
    %v7036 = vand.u32 %v3418, 4294901760
    %7037 = vmatpush.msra.mxu0 %v7036
    %v7038 = vand.u32 %v3384, 4294901760
    %7039 = vmatpush.msra.mxu0 %v7038
    %v7040 = vand.u32 %v3350, 4294901760
    %7041 = vmatpush.msra.mxu0 %v7040
    %v7042 = vand.u32 %v3654, 4294901760
    %v7043 = vsub.f32 %v3654, %v7042
    %v7044 = vand.u32 %v7043, 4294901760
    %7045 = vmatmul.f32.gmra.mxu0 %v7044
    %v7046 = vpop.f32.mrf.mxu0
    %v7047 = vadd.f32 %v7017, %v7046
    %7048 = vdwg.mxu0
    %7049 = vmatpush.msra.mxu0 0.0
    %7050 = vmatpush.msra.mxu0 0.0
    %7051 = vmatpush.msra.mxu0 0.0
    %7052 = vmatpush.msra.mxu0 0.0
    %7053 = vmatpush.msra.mxu0 0.0
    %7054 = vmatpush.msra.mxu0 0.0
    %7055 = vmatpush.msra.mxu0 0.0
    %7056 = vmatpush.msra.mxu0 0.0
    %7057 = vmatpush.msra.mxu0 0.0
    %v7058 = vand.u32 %v3700, 4294901760
    %v7059 = vsub.f32 %v3700, %v7058
    %v7060 = vand.u32 %v7059, 4294901760
    %7061 = vmatpush.msra.mxu0 %v7060
    %v7062 = vand.u32 %v3520, 4294901760
    %v7063 = vsub.f32 %v3520, %v7062
    %v7064 = vand.u32 %v7063, 4294901760
    %7065 = vmatpush.msra.mxu0 %v7064
    %v7066 = vand.u32 %v3486, 4294901760
    %v7067 = vsub.f32 %v3486, %v7066
    %v7068 = vand.u32 %v7067, 4294901760
    %7069 = vmatpush.msra.mxu0 %v7068
    %v7070 = vand.u32 %v3452, 4294901760
    %v7071 = vsub.f32 %v3452, %v7070
    %v7072 = vand.u32 %v7071, 4294901760
    %7073 = vmatpush.msra.mxu0 %v7072
    %v7074 = vand.u32 %v3418, 4294901760
    %v7075 = vsub.f32 %v3418, %v7074
    %v7076 = vand.u32 %v7075, 4294901760
    %7077 = vmatpush.msra.mxu0 %v7076
    %v7078 = vand.u32 %v3384, 4294901760
    %v7079 = vsub.f32 %v3384, %v7078
    %v7080 = vand.u32 %v7079, 4294901760
    %7081 = vmatpush.msra.mxu0 %v7080
    %v7082 = vand.u32 %v3350, 4294901760
    %v7083 = vsub.f32 %v3350, %v7082
    %v7084 = vand.u32 %v7083, 4294901760
    %7085 = vmatpush.msra.mxu0 %v7084
    %v7086 = vand.u32 %v3654, 4294901760
    %7087 = vmatmul.f32.gmra.mxu0 %v7086
    %v7088 = vpop.f32.mrf.mxu0
    %v7089 = vadd.f32 %v7047, %v7088
    %7090 = vdwg.mxu0
    %7091 = vmatpush.msra.mxu0 0.0
    %7092 = vmatpush.msra.mxu0 0.0
    %7093 = vmatpush.msra.mxu0 0.0
    %7094 = vmatpush.msra.mxu0 0.0
    %7095 = vmatpush.msra.mxu0 0.0
    %7096 = vmatpush.msra.mxu0 0.0
    %7097 = vmatpush.msra.mxu0 0.0
    %7098 = vmatpush.msra.mxu0 0.0
    %7099 = vmatpush.msra.mxu0 0.0
    %v7100 = vand.u32 %v3700, 4294901760
    %7101 = vmatpush.msra.mxu0 %v7100
    %v7102 = vand.u32 %v3520, 4294901760
    %7103 = vmatpush.msra.mxu0 %v7102
    %v7104 = vand.u32 %v3486, 4294901760
    %7105 = vmatpush.msra.mxu0 %v7104
    %v7106 = vand.u32 %v3452, 4294901760
    %7107 = vmatpush.msra.mxu0 %v7106
    %v7108 = vand.u32 %v3418, 4294901760
    %7109 = vmatpush.msra.mxu0 %v7108
    %v7110 = vand.u32 %v3384, 4294901760
    %7111 = vmatpush.msra.mxu0 %v7110
    %v7112 = vand.u32 %v3350, 4294901760
    %7113 = vmatpush.msra.mxu0 %v7112
    %v7114 = vand.u32 %v3654, 4294901760
    %7115 = vmatmul.f32.gmra.mxu0 %v7114
    %v7116 = vpop.f32.mrf.mxu0
    %v7117 = vadd.f32 %v7089, %v7116
    %7118 = vdwg.mxu0
    %7119 = vmatpush.msra.mxu0 0.0
    %7120 = vmatpush.msra.mxu0 0.0
    %7121 = vmatpush.msra.mxu0 0.0
    %7122 = vmatpush.msra.mxu0 0.0
    %7123 = vmatpush.msra.mxu0 0.0
    %7124 = vmatpush.msra.mxu0 0.0
    %7125 = vmatpush.msra.mxu0 0.0
    %7126 = vmatpush.msra.mxu0 0.0
    %7127 = vmatpush.msra.mxu0 0.0
    %v7128 = vand.u32 %v3703, 4294901760
    %7129 = vmatpush.msra.mxu0 %v7128
    %v7130 = vand.u32 %v3521, 4294901760
    %7131 = vmatpush.msra.mxu0 %v7130
    %v7132 = vand.u32 %v3487, 4294901760
    %7133 = vmatpush.msra.mxu0 %v7132
    %v7134 = vand.u32 %v3453, 4294901760
    %7135 = vmatpush.msra.mxu0 %v7134
    %v7136 = vand.u32 %v3419, 4294901760
    %7137 = vmatpush.msra.mxu0 %v7136
    %v7138 = vand.u32 %v3385, 4294901760
    %7139 = vmatpush.msra.mxu0 %v7138
    %v7140 = vand.u32 %v3351, 4294901760
    %7141 = vmatpush.msra.mxu0 %v7140
    %v7142 = vand.u32 %v3654, 4294901760
    %v7143 = vsub.f32 %v3654, %v7142
    %v7144 = vand.u32 %v7143, 4294901760
    %v7145 = vsub.f32 %v7143, %v7144
    %v7146 = vand.u32 %v7145, 4294901760
    %7147 = vmatmul.f32.gmra.mxu0 %v7146
    %v7148 = vpop.f32.mrf.mxu0
    %v7149 = vadd.f32 %v3599, %v7148
    %7150 = vdwg.mxu0
    %7151 = vmatpush.msra.mxu0 0.0
    %7152 = vmatpush.msra.mxu0 0.0
    %7153 = vmatpush.msra.mxu0 0.0
    %7154 = vmatpush.msra.mxu0 0.0
    %7155 = vmatpush.msra.mxu0 0.0
    %7156 = vmatpush.msra.mxu0 0.0
    %7157 = vmatpush.msra.mxu0 0.0
    %7158 = vmatpush.msra.mxu0 0.0
    %7159 = vmatpush.msra.mxu0 0.0
    %v7160 = vand.u32 %v3703, 4294901760
    %v7161 = vsub.f32 %v3703, %v7160
    %v7162 = vand.u32 %v7161, 4294901760
    %v7163 = vsub.f32 %v7161, %v7162
    %v7164 = vand.u32 %v7163, 4294901760
    %7165 = vmatpush.msra.mxu0 %v7164
    %v7166 = vand.u32 %v3521, 4294901760
    %v7167 = vsub.f32 %v3521, %v7166
    %v7168 = vand.u32 %v7167, 4294901760
    %v7169 = vsub.f32 %v7167, %v7168
    %v7170 = vand.u32 %v7169, 4294901760
    %7171 = vmatpush.msra.mxu0 %v7170
    %v7172 = vand.u32 %v3487, 4294901760
    %v7173 = vsub.f32 %v3487, %v7172
    %v7174 = vand.u32 %v7173, 4294901760
    %v7175 = vsub.f32 %v7173, %v7174
    %v7176 = vand.u32 %v7175, 4294901760
    %7177 = vmatpush.msra.mxu0 %v7176
    %v7178 = vand.u32 %v3453, 4294901760
    %v7179 = vsub.f32 %v3453, %v7178
    %v7180 = vand.u32 %v7179, 4294901760
    %v7181 = vsub.f32 %v7179, %v7180
    %v7182 = vand.u32 %v7181, 4294901760
    %7183 = vmatpush.msra.mxu0 %v7182
    %v7184 = vand.u32 %v3419, 4294901760
    %v7185 = vsub.f32 %v3419, %v7184
    %v7186 = vand.u32 %v7185, 4294901760
    %v7187 = vsub.f32 %v7185, %v7186
    %v7188 = vand.u32 %v7187, 4294901760
    %7189 = vmatpush.msra.mxu0 %v7188
    %v7190 = vand.u32 %v3385, 4294901760
    %v7191 = vsub.f32 %v3385, %v7190
    %v7192 = vand.u32 %v7191, 4294901760
    %v7193 = vsub.f32 %v7191, %v7192
    %v7194 = vand.u32 %v7193, 4294901760
    %7195 = vmatpush.msra.mxu0 %v7194
    %v7196 = vand.u32 %v3351, 4294901760
    %v7197 = vsub.f32 %v3351, %v7196
    %v7198 = vand.u32 %v7197, 4294901760
    %v7199 = vsub.f32 %v7197, %v7198
    %v7200 = vand.u32 %v7199, 4294901760
    %7201 = vmatpush.msra.mxu0 %v7200
    %v7202 = vand.u32 %v3654, 4294901760
    %7203 = vmatmul.f32.gmra.mxu0 %v7202
    %v7204 = vpop.f32.mrf.mxu0
    %v7205 = vadd.f32 %v7149, %v7204
    %7206 = vdwg.mxu0
    %7207 = vmatpush.msra.mxu0 0.0
    %7208 = vmatpush.msra.mxu0 0.0
    %7209 = vmatpush.msra.mxu0 0.0
    %7210 = vmatpush.msra.mxu0 0.0
    %7211 = vmatpush.msra.mxu0 0.0
    %7212 = vmatpush.msra.mxu0 0.0
    %7213 = vmatpush.msra.mxu0 0.0
    %7214 = vmatpush.msra.mxu0 0.0
    %7215 = vmatpush.msra.mxu0 0.0
    %v7216 = vand.u32 %v3703, 4294901760
    %v7217 = vsub.f32 %v3703, %v7216
    %7218 = vmatpush.msra.mxu0 %v7217
    %v7219 = vand.u32 %v3521, 4294901760
    %v7220 = vsub.f32 %v3521, %v7219
    %7221 = vmatpush.msra.mxu0 %v7220
    %v7222 = vand.u32 %v3487, 4294901760
    %v7223 = vsub.f32 %v3487, %v7222
    %7224 = vmatpush.msra.mxu0 %v7223
    %v7225 = vand.u32 %v3453, 4294901760
    %v7226 = vsub.f32 %v3453, %v7225
    %7227 = vmatpush.msra.mxu0 %v7226
    %v7228 = vand.u32 %v3419, 4294901760
    %v7229 = vsub.f32 %v3419, %v7228
    %7230 = vmatpush.msra.mxu0 %v7229
    %v7231 = vand.u32 %v3385, 4294901760
    %v7232 = vsub.f32 %v3385, %v7231
    %7233 = vmatpush.msra.mxu0 %v7232
    %v7234 = vand.u32 %v3351, 4294901760
    %v7235 = vsub.f32 %v3351, %v7234
    %7236 = vmatpush.msra.mxu0 %v7235
    %v7237 = vand.u32 %v3654, 4294901760
    %v7238 = vsub.f32 %v3654, %v7237
    %7239 = vmatmul.f32.gmra.mxu0 %v7238
    %v7240 = vpop.f32.mrf.mxu0
    %v7241 = vadd.f32 %v7205, %v7240
    %7242 = vdwg.mxu0
    %7243 = vmatpush.msra.mxu0 0.0
    %7244 = vmatpush.msra.mxu0 0.0
    %7245 = vmatpush.msra.mxu0 0.0
    %7246 = vmatpush.msra.mxu0 0.0
    %7247 = vmatpush.msra.mxu0 0.0
    %7248 = vmatpush.msra.mxu0 0.0
    %7249 = vmatpush.msra.mxu0 0.0
    %7250 = vmatpush.msra.mxu0 0.0
    %7251 = vmatpush.msra.mxu0 0.0
    %v7252 = vand.u32 %v3703, 4294901760
    %7253 = vmatpush.msra.mxu0 %v7252
    %v7254 = vand.u32 %v3521, 4294901760
    %7255 = vmatpush.msra.mxu0 %v7254
    %v7256 = vand.u32 %v3487, 4294901760
    %7257 = vmatpush.msra.mxu0 %v7256
    %v7258 = vand.u32 %v3453, 4294901760
    %7259 = vmatpush.msra.mxu0 %v7258
    %v7260 = vand.u32 %v3419, 4294901760
    %7261 = vmatpush.msra.mxu0 %v7260
    %v7262 = vand.u32 %v3385, 4294901760
    %7263 = vmatpush.msra.mxu0 %v7262
    %v7264 = vand.u32 %v3351, 4294901760
    %7265 = vmatpush.msra.mxu0 %v7264
    %v7266 = vand.u32 %v3654, 4294901760
    %v7267 = vsub.f32 %v3654, %v7266
    %v7268 = vand.u32 %v7267, 4294901760
    %7269 = vmatmul.f32.gmra.mxu0 %v7268
    %v7270 = vpop.f32.mrf.mxu0
    %v7271 = vadd.f32 %v7241, %v7270
    %7272 = vdwg.mxu0
    %7273 = vmatpush.msra.mxu0 0.0
    %7274 = vmatpush.msra.mxu0 0.0
    %7275 = vmatpush.msra.mxu0 0.0
    %7276 = vmatpush.msra.mxu0 0.0
    %7277 = vmatpush.msra.mxu0 0.0
    %7278 = vmatpush.msra.mxu0 0.0
    %7279 = vmatpush.msra.mxu0 0.0
    %7280 = vmatpush.msra.mxu0 0.0
    %7281 = vmatpush.msra.mxu0 0.0
    %v7282 = vand.u32 %v3703, 4294901760
    %v7283 = vsub.f32 %v3703, %v7282
    %v7284 = vand.u32 %v7283, 4294901760
    %7285 = vmatpush.msra.mxu0 %v7284
    %v7286 = vand.u32 %v3521, 4294901760
    %v7287 = vsub.f32 %v3521, %v7286
    %v7288 = vand.u32 %v7287, 4294901760
    %7289 = vmatpush.msra.mxu0 %v7288
    %v7290 = vand.u32 %v3487, 4294901760
    %v7291 = vsub.f32 %v3487, %v7290
    %v7292 = vand.u32 %v7291, 4294901760
    %7293 = vmatpush.msra.mxu0 %v7292
    %v7294 = vand.u32 %v3453, 4294901760
    %v7295 = vsub.f32 %v3453, %v7294
    %v7296 = vand.u32 %v7295, 4294901760
    %7297 = vmatpush.msra.mxu0 %v7296
    %v7298 = vand.u32 %v3419, 4294901760
    %v7299 = vsub.f32 %v3419, %v7298
    %v7300 = vand.u32 %v7299, 4294901760
    %7301 = vmatpush.msra.mxu0 %v7300
    %v7302 = vand.u32 %v3385, 4294901760
    %v7303 = vsub.f32 %v3385, %v7302
    %v7304 = vand.u32 %v7303, 4294901760
    %7305 = vmatpush.msra.mxu0 %v7304
    %v7306 = vand.u32 %v3351, 4294901760
    %v7307 = vsub.f32 %v3351, %v7306
    %v7308 = vand.u32 %v7307, 4294901760
    %7309 = vmatpush.msra.mxu0 %v7308
    %v7310 = vand.u32 %v3654, 4294901760
    %7311 = vmatmul.f32.gmra.mxu0 %v7310
    %v7312 = vpop.f32.mrf.mxu0
    %v7313 = vadd.f32 %v7271, %v7312
    %7314 = vdwg.mxu0
    %7315 = vmatpush.msra.mxu0 0.0
    %7316 = vmatpush.msra.mxu0 0.0
    %7317 = vmatpush.msra.mxu0 0.0
    %7318 = vmatpush.msra.mxu0 0.0
    %7319 = vmatpush.msra.mxu0 0.0
    %7320 = vmatpush.msra.mxu0 0.0
    %7321 = vmatpush.msra.mxu0 0.0
    %7322 = vmatpush.msra.mxu0 0.0
    %7323 = vmatpush.msra.mxu0 0.0
    %v7324 = vand.u32 %v3703, 4294901760
    %7325 = vmatpush.msra.mxu0 %v7324
    %v7326 = vand.u32 %v3521, 4294901760
    %7327 = vmatpush.msra.mxu0 %v7326
    %v7328 = vand.u32 %v3487, 4294901760
    %7329 = vmatpush.msra.mxu0 %v7328
    %v7330 = vand.u32 %v3453, 4294901760
    %7331 = vmatpush.msra.mxu0 %v7330
    %v7332 = vand.u32 %v3419, 4294901760
    %7333 = vmatpush.msra.mxu0 %v7332
    %v7334 = vand.u32 %v3385, 4294901760
    %7335 = vmatpush.msra.mxu0 %v7334
    %v7336 = vand.u32 %v3351, 4294901760
    %7337 = vmatpush.msra.mxu0 %v7336
    %v7338 = vand.u32 %v3654, 4294901760
    %7339 = vmatmul.f32.gmra.mxu0 %v7338
    %v7340 = vpop.f32.mrf.mxu0
    %v7341 = vadd.f32 %v7313, %v7340
    %7342 = vdwg.mxu0
    %7343 = vmatpush.msra.mxu0 0.0
    %7344 = vmatpush.msra.mxu0 0.0
    %7345 = vmatpush.msra.mxu0 0.0
    %7346 = vmatpush.msra.mxu0 0.0
    %7347 = vmatpush.msra.mxu0 0.0
    %7348 = vmatpush.msra.mxu0 0.0
    %7349 = vmatpush.msra.mxu0 0.0
    %7350 = vmatpush.msra.mxu0 0.0
    %7351 = vmatpush.msra.mxu0 0.0
    %v7352 = vand.u32 %v3706, 4294901760
    %7353 = vmatpush.msra.mxu0 %v7352
    %v7354 = vand.u32 %v3522, 4294901760
    %7355 = vmatpush.msra.mxu0 %v7354
    %v7356 = vand.u32 %v3488, 4294901760
    %7357 = vmatpush.msra.mxu0 %v7356
    %v7358 = vand.u32 %v3454, 4294901760
    %7359 = vmatpush.msra.mxu0 %v7358
    %v7360 = vand.u32 %v3420, 4294901760
    %7361 = vmatpush.msra.mxu0 %v7360
    %v7362 = vand.u32 %v3386, 4294901760
    %7363 = vmatpush.msra.mxu0 %v7362
    %v7364 = vand.u32 %v3352, 4294901760
    %7365 = vmatpush.msra.mxu0 %v7364
    %v7366 = vand.u32 %v3654, 4294901760
    %v7367 = vsub.f32 %v3654, %v7366
    %v7368 = vand.u32 %v7367, 4294901760
    %v7369 = vsub.f32 %v7367, %v7368
    %v7370 = vand.u32 %v7369, 4294901760
    %7371 = vmatmul.f32.gmra.mxu0 %v7370
    %v7372 = vpop.f32.mrf.mxu0
    %v7373 = vadd.f32 %v3600, %v7372
    %7374 = vdwg.mxu0
    %7375 = vmatpush.msra.mxu0 0.0
    %7376 = vmatpush.msra.mxu0 0.0
    %7377 = vmatpush.msra.mxu0 0.0
    %7378 = vmatpush.msra.mxu0 0.0
    %7379 = vmatpush.msra.mxu0 0.0
    %7380 = vmatpush.msra.mxu0 0.0
    %7381 = vmatpush.msra.mxu0 0.0
    %7382 = vmatpush.msra.mxu0 0.0
    %7383 = vmatpush.msra.mxu0 0.0
    %v7384 = vand.u32 %v3706, 4294901760
    %v7385 = vsub.f32 %v3706, %v7384
    %v7386 = vand.u32 %v7385, 4294901760
    %v7387 = vsub.f32 %v7385, %v7386
    %v7388 = vand.u32 %v7387, 4294901760
    %7389 = vmatpush.msra.mxu0 %v7388
    %v7390 = vand.u32 %v3522, 4294901760
    %v7391 = vsub.f32 %v3522, %v7390
    %v7392 = vand.u32 %v7391, 4294901760
    %v7393 = vsub.f32 %v7391, %v7392
    %v7394 = vand.u32 %v7393, 4294901760
    %7395 = vmatpush.msra.mxu0 %v7394
    %v7396 = vand.u32 %v3488, 4294901760
    %v7397 = vsub.f32 %v3488, %v7396
    %v7398 = vand.u32 %v7397, 4294901760
    %v7399 = vsub.f32 %v7397, %v7398
    %v7400 = vand.u32 %v7399, 4294901760
    %7401 = vmatpush.msra.mxu0 %v7400
    %v7402 = vand.u32 %v3454, 4294901760
    %v7403 = vsub.f32 %v3454, %v7402
    %v7404 = vand.u32 %v7403, 4294901760
    %v7405 = vsub.f32 %v7403, %v7404
    %v7406 = vand.u32 %v7405, 4294901760
    %7407 = vmatpush.msra.mxu0 %v7406
    %v7408 = vand.u32 %v3420, 4294901760
    %v7409 = vsub.f32 %v3420, %v7408
    %v7410 = vand.u32 %v7409, 4294901760
    %v7411 = vsub.f32 %v7409, %v7410
    %v7412 = vand.u32 %v7411, 4294901760
    %7413 = vmatpush.msra.mxu0 %v7412
    %v7414 = vand.u32 %v3386, 4294901760
    %v7415 = vsub.f32 %v3386, %v7414
    %v7416 = vand.u32 %v7415, 4294901760
    %v7417 = vsub.f32 %v7415, %v7416
    %v7418 = vand.u32 %v7417, 4294901760
    %7419 = vmatpush.msra.mxu0 %v7418
    %v7420 = vand.u32 %v3352, 4294901760
    %v7421 = vsub.f32 %v3352, %v7420
    %v7422 = vand.u32 %v7421, 4294901760
    %v7423 = vsub.f32 %v7421, %v7422
    %v7424 = vand.u32 %v7423, 4294901760
    %7425 = vmatpush.msra.mxu0 %v7424
    %v7426 = vand.u32 %v3654, 4294901760
    %7427 = vmatmul.f32.gmra.mxu0 %v7426
    %v7428 = vpop.f32.mrf.mxu0
    %v7429 = vadd.f32 %v7373, %v7428
    %7430 = vdwg.mxu0
    %7431 = vmatpush.msra.mxu0 0.0
    %7432 = vmatpush.msra.mxu0 0.0
    %7433 = vmatpush.msra.mxu0 0.0
    %7434 = vmatpush.msra.mxu0 0.0
    %7435 = vmatpush.msra.mxu0 0.0
    %7436 = vmatpush.msra.mxu0 0.0
    %7437 = vmatpush.msra.mxu0 0.0
    %7438 = vmatpush.msra.mxu0 0.0
    %7439 = vmatpush.msra.mxu0 0.0
    %v7440 = vand.u32 %v3706, 4294901760
    %v7441 = vsub.f32 %v3706, %v7440
    %7442 = vmatpush.msra.mxu0 %v7441
    %v7443 = vand.u32 %v3522, 4294901760
    %v7444 = vsub.f32 %v3522, %v7443
    %7445 = vmatpush.msra.mxu0 %v7444
    %v7446 = vand.u32 %v3488, 4294901760
    %v7447 = vsub.f32 %v3488, %v7446
    %7448 = vmatpush.msra.mxu0 %v7447
    %v7449 = vand.u32 %v3454, 4294901760
    %v7450 = vsub.f32 %v3454, %v7449
    %7451 = vmatpush.msra.mxu0 %v7450
    %v7452 = vand.u32 %v3420, 4294901760
    %v7453 = vsub.f32 %v3420, %v7452
    %7454 = vmatpush.msra.mxu0 %v7453
    %v7455 = vand.u32 %v3386, 4294901760
    %v7456 = vsub.f32 %v3386, %v7455
    %7457 = vmatpush.msra.mxu0 %v7456
    %v7458 = vand.u32 %v3352, 4294901760
    %v7459 = vsub.f32 %v3352, %v7458
    %7460 = vmatpush.msra.mxu0 %v7459
    %v7461 = vand.u32 %v3654, 4294901760
    %v7462 = vsub.f32 %v3654, %v7461
    %7463 = vmatmul.f32.gmra.mxu0 %v7462
    %v7464 = vpop.f32.mrf.mxu0
    %v7465 = vadd.f32 %v7429, %v7464
    %7466 = vdwg.mxu0
    %7467 = vmatpush.msra.mxu0 0.0
    %7468 = vmatpush.msra.mxu0 0.0
    %7469 = vmatpush.msra.mxu0 0.0
    %7470 = vmatpush.msra.mxu0 0.0
    %7471 = vmatpush.msra.mxu0 0.0
    %7472 = vmatpush.msra.mxu0 0.0
    %7473 = vmatpush.msra.mxu0 0.0
    %7474 = vmatpush.msra.mxu0 0.0
    %7475 = vmatpush.msra.mxu0 0.0
    %v7476 = vand.u32 %v3706, 4294901760
    %7477 = vmatpush.msra.mxu0 %v7476
    %v7478 = vand.u32 %v3522, 4294901760
    %7479 = vmatpush.msra.mxu0 %v7478
    %v7480 = vand.u32 %v3488, 4294901760
    %7481 = vmatpush.msra.mxu0 %v7480
    %v7482 = vand.u32 %v3454, 4294901760
    %7483 = vmatpush.msra.mxu0 %v7482
    %v7484 = vand.u32 %v3420, 4294901760
    %7485 = vmatpush.msra.mxu0 %v7484
    %v7486 = vand.u32 %v3386, 4294901760
    %7487 = vmatpush.msra.mxu0 %v7486
    %v7488 = vand.u32 %v3352, 4294901760
    %7489 = vmatpush.msra.mxu0 %v7488
    %v7490 = vand.u32 %v3654, 4294901760
    %v7491 = vsub.f32 %v3654, %v7490
    %v7492 = vand.u32 %v7491, 4294901760
    %7493 = vmatmul.f32.gmra.mxu0 %v7492
    %v7494 = vpop.f32.mrf.mxu0
    %v7495 = vadd.f32 %v7465, %v7494
    %7496 = vdwg.mxu0
    %7497 = vmatpush.msra.mxu0 0.0
    %7498 = vmatpush.msra.mxu0 0.0
    %7499 = vmatpush.msra.mxu0 0.0
    %7500 = vmatpush.msra.mxu0 0.0
    %7501 = vmatpush.msra.mxu0 0.0
    %7502 = vmatpush.msra.mxu0 0.0
    %7503 = vmatpush.msra.mxu0 0.0
    %7504 = vmatpush.msra.mxu0 0.0
    %7505 = vmatpush.msra.mxu0 0.0
    %v7506 = vand.u32 %v3706, 4294901760
    %v7507 = vsub.f32 %v3706, %v7506
    %v7508 = vand.u32 %v7507, 4294901760
    %7509 = vmatpush.msra.mxu0 %v7508
    %v7510 = vand.u32 %v3522, 4294901760
    %v7511 = vsub.f32 %v3522, %v7510
    %v7512 = vand.u32 %v7511, 4294901760
    %7513 = vmatpush.msra.mxu0 %v7512
    %v7514 = vand.u32 %v3488, 4294901760
    %v7515 = vsub.f32 %v3488, %v7514
    %v7516 = vand.u32 %v7515, 4294901760
    %7517 = vmatpush.msra.mxu0 %v7516
    %v7518 = vand.u32 %v3454, 4294901760
    %v7519 = vsub.f32 %v3454, %v7518
    %v7520 = vand.u32 %v7519, 4294901760
    %7521 = vmatpush.msra.mxu0 %v7520
    %v7522 = vand.u32 %v3420, 4294901760
    %v7523 = vsub.f32 %v3420, %v7522
    %v7524 = vand.u32 %v7523, 4294901760
    %7525 = vmatpush.msra.mxu0 %v7524
    %v7526 = vand.u32 %v3386, 4294901760
    %v7527 = vsub.f32 %v3386, %v7526
    %v7528 = vand.u32 %v7527, 4294901760
    %7529 = vmatpush.msra.mxu0 %v7528
    %v7530 = vand.u32 %v3352, 4294901760
    %v7531 = vsub.f32 %v3352, %v7530
    %v7532 = vand.u32 %v7531, 4294901760
    %7533 = vmatpush.msra.mxu0 %v7532
    %v7534 = vand.u32 %v3654, 4294901760
    %7535 = vmatmul.f32.gmra.mxu0 %v7534
    %v7536 = vpop.f32.mrf.mxu0
    %v7537 = vadd.f32 %v7495, %v7536
    %7538 = vdwg.mxu0
    %7539 = vmatpush.msra.mxu0 0.0
    %7540 = vmatpush.msra.mxu0 0.0
    %7541 = vmatpush.msra.mxu0 0.0
    %7542 = vmatpush.msra.mxu0 0.0
    %7543 = vmatpush.msra.mxu0 0.0
    %7544 = vmatpush.msra.mxu0 0.0
    %7545 = vmatpush.msra.mxu0 0.0
    %7546 = vmatpush.msra.mxu0 0.0
    %7547 = vmatpush.msra.mxu0 0.0
    %v7548 = vand.u32 %v3706, 4294901760
    %7549 = vmatpush.msra.mxu0 %v7548
    %v7550 = vand.u32 %v3522, 4294901760
    %7551 = vmatpush.msra.mxu0 %v7550
    %v7552 = vand.u32 %v3488, 4294901760
    %7553 = vmatpush.msra.mxu0 %v7552
    %v7554 = vand.u32 %v3454, 4294901760
    %7555 = vmatpush.msra.mxu0 %v7554
    %v7556 = vand.u32 %v3420, 4294901760
    %7557 = vmatpush.msra.mxu0 %v7556
    %v7558 = vand.u32 %v3386, 4294901760
    %7559 = vmatpush.msra.mxu0 %v7558
    %v7560 = vand.u32 %v3352, 4294901760
    %7561 = vmatpush.msra.mxu0 %v7560
    %v7562 = vand.u32 %v3654, 4294901760
    %7563 = vmatmul.f32.gmra.mxu0 %v7562
    %v7564 = vpop.f32.mrf.mxu0
    %v7565 = vadd.f32 %v7537, %v7564
    %7566 = vdwg.mxu0
    %7567 = vmatpush.msra.mxu0 0.0
    %7568 = vmatpush.msra.mxu0 0.0
    %7569 = vmatpush.msra.mxu0 0.0
    %7570 = vmatpush.msra.mxu0 0.0
    %7571 = vmatpush.msra.mxu0 0.0
    %7572 = vmatpush.msra.mxu0 0.0
    %7573 = vmatpush.msra.mxu0 0.0
    %7574 = vmatpush.msra.mxu0 0.0
    %7575 = vmatpush.msra.mxu0 0.0
    %v7576 = vand.u32 %v3709, 4294901760
    %7577 = vmatpush.msra.mxu0 %v7576
    %v7578 = vand.u32 %v3523, 4294901760
    %7579 = vmatpush.msra.mxu0 %v7578
    %v7580 = vand.u32 %v3489, 4294901760
    %7581 = vmatpush.msra.mxu0 %v7580
    %v7582 = vand.u32 %v3455, 4294901760
    %7583 = vmatpush.msra.mxu0 %v7582
    %v7584 = vand.u32 %v3421, 4294901760
    %7585 = vmatpush.msra.mxu0 %v7584
    %v7586 = vand.u32 %v3387, 4294901760
    %7587 = vmatpush.msra.mxu0 %v7586
    %v7588 = vand.u32 %v3353, 4294901760
    %7589 = vmatpush.msra.mxu0 %v7588
    %v7590 = vand.u32 %v3654, 4294901760
    %v7591 = vsub.f32 %v3654, %v7590
    %v7592 = vand.u32 %v7591, 4294901760
    %v7593 = vsub.f32 %v7591, %v7592
    %v7594 = vand.u32 %v7593, 4294901760
    %7595 = vmatmul.f32.gmra.mxu0 %v7594
    %v7596 = vpop.f32.mrf.mxu0
    %v7597 = vadd.f32 %v3601, %v7596
    %7598 = vdwg.mxu0
    %7599 = vmatpush.msra.mxu0 0.0
    %7600 = vmatpush.msra.mxu0 0.0
    %7601 = vmatpush.msra.mxu0 0.0
    %7602 = vmatpush.msra.mxu0 0.0
    %7603 = vmatpush.msra.mxu0 0.0
    %7604 = vmatpush.msra.mxu0 0.0
    %7605 = vmatpush.msra.mxu0 0.0
    %7606 = vmatpush.msra.mxu0 0.0
    %7607 = vmatpush.msra.mxu0 0.0
    %v7608 = vand.u32 %v3709, 4294901760
    %v7609 = vsub.f32 %v3709, %v7608
    %v7610 = vand.u32 %v7609, 4294901760
    %v7611 = vsub.f32 %v7609, %v7610
    %v7612 = vand.u32 %v7611, 4294901760
    %7613 = vmatpush.msra.mxu0 %v7612
    %v7614 = vand.u32 %v3523, 4294901760
    %v7615 = vsub.f32 %v3523, %v7614
    %v7616 = vand.u32 %v7615, 4294901760
    %v7617 = vsub.f32 %v7615, %v7616
    %v7618 = vand.u32 %v7617, 4294901760
    %7619 = vmatpush.msra.mxu0 %v7618
    %v7620 = vand.u32 %v3489, 4294901760
    %v7621 = vsub.f32 %v3489, %v7620
    %v7622 = vand.u32 %v7621, 4294901760
    %v7623 = vsub.f32 %v7621, %v7622
    %v7624 = vand.u32 %v7623, 4294901760
    %7625 = vmatpush.msra.mxu0 %v7624
    %v7626 = vand.u32 %v3455, 4294901760
    %v7627 = vsub.f32 %v3455, %v7626
    %v7628 = vand.u32 %v7627, 4294901760
    %v7629 = vsub.f32 %v7627, %v7628
    %v7630 = vand.u32 %v7629, 4294901760
    %7631 = vmatpush.msra.mxu0 %v7630
    %v7632 = vand.u32 %v3421, 4294901760
    %v7633 = vsub.f32 %v3421, %v7632
    %v7634 = vand.u32 %v7633, 4294901760
    %v7635 = vsub.f32 %v7633, %v7634
    %v7636 = vand.u32 %v7635, 4294901760
    %7637 = vmatpush.msra.mxu0 %v7636
    %v7638 = vand.u32 %v3387, 4294901760
    %v7639 = vsub.f32 %v3387, %v7638
    %v7640 = vand.u32 %v7639, 4294901760
    %v7641 = vsub.f32 %v7639, %v7640
    %v7642 = vand.u32 %v7641, 4294901760
    %7643 = vmatpush.msra.mxu0 %v7642
    %v7644 = vand.u32 %v3353, 4294901760
    %v7645 = vsub.f32 %v3353, %v7644
    %v7646 = vand.u32 %v7645, 4294901760
    %v7647 = vsub.f32 %v7645, %v7646
    %v7648 = vand.u32 %v7647, 4294901760
    %7649 = vmatpush.msra.mxu0 %v7648
    %v7650 = vand.u32 %v3654, 4294901760
    %7651 = vmatmul.f32.gmra.mxu0 %v7650
    %v7652 = vpop.f32.mrf.mxu0
    %v7653 = vadd.f32 %v7597, %v7652
    %7654 = vdwg.mxu0
    %7655 = vmatpush.msra.mxu0 0.0
    %7656 = vmatpush.msra.mxu0 0.0
    %7657 = vmatpush.msra.mxu0 0.0
    %7658 = vmatpush.msra.mxu0 0.0
    %7659 = vmatpush.msra.mxu0 0.0
    %7660 = vmatpush.msra.mxu0 0.0
    %7661 = vmatpush.msra.mxu0 0.0
    %7662 = vmatpush.msra.mxu0 0.0
    %7663 = vmatpush.msra.mxu0 0.0
    %v7664 = vand.u32 %v3709, 4294901760
    %v7665 = vsub.f32 %v3709, %v7664
    %7666 = vmatpush.msra.mxu0 %v7665
    %v7667 = vand.u32 %v3523, 4294901760
    %v7668 = vsub.f32 %v3523, %v7667
    %7669 = vmatpush.msra.mxu0 %v7668
    %v7670 = vand.u32 %v3489, 4294901760
    %v7671 = vsub.f32 %v3489, %v7670
    %7672 = vmatpush.msra.mxu0 %v7671
    %v7673 = vand.u32 %v3455, 4294901760
    %v7674 = vsub.f32 %v3455, %v7673
    %7675 = vmatpush.msra.mxu0 %v7674
    %v7676 = vand.u32 %v3421, 4294901760
    %v7677 = vsub.f32 %v3421, %v7676
    %7678 = vmatpush.msra.mxu0 %v7677
    %v7679 = vand.u32 %v3387, 4294901760
    %v7680 = vsub.f32 %v3387, %v7679
    %7681 = vmatpush.msra.mxu0 %v7680
    %v7682 = vand.u32 %v3353, 4294901760
    %v7683 = vsub.f32 %v3353, %v7682
    %7684 = vmatpush.msra.mxu0 %v7683
    %v7685 = vand.u32 %v3654, 4294901760
    %v7686 = vsub.f32 %v3654, %v7685
    %7687 = vmatmul.f32.gmra.mxu0 %v7686
    %v7688 = vpop.f32.mrf.mxu0
    %v7689 = vadd.f32 %v7653, %v7688
    %7690 = vdwg.mxu0
    %7691 = vmatpush.msra.mxu0 0.0
    %7692 = vmatpush.msra.mxu0 0.0
    %7693 = vmatpush.msra.mxu0 0.0
    %7694 = vmatpush.msra.mxu0 0.0
    %7695 = vmatpush.msra.mxu0 0.0
    %7696 = vmatpush.msra.mxu0 0.0
    %7697 = vmatpush.msra.mxu0 0.0
    %7698 = vmatpush.msra.mxu0 0.0
    %7699 = vmatpush.msra.mxu0 0.0
    %v7700 = vand.u32 %v3709, 4294901760
    %7701 = vmatpush.msra.mxu0 %v7700
    %v7702 = vand.u32 %v3523, 4294901760
    %7703 = vmatpush.msra.mxu0 %v7702
    %v7704 = vand.u32 %v3489, 4294901760
    %7705 = vmatpush.msra.mxu0 %v7704
    %v7706 = vand.u32 %v3455, 4294901760
    %7707 = vmatpush.msra.mxu0 %v7706
    %v7708 = vand.u32 %v3421, 4294901760
    %7709 = vmatpush.msra.mxu0 %v7708
    %v7710 = vand.u32 %v3387, 4294901760
    %7711 = vmatpush.msra.mxu0 %v7710
    %v7712 = vand.u32 %v3353, 4294901760
    %7713 = vmatpush.msra.mxu0 %v7712
    %v7714 = vand.u32 %v3654, 4294901760
    %v7715 = vsub.f32 %v3654, %v7714
    %v7716 = vand.u32 %v7715, 4294901760
    %7717 = vmatmul.f32.gmra.mxu0 %v7716
    %v7718 = vpop.f32.mrf.mxu0
    %v7719 = vadd.f32 %v7689, %v7718
    %7720 = vdwg.mxu0
    %7721 = vmatpush.msra.mxu0 0.0
    %7722 = vmatpush.msra.mxu0 0.0
    %7723 = vmatpush.msra.mxu0 0.0
    %7724 = vmatpush.msra.mxu0 0.0
    %7725 = vmatpush.msra.mxu0 0.0
    %7726 = vmatpush.msra.mxu0 0.0
    %7727 = vmatpush.msra.mxu0 0.0
    %7728 = vmatpush.msra.mxu0 0.0
    %7729 = vmatpush.msra.mxu0 0.0
    %v7730 = vand.u32 %v3709, 4294901760
    %v7731 = vsub.f32 %v3709, %v7730
    %v7732 = vand.u32 %v7731, 4294901760
    %7733 = vmatpush.msra.mxu0 %v7732
    %v7734 = vand.u32 %v3523, 4294901760
    %v7735 = vsub.f32 %v3523, %v7734
    %v7736 = vand.u32 %v7735, 4294901760
    %7737 = vmatpush.msra.mxu0 %v7736
    %v7738 = vand.u32 %v3489, 4294901760
    %v7739 = vsub.f32 %v3489, %v7738
    %v7740 = vand.u32 %v7739, 4294901760
    %7741 = vmatpush.msra.mxu0 %v7740
    %v7742 = vand.u32 %v3455, 4294901760
    %v7743 = vsub.f32 %v3455, %v7742
    %v7744 = vand.u32 %v7743, 4294901760
    %7745 = vmatpush.msra.mxu0 %v7744
    %v7746 = vand.u32 %v3421, 4294901760
    %v7747 = vsub.f32 %v3421, %v7746
    %v7748 = vand.u32 %v7747, 4294901760
    %7749 = vmatpush.msra.mxu0 %v7748
    %v7750 = vand.u32 %v3387, 4294901760
    %v7751 = vsub.f32 %v3387, %v7750
    %v7752 = vand.u32 %v7751, 4294901760
    %7753 = vmatpush.msra.mxu0 %v7752
    %v7754 = vand.u32 %v3353, 4294901760
    %v7755 = vsub.f32 %v3353, %v7754
    %v7756 = vand.u32 %v7755, 4294901760
    %7757 = vmatpush.msra.mxu0 %v7756
    %v7758 = vand.u32 %v3654, 4294901760
    %7759 = vmatmul.f32.gmra.mxu0 %v7758
    %v7760 = vpop.f32.mrf.mxu0
    %v7761 = vadd.f32 %v7719, %v7760
    %7762 = vdwg.mxu0
    %7763 = vmatpush.msra.mxu0 0.0
    %7764 = vmatpush.msra.mxu0 0.0
    %7765 = vmatpush.msra.mxu0 0.0
    %7766 = vmatpush.msra.mxu0 0.0
    %7767 = vmatpush.msra.mxu0 0.0
    %7768 = vmatpush.msra.mxu0 0.0
    %7769 = vmatpush.msra.mxu0 0.0
    %7770 = vmatpush.msra.mxu0 0.0
    %7771 = vmatpush.msra.mxu0 0.0
    %v7772 = vand.u32 %v3709, 4294901760
    %7773 = vmatpush.msra.mxu0 %v7772
    %v7774 = vand.u32 %v3523, 4294901760
    %7775 = vmatpush.msra.mxu0 %v7774
    %v7776 = vand.u32 %v3489, 4294901760
    %7777 = vmatpush.msra.mxu0 %v7776
    %v7778 = vand.u32 %v3455, 4294901760
    %7779 = vmatpush.msra.mxu0 %v7778
    %v7780 = vand.u32 %v3421, 4294901760
    %7781 = vmatpush.msra.mxu0 %v7780
    %v7782 = vand.u32 %v3387, 4294901760
    %7783 = vmatpush.msra.mxu0 %v7782
    %v7784 = vand.u32 %v3353, 4294901760
    %7785 = vmatpush.msra.mxu0 %v7784
    %v7786 = vand.u32 %v3654, 4294901760
    %7787 = vmatmul.f32.gmra.mxu0 %v7786
    %v7788 = vpop.f32.mrf.mxu0
    %v7789 = vadd.f32 %v7761, %v7788
    %7790 = vdwg.mxu0
    %7791 = vmatpush.msra.mxu0 0.0
    %7792 = vmatpush.msra.mxu0 0.0
    %7793 = vmatpush.msra.mxu0 0.0
    %7794 = vmatpush.msra.mxu0 0.0
    %7795 = vmatpush.msra.mxu0 0.0
    %7796 = vmatpush.msra.mxu0 0.0
    %7797 = vmatpush.msra.mxu0 0.0
    %7798 = vmatpush.msra.mxu0 0.0
    %7799 = vmatpush.msra.mxu0 0.0
    %v7800 = vand.u32 %v3712, 4294901760
    %7801 = vmatpush.msra.mxu0 %v7800
    %v7802 = vand.u32 %v3524, 4294901760
    %7803 = vmatpush.msra.mxu0 %v7802
    %v7804 = vand.u32 %v3490, 4294901760
    %7805 = vmatpush.msra.mxu0 %v7804
    %v7806 = vand.u32 %v3456, 4294901760
    %7807 = vmatpush.msra.mxu0 %v7806
    %v7808 = vand.u32 %v3422, 4294901760
    %7809 = vmatpush.msra.mxu0 %v7808
    %v7810 = vand.u32 %v3388, 4294901760
    %7811 = vmatpush.msra.mxu0 %v7810
    %v7812 = vand.u32 %v3354, 4294901760
    %7813 = vmatpush.msra.mxu0 %v7812
    %v7814 = vand.u32 %v3654, 4294901760
    %v7815 = vsub.f32 %v3654, %v7814
    %v7816 = vand.u32 %v7815, 4294901760
    %v7817 = vsub.f32 %v7815, %v7816
    %v7818 = vand.u32 %v7817, 4294901760
    %7819 = vmatmul.f32.gmra.mxu0 %v7818
    %v7820 = vpop.f32.mrf.mxu0
    %v7821 = vadd.f32 %v3602, %v7820
    %7822 = vdwg.mxu0
    %7823 = vmatpush.msra.mxu0 0.0
    %7824 = vmatpush.msra.mxu0 0.0
    %7825 = vmatpush.msra.mxu0 0.0
    %7826 = vmatpush.msra.mxu0 0.0
    %7827 = vmatpush.msra.mxu0 0.0
    %7828 = vmatpush.msra.mxu0 0.0
    %7829 = vmatpush.msra.mxu0 0.0
    %7830 = vmatpush.msra.mxu0 0.0
    %7831 = vmatpush.msra.mxu0 0.0
    %v7832 = vand.u32 %v3712, 4294901760
    %v7833 = vsub.f32 %v3712, %v7832
    %v7834 = vand.u32 %v7833, 4294901760
    %v7835 = vsub.f32 %v7833, %v7834
    %v7836 = vand.u32 %v7835, 4294901760
    %7837 = vmatpush.msra.mxu0 %v7836
    %v7838 = vand.u32 %v3524, 4294901760
    %v7839 = vsub.f32 %v3524, %v7838
    %v7840 = vand.u32 %v7839, 4294901760
    %v7841 = vsub.f32 %v7839, %v7840
    %v7842 = vand.u32 %v7841, 4294901760
    %7843 = vmatpush.msra.mxu0 %v7842
    %v7844 = vand.u32 %v3490, 4294901760
    %v7845 = vsub.f32 %v3490, %v7844
    %v7846 = vand.u32 %v7845, 4294901760
    %v7847 = vsub.f32 %v7845, %v7846
    %v7848 = vand.u32 %v7847, 4294901760
    %7849 = vmatpush.msra.mxu0 %v7848
    %v7850 = vand.u32 %v3456, 4294901760
    %v7851 = vsub.f32 %v3456, %v7850
    %v7852 = vand.u32 %v7851, 4294901760
    %v7853 = vsub.f32 %v7851, %v7852
    %v7854 = vand.u32 %v7853, 4294901760
    %7855 = vmatpush.msra.mxu0 %v7854
    %v7856 = vand.u32 %v3422, 4294901760
    %v7857 = vsub.f32 %v3422, %v7856
    %v7858 = vand.u32 %v7857, 4294901760
    %v7859 = vsub.f32 %v7857, %v7858
    %v7860 = vand.u32 %v7859, 4294901760
    %7861 = vmatpush.msra.mxu0 %v7860
    %v7862 = vand.u32 %v3388, 4294901760
    %v7863 = vsub.f32 %v3388, %v7862
    %v7864 = vand.u32 %v7863, 4294901760
    %v7865 = vsub.f32 %v7863, %v7864
    %v7866 = vand.u32 %v7865, 4294901760
    %7867 = vmatpush.msra.mxu0 %v7866
    %v7868 = vand.u32 %v3354, 4294901760
    %v7869 = vsub.f32 %v3354, %v7868
    %v7870 = vand.u32 %v7869, 4294901760
    %v7871 = vsub.f32 %v7869, %v7870
    %v7872 = vand.u32 %v7871, 4294901760
    %7873 = vmatpush.msra.mxu0 %v7872
    %v7874 = vand.u32 %v3654, 4294901760
    %7875 = vmatmul.f32.gmra.mxu0 %v7874
    %v7876 = vpop.f32.mrf.mxu0
    %v7877 = vadd.f32 %v7821, %v7876
    %7878 = vdwg.mxu0
    %7879 = vmatpush.msra.mxu0 0.0
    %7880 = vmatpush.msra.mxu0 0.0
    %7881 = vmatpush.msra.mxu0 0.0
    %7882 = vmatpush.msra.mxu0 0.0
    %7883 = vmatpush.msra.mxu0 0.0
    %7884 = vmatpush.msra.mxu0 0.0
    %7885 = vmatpush.msra.mxu0 0.0
    %7886 = vmatpush.msra.mxu0 0.0
    %7887 = vmatpush.msra.mxu0 0.0
    %v7888 = vand.u32 %v3712, 4294901760
    %v7889 = vsub.f32 %v3712, %v7888
    %7890 = vmatpush.msra.mxu0 %v7889
    %v7891 = vand.u32 %v3524, 4294901760
    %v7892 = vsub.f32 %v3524, %v7891
    %7893 = vmatpush.msra.mxu0 %v7892
    %v7894 = vand.u32 %v3490, 4294901760
    %v7895 = vsub.f32 %v3490, %v7894
    %7896 = vmatpush.msra.mxu0 %v7895
    %v7897 = vand.u32 %v3456, 4294901760
    %v7898 = vsub.f32 %v3456, %v7897
    %7899 = vmatpush.msra.mxu0 %v7898
    %v7900 = vand.u32 %v3422, 4294901760
    %v7901 = vsub.f32 %v3422, %v7900
    %7902 = vmatpush.msra.mxu0 %v7901
    %v7903 = vand.u32 %v3388, 4294901760
    %v7904 = vsub.f32 %v3388, %v7903
    %7905 = vmatpush.msra.mxu0 %v7904
    %v7906 = vand.u32 %v3354, 4294901760
    %v7907 = vsub.f32 %v3354, %v7906
    %7908 = vmatpush.msra.mxu0 %v7907
    %v7909 = vand.u32 %v3654, 4294901760
    %v7910 = vsub.f32 %v3654, %v7909
    %7911 = vmatmul.f32.gmra.mxu0 %v7910
    %v7912 = vpop.f32.mrf.mxu0
    %v7913 = vadd.f32 %v7877, %v7912
    %7914 = vdwg.mxu0
    %7915 = vmatpush.msra.mxu0 0.0
    %7916 = vmatpush.msra.mxu0 0.0
    %7917 = vmatpush.msra.mxu0 0.0
    %7918 = vmatpush.msra.mxu0 0.0
    %7919 = vmatpush.msra.mxu0 0.0
    %7920 = vmatpush.msra.mxu0 0.0
    %7921 = vmatpush.msra.mxu0 0.0
    %7922 = vmatpush.msra.mxu0 0.0
    %7923 = vmatpush.msra.mxu0 0.0
    %v7924 = vand.u32 %v3712, 4294901760
    %7925 = vmatpush.msra.mxu0 %v7924
    %v7926 = vand.u32 %v3524, 4294901760
    %7927 = vmatpush.msra.mxu0 %v7926
    %v7928 = vand.u32 %v3490, 4294901760
    %7929 = vmatpush.msra.mxu0 %v7928
    %v7930 = vand.u32 %v3456, 4294901760
    %7931 = vmatpush.msra.mxu0 %v7930
    %v7932 = vand.u32 %v3422, 4294901760
    %7933 = vmatpush.msra.mxu0 %v7932
    %v7934 = vand.u32 %v3388, 4294901760
    %7935 = vmatpush.msra.mxu0 %v7934
    %v7936 = vand.u32 %v3354, 4294901760
    %7937 = vmatpush.msra.mxu0 %v7936
    %v7938 = vand.u32 %v3654, 4294901760
    %v7939 = vsub.f32 %v3654, %v7938
    %v7940 = vand.u32 %v7939, 4294901760
    %7941 = vmatmul.f32.gmra.mxu0 %v7940
    %v7942 = vpop.f32.mrf.mxu0
    %v7943 = vadd.f32 %v7913, %v7942
    %7944 = vdwg.mxu0
    %7945 = vmatpush.msra.mxu0 0.0
    %7946 = vmatpush.msra.mxu0 0.0
    %7947 = vmatpush.msra.mxu0 0.0
    %7948 = vmatpush.msra.mxu0 0.0
    %7949 = vmatpush.msra.mxu0 0.0
    %7950 = vmatpush.msra.mxu0 0.0
    %7951 = vmatpush.msra.mxu0 0.0
    %7952 = vmatpush.msra.mxu0 0.0
    %7953 = vmatpush.msra.mxu0 0.0
    %v7954 = vand.u32 %v3712, 4294901760
    %v7955 = vsub.f32 %v3712, %v7954
    %v7956 = vand.u32 %v7955, 4294901760
    %7957 = vmatpush.msra.mxu0 %v7956
    %v7958 = vand.u32 %v3524, 4294901760
    %v7959 = vsub.f32 %v3524, %v7958
    %v7960 = vand.u32 %v7959, 4294901760
    %7961 = vmatpush.msra.mxu0 %v7960
    %v7962 = vand.u32 %v3490, 4294901760
    %v7963 = vsub.f32 %v3490, %v7962
    %v7964 = vand.u32 %v7963, 4294901760
    %7965 = vmatpush.msra.mxu0 %v7964
    %v7966 = vand.u32 %v3456, 4294901760
    %v7967 = vsub.f32 %v3456, %v7966
    %v7968 = vand.u32 %v7967, 4294901760
    %7969 = vmatpush.msra.mxu0 %v7968
    %v7970 = vand.u32 %v3422, 4294901760
    %v7971 = vsub.f32 %v3422, %v7970
    %v7972 = vand.u32 %v7971, 4294901760
    %7973 = vmatpush.msra.mxu0 %v7972
    %v7974 = vand.u32 %v3388, 4294901760
    %v7975 = vsub.f32 %v3388, %v7974
    %v7976 = vand.u32 %v7975, 4294901760
    %7977 = vmatpush.msra.mxu0 %v7976
    %v7978 = vand.u32 %v3354, 4294901760
    %v7979 = vsub.f32 %v3354, %v7978
    %v7980 = vand.u32 %v7979, 4294901760
    %7981 = vmatpush.msra.mxu0 %v7980
    %v7982 = vand.u32 %v3654, 4294901760
    %7983 = vmatmul.f32.gmra.mxu0 %v7982
    %v7984 = vpop.f32.mrf.mxu0
    %v7985 = vadd.f32 %v7943, %v7984
    %7986 = vdwg.mxu0
    %7987 = vmatpush.msra.mxu0 0.0
    %7988 = vmatpush.msra.mxu0 0.0
    %7989 = vmatpush.msra.mxu0 0.0
    %7990 = vmatpush.msra.mxu0 0.0
    %7991 = vmatpush.msra.mxu0 0.0
    %7992 = vmatpush.msra.mxu0 0.0
    %7993 = vmatpush.msra.mxu0 0.0
    %7994 = vmatpush.msra.mxu0 0.0
    %7995 = vmatpush.msra.mxu0 0.0
    %v7996 = vand.u32 %v3712, 4294901760
    %7997 = vmatpush.msra.mxu0 %v7996
    %v7998 = vand.u32 %v3524, 4294901760
    %7999 = vmatpush.msra.mxu0 %v7998
    %v8000 = vand.u32 %v3490, 4294901760
    %8001 = vmatpush.msra.mxu0 %v8000
    %v8002 = vand.u32 %v3456, 4294901760
    %8003 = vmatpush.msra.mxu0 %v8002
    %v8004 = vand.u32 %v3422, 4294901760
    %8005 = vmatpush.msra.mxu0 %v8004
    %v8006 = vand.u32 %v3388, 4294901760
    %8007 = vmatpush.msra.mxu0 %v8006
    %v8008 = vand.u32 %v3354, 4294901760
    %8009 = vmatpush.msra.mxu0 %v8008
    %v8010 = vand.u32 %v3654, 4294901760
    %8011 = vmatmul.f32.gmra.mxu0 %v8010
    %v8012 = vpop.f32.mrf.mxu0
    %v8013 = vadd.f32 %v7985, %v8012
    %8014 = vdwg.mxu0
    %8015 = vmatpush.msra.mxu0 0.0
    %8016 = vmatpush.msra.mxu0 0.0
    %8017 = vmatpush.msra.mxu0 0.0
    %8018 = vmatpush.msra.mxu0 0.0
    %8019 = vmatpush.msra.mxu0 0.0
    %8020 = vmatpush.msra.mxu0 0.0
    %8021 = vmatpush.msra.mxu0 0.0
    %8022 = vmatpush.msra.mxu0 0.0
    %8023 = vmatpush.msra.mxu0 0.0
    %v8024 = vand.u32 %v3715, 4294901760
    %8025 = vmatpush.msra.mxu0 %v8024
    %v8026 = vand.u32 %v3525, 4294901760
    %8027 = vmatpush.msra.mxu0 %v8026
    %v8028 = vand.u32 %v3491, 4294901760
    %8029 = vmatpush.msra.mxu0 %v8028
    %v8030 = vand.u32 %v3457, 4294901760
    %8031 = vmatpush.msra.mxu0 %v8030
    %v8032 = vand.u32 %v3423, 4294901760
    %8033 = vmatpush.msra.mxu0 %v8032
    %v8034 = vand.u32 %v3389, 4294901760
    %8035 = vmatpush.msra.mxu0 %v8034
    %v8036 = vand.u32 %v3355, 4294901760
    %8037 = vmatpush.msra.mxu0 %v8036
    %v8038 = vand.u32 %v3654, 4294901760
    %v8039 = vsub.f32 %v3654, %v8038
    %v8040 = vand.u32 %v8039, 4294901760
    %v8041 = vsub.f32 %v8039, %v8040
    %v8042 = vand.u32 %v8041, 4294901760
    %8043 = vmatmul.f32.gmra.mxu0 %v8042
    %v8044 = vpop.f32.mrf.mxu0
    %v8045 = vadd.f32 %v3603, %v8044
    %8046 = vdwg.mxu0
    %8047 = vmatpush.msra.mxu0 0.0
    %8048 = vmatpush.msra.mxu0 0.0
    %8049 = vmatpush.msra.mxu0 0.0
    %8050 = vmatpush.msra.mxu0 0.0
    %8051 = vmatpush.msra.mxu0 0.0
    %8052 = vmatpush.msra.mxu0 0.0
    %8053 = vmatpush.msra.mxu0 0.0
    %8054 = vmatpush.msra.mxu0 0.0
    %8055 = vmatpush.msra.mxu0 0.0
    %v8056 = vand.u32 %v3715, 4294901760
    %v8057 = vsub.f32 %v3715, %v8056
    %v8058 = vand.u32 %v8057, 4294901760
    %v8059 = vsub.f32 %v8057, %v8058
    %v8060 = vand.u32 %v8059, 4294901760
    %8061 = vmatpush.msra.mxu0 %v8060
    %v8062 = vand.u32 %v3525, 4294901760
    %v8063 = vsub.f32 %v3525, %v8062
    %v8064 = vand.u32 %v8063, 4294901760
    %v8065 = vsub.f32 %v8063, %v8064
    %v8066 = vand.u32 %v8065, 4294901760
    %8067 = vmatpush.msra.mxu0 %v8066
    %v8068 = vand.u32 %v3491, 4294901760
    %v8069 = vsub.f32 %v3491, %v8068
    %v8070 = vand.u32 %v8069, 4294901760
    %v8071 = vsub.f32 %v8069, %v8070
    %v8072 = vand.u32 %v8071, 4294901760
    %8073 = vmatpush.msra.mxu0 %v8072
    %v8074 = vand.u32 %v3457, 4294901760
    %v8075 = vsub.f32 %v3457, %v8074
    %v8076 = vand.u32 %v8075, 4294901760
    %v8077 = vsub.f32 %v8075, %v8076
    %v8078 = vand.u32 %v8077, 4294901760
    %8079 = vmatpush.msra.mxu0 %v8078
    %v8080 = vand.u32 %v3423, 4294901760
    %v8081 = vsub.f32 %v3423, %v8080
    %v8082 = vand.u32 %v8081, 4294901760
    %v8083 = vsub.f32 %v8081, %v8082
    %v8084 = vand.u32 %v8083, 4294901760
    %8085 = vmatpush.msra.mxu0 %v8084
    %v8086 = vand.u32 %v3389, 4294901760
    %v8087 = vsub.f32 %v3389, %v8086
    %v8088 = vand.u32 %v8087, 4294901760
    %v8089 = vsub.f32 %v8087, %v8088
    %v8090 = vand.u32 %v8089, 4294901760
    %8091 = vmatpush.msra.mxu0 %v8090
    %v8092 = vand.u32 %v3355, 4294901760
    %v8093 = vsub.f32 %v3355, %v8092
    %v8094 = vand.u32 %v8093, 4294901760
    %v8095 = vsub.f32 %v8093, %v8094
    %v8096 = vand.u32 %v8095, 4294901760
    %8097 = vmatpush.msra.mxu0 %v8096
    %v8098 = vand.u32 %v3654, 4294901760
    %8099 = vmatmul.f32.gmra.mxu0 %v8098
    %v8100 = vpop.f32.mrf.mxu0
    %v8101 = vadd.f32 %v8045, %v8100
    %8102 = vdwg.mxu0
    %8103 = vmatpush.msra.mxu0 0.0
    %8104 = vmatpush.msra.mxu0 0.0
    %8105 = vmatpush.msra.mxu0 0.0
    %8106 = vmatpush.msra.mxu0 0.0
    %8107 = vmatpush.msra.mxu0 0.0
    %8108 = vmatpush.msra.mxu0 0.0
    %8109 = vmatpush.msra.mxu0 0.0
    %8110 = vmatpush.msra.mxu0 0.0
    %8111 = vmatpush.msra.mxu0 0.0
    %v8112 = vand.u32 %v3715, 4294901760
    %v8113 = vsub.f32 %v3715, %v8112
    %8114 = vmatpush.msra.mxu0 %v8113
    %v8115 = vand.u32 %v3525, 4294901760
    %v8116 = vsub.f32 %v3525, %v8115
    %8117 = vmatpush.msra.mxu0 %v8116
    %v8118 = vand.u32 %v3491, 4294901760
    %v8119 = vsub.f32 %v3491, %v8118
    %8120 = vmatpush.msra.mxu0 %v8119
    %v8121 = vand.u32 %v3457, 4294901760
    %v8122 = vsub.f32 %v3457, %v8121
    %8123 = vmatpush.msra.mxu0 %v8122
    %v8124 = vand.u32 %v3423, 4294901760
    %v8125 = vsub.f32 %v3423, %v8124
    %8126 = vmatpush.msra.mxu0 %v8125
    %v8127 = vand.u32 %v3389, 4294901760
    %v8128 = vsub.f32 %v3389, %v8127
    %8129 = vmatpush.msra.mxu0 %v8128
    %v8130 = vand.u32 %v3355, 4294901760
    %v8131 = vsub.f32 %v3355, %v8130
    %8132 = vmatpush.msra.mxu0 %v8131
    %v8133 = vand.u32 %v3654, 4294901760
    %v8134 = vsub.f32 %v3654, %v8133
    %8135 = vmatmul.f32.gmra.mxu0 %v8134
    %v8136 = vpop.f32.mrf.mxu0
    %v8137 = vadd.f32 %v8101, %v8136
    %8138 = vdwg.mxu0
    %8139 = vmatpush.msra.mxu0 0.0
    %8140 = vmatpush.msra.mxu0 0.0
    %8141 = vmatpush.msra.mxu0 0.0
    %8142 = vmatpush.msra.mxu0 0.0
    %8143 = vmatpush.msra.mxu0 0.0
    %8144 = vmatpush.msra.mxu0 0.0
    %8145 = vmatpush.msra.mxu0 0.0
    %8146 = vmatpush.msra.mxu0 0.0
    %8147 = vmatpush.msra.mxu0 0.0
    %v8148 = vand.u32 %v3715, 4294901760
    %8149 = vmatpush.msra.mxu0 %v8148
    %v8150 = vand.u32 %v3525, 4294901760
    %8151 = vmatpush.msra.mxu0 %v8150
    %v8152 = vand.u32 %v3491, 4294901760
    %8153 = vmatpush.msra.mxu0 %v8152
    %v8154 = vand.u32 %v3457, 4294901760
    %8155 = vmatpush.msra.mxu0 %v8154
    %v8156 = vand.u32 %v3423, 4294901760
    %8157 = vmatpush.msra.mxu0 %v8156
    %v8158 = vand.u32 %v3389, 4294901760
    %8159 = vmatpush.msra.mxu0 %v8158
    %v8160 = vand.u32 %v3355, 4294901760
    %8161 = vmatpush.msra.mxu0 %v8160
    %v8162 = vand.u32 %v3654, 4294901760
    %v8163 = vsub.f32 %v3654, %v8162
    %v8164 = vand.u32 %v8163, 4294901760
    %8165 = vmatmul.f32.gmra.mxu0 %v8164
    %v8166 = vpop.f32.mrf.mxu0
    %v8167 = vadd.f32 %v8137, %v8166
    %8168 = vdwg.mxu0
    %8169 = vmatpush.msra.mxu0 0.0
    %8170 = vmatpush.msra.mxu0 0.0
    %8171 = vmatpush.msra.mxu0 0.0
    %8172 = vmatpush.msra.mxu0 0.0
    %8173 = vmatpush.msra.mxu0 0.0
    %8174 = vmatpush.msra.mxu0 0.0
    %8175 = vmatpush.msra.mxu0 0.0
    %8176 = vmatpush.msra.mxu0 0.0
    %8177 = vmatpush.msra.mxu0 0.0
    %v8178 = vand.u32 %v3715, 4294901760
    %v8179 = vsub.f32 %v3715, %v8178
    %v8180 = vand.u32 %v8179, 4294901760
    %8181 = vmatpush.msra.mxu0 %v8180
    %v8182 = vand.u32 %v3525, 4294901760
    %v8183 = vsub.f32 %v3525, %v8182
    %v8184 = vand.u32 %v8183, 4294901760
    %8185 = vmatpush.msra.mxu0 %v8184
    %v8186 = vand.u32 %v3491, 4294901760
    %v8187 = vsub.f32 %v3491, %v8186
    %v8188 = vand.u32 %v8187, 4294901760
    %8189 = vmatpush.msra.mxu0 %v8188
    %v8190 = vand.u32 %v3457, 4294901760
    %v8191 = vsub.f32 %v3457, %v8190
    %v8192 = vand.u32 %v8191, 4294901760
    %8193 = vmatpush.msra.mxu0 %v8192
    %v8194 = vand.u32 %v3423, 4294901760
    %v8195 = vsub.f32 %v3423, %v8194
    %v8196 = vand.u32 %v8195, 4294901760
    %8197 = vmatpush.msra.mxu0 %v8196
    %v8198 = vand.u32 %v3389, 4294901760
    %v8199 = vsub.f32 %v3389, %v8198
    %v8200 = vand.u32 %v8199, 4294901760
    %8201 = vmatpush.msra.mxu0 %v8200
    %v8202 = vand.u32 %v3355, 4294901760
    %v8203 = vsub.f32 %v3355, %v8202
    %v8204 = vand.u32 %v8203, 4294901760
    %8205 = vmatpush.msra.mxu0 %v8204
    %v8206 = vand.u32 %v3654, 4294901760
    %8207 = vmatmul.f32.gmra.mxu0 %v8206
    %v8208 = vpop.f32.mrf.mxu0
    %v8209 = vadd.f32 %v8167, %v8208
    %8210 = vdwg.mxu0
    %8211 = vmatpush.msra.mxu0 0.0
    %8212 = vmatpush.msra.mxu0 0.0
    %8213 = vmatpush.msra.mxu0 0.0
    %8214 = vmatpush.msra.mxu0 0.0
    %8215 = vmatpush.msra.mxu0 0.0
    %8216 = vmatpush.msra.mxu0 0.0
    %8217 = vmatpush.msra.mxu0 0.0
    %8218 = vmatpush.msra.mxu0 0.0
    %8219 = vmatpush.msra.mxu0 0.0
    %v8220 = vand.u32 %v3715, 4294901760
    %8221 = vmatpush.msra.mxu0 %v8220
    %v8222 = vand.u32 %v3525, 4294901760
    %8223 = vmatpush.msra.mxu0 %v8222
    %v8224 = vand.u32 %v3491, 4294901760
    %8225 = vmatpush.msra.mxu0 %v8224
    %v8226 = vand.u32 %v3457, 4294901760
    %8227 = vmatpush.msra.mxu0 %v8226
    %v8228 = vand.u32 %v3423, 4294901760
    %8229 = vmatpush.msra.mxu0 %v8228
    %v8230 = vand.u32 %v3389, 4294901760
    %8231 = vmatpush.msra.mxu0 %v8230
    %v8232 = vand.u32 %v3355, 4294901760
    %8233 = vmatpush.msra.mxu0 %v8232
    %v8234 = vand.u32 %v3654, 4294901760
    %8235 = vmatmul.f32.gmra.mxu0 %v8234
    %v8236 = vpop.f32.mrf.mxu0
    %v8237 = vadd.f32 %v8209, %v8236
    %8238 = vdwg.mxu0
    %8239 = vmatpush.msra.mxu0 0.0
    %8240 = vmatpush.msra.mxu0 0.0
    %8241 = vmatpush.msra.mxu0 0.0
    %8242 = vmatpush.msra.mxu0 0.0
    %8243 = vmatpush.msra.mxu0 0.0
    %8244 = vmatpush.msra.mxu0 0.0
    %8245 = vmatpush.msra.mxu0 0.0
    %8246 = vmatpush.msra.mxu0 0.0
    %8247 = vmatpush.msra.mxu0 0.0
    %v8248 = vand.u32 %v3718, 4294901760
    %8249 = vmatpush.msra.mxu0 %v8248
    %v8250 = vand.u32 %v3526, 4294901760
    %8251 = vmatpush.msra.mxu0 %v8250
    %v8252 = vand.u32 %v3492, 4294901760
    %8253 = vmatpush.msra.mxu0 %v8252
    %v8254 = vand.u32 %v3458, 4294901760
    %8255 = vmatpush.msra.mxu0 %v8254
    %v8256 = vand.u32 %v3424, 4294901760
    %8257 = vmatpush.msra.mxu0 %v8256
    %v8258 = vand.u32 %v3390, 4294901760
    %8259 = vmatpush.msra.mxu0 %v8258
    %v8260 = vand.u32 %v3356, 4294901760
    %8261 = vmatpush.msra.mxu0 %v8260
    %v8262 = vand.u32 %v3654, 4294901760
    %v8263 = vsub.f32 %v3654, %v8262
    %v8264 = vand.u32 %v8263, 4294901760
    %v8265 = vsub.f32 %v8263, %v8264
    %v8266 = vand.u32 %v8265, 4294901760
    %8267 = vmatmul.f32.gmra.mxu0 %v8266
    %v8268 = vpop.f32.mrf.mxu0
    %v8269 = vadd.f32 %v3604, %v8268
    %8270 = vdwg.mxu0
    %8271 = vmatpush.msra.mxu0 0.0
    %8272 = vmatpush.msra.mxu0 0.0
    %8273 = vmatpush.msra.mxu0 0.0
    %8274 = vmatpush.msra.mxu0 0.0
    %8275 = vmatpush.msra.mxu0 0.0
    %8276 = vmatpush.msra.mxu0 0.0
    %8277 = vmatpush.msra.mxu0 0.0
    %8278 = vmatpush.msra.mxu0 0.0
    %8279 = vmatpush.msra.mxu0 0.0
    %v8280 = vand.u32 %v3718, 4294901760
    %v8281 = vsub.f32 %v3718, %v8280
    %v8282 = vand.u32 %v8281, 4294901760
    %v8283 = vsub.f32 %v8281, %v8282
    %v8284 = vand.u32 %v8283, 4294901760
    %8285 = vmatpush.msra.mxu0 %v8284
    %v8286 = vand.u32 %v3526, 4294901760
    %v8287 = vsub.f32 %v3526, %v8286
    %v8288 = vand.u32 %v8287, 4294901760
    %v8289 = vsub.f32 %v8287, %v8288
    %v8290 = vand.u32 %v8289, 4294901760
    %8291 = vmatpush.msra.mxu0 %v8290
    %v8292 = vand.u32 %v3492, 4294901760
    %v8293 = vsub.f32 %v3492, %v8292
    %v8294 = vand.u32 %v8293, 4294901760
    %v8295 = vsub.f32 %v8293, %v8294
    %v8296 = vand.u32 %v8295, 4294901760
    %8297 = vmatpush.msra.mxu0 %v8296
    %v8298 = vand.u32 %v3458, 4294901760
    %v8299 = vsub.f32 %v3458, %v8298
    %v8300 = vand.u32 %v8299, 4294901760
    %v8301 = vsub.f32 %v8299, %v8300
    %v8302 = vand.u32 %v8301, 4294901760
    %8303 = vmatpush.msra.mxu0 %v8302
    %v8304 = vand.u32 %v3424, 4294901760
    %v8305 = vsub.f32 %v3424, %v8304
    %v8306 = vand.u32 %v8305, 4294901760
    %v8307 = vsub.f32 %v8305, %v8306
    %v8308 = vand.u32 %v8307, 4294901760
    %8309 = vmatpush.msra.mxu0 %v8308
    %v8310 = vand.u32 %v3390, 4294901760
    %v8311 = vsub.f32 %v3390, %v8310
    %v8312 = vand.u32 %v8311, 4294901760
    %v8313 = vsub.f32 %v8311, %v8312
    %v8314 = vand.u32 %v8313, 4294901760
    %8315 = vmatpush.msra.mxu0 %v8314
    %v8316 = vand.u32 %v3356, 4294901760
    %v8317 = vsub.f32 %v3356, %v8316
    %v8318 = vand.u32 %v8317, 4294901760
    %v8319 = vsub.f32 %v8317, %v8318
    %v8320 = vand.u32 %v8319, 4294901760
    %8321 = vmatpush.msra.mxu0 %v8320
    %v8322 = vand.u32 %v3654, 4294901760
    %8323 = vmatmul.f32.gmra.mxu0 %v8322
    %v8324 = vpop.f32.mrf.mxu0
    %v8325 = vadd.f32 %v8269, %v8324
    %8326 = vdwg.mxu0
    %8327 = vmatpush.msra.mxu0 0.0
    %8328 = vmatpush.msra.mxu0 0.0
    %8329 = vmatpush.msra.mxu0 0.0
    %8330 = vmatpush.msra.mxu0 0.0
    %8331 = vmatpush.msra.mxu0 0.0
    %8332 = vmatpush.msra.mxu0 0.0
    %8333 = vmatpush.msra.mxu0 0.0
    %8334 = vmatpush.msra.mxu0 0.0
    %8335 = vmatpush.msra.mxu0 0.0
    %v8336 = vand.u32 %v3718, 4294901760
    %v8337 = vsub.f32 %v3718, %v8336
    %8338 = vmatpush.msra.mxu0 %v8337
    %v8339 = vand.u32 %v3526, 4294901760
    %v8340 = vsub.f32 %v3526, %v8339
    %8341 = vmatpush.msra.mxu0 %v8340
    %v8342 = vand.u32 %v3492, 4294901760
    %v8343 = vsub.f32 %v3492, %v8342
    %8344 = vmatpush.msra.mxu0 %v8343
    %v8345 = vand.u32 %v3458, 4294901760
    %v8346 = vsub.f32 %v3458, %v8345
    %8347 = vmatpush.msra.mxu0 %v8346
    %v8348 = vand.u32 %v3424, 4294901760
    %v8349 = vsub.f32 %v3424, %v8348
    %8350 = vmatpush.msra.mxu0 %v8349
    %v8351 = vand.u32 %v3390, 4294901760
    %v8352 = vsub.f32 %v3390, %v8351
    %8353 = vmatpush.msra.mxu0 %v8352
    %v8354 = vand.u32 %v3356, 4294901760
    %v8355 = vsub.f32 %v3356, %v8354
    %8356 = vmatpush.msra.mxu0 %v8355
    %v8357 = vand.u32 %v3654, 4294901760
    %v8358 = vsub.f32 %v3654, %v8357
    %8359 = vmatmul.f32.gmra.mxu0 %v8358
    %v8360 = vpop.f32.mrf.mxu0
    %v8361 = vadd.f32 %v8325, %v8360
    %8362 = vdwg.mxu0
    %8363 = vmatpush.msra.mxu0 0.0
    %8364 = vmatpush.msra.mxu0 0.0
    %8365 = vmatpush.msra.mxu0 0.0
    %8366 = vmatpush.msra.mxu0 0.0
    %8367 = vmatpush.msra.mxu0 0.0
    %8368 = vmatpush.msra.mxu0 0.0
    %8369 = vmatpush.msra.mxu0 0.0
    %8370 = vmatpush.msra.mxu0 0.0
    %8371 = vmatpush.msra.mxu0 0.0
    %v8372 = vand.u32 %v3718, 4294901760
    %8373 = vmatpush.msra.mxu0 %v8372
    %v8374 = vand.u32 %v3526, 4294901760
    %8375 = vmatpush.msra.mxu0 %v8374
    %v8376 = vand.u32 %v3492, 4294901760
    %8377 = vmatpush.msra.mxu0 %v8376
    %v8378 = vand.u32 %v3458, 4294901760
    %8379 = vmatpush.msra.mxu0 %v8378
    %v8380 = vand.u32 %v3424, 4294901760
    %8381 = vmatpush.msra.mxu0 %v8380
    %v8382 = vand.u32 %v3390, 4294901760
    %8383 = vmatpush.msra.mxu0 %v8382
    %v8384 = vand.u32 %v3356, 4294901760
    %8385 = vmatpush.msra.mxu0 %v8384
    %v8386 = vand.u32 %v3654, 4294901760
    %v8387 = vsub.f32 %v3654, %v8386
    %v8388 = vand.u32 %v8387, 4294901760
    %8389 = vmatmul.f32.gmra.mxu0 %v8388
    %v8390 = vpop.f32.mrf.mxu0
    %v8391 = vadd.f32 %v8361, %v8390
    %8392 = vdwg.mxu0
    %8393 = vmatpush.msra.mxu0 0.0
    %8394 = vmatpush.msra.mxu0 0.0
    %8395 = vmatpush.msra.mxu0 0.0
    %8396 = vmatpush.msra.mxu0 0.0
    %8397 = vmatpush.msra.mxu0 0.0
    %8398 = vmatpush.msra.mxu0 0.0
    %8399 = vmatpush.msra.mxu0 0.0
    %8400 = vmatpush.msra.mxu0 0.0
    %8401 = vmatpush.msra.mxu0 0.0
    %v8402 = vand.u32 %v3718, 4294901760
    %v8403 = vsub.f32 %v3718, %v8402
    %v8404 = vand.u32 %v8403, 4294901760
    %8405 = vmatpush.msra.mxu0 %v8404
    %v8406 = vand.u32 %v3526, 4294901760
    %v8407 = vsub.f32 %v3526, %v8406
    %v8408 = vand.u32 %v8407, 4294901760
    %8409 = vmatpush.msra.mxu0 %v8408
    %v8410 = vand.u32 %v3492, 4294901760
    %v8411 = vsub.f32 %v3492, %v8410
    %v8412 = vand.u32 %v8411, 4294901760
    %8413 = vmatpush.msra.mxu0 %v8412
    %v8414 = vand.u32 %v3458, 4294901760
    %v8415 = vsub.f32 %v3458, %v8414
    %v8416 = vand.u32 %v8415, 4294901760
    %8417 = vmatpush.msra.mxu0 %v8416
    %v8418 = vand.u32 %v3424, 4294901760
    %v8419 = vsub.f32 %v3424, %v8418
    %v8420 = vand.u32 %v8419, 4294901760
    %8421 = vmatpush.msra.mxu0 %v8420
    %v8422 = vand.u32 %v3390, 4294901760
    %v8423 = vsub.f32 %v3390, %v8422
    %v8424 = vand.u32 %v8423, 4294901760
    %8425 = vmatpush.msra.mxu0 %v8424
    %v8426 = vand.u32 %v3356, 4294901760
    %v8427 = vsub.f32 %v3356, %v8426
    %v8428 = vand.u32 %v8427, 4294901760
    %8429 = vmatpush.msra.mxu0 %v8428
    %v8430 = vand.u32 %v3654, 4294901760
    %8431 = vmatmul.f32.gmra.mxu0 %v8430
    %v8432 = vpop.f32.mrf.mxu0
    %v8433 = vadd.f32 %v8391, %v8432
    %8434 = vdwg.mxu0
    %8435 = vmatpush.msra.mxu0 0.0
    %8436 = vmatpush.msra.mxu0 0.0
    %8437 = vmatpush.msra.mxu0 0.0
    %8438 = vmatpush.msra.mxu0 0.0
    %8439 = vmatpush.msra.mxu0 0.0
    %8440 = vmatpush.msra.mxu0 0.0
    %8441 = vmatpush.msra.mxu0 0.0
    %8442 = vmatpush.msra.mxu0 0.0
    %8443 = vmatpush.msra.mxu0 0.0
    %v8444 = vand.u32 %v3718, 4294901760
    %8445 = vmatpush.msra.mxu0 %v8444
    %v8446 = vand.u32 %v3526, 4294901760
    %8447 = vmatpush.msra.mxu0 %v8446
    %v8448 = vand.u32 %v3492, 4294901760
    %8449 = vmatpush.msra.mxu0 %v8448
    %v8450 = vand.u32 %v3458, 4294901760
    %8451 = vmatpush.msra.mxu0 %v8450
    %v8452 = vand.u32 %v3424, 4294901760
    %8453 = vmatpush.msra.mxu0 %v8452
    %v8454 = vand.u32 %v3390, 4294901760
    %8455 = vmatpush.msra.mxu0 %v8454
    %v8456 = vand.u32 %v3356, 4294901760
    %8457 = vmatpush.msra.mxu0 %v8456
    %v8458 = vand.u32 %v3654, 4294901760
    %8459 = vmatmul.f32.gmra.mxu0 %v8458
    %v8460 = vpop.f32.mrf.mxu0
    %v8461 = vadd.f32 %v8433, %v8460
    %8462 = vdwg.mxu0
    %8463 = vmatpush.msra.mxu0 0.0
    %8464 = vmatpush.msra.mxu0 0.0
    %8465 = vmatpush.msra.mxu0 0.0
    %8466 = vmatpush.msra.mxu0 0.0
    %8467 = vmatpush.msra.mxu0 0.0
    %8468 = vmatpush.msra.mxu0 0.0
    %8469 = vmatpush.msra.mxu0 0.0
    %8470 = vmatpush.msra.mxu0 0.0
    %8471 = vmatpush.msra.mxu0 0.0
    %v8472 = vand.u32 %v3721, 4294901760
    %8473 = vmatpush.msra.mxu0 %v8472
    %v8474 = vand.u32 %v3527, 4294901760
    %8475 = vmatpush.msra.mxu0 %v8474
    %v8476 = vand.u32 %v3493, 4294901760
    %8477 = vmatpush.msra.mxu0 %v8476
    %v8478 = vand.u32 %v3459, 4294901760
    %8479 = vmatpush.msra.mxu0 %v8478
    %v8480 = vand.u32 %v3425, 4294901760
    %8481 = vmatpush.msra.mxu0 %v8480
    %v8482 = vand.u32 %v3391, 4294901760
    %8483 = vmatpush.msra.mxu0 %v8482
    %v8484 = vand.u32 %v3357, 4294901760
    %8485 = vmatpush.msra.mxu0 %v8484
    %v8486 = vand.u32 %v3654, 4294901760
    %v8487 = vsub.f32 %v3654, %v8486
    %v8488 = vand.u32 %v8487, 4294901760
    %v8489 = vsub.f32 %v8487, %v8488
    %v8490 = vand.u32 %v8489, 4294901760
    %8491 = vmatmul.f32.gmra.mxu0 %v8490
    %v8492 = vpop.f32.mrf.mxu0
    %v8493 = vadd.f32 %v3605, %v8492
    %8494 = vdwg.mxu0
    %8495 = vmatpush.msra.mxu0 0.0
    %8496 = vmatpush.msra.mxu0 0.0
    %8497 = vmatpush.msra.mxu0 0.0
    %8498 = vmatpush.msra.mxu0 0.0
    %8499 = vmatpush.msra.mxu0 0.0
    %8500 = vmatpush.msra.mxu0 0.0
    %8501 = vmatpush.msra.mxu0 0.0
    %8502 = vmatpush.msra.mxu0 0.0
    %8503 = vmatpush.msra.mxu0 0.0
    %v8504 = vand.u32 %v3721, 4294901760
    %v8505 = vsub.f32 %v3721, %v8504
    %v8506 = vand.u32 %v8505, 4294901760
    %v8507 = vsub.f32 %v8505, %v8506
    %v8508 = vand.u32 %v8507, 4294901760
    %8509 = vmatpush.msra.mxu0 %v8508
    %v8510 = vand.u32 %v3527, 4294901760
    %v8511 = vsub.f32 %v3527, %v8510
    %v8512 = vand.u32 %v8511, 4294901760
    %v8513 = vsub.f32 %v8511, %v8512
    %v8514 = vand.u32 %v8513, 4294901760
    %8515 = vmatpush.msra.mxu0 %v8514
    %v8516 = vand.u32 %v3493, 4294901760
    %v8517 = vsub.f32 %v3493, %v8516
    %v8518 = vand.u32 %v8517, 4294901760
    %v8519 = vsub.f32 %v8517, %v8518
    %v8520 = vand.u32 %v8519, 4294901760
    %8521 = vmatpush.msra.mxu0 %v8520
    %v8522 = vand.u32 %v3459, 4294901760
    %v8523 = vsub.f32 %v3459, %v8522
    %v8524 = vand.u32 %v8523, 4294901760
    %v8525 = vsub.f32 %v8523, %v8524
    %v8526 = vand.u32 %v8525, 4294901760
    %8527 = vmatpush.msra.mxu0 %v8526
    %v8528 = vand.u32 %v3425, 4294901760
    %v8529 = vsub.f32 %v3425, %v8528
    %v8530 = vand.u32 %v8529, 4294901760
    %v8531 = vsub.f32 %v8529, %v8530
    %v8532 = vand.u32 %v8531, 4294901760
    %8533 = vmatpush.msra.mxu0 %v8532
    %v8534 = vand.u32 %v3391, 4294901760
    %v8535 = vsub.f32 %v3391, %v8534
    %v8536 = vand.u32 %v8535, 4294901760
    %v8537 = vsub.f32 %v8535, %v8536
    %v8538 = vand.u32 %v8537, 4294901760
    %8539 = vmatpush.msra.mxu0 %v8538
    %v8540 = vand.u32 %v3357, 4294901760
    %v8541 = vsub.f32 %v3357, %v8540
    %v8542 = vand.u32 %v8541, 4294901760
    %v8543 = vsub.f32 %v8541, %v8542
    %v8544 = vand.u32 %v8543, 4294901760
    %8545 = vmatpush.msra.mxu0 %v8544
    %v8546 = vand.u32 %v3654, 4294901760
    %8547 = vmatmul.f32.gmra.mxu0 %v8546
    %v8548 = vpop.f32.mrf.mxu0
    %v8549 = vadd.f32 %v8493, %v8548
    %8550 = vdwg.mxu0
    %8551 = vmatpush.msra.mxu0 0.0
    %8552 = vmatpush.msra.mxu0 0.0
    %8553 = vmatpush.msra.mxu0 0.0
    %8554 = vmatpush.msra.mxu0 0.0
    %8555 = vmatpush.msra.mxu0 0.0
    %8556 = vmatpush.msra.mxu0 0.0
    %8557 = vmatpush.msra.mxu0 0.0
    %8558 = vmatpush.msra.mxu0 0.0
    %8559 = vmatpush.msra.mxu0 0.0
    %v8560 = vand.u32 %v3721, 4294901760
    %v8561 = vsub.f32 %v3721, %v8560
    %8562 = vmatpush.msra.mxu0 %v8561
    %v8563 = vand.u32 %v3527, 4294901760
    %v8564 = vsub.f32 %v3527, %v8563
    %8565 = vmatpush.msra.mxu0 %v8564
    %v8566 = vand.u32 %v3493, 4294901760
    %v8567 = vsub.f32 %v3493, %v8566
    %8568 = vmatpush.msra.mxu0 %v8567
    %v8569 = vand.u32 %v3459, 4294901760
    %v8570 = vsub.f32 %v3459, %v8569
    %8571 = vmatpush.msra.mxu0 %v8570
    %v8572 = vand.u32 %v3425, 4294901760
    %v8573 = vsub.f32 %v3425, %v8572
    %8574 = vmatpush.msra.mxu0 %v8573
    %v8575 = vand.u32 %v3391, 4294901760
    %v8576 = vsub.f32 %v3391, %v8575
    %8577 = vmatpush.msra.mxu0 %v8576
    %v8578 = vand.u32 %v3357, 4294901760
    %v8579 = vsub.f32 %v3357, %v8578
    %8580 = vmatpush.msra.mxu0 %v8579
    %v8581 = vand.u32 %v3654, 4294901760
    %v8582 = vsub.f32 %v3654, %v8581
    %8583 = vmatmul.f32.gmra.mxu0 %v8582
    %v8584 = vpop.f32.mrf.mxu0
    %v8585 = vadd.f32 %v8549, %v8584
    %8586 = vdwg.mxu0
    %8587 = vmatpush.msra.mxu0 0.0
    %8588 = vmatpush.msra.mxu0 0.0
    %8589 = vmatpush.msra.mxu0 0.0
    %8590 = vmatpush.msra.mxu0 0.0
    %8591 = vmatpush.msra.mxu0 0.0
    %8592 = vmatpush.msra.mxu0 0.0
    %8593 = vmatpush.msra.mxu0 0.0
    %8594 = vmatpush.msra.mxu0 0.0
    %8595 = vmatpush.msra.mxu0 0.0
    %v8596 = vand.u32 %v3721, 4294901760
    %8597 = vmatpush.msra.mxu0 %v8596
    %v8598 = vand.u32 %v3527, 4294901760
    %8599 = vmatpush.msra.mxu0 %v8598
    %v8600 = vand.u32 %v3493, 4294901760
    %8601 = vmatpush.msra.mxu0 %v8600
    %v8602 = vand.u32 %v3459, 4294901760
    %8603 = vmatpush.msra.mxu0 %v8602
    %v8604 = vand.u32 %v3425, 4294901760
    %8605 = vmatpush.msra.mxu0 %v8604
    %v8606 = vand.u32 %v3391, 4294901760
    %8607 = vmatpush.msra.mxu0 %v8606
    %v8608 = vand.u32 %v3357, 4294901760
    %8609 = vmatpush.msra.mxu0 %v8608
    %v8610 = vand.u32 %v3654, 4294901760
    %v8611 = vsub.f32 %v3654, %v8610
    %v8612 = vand.u32 %v8611, 4294901760
    %8613 = vmatmul.f32.gmra.mxu0 %v8612
    %v8614 = vpop.f32.mrf.mxu0
    %v8615 = vadd.f32 %v8585, %v8614
    %8616 = vdwg.mxu0
    %8617 = vmatpush.msra.mxu0 0.0
    %8618 = vmatpush.msra.mxu0 0.0
    %8619 = vmatpush.msra.mxu0 0.0
    %8620 = vmatpush.msra.mxu0 0.0
    %8621 = vmatpush.msra.mxu0 0.0
    %8622 = vmatpush.msra.mxu0 0.0
    %8623 = vmatpush.msra.mxu0 0.0
    %8624 = vmatpush.msra.mxu0 0.0
    %8625 = vmatpush.msra.mxu0 0.0
    %v8626 = vand.u32 %v3721, 4294901760
    %v8627 = vsub.f32 %v3721, %v8626
    %v8628 = vand.u32 %v8627, 4294901760
    %8629 = vmatpush.msra.mxu0 %v8628
    %v8630 = vand.u32 %v3527, 4294901760
    %v8631 = vsub.f32 %v3527, %v8630
    %v8632 = vand.u32 %v8631, 4294901760
    %8633 = vmatpush.msra.mxu0 %v8632
    %v8634 = vand.u32 %v3493, 4294901760
    %v8635 = vsub.f32 %v3493, %v8634
    %v8636 = vand.u32 %v8635, 4294901760
    %8637 = vmatpush.msra.mxu0 %v8636
    %v8638 = vand.u32 %v3459, 4294901760
    %v8639 = vsub.f32 %v3459, %v8638
    %v8640 = vand.u32 %v8639, 4294901760
    %8641 = vmatpush.msra.mxu0 %v8640
    %v8642 = vand.u32 %v3425, 4294901760
    %v8643 = vsub.f32 %v3425, %v8642
    %v8644 = vand.u32 %v8643, 4294901760
    %8645 = vmatpush.msra.mxu0 %v8644
    %v8646 = vand.u32 %v3391, 4294901760
    %v8647 = vsub.f32 %v3391, %v8646
    %v8648 = vand.u32 %v8647, 4294901760
    %8649 = vmatpush.msra.mxu0 %v8648
    %v8650 = vand.u32 %v3357, 4294901760
    %v8651 = vsub.f32 %v3357, %v8650
    %v8652 = vand.u32 %v8651, 4294901760
    %8653 = vmatpush.msra.mxu0 %v8652
    %v8654 = vand.u32 %v3654, 4294901760
    %8655 = vmatmul.f32.gmra.mxu0 %v8654
    %v8656 = vpop.f32.mrf.mxu0
    %v8657 = vadd.f32 %v8615, %v8656
    %8658 = vdwg.mxu0
    %8659 = vmatpush.msra.mxu0 0.0
    %8660 = vmatpush.msra.mxu0 0.0
    %8661 = vmatpush.msra.mxu0 0.0
    %8662 = vmatpush.msra.mxu0 0.0
    %8663 = vmatpush.msra.mxu0 0.0
    %8664 = vmatpush.msra.mxu0 0.0
    %8665 = vmatpush.msra.mxu0 0.0
    %8666 = vmatpush.msra.mxu0 0.0
    %8667 = vmatpush.msra.mxu0 0.0
    %v8668 = vand.u32 %v3721, 4294901760
    %8669 = vmatpush.msra.mxu0 %v8668
    %v8670 = vand.u32 %v3527, 4294901760
    %8671 = vmatpush.msra.mxu0 %v8670
    %v8672 = vand.u32 %v3493, 4294901760
    %8673 = vmatpush.msra.mxu0 %v8672
    %v8674 = vand.u32 %v3459, 4294901760
    %8675 = vmatpush.msra.mxu0 %v8674
    %v8676 = vand.u32 %v3425, 4294901760
    %8677 = vmatpush.msra.mxu0 %v8676
    %v8678 = vand.u32 %v3391, 4294901760
    %8679 = vmatpush.msra.mxu0 %v8678
    %v8680 = vand.u32 %v3357, 4294901760
    %8681 = vmatpush.msra.mxu0 %v8680
    %v8682 = vand.u32 %v3654, 4294901760
    %8683 = vmatmul.f32.gmra.mxu0 %v8682
    %v8684 = vpop.f32.mrf.mxu0
    %v8685 = vadd.f32 %v8657, %v8684
    %8686 = vdwg.mxu0
    %8687 = vmatpush.msra.mxu0 0.0
    %8688 = vmatpush.msra.mxu0 0.0
    %8689 = vmatpush.msra.mxu0 0.0
    %8690 = vmatpush.msra.mxu0 0.0
    %8691 = vmatpush.msra.mxu0 0.0
    %8692 = vmatpush.msra.mxu0 0.0
    %8693 = vmatpush.msra.mxu0 0.0
    %8694 = vmatpush.msra.mxu0 0.0
    %8695 = vmatpush.msra.mxu0 0.0
    %v8696 = vand.u32 %v3724, 4294901760
    %8697 = vmatpush.msra.mxu0 %v8696
    %v8698 = vand.u32 %v3528, 4294901760
    %8699 = vmatpush.msra.mxu0 %v8698
    %v8700 = vand.u32 %v3494, 4294901760
    %8701 = vmatpush.msra.mxu0 %v8700
    %v8702 = vand.u32 %v3460, 4294901760
    %8703 = vmatpush.msra.mxu0 %v8702
    %v8704 = vand.u32 %v3426, 4294901760
    %8705 = vmatpush.msra.mxu0 %v8704
    %v8706 = vand.u32 %v3392, 4294901760
    %8707 = vmatpush.msra.mxu0 %v8706
    %v8708 = vand.u32 %v3358, 4294901760
    %8709 = vmatpush.msra.mxu0 %v8708
    %v8710 = vand.u32 %v3654, 4294901760
    %v8711 = vsub.f32 %v3654, %v8710
    %v8712 = vand.u32 %v8711, 4294901760
    %v8713 = vsub.f32 %v8711, %v8712
    %v8714 = vand.u32 %v8713, 4294901760
    %8715 = vmatmul.f32.gmra.mxu0 %v8714
    %v8716 = vpop.f32.mrf.mxu0
    %v8717 = vadd.f32 %v3606, %v8716
    %8718 = vdwg.mxu0
    %8719 = vmatpush.msra.mxu0 0.0
    %8720 = vmatpush.msra.mxu0 0.0
    %8721 = vmatpush.msra.mxu0 0.0
    %8722 = vmatpush.msra.mxu0 0.0
    %8723 = vmatpush.msra.mxu0 0.0
    %8724 = vmatpush.msra.mxu0 0.0
    %8725 = vmatpush.msra.mxu0 0.0
    %8726 = vmatpush.msra.mxu0 0.0
    %8727 = vmatpush.msra.mxu0 0.0
    %v8728 = vand.u32 %v3724, 4294901760
    %v8729 = vsub.f32 %v3724, %v8728
    %v8730 = vand.u32 %v8729, 4294901760
    %v8731 = vsub.f32 %v8729, %v8730
    %v8732 = vand.u32 %v8731, 4294901760
    %8733 = vmatpush.msra.mxu0 %v8732
    %v8734 = vand.u32 %v3528, 4294901760
    %v8735 = vsub.f32 %v3528, %v8734
    %v8736 = vand.u32 %v8735, 4294901760
    %v8737 = vsub.f32 %v8735, %v8736
    %v8738 = vand.u32 %v8737, 4294901760
    %8739 = vmatpush.msra.mxu0 %v8738
    %v8740 = vand.u32 %v3494, 4294901760
    %v8741 = vsub.f32 %v3494, %v8740
    %v8742 = vand.u32 %v8741, 4294901760
    %v8743 = vsub.f32 %v8741, %v8742
    %v8744 = vand.u32 %v8743, 4294901760
    %8745 = vmatpush.msra.mxu0 %v8744
    %v8746 = vand.u32 %v3460, 4294901760
    %v8747 = vsub.f32 %v3460, %v8746
    %v8748 = vand.u32 %v8747, 4294901760
    %v8749 = vsub.f32 %v8747, %v8748
    %v8750 = vand.u32 %v8749, 4294901760
    %8751 = vmatpush.msra.mxu0 %v8750
    %v8752 = vand.u32 %v3426, 4294901760
    %v8753 = vsub.f32 %v3426, %v8752
    %v8754 = vand.u32 %v8753, 4294901760
    %v8755 = vsub.f32 %v8753, %v8754
    %v8756 = vand.u32 %v8755, 4294901760
    %8757 = vmatpush.msra.mxu0 %v8756
    %v8758 = vand.u32 %v3392, 4294901760
    %v8759 = vsub.f32 %v3392, %v8758
    %v8760 = vand.u32 %v8759, 4294901760
    %v8761 = vsub.f32 %v8759, %v8760
    %v8762 = vand.u32 %v8761, 4294901760
    %8763 = vmatpush.msra.mxu0 %v8762
    %v8764 = vand.u32 %v3358, 4294901760
    %v8765 = vsub.f32 %v3358, %v8764
    %v8766 = vand.u32 %v8765, 4294901760
    %v8767 = vsub.f32 %v8765, %v8766
    %v8768 = vand.u32 %v8767, 4294901760
    %8769 = vmatpush.msra.mxu0 %v8768
    %v8770 = vand.u32 %v3654, 4294901760
    %8771 = vmatmul.f32.gmra.mxu0 %v8770
    %v8772 = vpop.f32.mrf.mxu0
    %v8773 = vadd.f32 %v8717, %v8772
    %8774 = vdwg.mxu0
    %8775 = vmatpush.msra.mxu0 0.0
    %8776 = vmatpush.msra.mxu0 0.0
    %8777 = vmatpush.msra.mxu0 0.0
    %8778 = vmatpush.msra.mxu0 0.0
    %8779 = vmatpush.msra.mxu0 0.0
    %8780 = vmatpush.msra.mxu0 0.0
    %8781 = vmatpush.msra.mxu0 0.0
    %8782 = vmatpush.msra.mxu0 0.0
    %8783 = vmatpush.msra.mxu0 0.0
    %v8784 = vand.u32 %v3724, 4294901760
    %v8785 = vsub.f32 %v3724, %v8784
    %8786 = vmatpush.msra.mxu0 %v8785
    %v8787 = vand.u32 %v3528, 4294901760
    %v8788 = vsub.f32 %v3528, %v8787
    %8789 = vmatpush.msra.mxu0 %v8788
    %v8790 = vand.u32 %v3494, 4294901760
    %v8791 = vsub.f32 %v3494, %v8790
    %8792 = vmatpush.msra.mxu0 %v8791
    %v8793 = vand.u32 %v3460, 4294901760
    %v8794 = vsub.f32 %v3460, %v8793
    %8795 = vmatpush.msra.mxu0 %v8794
    %v8796 = vand.u32 %v3426, 4294901760
    %v8797 = vsub.f32 %v3426, %v8796
    %8798 = vmatpush.msra.mxu0 %v8797
    %v8799 = vand.u32 %v3392, 4294901760
    %v8800 = vsub.f32 %v3392, %v8799
    %8801 = vmatpush.msra.mxu0 %v8800
    %v8802 = vand.u32 %v3358, 4294901760
    %v8803 = vsub.f32 %v3358, %v8802
    %8804 = vmatpush.msra.mxu0 %v8803
    %v8805 = vand.u32 %v3654, 4294901760
    %v8806 = vsub.f32 %v3654, %v8805
    %8807 = vmatmul.f32.gmra.mxu0 %v8806
    %v8808 = vpop.f32.mrf.mxu0
    %v8809 = vadd.f32 %v8773, %v8808
    %8810 = vdwg.mxu0
    %8811 = vmatpush.msra.mxu0 0.0
    %8812 = vmatpush.msra.mxu0 0.0
    %8813 = vmatpush.msra.mxu0 0.0
    %8814 = vmatpush.msra.mxu0 0.0
    %8815 = vmatpush.msra.mxu0 0.0
    %8816 = vmatpush.msra.mxu0 0.0
    %8817 = vmatpush.msra.mxu0 0.0
    %8818 = vmatpush.msra.mxu0 0.0
    %8819 = vmatpush.msra.mxu0 0.0
    %v8820 = vand.u32 %v3724, 4294901760
    %8821 = vmatpush.msra.mxu0 %v8820
    %v8822 = vand.u32 %v3528, 4294901760
    %8823 = vmatpush.msra.mxu0 %v8822
    %v8824 = vand.u32 %v3494, 4294901760
    %8825 = vmatpush.msra.mxu0 %v8824
    %v8826 = vand.u32 %v3460, 4294901760
    %8827 = vmatpush.msra.mxu0 %v8826
    %v8828 = vand.u32 %v3426, 4294901760
    %8829 = vmatpush.msra.mxu0 %v8828
    %v8830 = vand.u32 %v3392, 4294901760
    %8831 = vmatpush.msra.mxu0 %v8830
    %v8832 = vand.u32 %v3358, 4294901760
    %8833 = vmatpush.msra.mxu0 %v8832
    %v8834 = vand.u32 %v3654, 4294901760
    %v8835 = vsub.f32 %v3654, %v8834
    %v8836 = vand.u32 %v8835, 4294901760
    %8837 = vmatmul.f32.gmra.mxu0 %v8836
    %v8838 = vpop.f32.mrf.mxu0
    %v8839 = vadd.f32 %v8809, %v8838
    %8840 = vdwg.mxu0
    %8841 = vmatpush.msra.mxu0 0.0
    %8842 = vmatpush.msra.mxu0 0.0
    %8843 = vmatpush.msra.mxu0 0.0
    %8844 = vmatpush.msra.mxu0 0.0
    %8845 = vmatpush.msra.mxu0 0.0
    %8846 = vmatpush.msra.mxu0 0.0
    %8847 = vmatpush.msra.mxu0 0.0
    %8848 = vmatpush.msra.mxu0 0.0
    %8849 = vmatpush.msra.mxu0 0.0
    %v8850 = vand.u32 %v3724, 4294901760
    %v8851 = vsub.f32 %v3724, %v8850
    %v8852 = vand.u32 %v8851, 4294901760
    %8853 = vmatpush.msra.mxu0 %v8852
    %v8854 = vand.u32 %v3528, 4294901760
    %v8855 = vsub.f32 %v3528, %v8854
    %v8856 = vand.u32 %v8855, 4294901760
    %8857 = vmatpush.msra.mxu0 %v8856
    %v8858 = vand.u32 %v3494, 4294901760
    %v8859 = vsub.f32 %v3494, %v8858
    %v8860 = vand.u32 %v8859, 4294901760
    %8861 = vmatpush.msra.mxu0 %v8860
    %v8862 = vand.u32 %v3460, 4294901760
    %v8863 = vsub.f32 %v3460, %v8862
    %v8864 = vand.u32 %v8863, 4294901760
    %8865 = vmatpush.msra.mxu0 %v8864
    %v8866 = vand.u32 %v3426, 4294901760
    %v8867 = vsub.f32 %v3426, %v8866
    %v8868 = vand.u32 %v8867, 4294901760
    %8869 = vmatpush.msra.mxu0 %v8868
    %v8870 = vand.u32 %v3392, 4294901760
    %v8871 = vsub.f32 %v3392, %v8870
    %v8872 = vand.u32 %v8871, 4294901760
    %8873 = vmatpush.msra.mxu0 %v8872
    %v8874 = vand.u32 %v3358, 4294901760
    %v8875 = vsub.f32 %v3358, %v8874
    %v8876 = vand.u32 %v8875, 4294901760
    %8877 = vmatpush.msra.mxu0 %v8876
    %v8878 = vand.u32 %v3654, 4294901760
    %8879 = vmatmul.f32.gmra.mxu0 %v8878
    %v8880 = vpop.f32.mrf.mxu0
    %v8881 = vadd.f32 %v8839, %v8880
    %8882 = vdwg.mxu0
    %8883 = vmatpush.msra.mxu0 0.0
    %8884 = vmatpush.msra.mxu0 0.0
    %8885 = vmatpush.msra.mxu0 0.0
    %8886 = vmatpush.msra.mxu0 0.0
    %8887 = vmatpush.msra.mxu0 0.0
    %8888 = vmatpush.msra.mxu0 0.0
    %8889 = vmatpush.msra.mxu0 0.0
    %8890 = vmatpush.msra.mxu0 0.0
    %8891 = vmatpush.msra.mxu0 0.0
    %v8892 = vand.u32 %v3724, 4294901760
    %8893 = vmatpush.msra.mxu0 %v8892
    %v8894 = vand.u32 %v3528, 4294901760
    %8895 = vmatpush.msra.mxu0 %v8894
    %v8896 = vand.u32 %v3494, 4294901760
    %8897 = vmatpush.msra.mxu0 %v8896
    %v8898 = vand.u32 %v3460, 4294901760
    %8899 = vmatpush.msra.mxu0 %v8898
    %v8900 = vand.u32 %v3426, 4294901760
    %8901 = vmatpush.msra.mxu0 %v8900
    %v8902 = vand.u32 %v3392, 4294901760
    %8903 = vmatpush.msra.mxu0 %v8902
    %v8904 = vand.u32 %v3358, 4294901760
    %8905 = vmatpush.msra.mxu0 %v8904
    %v8906 = vand.u32 %v3654, 4294901760
    %8907 = vmatmul.f32.gmra.mxu0 %v8906
    %v8908 = vpop.f32.mrf.mxu0
    %v8909 = vadd.f32 %v8881, %v8908
    %8910 = vdwg.mxu0
    %8911 = vmatpush.msra.mxu0 0.0
    %8912 = vmatpush.msra.mxu0 0.0
    %8913 = vmatpush.msra.mxu0 0.0
    %8914 = vmatpush.msra.mxu0 0.0
    %8915 = vmatpush.msra.mxu0 0.0
    %8916 = vmatpush.msra.mxu0 0.0
    %8917 = vmatpush.msra.mxu0 0.0
    %8918 = vmatpush.msra.mxu0 0.0
    %8919 = vmatpush.msra.mxu0 0.0
    %v8920 = vand.u32 %v3727, 4294901760
    %8921 = vmatpush.msra.mxu0 %v8920
    %v8922 = vand.u32 %v3529, 4294901760
    %8923 = vmatpush.msra.mxu0 %v8922
    %v8924 = vand.u32 %v3495, 4294901760
    %8925 = vmatpush.msra.mxu0 %v8924
    %v8926 = vand.u32 %v3461, 4294901760
    %8927 = vmatpush.msra.mxu0 %v8926
    %v8928 = vand.u32 %v3427, 4294901760
    %8929 = vmatpush.msra.mxu0 %v8928
    %v8930 = vand.u32 %v3393, 4294901760
    %8931 = vmatpush.msra.mxu0 %v8930
    %v8932 = vand.u32 %v3359, 4294901760
    %8933 = vmatpush.msra.mxu0 %v8932
    %v8934 = vand.u32 %v3654, 4294901760
    %v8935 = vsub.f32 %v3654, %v8934
    %v8936 = vand.u32 %v8935, 4294901760
    %v8937 = vsub.f32 %v8935, %v8936
    %v8938 = vand.u32 %v8937, 4294901760
    %8939 = vmatmul.f32.gmra.mxu0 %v8938
    %v8940 = vpop.f32.mrf.mxu0
    %v8941 = vadd.f32 %v3607, %v8940
    %8942 = vdwg.mxu0
    %8943 = vmatpush.msra.mxu0 0.0
    %8944 = vmatpush.msra.mxu0 0.0
    %8945 = vmatpush.msra.mxu0 0.0
    %8946 = vmatpush.msra.mxu0 0.0
    %8947 = vmatpush.msra.mxu0 0.0
    %8948 = vmatpush.msra.mxu0 0.0
    %8949 = vmatpush.msra.mxu0 0.0
    %8950 = vmatpush.msra.mxu0 0.0
    %8951 = vmatpush.msra.mxu0 0.0
    %v8952 = vand.u32 %v3727, 4294901760
    %v8953 = vsub.f32 %v3727, %v8952
    %v8954 = vand.u32 %v8953, 4294901760
    %v8955 = vsub.f32 %v8953, %v8954
    %v8956 = vand.u32 %v8955, 4294901760
    %8957 = vmatpush.msra.mxu0 %v8956
    %v8958 = vand.u32 %v3529, 4294901760
    %v8959 = vsub.f32 %v3529, %v8958
    %v8960 = vand.u32 %v8959, 4294901760
    %v8961 = vsub.f32 %v8959, %v8960
    %v8962 = vand.u32 %v8961, 4294901760
    %8963 = vmatpush.msra.mxu0 %v8962
    %v8964 = vand.u32 %v3495, 4294901760
    %v8965 = vsub.f32 %v3495, %v8964
    %v8966 = vand.u32 %v8965, 4294901760
    %v8967 = vsub.f32 %v8965, %v8966
    %v8968 = vand.u32 %v8967, 4294901760
    %8969 = vmatpush.msra.mxu0 %v8968
    %v8970 = vand.u32 %v3461, 4294901760
    %v8971 = vsub.f32 %v3461, %v8970
    %v8972 = vand.u32 %v8971, 4294901760
    %v8973 = vsub.f32 %v8971, %v8972
    %v8974 = vand.u32 %v8973, 4294901760
    %8975 = vmatpush.msra.mxu0 %v8974
    %v8976 = vand.u32 %v3427, 4294901760
    %v8977 = vsub.f32 %v3427, %v8976
    %v8978 = vand.u32 %v8977, 4294901760
    %v8979 = vsub.f32 %v8977, %v8978
    %v8980 = vand.u32 %v8979, 4294901760
    %8981 = vmatpush.msra.mxu0 %v8980
    %v8982 = vand.u32 %v3393, 4294901760
    %v8983 = vsub.f32 %v3393, %v8982
    %v8984 = vand.u32 %v8983, 4294901760
    %v8985 = vsub.f32 %v8983, %v8984
    %v8986 = vand.u32 %v8985, 4294901760
    %8987 = vmatpush.msra.mxu0 %v8986
    %v8988 = vand.u32 %v3359, 4294901760
    %v8989 = vsub.f32 %v3359, %v8988
    %v8990 = vand.u32 %v8989, 4294901760
    %v8991 = vsub.f32 %v8989, %v8990
    %v8992 = vand.u32 %v8991, 4294901760
    %8993 = vmatpush.msra.mxu0 %v8992
    %v8994 = vand.u32 %v3654, 4294901760
    %8995 = vmatmul.f32.gmra.mxu0 %v8994
    %v8996 = vpop.f32.mrf.mxu0
    %v8997 = vadd.f32 %v8941, %v8996
    %8998 = vdwg.mxu0
    %8999 = vmatpush.msra.mxu0 0.0
    %9000 = vmatpush.msra.mxu0 0.0
    %9001 = vmatpush.msra.mxu0 0.0
    %9002 = vmatpush.msra.mxu0 0.0
    %9003 = vmatpush.msra.mxu0 0.0
    %9004 = vmatpush.msra.mxu0 0.0
    %9005 = vmatpush.msra.mxu0 0.0
    %9006 = vmatpush.msra.mxu0 0.0
    %9007 = vmatpush.msra.mxu0 0.0
    %v9008 = vand.u32 %v3727, 4294901760
    %v9009 = vsub.f32 %v3727, %v9008
    %9010 = vmatpush.msra.mxu0 %v9009
    %v9011 = vand.u32 %v3529, 4294901760
    %v9012 = vsub.f32 %v3529, %v9011
    %9013 = vmatpush.msra.mxu0 %v9012
    %v9014 = vand.u32 %v3495, 4294901760
    %v9015 = vsub.f32 %v3495, %v9014
    %9016 = vmatpush.msra.mxu0 %v9015
    %v9017 = vand.u32 %v3461, 4294901760
    %v9018 = vsub.f32 %v3461, %v9017
    %9019 = vmatpush.msra.mxu0 %v9018
    %v9020 = vand.u32 %v3427, 4294901760
    %v9021 = vsub.f32 %v3427, %v9020
    %9022 = vmatpush.msra.mxu0 %v9021
    %v9023 = vand.u32 %v3393, 4294901760
    %v9024 = vsub.f32 %v3393, %v9023
    %9025 = vmatpush.msra.mxu0 %v9024
    %v9026 = vand.u32 %v3359, 4294901760
    %v9027 = vsub.f32 %v3359, %v9026
    %9028 = vmatpush.msra.mxu0 %v9027
    %v9029 = vand.u32 %v3654, 4294901760
    %v9030 = vsub.f32 %v3654, %v9029
    %9031 = vmatmul.f32.gmra.mxu0 %v9030
    %v9032 = vpop.f32.mrf.mxu0
    %v9033 = vadd.f32 %v8997, %v9032
    %9034 = vdwg.mxu0
    %9035 = vmatpush.msra.mxu0 0.0
    %9036 = vmatpush.msra.mxu0 0.0
    %9037 = vmatpush.msra.mxu0 0.0
    %9038 = vmatpush.msra.mxu0 0.0
    %9039 = vmatpush.msra.mxu0 0.0
    %9040 = vmatpush.msra.mxu0 0.0
    %9041 = vmatpush.msra.mxu0 0.0
    %9042 = vmatpush.msra.mxu0 0.0
    %9043 = vmatpush.msra.mxu0 0.0
    %v9044 = vand.u32 %v3727, 4294901760
    %9045 = vmatpush.msra.mxu0 %v9044
    %v9046 = vand.u32 %v3529, 4294901760
    %9047 = vmatpush.msra.mxu0 %v9046
    %v9048 = vand.u32 %v3495, 4294901760
    %9049 = vmatpush.msra.mxu0 %v9048
    %v9050 = vand.u32 %v3461, 4294901760
    %9051 = vmatpush.msra.mxu0 %v9050
    %v9052 = vand.u32 %v3427, 4294901760
    %9053 = vmatpush.msra.mxu0 %v9052
    %v9054 = vand.u32 %v3393, 4294901760
    %9055 = vmatpush.msra.mxu0 %v9054
    %v9056 = vand.u32 %v3359, 4294901760
    %9057 = vmatpush.msra.mxu0 %v9056
    %v9058 = vand.u32 %v3654, 4294901760
    %v9059 = vsub.f32 %v3654, %v9058
    %v9060 = vand.u32 %v9059, 4294901760
    %9061 = vmatmul.f32.gmra.mxu0 %v9060
    %v9062 = vpop.f32.mrf.mxu0
    %v9063 = vadd.f32 %v9033, %v9062
    %9064 = vdwg.mxu0
    %9065 = vmatpush.msra.mxu0 0.0
    %9066 = vmatpush.msra.mxu0 0.0
    %9067 = vmatpush.msra.mxu0 0.0
    %9068 = vmatpush.msra.mxu0 0.0
    %9069 = vmatpush.msra.mxu0 0.0
    %9070 = vmatpush.msra.mxu0 0.0
    %9071 = vmatpush.msra.mxu0 0.0
    %9072 = vmatpush.msra.mxu0 0.0
    %9073 = vmatpush.msra.mxu0 0.0
    %v9074 = vand.u32 %v3727, 4294901760
    %v9075 = vsub.f32 %v3727, %v9074
    %v9076 = vand.u32 %v9075, 4294901760
    %9077 = vmatpush.msra.mxu0 %v9076
    %v9078 = vand.u32 %v3529, 4294901760
    %v9079 = vsub.f32 %v3529, %v9078
    %v9080 = vand.u32 %v9079, 4294901760
    %9081 = vmatpush.msra.mxu0 %v9080
    %v9082 = vand.u32 %v3495, 4294901760
    %v9083 = vsub.f32 %v3495, %v9082
    %v9084 = vand.u32 %v9083, 4294901760
    %9085 = vmatpush.msra.mxu0 %v9084
    %v9086 = vand.u32 %v3461, 4294901760
    %v9087 = vsub.f32 %v3461, %v9086
    %v9088 = vand.u32 %v9087, 4294901760
    %9089 = vmatpush.msra.mxu0 %v9088
    %v9090 = vand.u32 %v3427, 4294901760
    %v9091 = vsub.f32 %v3427, %v9090
    %v9092 = vand.u32 %v9091, 4294901760
    %9093 = vmatpush.msra.mxu0 %v9092
    %v9094 = vand.u32 %v3393, 4294901760
    %v9095 = vsub.f32 %v3393, %v9094
    %v9096 = vand.u32 %v9095, 4294901760
    %9097 = vmatpush.msra.mxu0 %v9096
    %v9098 = vand.u32 %v3359, 4294901760
    %v9099 = vsub.f32 %v3359, %v9098
    %v9100 = vand.u32 %v9099, 4294901760
    %9101 = vmatpush.msra.mxu0 %v9100
    %v9102 = vand.u32 %v3654, 4294901760
    %9103 = vmatmul.f32.gmra.mxu0 %v9102
    %v9104 = vpop.f32.mrf.mxu0
    %v9105 = vadd.f32 %v9063, %v9104
    %9106 = vdwg.mxu0
    %9107 = vmatpush.msra.mxu0 0.0
    %9108 = vmatpush.msra.mxu0 0.0
    %9109 = vmatpush.msra.mxu0 0.0
    %9110 = vmatpush.msra.mxu0 0.0
    %9111 = vmatpush.msra.mxu0 0.0
    %9112 = vmatpush.msra.mxu0 0.0
    %9113 = vmatpush.msra.mxu0 0.0
    %9114 = vmatpush.msra.mxu0 0.0
    %9115 = vmatpush.msra.mxu0 0.0
    %v9116 = vand.u32 %v3727, 4294901760
    %9117 = vmatpush.msra.mxu0 %v9116
    %v9118 = vand.u32 %v3529, 4294901760
    %9119 = vmatpush.msra.mxu0 %v9118
    %v9120 = vand.u32 %v3495, 4294901760
    %9121 = vmatpush.msra.mxu0 %v9120
    %v9122 = vand.u32 %v3461, 4294901760
    %9123 = vmatpush.msra.mxu0 %v9122
    %v9124 = vand.u32 %v3427, 4294901760
    %9125 = vmatpush.msra.mxu0 %v9124
    %v9126 = vand.u32 %v3393, 4294901760
    %9127 = vmatpush.msra.mxu0 %v9126
    %v9128 = vand.u32 %v3359, 4294901760
    %9129 = vmatpush.msra.mxu0 %v9128
    %v9130 = vand.u32 %v3654, 4294901760
    %9131 = vmatmul.f32.gmra.mxu0 %v9130
    %v9132 = vpop.f32.mrf.mxu0
    %v9133 = vadd.f32 %v9105, %v9132
    %9134 = vdwg.mxu0
    %9135 = vmatpush.msra.mxu0 0.0
    %9136 = vmatpush.msra.mxu0 0.0
    %9137 = vmatpush.msra.mxu0 0.0
    %9138 = vmatpush.msra.mxu0 0.0
    %9139 = vmatpush.msra.mxu0 0.0
    %9140 = vmatpush.msra.mxu0 0.0
    %9141 = vmatpush.msra.mxu0 0.0
    %9142 = vmatpush.msra.mxu0 0.0
    %9143 = vmatpush.msra.mxu0 0.0
    %v9144 = vand.u32 %v3730, 4294901760
    %9145 = vmatpush.msra.mxu0 %v9144
    %v9146 = vand.u32 %v3530, 4294901760
    %9147 = vmatpush.msra.mxu0 %v9146
    %v9148 = vand.u32 %v3496, 4294901760
    %9149 = vmatpush.msra.mxu0 %v9148
    %v9150 = vand.u32 %v3462, 4294901760
    %9151 = vmatpush.msra.mxu0 %v9150
    %v9152 = vand.u32 %v3428, 4294901760
    %9153 = vmatpush.msra.mxu0 %v9152
    %v9154 = vand.u32 %v3394, 4294901760
    %9155 = vmatpush.msra.mxu0 %v9154
    %v9156 = vand.u32 %v3360, 4294901760
    %9157 = vmatpush.msra.mxu0 %v9156
    %v9158 = vand.u32 %v3654, 4294901760
    %v9159 = vsub.f32 %v3654, %v9158
    %v9160 = vand.u32 %v9159, 4294901760
    %v9161 = vsub.f32 %v9159, %v9160
    %v9162 = vand.u32 %v9161, 4294901760
    %9163 = vmatmul.f32.gmra.mxu0 %v9162
    %v9164 = vpop.f32.mrf.mxu0
    %v9165 = vadd.f32 %v3608, %v9164
    %9166 = vdwg.mxu0
    %9167 = vmatpush.msra.mxu0 0.0
    %9168 = vmatpush.msra.mxu0 0.0
    %9169 = vmatpush.msra.mxu0 0.0
    %9170 = vmatpush.msra.mxu0 0.0
    %9171 = vmatpush.msra.mxu0 0.0
    %9172 = vmatpush.msra.mxu0 0.0
    %9173 = vmatpush.msra.mxu0 0.0
    %9174 = vmatpush.msra.mxu0 0.0
    %9175 = vmatpush.msra.mxu0 0.0
    %v9176 = vand.u32 %v3730, 4294901760
    %v9177 = vsub.f32 %v3730, %v9176
    %v9178 = vand.u32 %v9177, 4294901760
    %v9179 = vsub.f32 %v9177, %v9178
    %v9180 = vand.u32 %v9179, 4294901760
    %9181 = vmatpush.msra.mxu0 %v9180
    %v9182 = vand.u32 %v3530, 4294901760
    %v9183 = vsub.f32 %v3530, %v9182
    %v9184 = vand.u32 %v9183, 4294901760
    %v9185 = vsub.f32 %v9183, %v9184
    %v9186 = vand.u32 %v9185, 4294901760
    %9187 = vmatpush.msra.mxu0 %v9186
    %v9188 = vand.u32 %v3496, 4294901760
    %v9189 = vsub.f32 %v3496, %v9188
    %v9190 = vand.u32 %v9189, 4294901760
    %v9191 = vsub.f32 %v9189, %v9190
    %v9192 = vand.u32 %v9191, 4294901760
    %9193 = vmatpush.msra.mxu0 %v9192
    %v9194 = vand.u32 %v3462, 4294901760
    %v9195 = vsub.f32 %v3462, %v9194
    %v9196 = vand.u32 %v9195, 4294901760
    %v9197 = vsub.f32 %v9195, %v9196
    %v9198 = vand.u32 %v9197, 4294901760
    %9199 = vmatpush.msra.mxu0 %v9198
    %v9200 = vand.u32 %v3428, 4294901760
    %v9201 = vsub.f32 %v3428, %v9200
    %v9202 = vand.u32 %v9201, 4294901760
    %v9203 = vsub.f32 %v9201, %v9202
    %v9204 = vand.u32 %v9203, 4294901760
    %9205 = vmatpush.msra.mxu0 %v9204
    %v9206 = vand.u32 %v3394, 4294901760
    %v9207 = vsub.f32 %v3394, %v9206
    %v9208 = vand.u32 %v9207, 4294901760
    %v9209 = vsub.f32 %v9207, %v9208
    %v9210 = vand.u32 %v9209, 4294901760
    %9211 = vmatpush.msra.mxu0 %v9210
    %v9212 = vand.u32 %v3360, 4294901760
    %v9213 = vsub.f32 %v3360, %v9212
    %v9214 = vand.u32 %v9213, 4294901760
    %v9215 = vsub.f32 %v9213, %v9214
    %v9216 = vand.u32 %v9215, 4294901760
    %9217 = vmatpush.msra.mxu0 %v9216
    %v9218 = vand.u32 %v3654, 4294901760
    %9219 = vmatmul.f32.gmra.mxu0 %v9218
    %v9220 = vpop.f32.mrf.mxu0
    %v9221 = vadd.f32 %v9165, %v9220
    %9222 = vdwg.mxu0
    %9223 = vmatpush.msra.mxu0 0.0
    %9224 = vmatpush.msra.mxu0 0.0
    %9225 = vmatpush.msra.mxu0 0.0
    %9226 = vmatpush.msra.mxu0 0.0
    %9227 = vmatpush.msra.mxu0 0.0
    %9228 = vmatpush.msra.mxu0 0.0
    %9229 = vmatpush.msra.mxu0 0.0
    %9230 = vmatpush.msra.mxu0 0.0
    %9231 = vmatpush.msra.mxu0 0.0
    %v9232 = vand.u32 %v3730, 4294901760
    %v9233 = vsub.f32 %v3730, %v9232
    %9234 = vmatpush.msra.mxu0 %v9233
    %v9235 = vand.u32 %v3530, 4294901760
    %v9236 = vsub.f32 %v3530, %v9235
    %9237 = vmatpush.msra.mxu0 %v9236
    %v9238 = vand.u32 %v3496, 4294901760
    %v9239 = vsub.f32 %v3496, %v9238
    %9240 = vmatpush.msra.mxu0 %v9239
    %v9241 = vand.u32 %v3462, 4294901760
    %v9242 = vsub.f32 %v3462, %v9241
    %9243 = vmatpush.msra.mxu0 %v9242
    %v9244 = vand.u32 %v3428, 4294901760
    %v9245 = vsub.f32 %v3428, %v9244
    %9246 = vmatpush.msra.mxu0 %v9245
    %v9247 = vand.u32 %v3394, 4294901760
    %v9248 = vsub.f32 %v3394, %v9247
    %9249 = vmatpush.msra.mxu0 %v9248
    %v9250 = vand.u32 %v3360, 4294901760
    %v9251 = vsub.f32 %v3360, %v9250
    %9252 = vmatpush.msra.mxu0 %v9251
    %v9253 = vand.u32 %v3654, 4294901760
    %v9254 = vsub.f32 %v3654, %v9253
    %9255 = vmatmul.f32.gmra.mxu0 %v9254
    %v9256 = vpop.f32.mrf.mxu0
    %v9257 = vadd.f32 %v9221, %v9256
    %9258 = vdwg.mxu0
    %9259 = vmatpush.msra.mxu0 0.0
    %9260 = vmatpush.msra.mxu0 0.0
    %9261 = vmatpush.msra.mxu0 0.0
    %9262 = vmatpush.msra.mxu0 0.0
    %9263 = vmatpush.msra.mxu0 0.0
    %9264 = vmatpush.msra.mxu0 0.0
    %9265 = vmatpush.msra.mxu0 0.0
    %9266 = vmatpush.msra.mxu0 0.0
    %9267 = vmatpush.msra.mxu0 0.0
    %v9268 = vand.u32 %v3730, 4294901760
    %9269 = vmatpush.msra.mxu0 %v9268
    %v9270 = vand.u32 %v3530, 4294901760
    %9271 = vmatpush.msra.mxu0 %v9270
    %v9272 = vand.u32 %v3496, 4294901760
    %9273 = vmatpush.msra.mxu0 %v9272
    %v9274 = vand.u32 %v3462, 4294901760
    %9275 = vmatpush.msra.mxu0 %v9274
    %v9276 = vand.u32 %v3428, 4294901760
    %9277 = vmatpush.msra.mxu0 %v9276
    %v9278 = vand.u32 %v3394, 4294901760
    %9279 = vmatpush.msra.mxu0 %v9278
    %v9280 = vand.u32 %v3360, 4294901760
    %9281 = vmatpush.msra.mxu0 %v9280
    %v9282 = vand.u32 %v3654, 4294901760
    %v9283 = vsub.f32 %v3654, %v9282
    %v9284 = vand.u32 %v9283, 4294901760
    %9285 = vmatmul.f32.gmra.mxu0 %v9284
    %v9286 = vpop.f32.mrf.mxu0
    %v9287 = vadd.f32 %v9257, %v9286
    %9288 = vdwg.mxu0
    %9289 = vmatpush.msra.mxu0 0.0
    %9290 = vmatpush.msra.mxu0 0.0
    %9291 = vmatpush.msra.mxu0 0.0
    %9292 = vmatpush.msra.mxu0 0.0
    %9293 = vmatpush.msra.mxu0 0.0
    %9294 = vmatpush.msra.mxu0 0.0
    %9295 = vmatpush.msra.mxu0 0.0
    %9296 = vmatpush.msra.mxu0 0.0
    %9297 = vmatpush.msra.mxu0 0.0
    %v9298 = vand.u32 %v3730, 4294901760
    %v9299 = vsub.f32 %v3730, %v9298
    %v9300 = vand.u32 %v9299, 4294901760
    %9301 = vmatpush.msra.mxu0 %v9300
    %v9302 = vand.u32 %v3530, 4294901760
    %v9303 = vsub.f32 %v3530, %v9302
    %v9304 = vand.u32 %v9303, 4294901760
    %9305 = vmatpush.msra.mxu0 %v9304
    %v9306 = vand.u32 %v3496, 4294901760
    %v9307 = vsub.f32 %v3496, %v9306
    %v9308 = vand.u32 %v9307, 4294901760
    %9309 = vmatpush.msra.mxu0 %v9308
    %v9310 = vand.u32 %v3462, 4294901760
    %v9311 = vsub.f32 %v3462, %v9310
    %v9312 = vand.u32 %v9311, 4294901760
    %9313 = vmatpush.msra.mxu0 %v9312
    %v9314 = vand.u32 %v3428, 4294901760
    %v9315 = vsub.f32 %v3428, %v9314
    %v9316 = vand.u32 %v9315, 4294901760
    %9317 = vmatpush.msra.mxu0 %v9316
    %v9318 = vand.u32 %v3394, 4294901760
    %v9319 = vsub.f32 %v3394, %v9318
    %v9320 = vand.u32 %v9319, 4294901760
    %9321 = vmatpush.msra.mxu0 %v9320
    %v9322 = vand.u32 %v3360, 4294901760
    %v9323 = vsub.f32 %v3360, %v9322
    %v9324 = vand.u32 %v9323, 4294901760
    %9325 = vmatpush.msra.mxu0 %v9324
    %v9326 = vand.u32 %v3654, 4294901760
    %9327 = vmatmul.f32.gmra.mxu0 %v9326
    %v9328 = vpop.f32.mrf.mxu0
    %v9329 = vadd.f32 %v9287, %v9328
    %9330 = vdwg.mxu0
    %9331 = vmatpush.msra.mxu0 0.0
    %9332 = vmatpush.msra.mxu0 0.0
    %9333 = vmatpush.msra.mxu0 0.0
    %9334 = vmatpush.msra.mxu0 0.0
    %9335 = vmatpush.msra.mxu0 0.0
    %9336 = vmatpush.msra.mxu0 0.0
    %9337 = vmatpush.msra.mxu0 0.0
    %9338 = vmatpush.msra.mxu0 0.0
    %9339 = vmatpush.msra.mxu0 0.0
    %v9340 = vand.u32 %v3730, 4294901760
    %9341 = vmatpush.msra.mxu0 %v9340
    %v9342 = vand.u32 %v3530, 4294901760
    %9343 = vmatpush.msra.mxu0 %v9342
    %v9344 = vand.u32 %v3496, 4294901760
    %9345 = vmatpush.msra.mxu0 %v9344
    %v9346 = vand.u32 %v3462, 4294901760
    %9347 = vmatpush.msra.mxu0 %v9346
    %v9348 = vand.u32 %v3428, 4294901760
    %9349 = vmatpush.msra.mxu0 %v9348
    %v9350 = vand.u32 %v3394, 4294901760
    %9351 = vmatpush.msra.mxu0 %v9350
    %v9352 = vand.u32 %v3360, 4294901760
    %9353 = vmatpush.msra.mxu0 %v9352
    %v9354 = vand.u32 %v3654, 4294901760
    %9355 = vmatmul.f32.gmra.mxu0 %v9354
    %v9356 = vpop.f32.mrf.mxu0
    %v9357 = vadd.f32 %v9329, %v9356
    %9358 = vdwg.mxu0
    %9359 = vmatpush.msra.mxu0 0.0
    %9360 = vmatpush.msra.mxu0 0.0
    %9361 = vmatpush.msra.mxu0 0.0
    %9362 = vmatpush.msra.mxu0 0.0
    %9363 = vmatpush.msra.mxu0 0.0
    %9364 = vmatpush.msra.mxu0 0.0
    %9365 = vmatpush.msra.mxu0 0.0
    %9366 = vmatpush.msra.mxu0 0.0
    %9367 = vmatpush.msra.mxu0 0.0
    %v9368 = vand.u32 %v3733, 4294901760
    %9369 = vmatpush.msra.mxu0 %v9368
    %v9370 = vand.u32 %v3531, 4294901760
    %9371 = vmatpush.msra.mxu0 %v9370
    %v9372 = vand.u32 %v3497, 4294901760
    %9373 = vmatpush.msra.mxu0 %v9372
    %v9374 = vand.u32 %v3463, 4294901760
    %9375 = vmatpush.msra.mxu0 %v9374
    %v9376 = vand.u32 %v3429, 4294901760
    %9377 = vmatpush.msra.mxu0 %v9376
    %v9378 = vand.u32 %v3395, 4294901760
    %9379 = vmatpush.msra.mxu0 %v9378
    %v9380 = vand.u32 %v3361, 4294901760
    %9381 = vmatpush.msra.mxu0 %v9380
    %v9382 = vand.u32 %v3654, 4294901760
    %v9383 = vsub.f32 %v3654, %v9382
    %v9384 = vand.u32 %v9383, 4294901760
    %v9385 = vsub.f32 %v9383, %v9384
    %v9386 = vand.u32 %v9385, 4294901760
    %9387 = vmatmul.f32.gmra.mxu0 %v9386
    %v9388 = vpop.f32.mrf.mxu0
    %v9389 = vadd.f32 %v3609, %v9388
    %9390 = vdwg.mxu0
    %9391 = vmatpush.msra.mxu0 0.0
    %9392 = vmatpush.msra.mxu0 0.0
    %9393 = vmatpush.msra.mxu0 0.0
    %9394 = vmatpush.msra.mxu0 0.0
    %9395 = vmatpush.msra.mxu0 0.0
    %9396 = vmatpush.msra.mxu0 0.0
    %9397 = vmatpush.msra.mxu0 0.0
    %9398 = vmatpush.msra.mxu0 0.0
    %9399 = vmatpush.msra.mxu0 0.0
    %v9400 = vand.u32 %v3733, 4294901760
    %v9401 = vsub.f32 %v3733, %v9400
    %v9402 = vand.u32 %v9401, 4294901760
    %v9403 = vsub.f32 %v9401, %v9402
    %v9404 = vand.u32 %v9403, 4294901760
    %9405 = vmatpush.msra.mxu0 %v9404
    %v9406 = vand.u32 %v3531, 4294901760
    %v9407 = vsub.f32 %v3531, %v9406
    %v9408 = vand.u32 %v9407, 4294901760
    %v9409 = vsub.f32 %v9407, %v9408
    %v9410 = vand.u32 %v9409, 4294901760
    %9411 = vmatpush.msra.mxu0 %v9410
    %v9412 = vand.u32 %v3497, 4294901760
    %v9413 = vsub.f32 %v3497, %v9412
    %v9414 = vand.u32 %v9413, 4294901760
    %v9415 = vsub.f32 %v9413, %v9414
    %v9416 = vand.u32 %v9415, 4294901760
    %9417 = vmatpush.msra.mxu0 %v9416
    %v9418 = vand.u32 %v3463, 4294901760
    %v9419 = vsub.f32 %v3463, %v9418
    %v9420 = vand.u32 %v9419, 4294901760
    %v9421 = vsub.f32 %v9419, %v9420
    %v9422 = vand.u32 %v9421, 4294901760
    %9423 = vmatpush.msra.mxu0 %v9422
    %v9424 = vand.u32 %v3429, 4294901760
    %v9425 = vsub.f32 %v3429, %v9424
    %v9426 = vand.u32 %v9425, 4294901760
    %v9427 = vsub.f32 %v9425, %v9426
    %v9428 = vand.u32 %v9427, 4294901760
    %9429 = vmatpush.msra.mxu0 %v9428
    %v9430 = vand.u32 %v3395, 4294901760
    %v9431 = vsub.f32 %v3395, %v9430
    %v9432 = vand.u32 %v9431, 4294901760
    %v9433 = vsub.f32 %v9431, %v9432
    %v9434 = vand.u32 %v9433, 4294901760
    %9435 = vmatpush.msra.mxu0 %v9434
    %v9436 = vand.u32 %v3361, 4294901760
    %v9437 = vsub.f32 %v3361, %v9436
    %v9438 = vand.u32 %v9437, 4294901760
    %v9439 = vsub.f32 %v9437, %v9438
    %v9440 = vand.u32 %v9439, 4294901760
    %9441 = vmatpush.msra.mxu0 %v9440
    %v9442 = vand.u32 %v3654, 4294901760
    %9443 = vmatmul.f32.gmra.mxu0 %v9442
    %v9444 = vpop.f32.mrf.mxu0
    %v9445 = vadd.f32 %v9389, %v9444
    %9446 = vdwg.mxu0
    %9447 = vmatpush.msra.mxu0 0.0
    %9448 = vmatpush.msra.mxu0 0.0
    %9449 = vmatpush.msra.mxu0 0.0
    %9450 = vmatpush.msra.mxu0 0.0
    %9451 = vmatpush.msra.mxu0 0.0
    %9452 = vmatpush.msra.mxu0 0.0
    %9453 = vmatpush.msra.mxu0 0.0
    %9454 = vmatpush.msra.mxu0 0.0
    %9455 = vmatpush.msra.mxu0 0.0
    %v9456 = vand.u32 %v3733, 4294901760
    %v9457 = vsub.f32 %v3733, %v9456
    %9458 = vmatpush.msra.mxu0 %v9457
    %v9459 = vand.u32 %v3531, 4294901760
    %v9460 = vsub.f32 %v3531, %v9459
    %9461 = vmatpush.msra.mxu0 %v9460
    %v9462 = vand.u32 %v3497, 4294901760
    %v9463 = vsub.f32 %v3497, %v9462
    %9464 = vmatpush.msra.mxu0 %v9463
    %v9465 = vand.u32 %v3463, 4294901760
    %v9466 = vsub.f32 %v3463, %v9465
    %9467 = vmatpush.msra.mxu0 %v9466
    %v9468 = vand.u32 %v3429, 4294901760
    %v9469 = vsub.f32 %v3429, %v9468
    %9470 = vmatpush.msra.mxu0 %v9469
    %v9471 = vand.u32 %v3395, 4294901760
    %v9472 = vsub.f32 %v3395, %v9471
    %9473 = vmatpush.msra.mxu0 %v9472
    %v9474 = vand.u32 %v3361, 4294901760
    %v9475 = vsub.f32 %v3361, %v9474
    %9476 = vmatpush.msra.mxu0 %v9475
    %v9477 = vand.u32 %v3654, 4294901760
    %v9478 = vsub.f32 %v3654, %v9477
    %9479 = vmatmul.f32.gmra.mxu0 %v9478
    %v9480 = vpop.f32.mrf.mxu0
    %v9481 = vadd.f32 %v9445, %v9480
    %9482 = vdwg.mxu0
    %9483 = vmatpush.msra.mxu0 0.0
    %9484 = vmatpush.msra.mxu0 0.0
    %9485 = vmatpush.msra.mxu0 0.0
    %9486 = vmatpush.msra.mxu0 0.0
    %9487 = vmatpush.msra.mxu0 0.0
    %9488 = vmatpush.msra.mxu0 0.0
    %9489 = vmatpush.msra.mxu0 0.0
    %9490 = vmatpush.msra.mxu0 0.0
    %9491 = vmatpush.msra.mxu0 0.0
    %v9492 = vand.u32 %v3733, 4294901760
    %9493 = vmatpush.msra.mxu0 %v9492
    %v9494 = vand.u32 %v3531, 4294901760
    %9495 = vmatpush.msra.mxu0 %v9494
    %v9496 = vand.u32 %v3497, 4294901760
    %9497 = vmatpush.msra.mxu0 %v9496
    %v9498 = vand.u32 %v3463, 4294901760
    %9499 = vmatpush.msra.mxu0 %v9498
    %v9500 = vand.u32 %v3429, 4294901760
    %9501 = vmatpush.msra.mxu0 %v9500
    %v9502 = vand.u32 %v3395, 4294901760
    %9503 = vmatpush.msra.mxu0 %v9502
    %v9504 = vand.u32 %v3361, 4294901760
    %9505 = vmatpush.msra.mxu0 %v9504
    %v9506 = vand.u32 %v3654, 4294901760
    %v9507 = vsub.f32 %v3654, %v9506
    %v9508 = vand.u32 %v9507, 4294901760
    %9509 = vmatmul.f32.gmra.mxu0 %v9508
    %v9510 = vpop.f32.mrf.mxu0
    %v9511 = vadd.f32 %v9481, %v9510
    %9512 = vdwg.mxu0
    %9513 = vmatpush.msra.mxu0 0.0
    %9514 = vmatpush.msra.mxu0 0.0
    %9515 = vmatpush.msra.mxu0 0.0
    %9516 = vmatpush.msra.mxu0 0.0
    %9517 = vmatpush.msra.mxu0 0.0
    %9518 = vmatpush.msra.mxu0 0.0
    %9519 = vmatpush.msra.mxu0 0.0
    %9520 = vmatpush.msra.mxu0 0.0
    %9521 = vmatpush.msra.mxu0 0.0
    %v9522 = vand.u32 %v3733, 4294901760
    %v9523 = vsub.f32 %v3733, %v9522
    %v9524 = vand.u32 %v9523, 4294901760
    %9525 = vmatpush.msra.mxu0 %v9524
    %v9526 = vand.u32 %v3531, 4294901760
    %v9527 = vsub.f32 %v3531, %v9526
    %v9528 = vand.u32 %v9527, 4294901760
    %9529 = vmatpush.msra.mxu0 %v9528
    %v9530 = vand.u32 %v3497, 4294901760
    %v9531 = vsub.f32 %v3497, %v9530
    %v9532 = vand.u32 %v9531, 4294901760
    %9533 = vmatpush.msra.mxu0 %v9532
    %v9534 = vand.u32 %v3463, 4294901760
    %v9535 = vsub.f32 %v3463, %v9534
    %v9536 = vand.u32 %v9535, 4294901760
    %9537 = vmatpush.msra.mxu0 %v9536
    %v9538 = vand.u32 %v3429, 4294901760
    %v9539 = vsub.f32 %v3429, %v9538
    %v9540 = vand.u32 %v9539, 4294901760
    %9541 = vmatpush.msra.mxu0 %v9540
    %v9542 = vand.u32 %v3395, 4294901760
    %v9543 = vsub.f32 %v3395, %v9542
    %v9544 = vand.u32 %v9543, 4294901760
    %9545 = vmatpush.msra.mxu0 %v9544
    %v9546 = vand.u32 %v3361, 4294901760
    %v9547 = vsub.f32 %v3361, %v9546
    %v9548 = vand.u32 %v9547, 4294901760
    %9549 = vmatpush.msra.mxu0 %v9548
    %v9550 = vand.u32 %v3654, 4294901760
    %9551 = vmatmul.f32.gmra.mxu0 %v9550
    %v9552 = vpop.f32.mrf.mxu0
    %v9553 = vadd.f32 %v9511, %v9552
    %9554 = vdwg.mxu0
    %9555 = vmatpush.msra.mxu0 0.0
    %9556 = vmatpush.msra.mxu0 0.0
    %9557 = vmatpush.msra.mxu0 0.0
    %9558 = vmatpush.msra.mxu0 0.0
    %9559 = vmatpush.msra.mxu0 0.0
    %9560 = vmatpush.msra.mxu0 0.0
    %9561 = vmatpush.msra.mxu0 0.0
    %9562 = vmatpush.msra.mxu0 0.0
    %9563 = vmatpush.msra.mxu0 0.0
    %v9564 = vand.u32 %v3733, 4294901760
    %9565 = vmatpush.msra.mxu0 %v9564
    %v9566 = vand.u32 %v3531, 4294901760
    %9567 = vmatpush.msra.mxu0 %v9566
    %v9568 = vand.u32 %v3497, 4294901760
    %9569 = vmatpush.msra.mxu0 %v9568
    %v9570 = vand.u32 %v3463, 4294901760
    %9571 = vmatpush.msra.mxu0 %v9570
    %v9572 = vand.u32 %v3429, 4294901760
    %9573 = vmatpush.msra.mxu0 %v9572
    %v9574 = vand.u32 %v3395, 4294901760
    %9575 = vmatpush.msra.mxu0 %v9574
    %v9576 = vand.u32 %v3361, 4294901760
    %9577 = vmatpush.msra.mxu0 %v9576
    %v9578 = vand.u32 %v3654, 4294901760
    %9579 = vmatmul.f32.gmra.mxu0 %v9578
    %v9580 = vpop.f32.mrf.mxu0
    %v9581 = vadd.f32 %v9553, %v9580
    %9582 = vdwg.mxu0
    %9583 = vmatpush.msra.mxu0 0.0
    %9584 = vmatpush.msra.mxu0 0.0
    %9585 = vmatpush.msra.mxu0 0.0
    %9586 = vmatpush.msra.mxu0 0.0
    %9587 = vmatpush.msra.mxu0 0.0
    %9588 = vmatpush.msra.mxu0 0.0
    %9589 = vmatpush.msra.mxu0 0.0
    %9590 = vmatpush.msra.mxu0 0.0
    %9591 = vmatpush.msra.mxu0 0.0
    %v9592 = vand.u32 %v3736, 4294901760
    %9593 = vmatpush.msra.mxu0 %v9592
    %v9594 = vand.u32 %v3532, 4294901760
    %9595 = vmatpush.msra.mxu0 %v9594
    %v9596 = vand.u32 %v3498, 4294901760
    %9597 = vmatpush.msra.mxu0 %v9596
    %v9598 = vand.u32 %v3464, 4294901760
    %9599 = vmatpush.msra.mxu0 %v9598
    %v9600 = vand.u32 %v3430, 4294901760
    %9601 = vmatpush.msra.mxu0 %v9600
    %v9602 = vand.u32 %v3396, 4294901760
    %9603 = vmatpush.msra.mxu0 %v9602
    %v9604 = vand.u32 %v3362, 4294901760
    %9605 = vmatpush.msra.mxu0 %v9604
    %v9606 = vand.u32 %v3654, 4294901760
    %v9607 = vsub.f32 %v3654, %v9606
    %v9608 = vand.u32 %v9607, 4294901760
    %v9609 = vsub.f32 %v9607, %v9608
    %v9610 = vand.u32 %v9609, 4294901760
    %9611 = vmatmul.f32.gmra.mxu0 %v9610
    %v9612 = vpop.f32.mrf.mxu0
    %v9613 = vadd.f32 %v3610, %v9612
    %9614 = vdwg.mxu0
    %9615 = vmatpush.msra.mxu0 0.0
    %9616 = vmatpush.msra.mxu0 0.0
    %9617 = vmatpush.msra.mxu0 0.0
    %9618 = vmatpush.msra.mxu0 0.0
    %9619 = vmatpush.msra.mxu0 0.0
    %9620 = vmatpush.msra.mxu0 0.0
    %9621 = vmatpush.msra.mxu0 0.0
    %9622 = vmatpush.msra.mxu0 0.0
    %9623 = vmatpush.msra.mxu0 0.0
    %v9624 = vand.u32 %v3736, 4294901760
    %v9625 = vsub.f32 %v3736, %v9624
    %v9626 = vand.u32 %v9625, 4294901760
    %v9627 = vsub.f32 %v9625, %v9626
    %v9628 = vand.u32 %v9627, 4294901760
    %9629 = vmatpush.msra.mxu0 %v9628
    %v9630 = vand.u32 %v3532, 4294901760
    %v9631 = vsub.f32 %v3532, %v9630
    %v9632 = vand.u32 %v9631, 4294901760
    %v9633 = vsub.f32 %v9631, %v9632
    %v9634 = vand.u32 %v9633, 4294901760
    %9635 = vmatpush.msra.mxu0 %v9634
    %v9636 = vand.u32 %v3498, 4294901760
    %v9637 = vsub.f32 %v3498, %v9636
    %v9638 = vand.u32 %v9637, 4294901760
    %v9639 = vsub.f32 %v9637, %v9638
    %v9640 = vand.u32 %v9639, 4294901760
    %9641 = vmatpush.msra.mxu0 %v9640
    %v9642 = vand.u32 %v3464, 4294901760
    %v9643 = vsub.f32 %v3464, %v9642
    %v9644 = vand.u32 %v9643, 4294901760
    %v9645 = vsub.f32 %v9643, %v9644
    %v9646 = vand.u32 %v9645, 4294901760
    %9647 = vmatpush.msra.mxu0 %v9646
    %v9648 = vand.u32 %v3430, 4294901760
    %v9649 = vsub.f32 %v3430, %v9648
    %v9650 = vand.u32 %v9649, 4294901760
    %v9651 = vsub.f32 %v9649, %v9650
    %v9652 = vand.u32 %v9651, 4294901760
    %9653 = vmatpush.msra.mxu0 %v9652
    %v9654 = vand.u32 %v3396, 4294901760
    %v9655 = vsub.f32 %v3396, %v9654
    %v9656 = vand.u32 %v9655, 4294901760
    %v9657 = vsub.f32 %v9655, %v9656
    %v9658 = vand.u32 %v9657, 4294901760
    %9659 = vmatpush.msra.mxu0 %v9658
    %v9660 = vand.u32 %v3362, 4294901760
    %v9661 = vsub.f32 %v3362, %v9660
    %v9662 = vand.u32 %v9661, 4294901760
    %v9663 = vsub.f32 %v9661, %v9662
    %v9664 = vand.u32 %v9663, 4294901760
    %9665 = vmatpush.msra.mxu0 %v9664
    %v9666 = vand.u32 %v3654, 4294901760
    %9667 = vmatmul.f32.gmra.mxu0 %v9666
    %v9668 = vpop.f32.mrf.mxu0
    %v9669 = vadd.f32 %v9613, %v9668
    %9670 = vdwg.mxu0
    %9671 = vmatpush.msra.mxu0 0.0
    %9672 = vmatpush.msra.mxu0 0.0
    %9673 = vmatpush.msra.mxu0 0.0
    %9674 = vmatpush.msra.mxu0 0.0
    %9675 = vmatpush.msra.mxu0 0.0
    %9676 = vmatpush.msra.mxu0 0.0
    %9677 = vmatpush.msra.mxu0 0.0
    %9678 = vmatpush.msra.mxu0 0.0
    %9679 = vmatpush.msra.mxu0 0.0
    %v9680 = vand.u32 %v3736, 4294901760
    %v9681 = vsub.f32 %v3736, %v9680
    %9682 = vmatpush.msra.mxu0 %v9681
    %v9683 = vand.u32 %v3532, 4294901760
    %v9684 = vsub.f32 %v3532, %v9683
    %9685 = vmatpush.msra.mxu0 %v9684
    %v9686 = vand.u32 %v3498, 4294901760
    %v9687 = vsub.f32 %v3498, %v9686
    %9688 = vmatpush.msra.mxu0 %v9687
    %v9689 = vand.u32 %v3464, 4294901760
    %v9690 = vsub.f32 %v3464, %v9689
    %9691 = vmatpush.msra.mxu0 %v9690
    %v9692 = vand.u32 %v3430, 4294901760
    %v9693 = vsub.f32 %v3430, %v9692
    %9694 = vmatpush.msra.mxu0 %v9693
    %v9695 = vand.u32 %v3396, 4294901760
    %v9696 = vsub.f32 %v3396, %v9695
    %9697 = vmatpush.msra.mxu0 %v9696
    %v9698 = vand.u32 %v3362, 4294901760
    %v9699 = vsub.f32 %v3362, %v9698
    %9700 = vmatpush.msra.mxu0 %v9699
    %v9701 = vand.u32 %v3654, 4294901760
    %v9702 = vsub.f32 %v3654, %v9701
    %9703 = vmatmul.f32.gmra.mxu0 %v9702
    %v9704 = vpop.f32.mrf.mxu0
    %v9705 = vadd.f32 %v9669, %v9704
    %9706 = vdwg.mxu0
    %9707 = vmatpush.msra.mxu0 0.0
    %9708 = vmatpush.msra.mxu0 0.0
    %9709 = vmatpush.msra.mxu0 0.0
    %9710 = vmatpush.msra.mxu0 0.0
    %9711 = vmatpush.msra.mxu0 0.0
    %9712 = vmatpush.msra.mxu0 0.0
    %9713 = vmatpush.msra.mxu0 0.0
    %9714 = vmatpush.msra.mxu0 0.0
    %9715 = vmatpush.msra.mxu0 0.0
    %v9716 = vand.u32 %v3736, 4294901760
    %9717 = vmatpush.msra.mxu0 %v9716
    %v9718 = vand.u32 %v3532, 4294901760
    %9719 = vmatpush.msra.mxu0 %v9718
    %v9720 = vand.u32 %v3498, 4294901760
    %9721 = vmatpush.msra.mxu0 %v9720
    %v9722 = vand.u32 %v3464, 4294901760
    %9723 = vmatpush.msra.mxu0 %v9722
    %v9724 = vand.u32 %v3430, 4294901760
    %9725 = vmatpush.msra.mxu0 %v9724
    %v9726 = vand.u32 %v3396, 4294901760
    %9727 = vmatpush.msra.mxu0 %v9726
    %v9728 = vand.u32 %v3362, 4294901760
    %9729 = vmatpush.msra.mxu0 %v9728
    %v9730 = vand.u32 %v3654, 4294901760
    %v9731 = vsub.f32 %v3654, %v9730
    %v9732 = vand.u32 %v9731, 4294901760
    %9733 = vmatmul.f32.gmra.mxu0 %v9732
    %v9734 = vpop.f32.mrf.mxu0
    %v9735 = vadd.f32 %v9705, %v9734
    %9736 = vdwg.mxu0
    %9737 = vmatpush.msra.mxu0 0.0
    %9738 = vmatpush.msra.mxu0 0.0
    %9739 = vmatpush.msra.mxu0 0.0
    %9740 = vmatpush.msra.mxu0 0.0
    %9741 = vmatpush.msra.mxu0 0.0
    %9742 = vmatpush.msra.mxu0 0.0
    %9743 = vmatpush.msra.mxu0 0.0
    %9744 = vmatpush.msra.mxu0 0.0
    %9745 = vmatpush.msra.mxu0 0.0
    %v9746 = vand.u32 %v3736, 4294901760
    %v9747 = vsub.f32 %v3736, %v9746
    %v9748 = vand.u32 %v9747, 4294901760
    %9749 = vmatpush.msra.mxu0 %v9748
    %v9750 = vand.u32 %v3532, 4294901760
    %v9751 = vsub.f32 %v3532, %v9750
    %v9752 = vand.u32 %v9751, 4294901760
    %9753 = vmatpush.msra.mxu0 %v9752
    %v9754 = vand.u32 %v3498, 4294901760
    %v9755 = vsub.f32 %v3498, %v9754
    %v9756 = vand.u32 %v9755, 4294901760
    %9757 = vmatpush.msra.mxu0 %v9756
    %v9758 = vand.u32 %v3464, 4294901760
    %v9759 = vsub.f32 %v3464, %v9758
    %v9760 = vand.u32 %v9759, 4294901760
    %9761 = vmatpush.msra.mxu0 %v9760
    %v9762 = vand.u32 %v3430, 4294901760
    %v9763 = vsub.f32 %v3430, %v9762
    %v9764 = vand.u32 %v9763, 4294901760
    %9765 = vmatpush.msra.mxu0 %v9764
    %v9766 = vand.u32 %v3396, 4294901760
    %v9767 = vsub.f32 %v3396, %v9766
    %v9768 = vand.u32 %v9767, 4294901760
    %9769 = vmatpush.msra.mxu0 %v9768
    %v9770 = vand.u32 %v3362, 4294901760
    %v9771 = vsub.f32 %v3362, %v9770
    %v9772 = vand.u32 %v9771, 4294901760
    %9773 = vmatpush.msra.mxu0 %v9772
    %v9774 = vand.u32 %v3654, 4294901760
    %9775 = vmatmul.f32.gmra.mxu0 %v9774
    %v9776 = vpop.f32.mrf.mxu0
    %v9777 = vadd.f32 %v9735, %v9776
    %9778 = vdwg.mxu0
    %9779 = vmatpush.msra.mxu0 0.0
    %9780 = vmatpush.msra.mxu0 0.0
    %9781 = vmatpush.msra.mxu0 0.0
    %9782 = vmatpush.msra.mxu0 0.0
    %9783 = vmatpush.msra.mxu0 0.0
    %9784 = vmatpush.msra.mxu0 0.0
    %9785 = vmatpush.msra.mxu0 0.0
    %9786 = vmatpush.msra.mxu0 0.0
    %9787 = vmatpush.msra.mxu0 0.0
    %v9788 = vand.u32 %v3736, 4294901760
    %9789 = vmatpush.msra.mxu0 %v9788
    %v9790 = vand.u32 %v3532, 4294901760
    %9791 = vmatpush.msra.mxu0 %v9790
    %v9792 = vand.u32 %v3498, 4294901760
    %9793 = vmatpush.msra.mxu0 %v9792
    %v9794 = vand.u32 %v3464, 4294901760
    %9795 = vmatpush.msra.mxu0 %v9794
    %v9796 = vand.u32 %v3430, 4294901760
    %9797 = vmatpush.msra.mxu0 %v9796
    %v9798 = vand.u32 %v3396, 4294901760
    %9799 = vmatpush.msra.mxu0 %v9798
    %v9800 = vand.u32 %v3362, 4294901760
    %9801 = vmatpush.msra.mxu0 %v9800
    %v9802 = vand.u32 %v3654, 4294901760
    %9803 = vmatmul.f32.gmra.mxu0 %v9802
    %v9804 = vpop.f32.mrf.mxu0
    %v9805 = vadd.f32 %v9777, %v9804
    %9806 = vdwg.mxu0
    %9807 = vmatpush.msra.mxu0 0.0
    %9808 = vmatpush.msra.mxu0 0.0
    %9809 = vmatpush.msra.mxu0 0.0
    %9810 = vmatpush.msra.mxu0 0.0
    %9811 = vmatpush.msra.mxu0 0.0
    %9812 = vmatpush.msra.mxu0 0.0
    %9813 = vmatpush.msra.mxu0 0.0
    %9814 = vmatpush.msra.mxu0 0.0
    %9815 = vmatpush.msra.mxu0 0.0
    %v9816 = vand.u32 %v3739, 4294901760
    %9817 = vmatpush.msra.mxu0 %v9816
    %v9818 = vand.u32 %v3533, 4294901760
    %9819 = vmatpush.msra.mxu0 %v9818
    %v9820 = vand.u32 %v3499, 4294901760
    %9821 = vmatpush.msra.mxu0 %v9820
    %v9822 = vand.u32 %v3465, 4294901760
    %9823 = vmatpush.msra.mxu0 %v9822
    %v9824 = vand.u32 %v3431, 4294901760
    %9825 = vmatpush.msra.mxu0 %v9824
    %v9826 = vand.u32 %v3397, 4294901760
    %9827 = vmatpush.msra.mxu0 %v9826
    %v9828 = vand.u32 %v3363, 4294901760
    %9829 = vmatpush.msra.mxu0 %v9828
    %v9830 = vand.u32 %v3654, 4294901760
    %v9831 = vsub.f32 %v3654, %v9830
    %v9832 = vand.u32 %v9831, 4294901760
    %v9833 = vsub.f32 %v9831, %v9832
    %v9834 = vand.u32 %v9833, 4294901760
    %9835 = vmatmul.f32.gmra.mxu0 %v9834
    %v9836 = vpop.f32.mrf.mxu0
    %v9837 = vadd.f32 %v3611, %v9836
    %9838 = vdwg.mxu0
    %9839 = vmatpush.msra.mxu0 0.0
    %9840 = vmatpush.msra.mxu0 0.0
    %9841 = vmatpush.msra.mxu0 0.0
    %9842 = vmatpush.msra.mxu0 0.0
    %9843 = vmatpush.msra.mxu0 0.0
    %9844 = vmatpush.msra.mxu0 0.0
    %9845 = vmatpush.msra.mxu0 0.0
    %9846 = vmatpush.msra.mxu0 0.0
    %9847 = vmatpush.msra.mxu0 0.0
    %v9848 = vand.u32 %v3739, 4294901760
    %v9849 = vsub.f32 %v3739, %v9848
    %v9850 = vand.u32 %v9849, 4294901760
    %v9851 = vsub.f32 %v9849, %v9850
    %v9852 = vand.u32 %v9851, 4294901760
    %9853 = vmatpush.msra.mxu0 %v9852
    %v9854 = vand.u32 %v3533, 4294901760
    %v9855 = vsub.f32 %v3533, %v9854
    %v9856 = vand.u32 %v9855, 4294901760
    %v9857 = vsub.f32 %v9855, %v9856
    %v9858 = vand.u32 %v9857, 4294901760
    %9859 = vmatpush.msra.mxu0 %v9858
    %v9860 = vand.u32 %v3499, 4294901760
    %v9861 = vsub.f32 %v3499, %v9860
    %v9862 = vand.u32 %v9861, 4294901760
    %v9863 = vsub.f32 %v9861, %v9862
    %v9864 = vand.u32 %v9863, 4294901760
    %9865 = vmatpush.msra.mxu0 %v9864
    %v9866 = vand.u32 %v3465, 4294901760
    %v9867 = vsub.f32 %v3465, %v9866
    %v9868 = vand.u32 %v9867, 4294901760
    %v9869 = vsub.f32 %v9867, %v9868
    %v9870 = vand.u32 %v9869, 4294901760
    %9871 = vmatpush.msra.mxu0 %v9870
    %v9872 = vand.u32 %v3431, 4294901760
    %v9873 = vsub.f32 %v3431, %v9872
    %v9874 = vand.u32 %v9873, 4294901760
    %v9875 = vsub.f32 %v9873, %v9874
    %v9876 = vand.u32 %v9875, 4294901760
    %9877 = vmatpush.msra.mxu0 %v9876
    %v9878 = vand.u32 %v3397, 4294901760
    %v9879 = vsub.f32 %v3397, %v9878
    %v9880 = vand.u32 %v9879, 4294901760
    %v9881 = vsub.f32 %v9879, %v9880
    %v9882 = vand.u32 %v9881, 4294901760
    %9883 = vmatpush.msra.mxu0 %v9882
    %v9884 = vand.u32 %v3363, 4294901760
    %v9885 = vsub.f32 %v3363, %v9884
    %v9886 = vand.u32 %v9885, 4294901760
    %v9887 = vsub.f32 %v9885, %v9886
    %v9888 = vand.u32 %v9887, 4294901760
    %9889 = vmatpush.msra.mxu0 %v9888
    %v9890 = vand.u32 %v3654, 4294901760
    %9891 = vmatmul.f32.gmra.mxu0 %v9890
    %v9892 = vpop.f32.mrf.mxu0
    %v9893 = vadd.f32 %v9837, %v9892
    %9894 = vdwg.mxu0
    %9895 = vmatpush.msra.mxu0 0.0
    %9896 = vmatpush.msra.mxu0 0.0
    %9897 = vmatpush.msra.mxu0 0.0
    %9898 = vmatpush.msra.mxu0 0.0
    %9899 = vmatpush.msra.mxu0 0.0
    %9900 = vmatpush.msra.mxu0 0.0
    %9901 = vmatpush.msra.mxu0 0.0
    %9902 = vmatpush.msra.mxu0 0.0
    %9903 = vmatpush.msra.mxu0 0.0
    %v9904 = vand.u32 %v3739, 4294901760
    %v9905 = vsub.f32 %v3739, %v9904
    %9906 = vmatpush.msra.mxu0 %v9905
    %v9907 = vand.u32 %v3533, 4294901760
    %v9908 = vsub.f32 %v3533, %v9907
    %9909 = vmatpush.msra.mxu0 %v9908
    %v9910 = vand.u32 %v3499, 4294901760
    %v9911 = vsub.f32 %v3499, %v9910
    %9912 = vmatpush.msra.mxu0 %v9911
    %v9913 = vand.u32 %v3465, 4294901760
    %v9914 = vsub.f32 %v3465, %v9913
    %9915 = vmatpush.msra.mxu0 %v9914
    %v9916 = vand.u32 %v3431, 4294901760
    %v9917 = vsub.f32 %v3431, %v9916
    %9918 = vmatpush.msra.mxu0 %v9917
    %v9919 = vand.u32 %v3397, 4294901760
    %v9920 = vsub.f32 %v3397, %v9919
    %9921 = vmatpush.msra.mxu0 %v9920
    %v9922 = vand.u32 %v3363, 4294901760
    %v9923 = vsub.f32 %v3363, %v9922
    %9924 = vmatpush.msra.mxu0 %v9923
    %v9925 = vand.u32 %v3654, 4294901760
    %v9926 = vsub.f32 %v3654, %v9925
    %9927 = vmatmul.f32.gmra.mxu0 %v9926
    %v9928 = vpop.f32.mrf.mxu0
    %v9929 = vadd.f32 %v9893, %v9928
    %9930 = vdwg.mxu0
    %9931 = vmatpush.msra.mxu0 0.0
    %9932 = vmatpush.msra.mxu0 0.0
    %9933 = vmatpush.msra.mxu0 0.0
    %9934 = vmatpush.msra.mxu0 0.0
    %9935 = vmatpush.msra.mxu0 0.0
    %9936 = vmatpush.msra.mxu0 0.0
    %9937 = vmatpush.msra.mxu0 0.0
    %9938 = vmatpush.msra.mxu0 0.0
    %9939 = vmatpush.msra.mxu0 0.0
    %v9940 = vand.u32 %v3739, 4294901760
    %9941 = vmatpush.msra.mxu0 %v9940
    %v9942 = vand.u32 %v3533, 4294901760
    %9943 = vmatpush.msra.mxu0 %v9942
    %v9944 = vand.u32 %v3499, 4294901760
    %9945 = vmatpush.msra.mxu0 %v9944
    %v9946 = vand.u32 %v3465, 4294901760
    %9947 = vmatpush.msra.mxu0 %v9946
    %v9948 = vand.u32 %v3431, 4294901760
    %9949 = vmatpush.msra.mxu0 %v9948
    %v9950 = vand.u32 %v3397, 4294901760
    %9951 = vmatpush.msra.mxu0 %v9950
    %v9952 = vand.u32 %v3363, 4294901760
    %9953 = vmatpush.msra.mxu0 %v9952
    %v9954 = vand.u32 %v3654, 4294901760
    %v9955 = vsub.f32 %v3654, %v9954
    %v9956 = vand.u32 %v9955, 4294901760
    %9957 = vmatmul.f32.gmra.mxu0 %v9956
    %v9958 = vpop.f32.mrf.mxu0
    %v9959 = vadd.f32 %v9929, %v9958
    %9960 = vdwg.mxu0
    %9961 = vmatpush.msra.mxu0 0.0
    %9962 = vmatpush.msra.mxu0 0.0
    %9963 = vmatpush.msra.mxu0 0.0
    %9964 = vmatpush.msra.mxu0 0.0
    %9965 = vmatpush.msra.mxu0 0.0
    %9966 = vmatpush.msra.mxu0 0.0
    %9967 = vmatpush.msra.mxu0 0.0
    %9968 = vmatpush.msra.mxu0 0.0
    %9969 = vmatpush.msra.mxu0 0.0
    %v9970 = vand.u32 %v3739, 4294901760
    %v9971 = vsub.f32 %v3739, %v9970
    %v9972 = vand.u32 %v9971, 4294901760
    %9973 = vmatpush.msra.mxu0 %v9972
    %v9974 = vand.u32 %v3533, 4294901760
    %v9975 = vsub.f32 %v3533, %v9974
    %v9976 = vand.u32 %v9975, 4294901760
    %9977 = vmatpush.msra.mxu0 %v9976
    %v9978 = vand.u32 %v3499, 4294901760
    %v9979 = vsub.f32 %v3499, %v9978
    %v9980 = vand.u32 %v9979, 4294901760
    %9981 = vmatpush.msra.mxu0 %v9980
    %v9982 = vand.u32 %v3465, 4294901760
    %v9983 = vsub.f32 %v3465, %v9982
    %v9984 = vand.u32 %v9983, 4294901760
    %9985 = vmatpush.msra.mxu0 %v9984
    %v9986 = vand.u32 %v3431, 4294901760
    %v9987 = vsub.f32 %v3431, %v9986
    %v9988 = vand.u32 %v9987, 4294901760
    %9989 = vmatpush.msra.mxu0 %v9988
    %v9990 = vand.u32 %v3397, 4294901760
    %v9991 = vsub.f32 %v3397, %v9990
    %v9992 = vand.u32 %v9991, 4294901760
    %9993 = vmatpush.msra.mxu0 %v9992
    %v9994 = vand.u32 %v3363, 4294901760
    %v9995 = vsub.f32 %v3363, %v9994
    %v9996 = vand.u32 %v9995, 4294901760
    %9997 = vmatpush.msra.mxu0 %v9996
    %v9998 = vand.u32 %v3654, 4294901760
    %9999 = vmatmul.f32.gmra.mxu0 %v9998
    %v10000 = vpop.f32.mrf.mxu0
    %v10001 = vadd.f32 %v9959, %v10000
    %10002 = vdwg.mxu0
    %10003 = vmatpush.msra.mxu0 0.0
    %10004 = vmatpush.msra.mxu0 0.0
    %10005 = vmatpush.msra.mxu0 0.0
    %10006 = vmatpush.msra.mxu0 0.0
    %10007 = vmatpush.msra.mxu0 0.0
    %10008 = vmatpush.msra.mxu0 0.0
    %10009 = vmatpush.msra.mxu0 0.0
    %10010 = vmatpush.msra.mxu0 0.0
    %10011 = vmatpush.msra.mxu0 0.0
    %v10012 = vand.u32 %v3739, 4294901760
    %10013 = vmatpush.msra.mxu0 %v10012
    %v10014 = vand.u32 %v3533, 4294901760
    %10015 = vmatpush.msra.mxu0 %v10014
    %v10016 = vand.u32 %v3499, 4294901760
    %10017 = vmatpush.msra.mxu0 %v10016
    %v10018 = vand.u32 %v3465, 4294901760
    %10019 = vmatpush.msra.mxu0 %v10018
    %v10020 = vand.u32 %v3431, 4294901760
    %10021 = vmatpush.msra.mxu0 %v10020
    %v10022 = vand.u32 %v3397, 4294901760
    %10023 = vmatpush.msra.mxu0 %v10022
    %v10024 = vand.u32 %v3363, 4294901760
    %10025 = vmatpush.msra.mxu0 %v10024
    %v10026 = vand.u32 %v3654, 4294901760
    %10027 = vmatmul.f32.gmra.mxu0 %v10026
    %v10028 = vpop.f32.mrf.mxu0
    %v10029 = vadd.f32 %v10001, %v10028
    %10030 = vdwg.mxu0
    %10031 = vmatpush.msra.mxu0 0.0
    %10032 = vmatpush.msra.mxu0 0.0
    %10033 = vmatpush.msra.mxu0 0.0
    %10034 = vmatpush.msra.mxu0 0.0
    %10035 = vmatpush.msra.mxu0 0.0
    %10036 = vmatpush.msra.mxu0 0.0
    %10037 = vmatpush.msra.mxu0 0.0
    %10038 = vmatpush.msra.mxu0 0.0
    %10039 = vmatpush.msra.mxu0 0.0
    %v10040 = vand.u32 %v3742, 4294901760
    %10041 = vmatpush.msra.mxu0 %v10040
    %v10042 = vand.u32 %v3534, 4294901760
    %10043 = vmatpush.msra.mxu0 %v10042
    %v10044 = vand.u32 %v3500, 4294901760
    %10045 = vmatpush.msra.mxu0 %v10044
    %v10046 = vand.u32 %v3466, 4294901760
    %10047 = vmatpush.msra.mxu0 %v10046
    %v10048 = vand.u32 %v3432, 4294901760
    %10049 = vmatpush.msra.mxu0 %v10048
    %v10050 = vand.u32 %v3398, 4294901760
    %10051 = vmatpush.msra.mxu0 %v10050
    %v10052 = vand.u32 %v3364, 4294901760
    %10053 = vmatpush.msra.mxu0 %v10052
    %v10054 = vand.u32 %v3654, 4294901760
    %v10055 = vsub.f32 %v3654, %v10054
    %v10056 = vand.u32 %v10055, 4294901760
    %v10057 = vsub.f32 %v10055, %v10056
    %v10058 = vand.u32 %v10057, 4294901760
    %10059 = vmatmul.f32.gmra.mxu0 %v10058
    %v10060 = vpop.f32.mrf.mxu0
    %v10061 = vadd.f32 %v3612, %v10060
    %10062 = vdwg.mxu0
    %10063 = vmatpush.msra.mxu0 0.0
    %10064 = vmatpush.msra.mxu0 0.0
    %10065 = vmatpush.msra.mxu0 0.0
    %10066 = vmatpush.msra.mxu0 0.0
    %10067 = vmatpush.msra.mxu0 0.0
    %10068 = vmatpush.msra.mxu0 0.0
    %10069 = vmatpush.msra.mxu0 0.0
    %10070 = vmatpush.msra.mxu0 0.0
    %10071 = vmatpush.msra.mxu0 0.0
    %v10072 = vand.u32 %v3742, 4294901760
    %v10073 = vsub.f32 %v3742, %v10072
    %v10074 = vand.u32 %v10073, 4294901760
    %v10075 = vsub.f32 %v10073, %v10074
    %v10076 = vand.u32 %v10075, 4294901760
    %10077 = vmatpush.msra.mxu0 %v10076
    %v10078 = vand.u32 %v3534, 4294901760
    %v10079 = vsub.f32 %v3534, %v10078
    %v10080 = vand.u32 %v10079, 4294901760
    %v10081 = vsub.f32 %v10079, %v10080
    %v10082 = vand.u32 %v10081, 4294901760
    %10083 = vmatpush.msra.mxu0 %v10082
    %v10084 = vand.u32 %v3500, 4294901760
    %v10085 = vsub.f32 %v3500, %v10084
    %v10086 = vand.u32 %v10085, 4294901760
    %v10087 = vsub.f32 %v10085, %v10086
    %v10088 = vand.u32 %v10087, 4294901760
    %10089 = vmatpush.msra.mxu0 %v10088
    %v10090 = vand.u32 %v3466, 4294901760
    %v10091 = vsub.f32 %v3466, %v10090
    %v10092 = vand.u32 %v10091, 4294901760
    %v10093 = vsub.f32 %v10091, %v10092
    %v10094 = vand.u32 %v10093, 4294901760
    %10095 = vmatpush.msra.mxu0 %v10094
    %v10096 = vand.u32 %v3432, 4294901760
    %v10097 = vsub.f32 %v3432, %v10096
    %v10098 = vand.u32 %v10097, 4294901760
    %v10099 = vsub.f32 %v10097, %v10098
    %v10100 = vand.u32 %v10099, 4294901760
    %10101 = vmatpush.msra.mxu0 %v10100
    %v10102 = vand.u32 %v3398, 4294901760
    %v10103 = vsub.f32 %v3398, %v10102
    %v10104 = vand.u32 %v10103, 4294901760
    %v10105 = vsub.f32 %v10103, %v10104
    %v10106 = vand.u32 %v10105, 4294901760
    %10107 = vmatpush.msra.mxu0 %v10106
    %v10108 = vand.u32 %v3364, 4294901760
    %v10109 = vsub.f32 %v3364, %v10108
    %v10110 = vand.u32 %v10109, 4294901760
    %v10111 = vsub.f32 %v10109, %v10110
    %v10112 = vand.u32 %v10111, 4294901760
    %10113 = vmatpush.msra.mxu0 %v10112
    %v10114 = vand.u32 %v3654, 4294901760
    %10115 = vmatmul.f32.gmra.mxu0 %v10114
    %v10116 = vpop.f32.mrf.mxu0
    %v10117 = vadd.f32 %v10061, %v10116
    %10118 = vdwg.mxu0
    %10119 = vmatpush.msra.mxu0 0.0
    %10120 = vmatpush.msra.mxu0 0.0
    %10121 = vmatpush.msra.mxu0 0.0
    %10122 = vmatpush.msra.mxu0 0.0
    %10123 = vmatpush.msra.mxu0 0.0
    %10124 = vmatpush.msra.mxu0 0.0
    %10125 = vmatpush.msra.mxu0 0.0
    %10126 = vmatpush.msra.mxu0 0.0
    %10127 = vmatpush.msra.mxu0 0.0
    %v10128 = vand.u32 %v3742, 4294901760
    %v10129 = vsub.f32 %v3742, %v10128
    %10130 = vmatpush.msra.mxu0 %v10129
    %v10131 = vand.u32 %v3534, 4294901760
    %v10132 = vsub.f32 %v3534, %v10131
    %10133 = vmatpush.msra.mxu0 %v10132
    %v10134 = vand.u32 %v3500, 4294901760
    %v10135 = vsub.f32 %v3500, %v10134
    %10136 = vmatpush.msra.mxu0 %v10135
    %v10137 = vand.u32 %v3466, 4294901760
    %v10138 = vsub.f32 %v3466, %v10137
    %10139 = vmatpush.msra.mxu0 %v10138
    %v10140 = vand.u32 %v3432, 4294901760
    %v10141 = vsub.f32 %v3432, %v10140
    %10142 = vmatpush.msra.mxu0 %v10141
    %v10143 = vand.u32 %v3398, 4294901760
    %v10144 = vsub.f32 %v3398, %v10143
    %10145 = vmatpush.msra.mxu0 %v10144
    %v10146 = vand.u32 %v3364, 4294901760
    %v10147 = vsub.f32 %v3364, %v10146
    %10148 = vmatpush.msra.mxu0 %v10147
    %v10149 = vand.u32 %v3654, 4294901760
    %v10150 = vsub.f32 %v3654, %v10149
    %10151 = vmatmul.f32.gmra.mxu0 %v10150
    %v10152 = vpop.f32.mrf.mxu0
    %v10153 = vadd.f32 %v10117, %v10152
    %10154 = vdwg.mxu0
    %10155 = vmatpush.msra.mxu0 0.0
    %10156 = vmatpush.msra.mxu0 0.0
    %10157 = vmatpush.msra.mxu0 0.0
    %10158 = vmatpush.msra.mxu0 0.0
    %10159 = vmatpush.msra.mxu0 0.0
    %10160 = vmatpush.msra.mxu0 0.0
    %10161 = vmatpush.msra.mxu0 0.0
    %10162 = vmatpush.msra.mxu0 0.0
    %10163 = vmatpush.msra.mxu0 0.0
    %v10164 = vand.u32 %v3742, 4294901760
    %10165 = vmatpush.msra.mxu0 %v10164
    %v10166 = vand.u32 %v3534, 4294901760
    %10167 = vmatpush.msra.mxu0 %v10166
    %v10168 = vand.u32 %v3500, 4294901760
    %10169 = vmatpush.msra.mxu0 %v10168
    %v10170 = vand.u32 %v3466, 4294901760
    %10171 = vmatpush.msra.mxu0 %v10170
    %v10172 = vand.u32 %v3432, 4294901760
    %10173 = vmatpush.msra.mxu0 %v10172
    %v10174 = vand.u32 %v3398, 4294901760
    %10175 = vmatpush.msra.mxu0 %v10174
    %v10176 = vand.u32 %v3364, 4294901760
    %10177 = vmatpush.msra.mxu0 %v10176
    %v10178 = vand.u32 %v3654, 4294901760
    %v10179 = vsub.f32 %v3654, %v10178
    %v10180 = vand.u32 %v10179, 4294901760
    %10181 = vmatmul.f32.gmra.mxu0 %v10180
    %v10182 = vpop.f32.mrf.mxu0
    %v10183 = vadd.f32 %v10153, %v10182
    %10184 = vdwg.mxu0
    %10185 = vmatpush.msra.mxu0 0.0
    %10186 = vmatpush.msra.mxu0 0.0
    %10187 = vmatpush.msra.mxu0 0.0
    %10188 = vmatpush.msra.mxu0 0.0
    %10189 = vmatpush.msra.mxu0 0.0
    %10190 = vmatpush.msra.mxu0 0.0
    %10191 = vmatpush.msra.mxu0 0.0
    %10192 = vmatpush.msra.mxu0 0.0
    %10193 = vmatpush.msra.mxu0 0.0
    %v10194 = vand.u32 %v3742, 4294901760
    %v10195 = vsub.f32 %v3742, %v10194
    %v10196 = vand.u32 %v10195, 4294901760
    %10197 = vmatpush.msra.mxu0 %v10196
    %v10198 = vand.u32 %v3534, 4294901760
    %v10199 = vsub.f32 %v3534, %v10198
    %v10200 = vand.u32 %v10199, 4294901760
    %10201 = vmatpush.msra.mxu0 %v10200
    %v10202 = vand.u32 %v3500, 4294901760
    %v10203 = vsub.f32 %v3500, %v10202
    %v10204 = vand.u32 %v10203, 4294901760
    %10205 = vmatpush.msra.mxu0 %v10204
    %v10206 = vand.u32 %v3466, 4294901760
    %v10207 = vsub.f32 %v3466, %v10206
    %v10208 = vand.u32 %v10207, 4294901760
    %10209 = vmatpush.msra.mxu0 %v10208
    %v10210 = vand.u32 %v3432, 4294901760
    %v10211 = vsub.f32 %v3432, %v10210
    %v10212 = vand.u32 %v10211, 4294901760
    %10213 = vmatpush.msra.mxu0 %v10212
    %v10214 = vand.u32 %v3398, 4294901760
    %v10215 = vsub.f32 %v3398, %v10214
    %v10216 = vand.u32 %v10215, 4294901760
    %10217 = vmatpush.msra.mxu0 %v10216
    %v10218 = vand.u32 %v3364, 4294901760
    %v10219 = vsub.f32 %v3364, %v10218
    %v10220 = vand.u32 %v10219, 4294901760
    %10221 = vmatpush.msra.mxu0 %v10220
    %v10222 = vand.u32 %v3654, 4294901760
    %10223 = vmatmul.f32.gmra.mxu0 %v10222
    %v10224 = vpop.f32.mrf.mxu0
    %v10225 = vadd.f32 %v10183, %v10224
    %10226 = vdwg.mxu0
    %10227 = vmatpush.msra.mxu0 0.0
    %10228 = vmatpush.msra.mxu0 0.0
    %10229 = vmatpush.msra.mxu0 0.0
    %10230 = vmatpush.msra.mxu0 0.0
    %10231 = vmatpush.msra.mxu0 0.0
    %10232 = vmatpush.msra.mxu0 0.0
    %10233 = vmatpush.msra.mxu0 0.0
    %10234 = vmatpush.msra.mxu0 0.0
    %10235 = vmatpush.msra.mxu0 0.0
    %v10236 = vand.u32 %v3742, 4294901760
    %10237 = vmatpush.msra.mxu0 %v10236
    %v10238 = vand.u32 %v3534, 4294901760
    %10239 = vmatpush.msra.mxu0 %v10238
    %v10240 = vand.u32 %v3500, 4294901760
    %10241 = vmatpush.msra.mxu0 %v10240
    %v10242 = vand.u32 %v3466, 4294901760
    %10243 = vmatpush.msra.mxu0 %v10242
    %v10244 = vand.u32 %v3432, 4294901760
    %10245 = vmatpush.msra.mxu0 %v10244
    %v10246 = vand.u32 %v3398, 4294901760
    %10247 = vmatpush.msra.mxu0 %v10246
    %v10248 = vand.u32 %v3364, 4294901760
    %10249 = vmatpush.msra.mxu0 %v10248
    %v10250 = vand.u32 %v3654, 4294901760
    %10251 = vmatmul.f32.gmra.mxu0 %v10250
    %v10252 = vpop.f32.mrf.mxu0
    %v10253 = vadd.f32 %v10225, %v10252
    %10254 = vdwg.mxu0
    %10255 = vmatpush.msra.mxu0 0.0
    %10256 = vmatpush.msra.mxu0 0.0
    %10257 = vmatpush.msra.mxu0 0.0
    %10258 = vmatpush.msra.mxu0 0.0
    %10259 = vmatpush.msra.mxu0 0.0
    %10260 = vmatpush.msra.mxu0 0.0
    %10261 = vmatpush.msra.mxu0 0.0
    %10262 = vmatpush.msra.mxu0 0.0
    %10263 = vmatpush.msra.mxu0 0.0
    %v10264 = vand.u32 %v3745, 4294901760
    %10265 = vmatpush.msra.mxu0 %v10264
    %v10266 = vand.u32 %v3535, 4294901760
    %10267 = vmatpush.msra.mxu0 %v10266
    %v10268 = vand.u32 %v3501, 4294901760
    %10269 = vmatpush.msra.mxu0 %v10268
    %v10270 = vand.u32 %v3467, 4294901760
    %10271 = vmatpush.msra.mxu0 %v10270
    %v10272 = vand.u32 %v3433, 4294901760
    %10273 = vmatpush.msra.mxu0 %v10272
    %v10274 = vand.u32 %v3399, 4294901760
    %10275 = vmatpush.msra.mxu0 %v10274
    %v10276 = vand.u32 %v3365, 4294901760
    %10277 = vmatpush.msra.mxu0 %v10276
    %v10278 = vand.u32 %v3654, 4294901760
    %v10279 = vsub.f32 %v3654, %v10278
    %v10280 = vand.u32 %v10279, 4294901760
    %v10281 = vsub.f32 %v10279, %v10280
    %v10282 = vand.u32 %v10281, 4294901760
    %10283 = vmatmul.f32.gmra.mxu0 %v10282
    %v10284 = vpop.f32.mrf.mxu0
    %v10285 = vadd.f32 %v3613, %v10284
    %10286 = vdwg.mxu0
    %10287 = vmatpush.msra.mxu0 0.0
    %10288 = vmatpush.msra.mxu0 0.0
    %10289 = vmatpush.msra.mxu0 0.0
    %10290 = vmatpush.msra.mxu0 0.0
    %10291 = vmatpush.msra.mxu0 0.0
    %10292 = vmatpush.msra.mxu0 0.0
    %10293 = vmatpush.msra.mxu0 0.0
    %10294 = vmatpush.msra.mxu0 0.0
    %10295 = vmatpush.msra.mxu0 0.0
    %v10296 = vand.u32 %v3745, 4294901760
    %v10297 = vsub.f32 %v3745, %v10296
    %v10298 = vand.u32 %v10297, 4294901760
    %v10299 = vsub.f32 %v10297, %v10298
    %v10300 = vand.u32 %v10299, 4294901760
    %10301 = vmatpush.msra.mxu0 %v10300
    %v10302 = vand.u32 %v3535, 4294901760
    %v10303 = vsub.f32 %v3535, %v10302
    %v10304 = vand.u32 %v10303, 4294901760
    %v10305 = vsub.f32 %v10303, %v10304
    %v10306 = vand.u32 %v10305, 4294901760
    %10307 = vmatpush.msra.mxu0 %v10306
    %v10308 = vand.u32 %v3501, 4294901760
    %v10309 = vsub.f32 %v3501, %v10308
    %v10310 = vand.u32 %v10309, 4294901760
    %v10311 = vsub.f32 %v10309, %v10310
    %v10312 = vand.u32 %v10311, 4294901760
    %10313 = vmatpush.msra.mxu0 %v10312
    %v10314 = vand.u32 %v3467, 4294901760
    %v10315 = vsub.f32 %v3467, %v10314
    %v10316 = vand.u32 %v10315, 4294901760
    %v10317 = vsub.f32 %v10315, %v10316
    %v10318 = vand.u32 %v10317, 4294901760
    %10319 = vmatpush.msra.mxu0 %v10318
    %v10320 = vand.u32 %v3433, 4294901760
    %v10321 = vsub.f32 %v3433, %v10320
    %v10322 = vand.u32 %v10321, 4294901760
    %v10323 = vsub.f32 %v10321, %v10322
    %v10324 = vand.u32 %v10323, 4294901760
    %10325 = vmatpush.msra.mxu0 %v10324
    %v10326 = vand.u32 %v3399, 4294901760
    %v10327 = vsub.f32 %v3399, %v10326
    %v10328 = vand.u32 %v10327, 4294901760
    %v10329 = vsub.f32 %v10327, %v10328
    %v10330 = vand.u32 %v10329, 4294901760
    %10331 = vmatpush.msra.mxu0 %v10330
    %v10332 = vand.u32 %v3365, 4294901760
    %v10333 = vsub.f32 %v3365, %v10332
    %v10334 = vand.u32 %v10333, 4294901760
    %v10335 = vsub.f32 %v10333, %v10334
    %v10336 = vand.u32 %v10335, 4294901760
    %10337 = vmatpush.msra.mxu0 %v10336
    %v10338 = vand.u32 %v3654, 4294901760
    %10339 = vmatmul.f32.gmra.mxu0 %v10338
    %v10340 = vpop.f32.mrf.mxu0
    %v10341 = vadd.f32 %v10285, %v10340
    %10342 = vdwg.mxu0
    %10343 = vmatpush.msra.mxu0 0.0
    %10344 = vmatpush.msra.mxu0 0.0
    %10345 = vmatpush.msra.mxu0 0.0
    %10346 = vmatpush.msra.mxu0 0.0
    %10347 = vmatpush.msra.mxu0 0.0
    %10348 = vmatpush.msra.mxu0 0.0
    %10349 = vmatpush.msra.mxu0 0.0
    %10350 = vmatpush.msra.mxu0 0.0
    %10351 = vmatpush.msra.mxu0 0.0
    %v10352 = vand.u32 %v3745, 4294901760
    %v10353 = vsub.f32 %v3745, %v10352
    %10354 = vmatpush.msra.mxu0 %v10353
    %v10355 = vand.u32 %v3535, 4294901760
    %v10356 = vsub.f32 %v3535, %v10355
    %10357 = vmatpush.msra.mxu0 %v10356
    %v10358 = vand.u32 %v3501, 4294901760
    %v10359 = vsub.f32 %v3501, %v10358
    %10360 = vmatpush.msra.mxu0 %v10359
    %v10361 = vand.u32 %v3467, 4294901760
    %v10362 = vsub.f32 %v3467, %v10361
    %10363 = vmatpush.msra.mxu0 %v10362
    %v10364 = vand.u32 %v3433, 4294901760
    %v10365 = vsub.f32 %v3433, %v10364
    %10366 = vmatpush.msra.mxu0 %v10365
    %v10367 = vand.u32 %v3399, 4294901760
    %v10368 = vsub.f32 %v3399, %v10367
    %10369 = vmatpush.msra.mxu0 %v10368
    %v10370 = vand.u32 %v3365, 4294901760
    %v10371 = vsub.f32 %v3365, %v10370
    %10372 = vmatpush.msra.mxu0 %v10371
    %v10373 = vand.u32 %v3654, 4294901760
    %v10374 = vsub.f32 %v3654, %v10373
    %10375 = vmatmul.f32.gmra.mxu0 %v10374
    %v10376 = vpop.f32.mrf.mxu0
    %v10377 = vadd.f32 %v10341, %v10376
    %10378 = vdwg.mxu0
    %10379 = vmatpush.msra.mxu0 0.0
    %10380 = vmatpush.msra.mxu0 0.0
    %10381 = vmatpush.msra.mxu0 0.0
    %10382 = vmatpush.msra.mxu0 0.0
    %10383 = vmatpush.msra.mxu0 0.0
    %10384 = vmatpush.msra.mxu0 0.0
    %10385 = vmatpush.msra.mxu0 0.0
    %10386 = vmatpush.msra.mxu0 0.0
    %10387 = vmatpush.msra.mxu0 0.0
    %v10388 = vand.u32 %v3745, 4294901760
    %10389 = vmatpush.msra.mxu0 %v10388
    %v10390 = vand.u32 %v3535, 4294901760
    %10391 = vmatpush.msra.mxu0 %v10390
    %v10392 = vand.u32 %v3501, 4294901760
    %10393 = vmatpush.msra.mxu0 %v10392
    %v10394 = vand.u32 %v3467, 4294901760
    %10395 = vmatpush.msra.mxu0 %v10394
    %v10396 = vand.u32 %v3433, 4294901760
    %10397 = vmatpush.msra.mxu0 %v10396
    %v10398 = vand.u32 %v3399, 4294901760
    %10399 = vmatpush.msra.mxu0 %v10398
    %v10400 = vand.u32 %v3365, 4294901760
    %10401 = vmatpush.msra.mxu0 %v10400
    %v10402 = vand.u32 %v3654, 4294901760
    %v10403 = vsub.f32 %v3654, %v10402
    %v10404 = vand.u32 %v10403, 4294901760
    %10405 = vmatmul.f32.gmra.mxu0 %v10404
    %v10406 = vpop.f32.mrf.mxu0
    %v10407 = vadd.f32 %v10377, %v10406
    %10408 = vdwg.mxu0
    %10409 = vmatpush.msra.mxu0 0.0
    %10410 = vmatpush.msra.mxu0 0.0
    %10411 = vmatpush.msra.mxu0 0.0
    %10412 = vmatpush.msra.mxu0 0.0
    %10413 = vmatpush.msra.mxu0 0.0
    %10414 = vmatpush.msra.mxu0 0.0
    %10415 = vmatpush.msra.mxu0 0.0
    %10416 = vmatpush.msra.mxu0 0.0
    %10417 = vmatpush.msra.mxu0 0.0
    %v10418 = vand.u32 %v3745, 4294901760
    %v10419 = vsub.f32 %v3745, %v10418
    %v10420 = vand.u32 %v10419, 4294901760
    %10421 = vmatpush.msra.mxu0 %v10420
    %v10422 = vand.u32 %v3535, 4294901760
    %v10423 = vsub.f32 %v3535, %v10422
    %v10424 = vand.u32 %v10423, 4294901760
    %10425 = vmatpush.msra.mxu0 %v10424
    %v10426 = vand.u32 %v3501, 4294901760
    %v10427 = vsub.f32 %v3501, %v10426
    %v10428 = vand.u32 %v10427, 4294901760
    %10429 = vmatpush.msra.mxu0 %v10428
    %v10430 = vand.u32 %v3467, 4294901760
    %v10431 = vsub.f32 %v3467, %v10430
    %v10432 = vand.u32 %v10431, 4294901760
    %10433 = vmatpush.msra.mxu0 %v10432
    %v10434 = vand.u32 %v3433, 4294901760
    %v10435 = vsub.f32 %v3433, %v10434
    %v10436 = vand.u32 %v10435, 4294901760
    %10437 = vmatpush.msra.mxu0 %v10436
    %v10438 = vand.u32 %v3399, 4294901760
    %v10439 = vsub.f32 %v3399, %v10438
    %v10440 = vand.u32 %v10439, 4294901760
    %10441 = vmatpush.msra.mxu0 %v10440
    %v10442 = vand.u32 %v3365, 4294901760
    %v10443 = vsub.f32 %v3365, %v10442
    %v10444 = vand.u32 %v10443, 4294901760
    %10445 = vmatpush.msra.mxu0 %v10444
    %v10446 = vand.u32 %v3654, 4294901760
    %10447 = vmatmul.f32.gmra.mxu0 %v10446
    %v10448 = vpop.f32.mrf.mxu0
    %v10449 = vadd.f32 %v10407, %v10448
    %10450 = vdwg.mxu0
    %10451 = vmatpush.msra.mxu0 0.0
    %10452 = vmatpush.msra.mxu0 0.0
    %10453 = vmatpush.msra.mxu0 0.0
    %10454 = vmatpush.msra.mxu0 0.0
    %10455 = vmatpush.msra.mxu0 0.0
    %10456 = vmatpush.msra.mxu0 0.0
    %10457 = vmatpush.msra.mxu0 0.0
    %10458 = vmatpush.msra.mxu0 0.0
    %10459 = vmatpush.msra.mxu0 0.0
    %v10460 = vand.u32 %v3745, 4294901760
    %10461 = vmatpush.msra.mxu0 %v10460
    %v10462 = vand.u32 %v3535, 4294901760
    %10463 = vmatpush.msra.mxu0 %v10462
    %v10464 = vand.u32 %v3501, 4294901760
    %10465 = vmatpush.msra.mxu0 %v10464
    %v10466 = vand.u32 %v3467, 4294901760
    %10467 = vmatpush.msra.mxu0 %v10466
    %v10468 = vand.u32 %v3433, 4294901760
    %10469 = vmatpush.msra.mxu0 %v10468
    %v10470 = vand.u32 %v3399, 4294901760
    %10471 = vmatpush.msra.mxu0 %v10470
    %v10472 = vand.u32 %v3365, 4294901760
    %10473 = vmatpush.msra.mxu0 %v10472
    %v10474 = vand.u32 %v3654, 4294901760
    %10475 = vmatmul.f32.gmra.mxu0 %v10474
    %v10476 = vpop.f32.mrf.mxu0
    %v10477 = vadd.f32 %v10449, %v10476
    %10478 = vdwg.mxu0
    %10479 = vmatpush.msra.mxu0 0.0
    %10480 = vmatpush.msra.mxu0 0.0
    %10481 = vmatpush.msra.mxu0 0.0
    %10482 = vmatpush.msra.mxu0 0.0
    %10483 = vmatpush.msra.mxu0 0.0
    %10484 = vmatpush.msra.mxu0 0.0
    %10485 = vmatpush.msra.mxu0 0.0
    %10486 = vmatpush.msra.mxu0 0.0
    %10487 = vmatpush.msra.mxu0 0.0
    %v10488 = vand.u32 %v3748, 4294901760
    %10489 = vmatpush.msra.mxu0 %v10488
    %v10490 = vand.u32 %v3536, 4294901760
    %10491 = vmatpush.msra.mxu0 %v10490
    %v10492 = vand.u32 %v3502, 4294901760
    %10493 = vmatpush.msra.mxu0 %v10492
    %v10494 = vand.u32 %v3468, 4294901760
    %10495 = vmatpush.msra.mxu0 %v10494
    %v10496 = vand.u32 %v3434, 4294901760
    %10497 = vmatpush.msra.mxu0 %v10496
    %v10498 = vand.u32 %v3400, 4294901760
    %10499 = vmatpush.msra.mxu0 %v10498
    %v10500 = vand.u32 %v3366, 4294901760
    %10501 = vmatpush.msra.mxu0 %v10500
    %v10502 = vand.u32 %v3654, 4294901760
    %v10503 = vsub.f32 %v3654, %v10502
    %v10504 = vand.u32 %v10503, 4294901760
    %v10505 = vsub.f32 %v10503, %v10504
    %v10506 = vand.u32 %v10505, 4294901760
    %10507 = vmatmul.f32.gmra.mxu0 %v10506
    %v10508 = vpop.f32.mrf.mxu0
    %v10509 = vadd.f32 %v3614, %v10508
    %10510 = vdwg.mxu0
    %10511 = vmatpush.msra.mxu0 0.0
    %10512 = vmatpush.msra.mxu0 0.0
    %10513 = vmatpush.msra.mxu0 0.0
    %10514 = vmatpush.msra.mxu0 0.0
    %10515 = vmatpush.msra.mxu0 0.0
    %10516 = vmatpush.msra.mxu0 0.0
    %10517 = vmatpush.msra.mxu0 0.0
    %10518 = vmatpush.msra.mxu0 0.0
    %10519 = vmatpush.msra.mxu0 0.0
    %v10520 = vand.u32 %v3748, 4294901760
    %v10521 = vsub.f32 %v3748, %v10520
    %v10522 = vand.u32 %v10521, 4294901760
    %v10523 = vsub.f32 %v10521, %v10522
    %v10524 = vand.u32 %v10523, 4294901760
    %10525 = vmatpush.msra.mxu0 %v10524
    %v10526 = vand.u32 %v3536, 4294901760
    %v10527 = vsub.f32 %v3536, %v10526
    %v10528 = vand.u32 %v10527, 4294901760
    %v10529 = vsub.f32 %v10527, %v10528
    %v10530 = vand.u32 %v10529, 4294901760
    %10531 = vmatpush.msra.mxu0 %v10530
    %v10532 = vand.u32 %v3502, 4294901760
    %v10533 = vsub.f32 %v3502, %v10532
    %v10534 = vand.u32 %v10533, 4294901760
    %v10535 = vsub.f32 %v10533, %v10534
    %v10536 = vand.u32 %v10535, 4294901760
    %10537 = vmatpush.msra.mxu0 %v10536
    %v10538 = vand.u32 %v3468, 4294901760
    %v10539 = vsub.f32 %v3468, %v10538
    %v10540 = vand.u32 %v10539, 4294901760
    %v10541 = vsub.f32 %v10539, %v10540
    %v10542 = vand.u32 %v10541, 4294901760
    %10543 = vmatpush.msra.mxu0 %v10542
    %v10544 = vand.u32 %v3434, 4294901760
    %v10545 = vsub.f32 %v3434, %v10544
    %v10546 = vand.u32 %v10545, 4294901760
    %v10547 = vsub.f32 %v10545, %v10546
    %v10548 = vand.u32 %v10547, 4294901760
    %10549 = vmatpush.msra.mxu0 %v10548
    %v10550 = vand.u32 %v3400, 4294901760
    %v10551 = vsub.f32 %v3400, %v10550
    %v10552 = vand.u32 %v10551, 4294901760
    %v10553 = vsub.f32 %v10551, %v10552
    %v10554 = vand.u32 %v10553, 4294901760
    %10555 = vmatpush.msra.mxu0 %v10554
    %v10556 = vand.u32 %v3366, 4294901760
    %v10557 = vsub.f32 %v3366, %v10556
    %v10558 = vand.u32 %v10557, 4294901760
    %v10559 = vsub.f32 %v10557, %v10558
    %v10560 = vand.u32 %v10559, 4294901760
    %10561 = vmatpush.msra.mxu0 %v10560
    %v10562 = vand.u32 %v3654, 4294901760
    %10563 = vmatmul.f32.gmra.mxu0 %v10562
    %v10564 = vpop.f32.mrf.mxu0
    %v10565 = vadd.f32 %v10509, %v10564
    %10566 = vdwg.mxu0
    %10567 = vmatpush.msra.mxu0 0.0
    %10568 = vmatpush.msra.mxu0 0.0
    %10569 = vmatpush.msra.mxu0 0.0
    %10570 = vmatpush.msra.mxu0 0.0
    %10571 = vmatpush.msra.mxu0 0.0
    %10572 = vmatpush.msra.mxu0 0.0
    %10573 = vmatpush.msra.mxu0 0.0
    %10574 = vmatpush.msra.mxu0 0.0
    %10575 = vmatpush.msra.mxu0 0.0
    %v10576 = vand.u32 %v3748, 4294901760
    %v10577 = vsub.f32 %v3748, %v10576
    %10578 = vmatpush.msra.mxu0 %v10577
    %v10579 = vand.u32 %v3536, 4294901760
    %v10580 = vsub.f32 %v3536, %v10579
    %10581 = vmatpush.msra.mxu0 %v10580
    %v10582 = vand.u32 %v3502, 4294901760
    %v10583 = vsub.f32 %v3502, %v10582
    %10584 = vmatpush.msra.mxu0 %v10583
    %v10585 = vand.u32 %v3468, 4294901760
    %v10586 = vsub.f32 %v3468, %v10585
    %10587 = vmatpush.msra.mxu0 %v10586
    %v10588 = vand.u32 %v3434, 4294901760
    %v10589 = vsub.f32 %v3434, %v10588
    %10590 = vmatpush.msra.mxu0 %v10589
    %v10591 = vand.u32 %v3400, 4294901760
    %v10592 = vsub.f32 %v3400, %v10591
    %10593 = vmatpush.msra.mxu0 %v10592
    %v10594 = vand.u32 %v3366, 4294901760
    %v10595 = vsub.f32 %v3366, %v10594
    %10596 = vmatpush.msra.mxu0 %v10595
    %v10597 = vand.u32 %v3654, 4294901760
    %v10598 = vsub.f32 %v3654, %v10597
    %10599 = vmatmul.f32.gmra.mxu0 %v10598
    %v10600 = vpop.f32.mrf.mxu0
    %v10601 = vadd.f32 %v10565, %v10600
    %10602 = vdwg.mxu0
    %10603 = vmatpush.msra.mxu0 0.0
    %10604 = vmatpush.msra.mxu0 0.0
    %10605 = vmatpush.msra.mxu0 0.0
    %10606 = vmatpush.msra.mxu0 0.0
    %10607 = vmatpush.msra.mxu0 0.0
    %10608 = vmatpush.msra.mxu0 0.0
    %10609 = vmatpush.msra.mxu0 0.0
    %10610 = vmatpush.msra.mxu0 0.0
    %10611 = vmatpush.msra.mxu0 0.0
    %v10612 = vand.u32 %v3748, 4294901760
    %10613 = vmatpush.msra.mxu0 %v10612
    %v10614 = vand.u32 %v3536, 4294901760
    %10615 = vmatpush.msra.mxu0 %v10614
    %v10616 = vand.u32 %v3502, 4294901760
    %10617 = vmatpush.msra.mxu0 %v10616
    %v10618 = vand.u32 %v3468, 4294901760
    %10619 = vmatpush.msra.mxu0 %v10618
    %v10620 = vand.u32 %v3434, 4294901760
    %10621 = vmatpush.msra.mxu0 %v10620
    %v10622 = vand.u32 %v3400, 4294901760
    %10623 = vmatpush.msra.mxu0 %v10622
    %v10624 = vand.u32 %v3366, 4294901760
    %10625 = vmatpush.msra.mxu0 %v10624
    %v10626 = vand.u32 %v3654, 4294901760
    %v10627 = vsub.f32 %v3654, %v10626
    %v10628 = vand.u32 %v10627, 4294901760
    %10629 = vmatmul.f32.gmra.mxu0 %v10628
    %v10630 = vpop.f32.mrf.mxu0
    %v10631 = vadd.f32 %v10601, %v10630
    %10632 = vdwg.mxu0
    %10633 = vmatpush.msra.mxu0 0.0
    %10634 = vmatpush.msra.mxu0 0.0
    %10635 = vmatpush.msra.mxu0 0.0
    %10636 = vmatpush.msra.mxu0 0.0
    %10637 = vmatpush.msra.mxu0 0.0
    %10638 = vmatpush.msra.mxu0 0.0
    %10639 = vmatpush.msra.mxu0 0.0
    %10640 = vmatpush.msra.mxu0 0.0
    %10641 = vmatpush.msra.mxu0 0.0
    %v10642 = vand.u32 %v3748, 4294901760
    %v10643 = vsub.f32 %v3748, %v10642
    %v10644 = vand.u32 %v10643, 4294901760
    %10645 = vmatpush.msra.mxu0 %v10644
    %v10646 = vand.u32 %v3536, 4294901760
    %v10647 = vsub.f32 %v3536, %v10646
    %v10648 = vand.u32 %v10647, 4294901760
    %10649 = vmatpush.msra.mxu0 %v10648
    %v10650 = vand.u32 %v3502, 4294901760
    %v10651 = vsub.f32 %v3502, %v10650
    %v10652 = vand.u32 %v10651, 4294901760
    %10653 = vmatpush.msra.mxu0 %v10652
    %v10654 = vand.u32 %v3468, 4294901760
    %v10655 = vsub.f32 %v3468, %v10654
    %v10656 = vand.u32 %v10655, 4294901760
    %10657 = vmatpush.msra.mxu0 %v10656
    %v10658 = vand.u32 %v3434, 4294901760
    %v10659 = vsub.f32 %v3434, %v10658
    %v10660 = vand.u32 %v10659, 4294901760
    %10661 = vmatpush.msra.mxu0 %v10660
    %v10662 = vand.u32 %v3400, 4294901760
    %v10663 = vsub.f32 %v3400, %v10662
    %v10664 = vand.u32 %v10663, 4294901760
    %10665 = vmatpush.msra.mxu0 %v10664
    %v10666 = vand.u32 %v3366, 4294901760
    %v10667 = vsub.f32 %v3366, %v10666
    %v10668 = vand.u32 %v10667, 4294901760
    %10669 = vmatpush.msra.mxu0 %v10668
    %v10670 = vand.u32 %v3654, 4294901760
    %10671 = vmatmul.f32.gmra.mxu0 %v10670
    %v10672 = vpop.f32.mrf.mxu0
    %v10673 = vadd.f32 %v10631, %v10672
    %10674 = vdwg.mxu0
    %10675 = vmatpush.msra.mxu0 0.0
    %10676 = vmatpush.msra.mxu0 0.0
    %10677 = vmatpush.msra.mxu0 0.0
    %10678 = vmatpush.msra.mxu0 0.0
    %10679 = vmatpush.msra.mxu0 0.0
    %10680 = vmatpush.msra.mxu0 0.0
    %10681 = vmatpush.msra.mxu0 0.0
    %10682 = vmatpush.msra.mxu0 0.0
    %10683 = vmatpush.msra.mxu0 0.0
    %v10684 = vand.u32 %v3748, 4294901760
    %10685 = vmatpush.msra.mxu0 %v10684
    %v10686 = vand.u32 %v3536, 4294901760
    %10687 = vmatpush.msra.mxu0 %v10686
    %v10688 = vand.u32 %v3502, 4294901760
    %10689 = vmatpush.msra.mxu0 %v10688
    %v10690 = vand.u32 %v3468, 4294901760
    %10691 = vmatpush.msra.mxu0 %v10690
    %v10692 = vand.u32 %v3434, 4294901760
    %10693 = vmatpush.msra.mxu0 %v10692
    %v10694 = vand.u32 %v3400, 4294901760
    %10695 = vmatpush.msra.mxu0 %v10694
    %v10696 = vand.u32 %v3366, 4294901760
    %10697 = vmatpush.msra.mxu0 %v10696
    %v10698 = vand.u32 %v3654, 4294901760
    %10699 = vmatmul.f32.gmra.mxu0 %v10698
    %v10700 = vpop.f32.mrf.mxu0
    %v10701 = vadd.f32 %v10673, %v10700
    %10702 = vdwg.mxu0
    %10703 = vmatpush.msra.mxu0 0.0
    %10704 = vmatpush.msra.mxu0 0.0
    %10705 = vmatpush.msra.mxu0 0.0
    %10706 = vmatpush.msra.mxu0 0.0
    %10707 = vmatpush.msra.mxu0 0.0
    %10708 = vmatpush.msra.mxu0 0.0
    %10709 = vmatpush.msra.mxu0 0.0
    %10710 = vmatpush.msra.mxu0 0.0
    %10711 = vmatpush.msra.mxu0 0.0
    %v10712 = vand.u32 %v3751, 4294901760
    %10713 = vmatpush.msra.mxu0 %v10712
    %v10714 = vand.u32 %v3537, 4294901760
    %10715 = vmatpush.msra.mxu0 %v10714
    %v10716 = vand.u32 %v3503, 4294901760
    %10717 = vmatpush.msra.mxu0 %v10716
    %v10718 = vand.u32 %v3469, 4294901760
    %10719 = vmatpush.msra.mxu0 %v10718
    %v10720 = vand.u32 %v3435, 4294901760
    %10721 = vmatpush.msra.mxu0 %v10720
    %v10722 = vand.u32 %v3401, 4294901760
    %10723 = vmatpush.msra.mxu0 %v10722
    %v10724 = vand.u32 %v3367, 4294901760
    %10725 = vmatpush.msra.mxu0 %v10724
    %v10726 = vand.u32 %v3654, 4294901760
    %v10727 = vsub.f32 %v3654, %v10726
    %v10728 = vand.u32 %v10727, 4294901760
    %v10729 = vsub.f32 %v10727, %v10728
    %v10730 = vand.u32 %v10729, 4294901760
    %10731 = vmatmul.f32.gmra.mxu0 %v10730
    %v10732 = vpop.f32.mrf.mxu0
    %v10733 = vadd.f32 %v3615, %v10732
    %10734 = vdwg.mxu0
    %10735 = vmatpush.msra.mxu0 0.0
    %10736 = vmatpush.msra.mxu0 0.0
    %10737 = vmatpush.msra.mxu0 0.0
    %10738 = vmatpush.msra.mxu0 0.0
    %10739 = vmatpush.msra.mxu0 0.0
    %10740 = vmatpush.msra.mxu0 0.0
    %10741 = vmatpush.msra.mxu0 0.0
    %10742 = vmatpush.msra.mxu0 0.0
    %10743 = vmatpush.msra.mxu0 0.0
    %v10744 = vand.u32 %v3751, 4294901760
    %v10745 = vsub.f32 %v3751, %v10744
    %v10746 = vand.u32 %v10745, 4294901760
    %v10747 = vsub.f32 %v10745, %v10746
    %v10748 = vand.u32 %v10747, 4294901760
    %10749 = vmatpush.msra.mxu0 %v10748
    %v10750 = vand.u32 %v3537, 4294901760
    %v10751 = vsub.f32 %v3537, %v10750
    %v10752 = vand.u32 %v10751, 4294901760
    %v10753 = vsub.f32 %v10751, %v10752
    %v10754 = vand.u32 %v10753, 4294901760
    %10755 = vmatpush.msra.mxu0 %v10754
    %v10756 = vand.u32 %v3503, 4294901760
    %v10757 = vsub.f32 %v3503, %v10756
    %v10758 = vand.u32 %v10757, 4294901760
    %v10759 = vsub.f32 %v10757, %v10758
    %v10760 = vand.u32 %v10759, 4294901760
    %10761 = vmatpush.msra.mxu0 %v10760
    %v10762 = vand.u32 %v3469, 4294901760
    %v10763 = vsub.f32 %v3469, %v10762
    %v10764 = vand.u32 %v10763, 4294901760
    %v10765 = vsub.f32 %v10763, %v10764
    %v10766 = vand.u32 %v10765, 4294901760
    %10767 = vmatpush.msra.mxu0 %v10766
    %v10768 = vand.u32 %v3435, 4294901760
    %v10769 = vsub.f32 %v3435, %v10768
    %v10770 = vand.u32 %v10769, 4294901760
    %v10771 = vsub.f32 %v10769, %v10770
    %v10772 = vand.u32 %v10771, 4294901760
    %10773 = vmatpush.msra.mxu0 %v10772
    %v10774 = vand.u32 %v3401, 4294901760
    %v10775 = vsub.f32 %v3401, %v10774
    %v10776 = vand.u32 %v10775, 4294901760
    %v10777 = vsub.f32 %v10775, %v10776
    %v10778 = vand.u32 %v10777, 4294901760
    %10779 = vmatpush.msra.mxu0 %v10778
    %v10780 = vand.u32 %v3367, 4294901760
    %v10781 = vsub.f32 %v3367, %v10780
    %v10782 = vand.u32 %v10781, 4294901760
    %v10783 = vsub.f32 %v10781, %v10782
    %v10784 = vand.u32 %v10783, 4294901760
    %10785 = vmatpush.msra.mxu0 %v10784
    %v10786 = vand.u32 %v3654, 4294901760
    %10787 = vmatmul.f32.gmra.mxu0 %v10786
    %v10788 = vpop.f32.mrf.mxu0
    %v10789 = vadd.f32 %v10733, %v10788
    %10790 = vdwg.mxu0
    %10791 = vmatpush.msra.mxu0 0.0
    %10792 = vmatpush.msra.mxu0 0.0
    %10793 = vmatpush.msra.mxu0 0.0
    %10794 = vmatpush.msra.mxu0 0.0
    %10795 = vmatpush.msra.mxu0 0.0
    %10796 = vmatpush.msra.mxu0 0.0
    %10797 = vmatpush.msra.mxu0 0.0
    %10798 = vmatpush.msra.mxu0 0.0
    %10799 = vmatpush.msra.mxu0 0.0
    %v10800 = vand.u32 %v3751, 4294901760
    %v10801 = vsub.f32 %v3751, %v10800
    %10802 = vmatpush.msra.mxu0 %v10801
    %v10803 = vand.u32 %v3537, 4294901760
    %v10804 = vsub.f32 %v3537, %v10803
    %10805 = vmatpush.msra.mxu0 %v10804
    %v10806 = vand.u32 %v3503, 4294901760
    %v10807 = vsub.f32 %v3503, %v10806
    %10808 = vmatpush.msra.mxu0 %v10807
    %v10809 = vand.u32 %v3469, 4294901760
    %v10810 = vsub.f32 %v3469, %v10809
    %10811 = vmatpush.msra.mxu0 %v10810
    %v10812 = vand.u32 %v3435, 4294901760
    %v10813 = vsub.f32 %v3435, %v10812
    %10814 = vmatpush.msra.mxu0 %v10813
    %v10815 = vand.u32 %v3401, 4294901760
    %v10816 = vsub.f32 %v3401, %v10815
    %10817 = vmatpush.msra.mxu0 %v10816
    %v10818 = vand.u32 %v3367, 4294901760
    %v10819 = vsub.f32 %v3367, %v10818
    %10820 = vmatpush.msra.mxu0 %v10819
    %v10821 = vand.u32 %v3654, 4294901760
    %v10822 = vsub.f32 %v3654, %v10821
    %10823 = vmatmul.f32.gmra.mxu0 %v10822
    %v10824 = vpop.f32.mrf.mxu0
    %v10825 = vadd.f32 %v10789, %v10824
    %10826 = vdwg.mxu0
    %10827 = vmatpush.msra.mxu0 0.0
    %10828 = vmatpush.msra.mxu0 0.0
    %10829 = vmatpush.msra.mxu0 0.0
    %10830 = vmatpush.msra.mxu0 0.0
    %10831 = vmatpush.msra.mxu0 0.0
    %10832 = vmatpush.msra.mxu0 0.0
    %10833 = vmatpush.msra.mxu0 0.0
    %10834 = vmatpush.msra.mxu0 0.0
    %10835 = vmatpush.msra.mxu0 0.0
    %v10836 = vand.u32 %v3751, 4294901760
    %10837 = vmatpush.msra.mxu0 %v10836
    %v10838 = vand.u32 %v3537, 4294901760
    %10839 = vmatpush.msra.mxu0 %v10838
    %v10840 = vand.u32 %v3503, 4294901760
    %10841 = vmatpush.msra.mxu0 %v10840
    %v10842 = vand.u32 %v3469, 4294901760
    %10843 = vmatpush.msra.mxu0 %v10842
    %v10844 = vand.u32 %v3435, 4294901760
    %10845 = vmatpush.msra.mxu0 %v10844
    %v10846 = vand.u32 %v3401, 4294901760
    %10847 = vmatpush.msra.mxu0 %v10846
    %v10848 = vand.u32 %v3367, 4294901760
    %10849 = vmatpush.msra.mxu0 %v10848
    %v10850 = vand.u32 %v3654, 4294901760
    %v10851 = vsub.f32 %v3654, %v10850
    %v10852 = vand.u32 %v10851, 4294901760
    %10853 = vmatmul.f32.gmra.mxu0 %v10852
    %v10854 = vpop.f32.mrf.mxu0
    %v10855 = vadd.f32 %v10825, %v10854
    %10856 = vdwg.mxu0
    %10857 = vmatpush.msra.mxu0 0.0
    %10858 = vmatpush.msra.mxu0 0.0
    %10859 = vmatpush.msra.mxu0 0.0
    %10860 = vmatpush.msra.mxu0 0.0
    %10861 = vmatpush.msra.mxu0 0.0
    %10862 = vmatpush.msra.mxu0 0.0
    %10863 = vmatpush.msra.mxu0 0.0
    %10864 = vmatpush.msra.mxu0 0.0
    %10865 = vmatpush.msra.mxu0 0.0
    %v10866 = vand.u32 %v3751, 4294901760
    %v10867 = vsub.f32 %v3751, %v10866
    %v10868 = vand.u32 %v10867, 4294901760
    %10869 = vmatpush.msra.mxu0 %v10868
    %v10870 = vand.u32 %v3537, 4294901760
    %v10871 = vsub.f32 %v3537, %v10870
    %v10872 = vand.u32 %v10871, 4294901760
    %10873 = vmatpush.msra.mxu0 %v10872
    %v10874 = vand.u32 %v3503, 4294901760
    %v10875 = vsub.f32 %v3503, %v10874
    %v10876 = vand.u32 %v10875, 4294901760
    %10877 = vmatpush.msra.mxu0 %v10876
    %v10878 = vand.u32 %v3469, 4294901760
    %v10879 = vsub.f32 %v3469, %v10878
    %v10880 = vand.u32 %v10879, 4294901760
    %10881 = vmatpush.msra.mxu0 %v10880
    %v10882 = vand.u32 %v3435, 4294901760
    %v10883 = vsub.f32 %v3435, %v10882
    %v10884 = vand.u32 %v10883, 4294901760
    %10885 = vmatpush.msra.mxu0 %v10884
    %v10886 = vand.u32 %v3401, 4294901760
    %v10887 = vsub.f32 %v3401, %v10886
    %v10888 = vand.u32 %v10887, 4294901760
    %10889 = vmatpush.msra.mxu0 %v10888
    %v10890 = vand.u32 %v3367, 4294901760
    %v10891 = vsub.f32 %v3367, %v10890
    %v10892 = vand.u32 %v10891, 4294901760
    %10893 = vmatpush.msra.mxu0 %v10892
    %v10894 = vand.u32 %v3654, 4294901760
    %10895 = vmatmul.f32.gmra.mxu0 %v10894
    %v10896 = vpop.f32.mrf.mxu0
    %v10897 = vadd.f32 %v10855, %v10896
    %10898 = vdwg.mxu0
    %10899 = vmatpush.msra.mxu0 0.0
    %10900 = vmatpush.msra.mxu0 0.0
    %10901 = vmatpush.msra.mxu0 0.0
    %10902 = vmatpush.msra.mxu0 0.0
    %10903 = vmatpush.msra.mxu0 0.0
    %10904 = vmatpush.msra.mxu0 0.0
    %10905 = vmatpush.msra.mxu0 0.0
    %10906 = vmatpush.msra.mxu0 0.0
    %10907 = vmatpush.msra.mxu0 0.0
    %v10908 = vand.u32 %v3751, 4294901760
    %10909 = vmatpush.msra.mxu0 %v10908
    %v10910 = vand.u32 %v3537, 4294901760
    %10911 = vmatpush.msra.mxu0 %v10910
    %v10912 = vand.u32 %v3503, 4294901760
    %10913 = vmatpush.msra.mxu0 %v10912
    %v10914 = vand.u32 %v3469, 4294901760
    %10915 = vmatpush.msra.mxu0 %v10914
    %v10916 = vand.u32 %v3435, 4294901760
    %10917 = vmatpush.msra.mxu0 %v10916
    %v10918 = vand.u32 %v3401, 4294901760
    %10919 = vmatpush.msra.mxu0 %v10918
    %v10920 = vand.u32 %v3367, 4294901760
    %10921 = vmatpush.msra.mxu0 %v10920
    %v10922 = vand.u32 %v3654, 4294901760
    %10923 = vmatmul.f32.gmra.mxu0 %v10922
    %v10924 = vpop.f32.mrf.mxu0
    %v10925 = vadd.f32 %v10897, %v10924
    %10926 = vdwg.mxu0
    %10927 = vmatpush.msra.mxu0 0.0
    %10928 = vmatpush.msra.mxu0 0.0
    %10929 = vmatpush.msra.mxu0 0.0
    %10930 = vmatpush.msra.mxu0 0.0
    %10931 = vmatpush.msra.mxu0 0.0
    %10932 = vmatpush.msra.mxu0 0.0
    %10933 = vmatpush.msra.mxu0 0.0
    %10934 = vmatpush.msra.mxu0 0.0
    %10935 = vmatpush.msra.mxu0 0.0
    %v10936 = vand.u32 %v3754, 4294901760
    %10937 = vmatpush.msra.mxu0 %v10936
    %v10938 = vand.u32 %v3538, 4294901760
    %10939 = vmatpush.msra.mxu0 %v10938
    %v10940 = vand.u32 %v3504, 4294901760
    %10941 = vmatpush.msra.mxu0 %v10940
    %v10942 = vand.u32 %v3470, 4294901760
    %10943 = vmatpush.msra.mxu0 %v10942
    %v10944 = vand.u32 %v3436, 4294901760
    %10945 = vmatpush.msra.mxu0 %v10944
    %v10946 = vand.u32 %v3402, 4294901760
    %10947 = vmatpush.msra.mxu0 %v10946
    %v10948 = vand.u32 %v3368, 4294901760
    %10949 = vmatpush.msra.mxu0 %v10948
    %v10950 = vand.u32 %v3654, 4294901760
    %v10951 = vsub.f32 %v3654, %v10950
    %v10952 = vand.u32 %v10951, 4294901760
    %v10953 = vsub.f32 %v10951, %v10952
    %v10954 = vand.u32 %v10953, 4294901760
    %10955 = vmatmul.f32.gmra.mxu0 %v10954
    %v10956 = vpop.f32.mrf.mxu0
    %v10957 = vadd.f32 %v3616, %v10956
    %10958 = vdwg.mxu0
    %10959 = vmatpush.msra.mxu0 0.0
    %10960 = vmatpush.msra.mxu0 0.0
    %10961 = vmatpush.msra.mxu0 0.0
    %10962 = vmatpush.msra.mxu0 0.0
    %10963 = vmatpush.msra.mxu0 0.0
    %10964 = vmatpush.msra.mxu0 0.0
    %10965 = vmatpush.msra.mxu0 0.0
    %10966 = vmatpush.msra.mxu0 0.0
    %10967 = vmatpush.msra.mxu0 0.0
    %v10968 = vand.u32 %v3754, 4294901760
    %v10969 = vsub.f32 %v3754, %v10968
    %v10970 = vand.u32 %v10969, 4294901760
    %v10971 = vsub.f32 %v10969, %v10970
    %v10972 = vand.u32 %v10971, 4294901760
    %10973 = vmatpush.msra.mxu0 %v10972
    %v10974 = vand.u32 %v3538, 4294901760
    %v10975 = vsub.f32 %v3538, %v10974
    %v10976 = vand.u32 %v10975, 4294901760
    %v10977 = vsub.f32 %v10975, %v10976
    %v10978 = vand.u32 %v10977, 4294901760
    %10979 = vmatpush.msra.mxu0 %v10978
    %v10980 = vand.u32 %v3504, 4294901760
    %v10981 = vsub.f32 %v3504, %v10980
    %v10982 = vand.u32 %v10981, 4294901760
    %v10983 = vsub.f32 %v10981, %v10982
    %v10984 = vand.u32 %v10983, 4294901760
    %10985 = vmatpush.msra.mxu0 %v10984
    %v10986 = vand.u32 %v3470, 4294901760
    %v10987 = vsub.f32 %v3470, %v10986
    %v10988 = vand.u32 %v10987, 4294901760
    %v10989 = vsub.f32 %v10987, %v10988
    %v10990 = vand.u32 %v10989, 4294901760
    %10991 = vmatpush.msra.mxu0 %v10990
    %v10992 = vand.u32 %v3436, 4294901760
    %v10993 = vsub.f32 %v3436, %v10992
    %v10994 = vand.u32 %v10993, 4294901760
    %v10995 = vsub.f32 %v10993, %v10994
    %v10996 = vand.u32 %v10995, 4294901760
    %10997 = vmatpush.msra.mxu0 %v10996
    %v10998 = vand.u32 %v3402, 4294901760
    %v10999 = vsub.f32 %v3402, %v10998
    %v11000 = vand.u32 %v10999, 4294901760
    %v11001 = vsub.f32 %v10999, %v11000
    %v11002 = vand.u32 %v11001, 4294901760
    %11003 = vmatpush.msra.mxu0 %v11002
    %v11004 = vand.u32 %v3368, 4294901760
    %v11005 = vsub.f32 %v3368, %v11004
    %v11006 = vand.u32 %v11005, 4294901760
    %v11007 = vsub.f32 %v11005, %v11006
    %v11008 = vand.u32 %v11007, 4294901760
    %11009 = vmatpush.msra.mxu0 %v11008
    %v11010 = vand.u32 %v3654, 4294901760
    %11011 = vmatmul.f32.gmra.mxu0 %v11010
    %v11012 = vpop.f32.mrf.mxu0
    %v11013 = vadd.f32 %v10957, %v11012
    %11014 = vdwg.mxu0
    %11015 = vmatpush.msra.mxu0 0.0
    %11016 = vmatpush.msra.mxu0 0.0
    %11017 = vmatpush.msra.mxu0 0.0
    %11018 = vmatpush.msra.mxu0 0.0
    %11019 = vmatpush.msra.mxu0 0.0
    %11020 = vmatpush.msra.mxu0 0.0
    %11021 = vmatpush.msra.mxu0 0.0
    %11022 = vmatpush.msra.mxu0 0.0
    %11023 = vmatpush.msra.mxu0 0.0
    %v11024 = vand.u32 %v3754, 4294901760
    %v11025 = vsub.f32 %v3754, %v11024
    %11026 = vmatpush.msra.mxu0 %v11025
    %v11027 = vand.u32 %v3538, 4294901760
    %v11028 = vsub.f32 %v3538, %v11027
    %11029 = vmatpush.msra.mxu0 %v11028
    %v11030 = vand.u32 %v3504, 4294901760
    %v11031 = vsub.f32 %v3504, %v11030
    %11032 = vmatpush.msra.mxu0 %v11031
    %v11033 = vand.u32 %v3470, 4294901760
    %v11034 = vsub.f32 %v3470, %v11033
    %11035 = vmatpush.msra.mxu0 %v11034
    %v11036 = vand.u32 %v3436, 4294901760
    %v11037 = vsub.f32 %v3436, %v11036
    %11038 = vmatpush.msra.mxu0 %v11037
    %v11039 = vand.u32 %v3402, 4294901760
    %v11040 = vsub.f32 %v3402, %v11039
    %11041 = vmatpush.msra.mxu0 %v11040
    %v11042 = vand.u32 %v3368, 4294901760
    %v11043 = vsub.f32 %v3368, %v11042
    %11044 = vmatpush.msra.mxu0 %v11043
    %v11045 = vand.u32 %v3654, 4294901760
    %v11046 = vsub.f32 %v3654, %v11045
    %11047 = vmatmul.f32.gmra.mxu0 %v11046
    %v11048 = vpop.f32.mrf.mxu0
    %v11049 = vadd.f32 %v11013, %v11048
    %11050 = vdwg.mxu0
    %11051 = vmatpush.msra.mxu0 0.0
    %11052 = vmatpush.msra.mxu0 0.0
    %11053 = vmatpush.msra.mxu0 0.0
    %11054 = vmatpush.msra.mxu0 0.0
    %11055 = vmatpush.msra.mxu0 0.0
    %11056 = vmatpush.msra.mxu0 0.0
    %11057 = vmatpush.msra.mxu0 0.0
    %11058 = vmatpush.msra.mxu0 0.0
    %11059 = vmatpush.msra.mxu0 0.0
    %v11060 = vand.u32 %v3754, 4294901760
    %11061 = vmatpush.msra.mxu0 %v11060
    %v11062 = vand.u32 %v3538, 4294901760
    %11063 = vmatpush.msra.mxu0 %v11062
    %v11064 = vand.u32 %v3504, 4294901760
    %11065 = vmatpush.msra.mxu0 %v11064
    %v11066 = vand.u32 %v3470, 4294901760
    %11067 = vmatpush.msra.mxu0 %v11066
    %v11068 = vand.u32 %v3436, 4294901760
    %11069 = vmatpush.msra.mxu0 %v11068
    %v11070 = vand.u32 %v3402, 4294901760
    %11071 = vmatpush.msra.mxu0 %v11070
    %v11072 = vand.u32 %v3368, 4294901760
    %11073 = vmatpush.msra.mxu0 %v11072
    %v11074 = vand.u32 %v3654, 4294901760
    %v11075 = vsub.f32 %v3654, %v11074
    %v11076 = vand.u32 %v11075, 4294901760
    %11077 = vmatmul.f32.gmra.mxu0 %v11076
    %v11078 = vpop.f32.mrf.mxu0
    %v11079 = vadd.f32 %v11049, %v11078
    %11080 = vdwg.mxu0
    %11081 = vmatpush.msra.mxu0 0.0
    %11082 = vmatpush.msra.mxu0 0.0
    %11083 = vmatpush.msra.mxu0 0.0
    %11084 = vmatpush.msra.mxu0 0.0
    %11085 = vmatpush.msra.mxu0 0.0
    %11086 = vmatpush.msra.mxu0 0.0
    %11087 = vmatpush.msra.mxu0 0.0
    %11088 = vmatpush.msra.mxu0 0.0
    %11089 = vmatpush.msra.mxu0 0.0
    %v11090 = vand.u32 %v3754, 4294901760
    %v11091 = vsub.f32 %v3754, %v11090
    %v11092 = vand.u32 %v11091, 4294901760
    %11093 = vmatpush.msra.mxu0 %v11092
    %v11094 = vand.u32 %v3538, 4294901760
    %v11095 = vsub.f32 %v3538, %v11094
    %v11096 = vand.u32 %v11095, 4294901760
    %11097 = vmatpush.msra.mxu0 %v11096
    %v11098 = vand.u32 %v3504, 4294901760
    %v11099 = vsub.f32 %v3504, %v11098
    %v11100 = vand.u32 %v11099, 4294901760
    %11101 = vmatpush.msra.mxu0 %v11100
    %v11102 = vand.u32 %v3470, 4294901760
    %v11103 = vsub.f32 %v3470, %v11102
    %v11104 = vand.u32 %v11103, 4294901760
    %11105 = vmatpush.msra.mxu0 %v11104
    %v11106 = vand.u32 %v3436, 4294901760
    %v11107 = vsub.f32 %v3436, %v11106
    %v11108 = vand.u32 %v11107, 4294901760
    %11109 = vmatpush.msra.mxu0 %v11108
    %v11110 = vand.u32 %v3402, 4294901760
    %v11111 = vsub.f32 %v3402, %v11110
    %v11112 = vand.u32 %v11111, 4294901760
    %11113 = vmatpush.msra.mxu0 %v11112
    %v11114 = vand.u32 %v3368, 4294901760
    %v11115 = vsub.f32 %v3368, %v11114
    %v11116 = vand.u32 %v11115, 4294901760
    %11117 = vmatpush.msra.mxu0 %v11116
    %v11118 = vand.u32 %v3654, 4294901760
    %11119 = vmatmul.f32.gmra.mxu0 %v11118
    %v11120 = vpop.f32.mrf.mxu0
    %v11121 = vadd.f32 %v11079, %v11120
    %11122 = vdwg.mxu0
    %11123 = vmatpush.msra.mxu0 0.0
    %11124 = vmatpush.msra.mxu0 0.0
    %11125 = vmatpush.msra.mxu0 0.0
    %11126 = vmatpush.msra.mxu0 0.0
    %11127 = vmatpush.msra.mxu0 0.0
    %11128 = vmatpush.msra.mxu0 0.0
    %11129 = vmatpush.msra.mxu0 0.0
    %11130 = vmatpush.msra.mxu0 0.0
    %11131 = vmatpush.msra.mxu0 0.0
    %v11132 = vand.u32 %v3754, 4294901760
    %11133 = vmatpush.msra.mxu0 %v11132
    %v11134 = vand.u32 %v3538, 4294901760
    %11135 = vmatpush.msra.mxu0 %v11134
    %v11136 = vand.u32 %v3504, 4294901760
    %11137 = vmatpush.msra.mxu0 %v11136
    %v11138 = vand.u32 %v3470, 4294901760
    %11139 = vmatpush.msra.mxu0 %v11138
    %v11140 = vand.u32 %v3436, 4294901760
    %11141 = vmatpush.msra.mxu0 %v11140
    %v11142 = vand.u32 %v3402, 4294901760
    %11143 = vmatpush.msra.mxu0 %v11142
    %v11144 = vand.u32 %v3368, 4294901760
    %11145 = vmatpush.msra.mxu0 %v11144
    %v11146 = vand.u32 %v3654, 4294901760
    %11147 = vmatmul.f32.gmra.mxu0 %v11146
    %v11148 = vpop.f32.mrf.mxu0
    %v11149 = vadd.f32 %v11121, %v11148
    %11150 = vdwg.mxu0
    %11151 = vmatpush.msra.mxu0 0.0
    %11152 = vmatpush.msra.mxu0 0.0
    %11153 = vmatpush.msra.mxu0 0.0
    %11154 = vmatpush.msra.mxu0 0.0
    %11155 = vmatpush.msra.mxu0 0.0
    %11156 = vmatpush.msra.mxu0 0.0
    %11157 = vmatpush.msra.mxu0 0.0
    %11158 = vmatpush.msra.mxu0 0.0
    %11159 = vmatpush.msra.mxu0 0.0
    %v11160 = vand.u32 %v3757, 4294901760
    %11161 = vmatpush.msra.mxu0 %v11160
    %v11162 = vand.u32 %v3539, 4294901760
    %11163 = vmatpush.msra.mxu0 %v11162
    %v11164 = vand.u32 %v3505, 4294901760
    %11165 = vmatpush.msra.mxu0 %v11164
    %v11166 = vand.u32 %v3471, 4294901760
    %11167 = vmatpush.msra.mxu0 %v11166
    %v11168 = vand.u32 %v3437, 4294901760
    %11169 = vmatpush.msra.mxu0 %v11168
    %v11170 = vand.u32 %v3403, 4294901760
    %11171 = vmatpush.msra.mxu0 %v11170
    %v11172 = vand.u32 %v3369, 4294901760
    %11173 = vmatpush.msra.mxu0 %v11172
    %v11174 = vand.u32 %v3654, 4294901760
    %v11175 = vsub.f32 %v3654, %v11174
    %v11176 = vand.u32 %v11175, 4294901760
    %v11177 = vsub.f32 %v11175, %v11176
    %v11178 = vand.u32 %v11177, 4294901760
    %11179 = vmatmul.f32.gmra.mxu0 %v11178
    %v11180 = vpop.f32.mrf.mxu0
    %v11181 = vadd.f32 %v3617, %v11180
    %11182 = vdwg.mxu0
    %11183 = vmatpush.msra.mxu0 0.0
    %11184 = vmatpush.msra.mxu0 0.0
    %11185 = vmatpush.msra.mxu0 0.0
    %11186 = vmatpush.msra.mxu0 0.0
    %11187 = vmatpush.msra.mxu0 0.0
    %11188 = vmatpush.msra.mxu0 0.0
    %11189 = vmatpush.msra.mxu0 0.0
    %11190 = vmatpush.msra.mxu0 0.0
    %11191 = vmatpush.msra.mxu0 0.0
    %v11192 = vand.u32 %v3757, 4294901760
    %v11193 = vsub.f32 %v3757, %v11192
    %v11194 = vand.u32 %v11193, 4294901760
    %v11195 = vsub.f32 %v11193, %v11194
    %v11196 = vand.u32 %v11195, 4294901760
    %11197 = vmatpush.msra.mxu0 %v11196
    %v11198 = vand.u32 %v3539, 4294901760
    %v11199 = vsub.f32 %v3539, %v11198
    %v11200 = vand.u32 %v11199, 4294901760
    %v11201 = vsub.f32 %v11199, %v11200
    %v11202 = vand.u32 %v11201, 4294901760
    %11203 = vmatpush.msra.mxu0 %v11202
    %v11204 = vand.u32 %v3505, 4294901760
    %v11205 = vsub.f32 %v3505, %v11204
    %v11206 = vand.u32 %v11205, 4294901760
    %v11207 = vsub.f32 %v11205, %v11206
    %v11208 = vand.u32 %v11207, 4294901760
    %11209 = vmatpush.msra.mxu0 %v11208
    %v11210 = vand.u32 %v3471, 4294901760
    %v11211 = vsub.f32 %v3471, %v11210
    %v11212 = vand.u32 %v11211, 4294901760
    %v11213 = vsub.f32 %v11211, %v11212
    %v11214 = vand.u32 %v11213, 4294901760
    %11215 = vmatpush.msra.mxu0 %v11214
    %v11216 = vand.u32 %v3437, 4294901760
    %v11217 = vsub.f32 %v3437, %v11216
    %v11218 = vand.u32 %v11217, 4294901760
    %v11219 = vsub.f32 %v11217, %v11218
    %v11220 = vand.u32 %v11219, 4294901760
    %11221 = vmatpush.msra.mxu0 %v11220
    %v11222 = vand.u32 %v3403, 4294901760
    %v11223 = vsub.f32 %v3403, %v11222
    %v11224 = vand.u32 %v11223, 4294901760
    %v11225 = vsub.f32 %v11223, %v11224
    %v11226 = vand.u32 %v11225, 4294901760
    %11227 = vmatpush.msra.mxu0 %v11226
    %v11228 = vand.u32 %v3369, 4294901760
    %v11229 = vsub.f32 %v3369, %v11228
    %v11230 = vand.u32 %v11229, 4294901760
    %v11231 = vsub.f32 %v11229, %v11230
    %v11232 = vand.u32 %v11231, 4294901760
    %11233 = vmatpush.msra.mxu0 %v11232
    %v11234 = vand.u32 %v3654, 4294901760
    %11235 = vmatmul.f32.gmra.mxu0 %v11234
    %v11236 = vpop.f32.mrf.mxu0
    %v11237 = vadd.f32 %v11181, %v11236
    %11238 = vdwg.mxu0
    %11239 = vmatpush.msra.mxu0 0.0
    %11240 = vmatpush.msra.mxu0 0.0
    %11241 = vmatpush.msra.mxu0 0.0
    %11242 = vmatpush.msra.mxu0 0.0
    %11243 = vmatpush.msra.mxu0 0.0
    %11244 = vmatpush.msra.mxu0 0.0
    %11245 = vmatpush.msra.mxu0 0.0
    %11246 = vmatpush.msra.mxu0 0.0
    %11247 = vmatpush.msra.mxu0 0.0
    %v11248 = vand.u32 %v3757, 4294901760
    %v11249 = vsub.f32 %v3757, %v11248
    %11250 = vmatpush.msra.mxu0 %v11249
    %v11251 = vand.u32 %v3539, 4294901760
    %v11252 = vsub.f32 %v3539, %v11251
    %11253 = vmatpush.msra.mxu0 %v11252
    %v11254 = vand.u32 %v3505, 4294901760
    %v11255 = vsub.f32 %v3505, %v11254
    %11256 = vmatpush.msra.mxu0 %v11255
    %v11257 = vand.u32 %v3471, 4294901760
    %v11258 = vsub.f32 %v3471, %v11257
    %11259 = vmatpush.msra.mxu0 %v11258
    %v11260 = vand.u32 %v3437, 4294901760
    %v11261 = vsub.f32 %v3437, %v11260
    %11262 = vmatpush.msra.mxu0 %v11261
    %v11263 = vand.u32 %v3403, 4294901760
    %v11264 = vsub.f32 %v3403, %v11263
    %11265 = vmatpush.msra.mxu0 %v11264
    %v11266 = vand.u32 %v3369, 4294901760
    %v11267 = vsub.f32 %v3369, %v11266
    %11268 = vmatpush.msra.mxu0 %v11267
    %v11269 = vand.u32 %v3654, 4294901760
    %v11270 = vsub.f32 %v3654, %v11269
    %11271 = vmatmul.f32.gmra.mxu0 %v11270
    %v11272 = vpop.f32.mrf.mxu0
    %v11273 = vadd.f32 %v11237, %v11272
    %11274 = vdwg.mxu0
    %11275 = vmatpush.msra.mxu0 0.0
    %11276 = vmatpush.msra.mxu0 0.0
    %11277 = vmatpush.msra.mxu0 0.0
    %11278 = vmatpush.msra.mxu0 0.0
    %11279 = vmatpush.msra.mxu0 0.0
    %11280 = vmatpush.msra.mxu0 0.0
    %11281 = vmatpush.msra.mxu0 0.0
    %11282 = vmatpush.msra.mxu0 0.0
    %11283 = vmatpush.msra.mxu0 0.0
    %v11284 = vand.u32 %v3757, 4294901760
    %11285 = vmatpush.msra.mxu0 %v11284
    %v11286 = vand.u32 %v3539, 4294901760
    %11287 = vmatpush.msra.mxu0 %v11286
    %v11288 = vand.u32 %v3505, 4294901760
    %11289 = vmatpush.msra.mxu0 %v11288
    %v11290 = vand.u32 %v3471, 4294901760
    %11291 = vmatpush.msra.mxu0 %v11290
    %v11292 = vand.u32 %v3437, 4294901760
    %11293 = vmatpush.msra.mxu0 %v11292
    %v11294 = vand.u32 %v3403, 4294901760
    %11295 = vmatpush.msra.mxu0 %v11294
    %v11296 = vand.u32 %v3369, 4294901760
    %11297 = vmatpush.msra.mxu0 %v11296
    %v11298 = vand.u32 %v3654, 4294901760
    %v11299 = vsub.f32 %v3654, %v11298
    %v11300 = vand.u32 %v11299, 4294901760
    %11301 = vmatmul.f32.gmra.mxu0 %v11300
    %v11302 = vpop.f32.mrf.mxu0
    %v11303 = vadd.f32 %v11273, %v11302
    %11304 = vdwg.mxu0
    %11305 = vmatpush.msra.mxu0 0.0
    %11306 = vmatpush.msra.mxu0 0.0
    %11307 = vmatpush.msra.mxu0 0.0
    %11308 = vmatpush.msra.mxu0 0.0
    %11309 = vmatpush.msra.mxu0 0.0
    %11310 = vmatpush.msra.mxu0 0.0
    %11311 = vmatpush.msra.mxu0 0.0
    %11312 = vmatpush.msra.mxu0 0.0
    %11313 = vmatpush.msra.mxu0 0.0
    %v11314 = vand.u32 %v3757, 4294901760
    %v11315 = vsub.f32 %v3757, %v11314
    %v11316 = vand.u32 %v11315, 4294901760
    %11317 = vmatpush.msra.mxu0 %v11316
    %v11318 = vand.u32 %v3539, 4294901760
    %v11319 = vsub.f32 %v3539, %v11318
    %v11320 = vand.u32 %v11319, 4294901760
    %11321 = vmatpush.msra.mxu0 %v11320
    %v11322 = vand.u32 %v3505, 4294901760
    %v11323 = vsub.f32 %v3505, %v11322
    %v11324 = vand.u32 %v11323, 4294901760
    %11325 = vmatpush.msra.mxu0 %v11324
    %v11326 = vand.u32 %v3471, 4294901760
    %v11327 = vsub.f32 %v3471, %v11326
    %v11328 = vand.u32 %v11327, 4294901760
    %11329 = vmatpush.msra.mxu0 %v11328
    %v11330 = vand.u32 %v3437, 4294901760
    %v11331 = vsub.f32 %v3437, %v11330
    %v11332 = vand.u32 %v11331, 4294901760
    %11333 = vmatpush.msra.mxu0 %v11332
    %v11334 = vand.u32 %v3403, 4294901760
    %v11335 = vsub.f32 %v3403, %v11334
    %v11336 = vand.u32 %v11335, 4294901760
    %11337 = vmatpush.msra.mxu0 %v11336
    %v11338 = vand.u32 %v3369, 4294901760
    %v11339 = vsub.f32 %v3369, %v11338
    %v11340 = vand.u32 %v11339, 4294901760
    %11341 = vmatpush.msra.mxu0 %v11340
    %v11342 = vand.u32 %v3654, 4294901760
    %11343 = vmatmul.f32.gmra.mxu0 %v11342
    %v11344 = vpop.f32.mrf.mxu0
    %v11345 = vadd.f32 %v11303, %v11344
    %11346 = vdwg.mxu0
    %11347 = vmatpush.msra.mxu0 0.0
    %11348 = vmatpush.msra.mxu0 0.0
    %11349 = vmatpush.msra.mxu0 0.0
    %11350 = vmatpush.msra.mxu0 0.0
    %11351 = vmatpush.msra.mxu0 0.0
    %11352 = vmatpush.msra.mxu0 0.0
    %11353 = vmatpush.msra.mxu0 0.0
    %11354 = vmatpush.msra.mxu0 0.0
    %11355 = vmatpush.msra.mxu0 0.0
    %v11356 = vand.u32 %v3757, 4294901760
    %11357 = vmatpush.msra.mxu0 %v11356
    %v11358 = vand.u32 %v3539, 4294901760
    %11359 = vmatpush.msra.mxu0 %v11358
    %v11360 = vand.u32 %v3505, 4294901760
    %11361 = vmatpush.msra.mxu0 %v11360
    %v11362 = vand.u32 %v3471, 4294901760
    %11363 = vmatpush.msra.mxu0 %v11362
    %v11364 = vand.u32 %v3437, 4294901760
    %11365 = vmatpush.msra.mxu0 %v11364
    %v11366 = vand.u32 %v3403, 4294901760
    %11367 = vmatpush.msra.mxu0 %v11366
    %v11368 = vand.u32 %v3369, 4294901760
    %11369 = vmatpush.msra.mxu0 %v11368
    %v11370 = vand.u32 %v3654, 4294901760
    %11371 = vmatmul.f32.gmra.mxu0 %v11370
    %v11372 = vpop.f32.mrf.mxu0
    %v11373 = vadd.f32 %v11345, %v11372
    %11374 = vdwg.mxu0
    %v11375 = vmax.f32 %v3981, %v4877
    %v11376 = vmax.f32 %v4205, %v5101
    %v11377 = vmax.f32 %v4429, %v5325
    %v11378 = vmax.f32 %v4653, %v5549
    %v11379 = vmax.f32 %v11375, %v5773
    %v11380 = vmax.f32 %v11376, %v5997
    %v11381 = vmax.f32 %v11377, %v6221
    %v11382 = vmax.f32 %v11378, %v6445
    %v11383 = vsub.f32 %v3981, %v11379
    %v11384 = vsub.f32 %v4205, %v11380
    %v11385 = vsub.f32 %v4429, %v11381
    %v11386 = vsub.f32 %v4653, %v11382
    %v11387 = vmul.f32 %v11383, 1.442695
    %v11388 = vpow.pop %v11387
    %v11389 = vmul.f32 %v11384, 1.442695
    %v11390 = vpow.pop %v11389
    %v11391 = vmul.f32 %v11385, 1.442695
    %v11392 = vpow.pop %v11391
    %v11393 = vmul.f32 %v11386, 1.442695
    %v11394 = vpow.pop %v11393
    %v11395 = vsub.f32 %v4877, %v11379
    %v11396 = vsub.f32 %v5101, %v11380
    %v11397 = vsub.f32 %v5325, %v11381
    %v11398 = vsub.f32 %v5549, %v11382
    %v11399 = vmul.f32 %v11395, 1.442695
    %v11400 = vpow.pop %v11399
    %v11401 = vmul.f32 %v11396, 1.442695
    %v11402 = vpow.pop %v11401
    %v11403 = vmul.f32 %v11397, 1.442695
    %v11404 = vpow.pop %v11403
    %v11405 = vmul.f32 %v11398, 1.442695
    %v11406 = vpow.pop %v11405
    %v11407 = vsub.f32 %v5773, %v11379
    %v11408 = vsub.f32 %v5997, %v11380
    %v11409 = vsub.f32 %v6221, %v11381
    %v11410 = vsub.f32 %v6445, %v11382
    %v11411 = vmul.f32 %v11407, 1.442695
    %v11412 = vpow.pop %v11411
    %v11413 = vmul.f32 %v11408, 1.442695
    %v11414 = vpow.pop %v11413
    %v11415 = vmul.f32 %v11409, 1.442695
    %v11416 = vpow.pop %v11415
    %v11417 = vmul.f32 %v11410, 1.442695
    %v11418 = vpow.pop %v11417
    %v11419 = vadd.f32 %v11388, %v11400
    %v11420 = vadd.f32 %v11390, %v11402
    %v11421 = vadd.f32 %v11392, %v11404
    %v11422 = vadd.f32 %v11394, %v11406
    %v11423 = vadd.f32 %v11419, %v11412
    %v11424 = vadd.f32 %v11420, %v11414
    %v11425 = vadd.f32 %v11421, %v11416
    %v11426 = vadd.f32 %v11422, %v11418
    %v11427 = vrcp.pop %v11423
    %v11428 = vmul.f32 %v11423, %v11427
    %v11429 = vsub.f32 1.0, %v11428
    %v11430 = vmul.f32 %v11427, %v11429
    %v11431 = vadd.f32 %v11427, %v11430
    %vm11432 = vweird.f32 %v11423
    %vm11433 = vweird.f32 %v11427
    %vm11434 = vmor %vm11432, %vm11433
    %v11435 = vsel %vm11434, %v11427, %v11431
    %v11436 = vand.u32 2147483647, %v11423
    %vm11437 = vcmp.eq.f32.partialorder %v11436, 8.507059e+37
    %v11438 = vand.u32 %v11423, 2147483648
    %v11439 = vor.u32 1.1754944e-38, %v11438
    %v11440 = vsel %vm11437, %v11439, %v11435
    %v11441 = vmul.f32 1.0, %v11440
    %v11442 = vrcp.pop %v11424
    %v11443 = vmul.f32 %v11424, %v11442
    %v11444 = vsub.f32 1.0, %v11443
    %v11445 = vmul.f32 %v11442, %v11444
    %v11446 = vadd.f32 %v11442, %v11445
    %vm11447 = vweird.f32 %v11424
    %vm11448 = vweird.f32 %v11442
    %vm11449 = vmor %vm11447, %vm11448
    %v11450 = vsel %vm11449, %v11442, %v11446
    %v11451 = vand.u32 2147483647, %v11424
    %vm11452 = vcmp.eq.f32.partialorder %v11451, 8.507059e+37
    %v11453 = vand.u32 %v11424, 2147483648
    %v11454 = vor.u32 1.1754944e-38, %v11453
    %v11455 = vsel %vm11452, %v11454, %v11450
    %v11456 = vmul.f32 1.0, %v11455
    %v11457 = vrcp.pop %v11425
    %v11458 = vmul.f32 %v11425, %v11457
    %v11459 = vsub.f32 1.0, %v11458
    %v11460 = vmul.f32 %v11457, %v11459
    %v11461 = vadd.f32 %v11457, %v11460
    %vm11462 = vweird.f32 %v11425
    %vm11463 = vweird.f32 %v11457
    %vm11464 = vmor %vm11462, %vm11463
    %v11465 = vsel %vm11464, %v11457, %v11461
    %v11466 = vand.u32 2147483647, %v11425
    %vm11467 = vcmp.eq.f32.partialorder %v11466, 8.507059e+37
    %v11468 = vand.u32 %v11425, 2147483648
    %v11469 = vor.u32 1.1754944e-38, %v11468
    %v11470 = vsel %vm11467, %v11469, %v11465
    %v11471 = vmul.f32 1.0, %v11470
    %v11472 = vrcp.pop %v11426
    %v11473 = vmul.f32 %v11426, %v11472
    %v11474 = vsub.f32 1.0, %v11473
    %v11475 = vmul.f32 %v11472, %v11474
    %v11476 = vadd.f32 %v11472, %v11475
    %vm11477 = vweird.f32 %v11426
    %vm11478 = vweird.f32 %v11472
    %vm11479 = vmor %vm11477, %vm11478
    %v11480 = vsel %vm11479, %v11472, %v11476
    %v11481 = vand.u32 2147483647, %v11426
    %vm11482 = vcmp.eq.f32.partialorder %v11481, 8.507059e+37
    %v11483 = vand.u32 %v11426, 2147483648
    %v11484 = vor.u32 1.1754944e-38, %v11483
    %v11485 = vsel %vm11482, %v11484, %v11480
    %v11486 = vmul.f32 1.0, %v11485
    %v11487 = vmul.f32 %v11388, %v11441
    %v11488 = vmul.f32 %v11390, %v11456
    %v11489 = vmul.f32 %v11392, %v11471
    %v11490 = vmul.f32 %v11394, %v11486
    %11491 = vst [vmem:[#allocation5] sm:$0xff] %v11487
    %11492 = vst [vmem:[#allocation5 + $0x8] sm:$0xff] %v11488
    %11493 = vst [vmem:[#allocation5 + $0x10] sm:$0xff] %v11489
    %11494 = vst [vmem:[#allocation5 + $0x18] sm:$0xff] %v11490
    %v11495 = vmul.f32 %v11400, %v11441
    %v11496 = vmul.f32 %v11402, %v11456
    %v11497 = vmul.f32 %v11404, %v11471
    %v11498 = vmul.f32 %v11406, %v11486
    %11499 = vst [vmem:[#allocation5 + $0x20] sm:$0xff] %v11495
    %11500 = vst [vmem:[#allocation5 + $0x28] sm:$0xff] %v11496
    %11501 = vst [vmem:[#allocation5 + $0x30] sm:$0xff] %v11497
    %11502 = vst [vmem:[#allocation5 + $0x38] sm:$0xff] %v11498
    %v11503 = vmul.f32 %v11412, %v11441
    %v11504 = vmul.f32 %v11414, %v11456
    %v11505 = vmul.f32 %v11416, %v11471
    %v11506 = vmul.f32 %v11418, %v11486
    %11507 = vst [vmem:[#allocation5 + $0x40] sm:$0xff] %v11503
    %11508 = vst [vmem:[#allocation5 + $0x48] sm:$0xff] %v11504
    %11509 = vst [vmem:[#allocation5 + $0x50] sm:$0xff] %v11505
    %11510 = vst [vmem:[#allocation5 + $0x58] sm:$0xff] %v11506
    %11511 = vst [vmem:[#allocation5 + $0x60] sm:$0xff] %v6669
    %11512 = vst [vmem:[#allocation5 + $0x68] sm:$0xff] %v6893
    %11513 = vst [vmem:[#allocation5 + $0x70] sm:$0xff] %v7117
    %11514 = vst [vmem:[#allocation5 + $0x78] sm:$0xff] %v7341
    %11515 = vst [vmem:[#allocation5 + $0x80] sm:$0xff] %v7565
    %11516 = vst [vmem:[#allocation5 + $0x88] sm:$0xff] %v7789
    %11517 = vst [vmem:[#allocation5 + $0x90] sm:$0xff] %v8013
    %11518 = vst [vmem:[#allocation5 + $0x98] sm:$0xff] %v8237
    %11519 = vst [vmem:[#allocation5 + $0xe0] sm:$0xff] %v10253
    %11520 = vst [vmem:[#allocation5 + $0xe8] sm:$0xff] %v10477
    %11521 = vst [vmem:[#allocation5 + $0xf0] sm:$0xff] %v10701
    %v11522 = vmul.f32 %v8461, 0.5
    %v11523 = vmul.f32 %v8685, 0.5
    %v11524 = vmul.f32 %v8909, 0.5
    %v11525 = vmul.f32 %v9133, 0.5
    %v11526 = vmul.f32 %v9357, 0.5
    %v11527 = vmul.f32 %v9581, 0.5
    %v11528 = vmul.f32 %v9805, 0.5
    %v11529 = vmul.f32 %v10029, 0.5
    %v11530 = vtanh.pop %v11522
    %v11531 = vtanh.pop %v11523
    %v11532 = vtanh.pop %v11524
    %v11533 = vtanh.pop %v11525
    %v11534 = vtanh.pop %v11526
    %v11535 = vtanh.pop %v11527
    %v11536 = vtanh.pop %v11528
    %v11537 = vtanh.pop %v11529
    %v11538 = vadd.f32 %v11530, 1.0
    %v11539 = vadd.f32 %v11531, 1.0
    %v11540 = vadd.f32 %v11532, 1.0
    %v11541 = vadd.f32 %v11533, 1.0
    %v11542 = vadd.f32 %v11534, 1.0
    %v11543 = vadd.f32 %v11535, 1.0
    %v11544 = vadd.f32 %v11536, 1.0
    %v11545 = vadd.f32 %v11537, 1.0
    %v11546 = vmul.f32 %v11538, 0.4
    %v11547 = vmul.f32 %v11539, 0.4
    %v11548 = vmul.f32 %v11540, 0.4
    %v11549 = vmul.f32 %v11541, 0.4
    %v11550 = vmul.f32 %v11542, 0.4
    %v11551 = vmul.f32 %v11543, 0.4
    %v11552 = vmul.f32 %v11544, 0.4
    %v11553 = vmul.f32 %v11545, 0.4
    %11554 = vst [vmem:[#allocation5 + $0xa0] sm:$0xff] %v11546
    %11555 = vst [vmem:[#allocation5 + $0xa8] sm:$0xff] %v11547
    %11556 = vst [vmem:[#allocation5 + $0xb0] sm:$0xff] %v11548
    %11557 = vst [vmem:[#allocation5 + $0xb8] sm:$0xff] %v11549
    %11558 = vst [vmem:[#allocation5 + $0xc0] sm:$0xff] %v11550
    %11559 = vst [vmem:[#allocation5 + $0xc8] sm:$0xff] %v11551
    %11560 = vst [vmem:[#allocation5 + $0xd0] sm:$0xff] %v11552
    %11561 = vst [vmem:[#allocation5 + $0xd8] sm:$0xff] %v11553
    %v11562 = vmax.f32 %v10925, 0.0
    %v11563 = vmax.f32 %v11149, 0.0
    %v11564 = vmax.f32 %v11373, 0.0
    %v11565 = vand.u32 2147483647, %v10925
    %v11566 = vand.u32 2147483647, %v11149
    %v11567 = vand.u32 2147483647, %v11373
    %v11568 = vsub.f32 0.0, %v11565
    %v11569 = vsub.f32 0.0, %v11566
    %v11570 = vsub.f32 0.0, %v11567
    %v11571 = vmul.f32 %v11568, 1.442695
    %v11572 = vpow.pop %v11571
    %v11573 = vmul.f32 %v11569, 1.442695
    %v11574 = vpow.pop %v11573
    %v11575 = vmul.f32 %v11570, 1.442695
    %v11576 = vpow.pop %v11575
    %v11577 = vadd.f32 %v11572, 1.0
    %v11578 = vadd.f32 %v11574, 1.0
    %v11579 = vadd.f32 %v11576, 1.0
    %v11580 = vlog2.pop %v11577
    %v11581 = vmul.f32 %v11580, 0.6931472
    %v11582 = vlog2.pop %v11578
    %v11583 = vmul.f32 %v11582, 0.6931472
    %v11584 = vlog2.pop %v11579
    %v11585 = vmul.f32 %v11584, 0.6931472
    %v11586 = vadd.f32 %v11562, %v11581
    %v11587 = vadd.f32 %v11563, %v11583
    %v11588 = vadd.f32 %v11564, %v11585
    %11589 = vst [vmem:[#allocation5 + $0xf8] sm:$0xff] %v11586
    %11590 = vst [vmem:[#allocation5 + $0x100] sm:$0xff] %v11587
    %11591 = vst [vmem:[#allocation5 + $0x108] sm:$0xff] %v11588
    // Predicated region
    $region82: #{tpu_custom_call.1} parent=1 // pred_check
      _
    $region83: #{tpu_custom_call.1} parent=1 // pred_check_branch
      %11593 = sbr.rel (0) target = $region85
    $region84: #{tpu_custom_call.1} parent=1 // pred_region
      %11595 = vsyncadd [#allocation4], 0
      %s11597 = sshll.u32 [#allocation5], 4
      %s11598 = int_to_ptr.vmem [resolvable:$true] %s11597
      %s11599 = sshll.u32 %s19, 4
      %s11600 = int_to_ptr.hbm [resolvable:$true] %s11599
      %11602 = dma.vmem_to_hbm [thread:$0]  %s11598, 4480, %s11600, [#allocation4]
    $region85: #{tpu_custom_call.1} parent=1 // pred_fallthru
      _
    // Predicated region
    $region86: #{tpu_custom_call.1} parent=1 // pred_check
      _
    $region87: #{tpu_custom_call.1} parent=1 // pred_check_branch
      %11604 = sbr.rel (0) target = $region89
    $region88: #{tpu_custom_call.1} parent=1 // pred_region
      %11606 = dma.done [#allocation4], 4480
    $region89: #{tpu_custom_call.1} parent=1 // pred_fallthru
      _
    %11607 = vsyncpa [#allocation3], 1
    %11608 = vsyncpa [#allocation4], 1

</llo_original>
